<compile_context>
chip_gen: v7x
topology: tpu7x:2x2x1
jax: 0.10.0
libtpu: 0.0.40
codegen_flags: <defaults>
</compile_context>

<pallas_src>
import functools

import jax
import jax.numpy as jnp
from jax.experimental import pallas as pl
from jax.experimental.pallas import tpu as pltpu


# --------------------------------------------------------------------------
# Kernel bodies
# --------------------------------------------------------------------------

def _bdot(a, b):
    """Batched 'gather' matmul  (P, M, K) x (P, K, N) -> (P, M, N) in f32.

    Precision.HIGHEST splits the f32 data operand into exact bf16 limbs on the
    MXU, so a one-hot contraction reproduces the selected element bit-exactly.
    """
    return jax.lax.dot_general(
        a, b,
        dimension_numbers=(((2,), (1,)), ((0,), (0,))),
        preferred_element_type=jnp.float32,
        precision=jax.lax.Precision.HIGHEST)


def _s3_max_kernel(x_ref, pw0_ref, pw1_ref, q0_ref, q1_ref, o_ref):
    """Fused pad(0,1,0,1) + 2x2/stride-1 max pool + stochastic per-cell pick.

    x_ref:  (P, H, W) block of image planes.
    pw0/pw1: (W, n_w) one-hot column selectors for w_idx[ow] and w_idx[ow]+1
             (an index == W selects nothing -> 0, i.e. the pad value).
    q0/q1:   (n_h, H) one-hot row selectors for h_idx[oh] and h_idx[oh]+1.
    """
    x = x_ref[...].astype(jnp.float32)                                # (P, H, W)
    p = x.shape[0]
    pw0 = jnp.broadcast_to(pw0_ref[...], (p,) + tuple(pw0_ref.shape))  # (P, W, n_w)
    pw1 = jnp.broadcast_to(pw1_ref[...], (p,) + tuple(pw1_ref.shape))
    q0 = jnp.broadcast_to(q0_ref[...], (p,) + tuple(q0_ref.shape))     # (P, n_h, H)
    q1 = jnp.broadcast_to(q1_ref[...], (p,) + tuple(q1_ref.shape))

    # Horizontal max over columns {w_idx, w_idx+1} (right pad == 0).
    c = jnp.maximum(_bdot(x, pw0), _bdot(x, pw1))                      # (P, H, n_w)
    # Vertical max over rows {h_idx, h_idx+1} (bottom pad == 0).
    o = jnp.maximum(_bdot(q0, c), _bdot(q1, c))                        # (P, n_h, n_w)
    o_ref[...] = o.astype(o_ref.dtype)


def _avg_kernel(x_ref, pw_ref, q_ref, o_ref):
    """avg_pool2d(kernel=2, stride=2): two 'two-hot' contractions, scaled 0.25."""
    x = x_ref[...].astype(jnp.float32)                                 # (P, H, W)
    p = x.shape[0]
    pw = jnp.broadcast_to(pw_ref[...], (p,) + tuple(pw_ref.shape))     # (P, W, n_w)
    q = jnp.broadcast_to(q_ref[...], (p,) + tuple(q_ref.shape))        # (P, n_h, H)
    s = _bdot(q, _bdot(x, pw))                                         # 2x2 block sums
    o_ref[...] = (s * 0.25).astype(o_ref.dtype)


# --------------------------------------------------------------------------
# Tiling / launch helpers
# --------------------------------------------------------------------------

def _vmem_limit_bytes():
    """Scoped VMEM limit safe on every generation (v7x has only 64 MiB)."""
    try:
        phys = pltpu.get_tpu_info().vmem_capacity_bytes
    except Exception:  # interpret mode / older runtimes
        phys = 64 << 20
    return int(min(48 << 20, max(16 << 20, phys * 3 // 4)))


def _pick_block_planes(nc, h, w, n_h, n_w, dtype,
                       target_bytes=4 << 20, work_vmem_bytes=32 << 20):
    """Image planes per grid step.

    Sized from the lane-padded VMEM footprint so the double-buffered in+out
    working set stays well inside the VMEM budget, capped to bound the
    batched-matmul unrolling, and clamped so there are always >= 2 grid steps
    (lets the "parallel" plane axis shard across v7x's two TensorCores).
    """
    item = jnp.dtype(dtype).itemsize
    rup = lambda a, m: ((a + m - 1) // m) * m
    in_plane = rup(h, 8) * rup(w, 128) * item         # VMEM tile footprint
    out_plane = rup(n_h, 8) * rup(n_w, 128) * item
    per_plane = 2 * (in_plane + out_plane)            # double-buffered in + out
    p = min(target_bytes // in_plane, work_vmem_bytes // per_plane)
    p = min(p, 64)                                    # bound per-step unroll / live values
    if nc >= 2:
        p = min(p, pl.cdiv(nc, 2))                    # >= 2 grid steps (dual-TC v7x)
    return int(max(1, min(p, nc)))


def _run_pool(x, kernel, selectors, n_h, n_w):
    """Launch one fused pooling kernel over (N*C, H, W) plane blocks."""
    n, c, h, w = x.shape
    nc = n * c
    x3 = x.reshape(nc, h, w)                          # free, contiguous view of NCHW
    p_blk = _pick_block_planes(nc, h, w, n_h, n_w, x.dtype)
    grid = (pl.cdiv(nc, p_blk),)                      # ragged tail handled by Pallas

    sel_specs = [pl.BlockSpec(tuple(s.shape), lambda i: (0, 0)) for s in selectors]
    out = pl.pallas_call(
        kernel,
        out_shape=jax.ShapeDtypeStruct((nc, n_h, n_w), x.dtype),
        grid=grid,
        in_specs=[pl.BlockSpec((p_blk, h, w), lambda i: (i, 0, 0))] + sel_specs,
        out_specs=pl.BlockSpec((p_blk, n_h, n_w), lambda i: (i, 0, 0)),
        compiler_params=pltpu.CompilerParams(
            dimension_semantics=("parallel",),
            vmem_limit_bytes=_vmem_limit_bytes(),
        ),
    )(x3, *selectors)
    return out.reshape(n, c, n_h, n_w)


# --------------------------------------------------------------------------
# Public op
# --------------------------------------------------------------------------

def _sample_indices(key, h, w, grid_size, training):
    """Per-grid-cell row/col indices, matching the PyTorch module's sampling."""
    n_h, n_w = h // grid_size, w // grid_size
    offs_h = grid_size * jnp.arange(n_h, dtype=jnp.int32)
    offs_w = grid_size * jnp.arange(n_w, dtype=jnp.int32)
    max_h = jnp.where(jnp.arange(n_h) + 1 < n_h, grid_size, h - offs_h).astype(jnp.float32)
    max_w = jnp.where(jnp.arange(n_w) + 1 < n_w, grid_size, w - offs_w).astype(jnp.float32)
    if training:
        kh, kw = jax.random.split(key)
        rand_h = jnp.floor(jax.random.uniform(kh, (n_h,)) * max_h).astype(jnp.int32)
        rand_w = jnp.floor(jax.random.uniform(kw, (n_w,)) * max_w).astype(jnp.int32)
    else:
        rand_h = jnp.zeros((n_h,), jnp.int32)
        rand_w = jnp.zeros((n_w,), jnp.int32)
    return rand_h + offs_h, rand_w + offs_w


@functools.partial(jax.jit,
                   static_argnames=("training", "s3pool_flag", "kernel_size", "stride"))
def stochastic_pool2d(x, key=None, *, training=True, s3pool_flag=False,
                      kernel_size=2, stride=2):
    """JAX/Pallas equivalent of StochasticPool2d.forward (NCHW input)."""
    if kernel_size != 2 or stride != 2:
        # TODO(synk): general kernel_size/stride needs wider selector windows.
        raise NotImplementedError("only kernel_size=stride=2 is supported")
    n, c, h, w = x.shape
    if h < 2 or w < 2:
        raise ValueError("spatial dims must be >= 2")
    n_h, n_w = h // 2, w // 2
    f32 = jnp.float32
    ha = jnp.arange(h, dtype=jnp.int32)
    wa = jnp.arange(w, dtype=jnp.int32)

    if s3pool_flag or training:
        if training and key is None:
            raise ValueError("training=True requires a PRNG key")
        h_idx, w_idx = _sample_indices(key, h, w, kernel_size, training)
        # One-hot selectors; an out-of-range index (== W or == H) yields an
        # all-zero column, i.e. the ConstantPad2d((0,1,0,1), 0) pad value.
        pw0 = (wa[:, None] == w_idx[None, :]).astype(f32)          # (W, n_w)
        pw1 = (wa[:, None] == (w_idx + 1)[None, :]).astype(f32)
        q0 = (h_idx[:, None] == ha[None, :]).astype(f32)           # (n_h, H)
        q1 = ((h_idx + 1)[:, None] == ha[None, :]).astype(f32)
        return _run_pool(x, _s3_max_kernel, (pw0, pw1, q0, q1), n_h, n_w)
    else:
        oh = jnp.arange(n_h, dtype=jnp.int32)
        ow = jnp.arange(n_w, dtype=jnp.int32)
        pw = ((wa[:, None] == 2 * ow[None, :]) |
              (wa[:, None] == 2 * ow[None, :] + 1)).astype(f32)    # (W, n_w) two-hot
        q = ((ha[None, :] == 2 * oh[:, None]) |
             (ha[None, :] == 2 * oh[:, None] + 1)).astype(f32)     # (n_h, H) two-hot
        return _run_pool(x, _avg_kernel, (pw, q), n_h, n_w)


# --------------------------------------------------------------------------
# Pure-JAX references and self-test
# --------------------------------------------------------------------------

def _ref_s3(x, h_idx, w_idx):
    """ConstantPad2d((0,1,0,1),0) + max_pool2d(2, stride=1) + index."""
    xp = jnp.pad(x, ((0, 0), (0, 0), (0, 1), (0, 1)))
    m = jnp.maximum(
        jnp.maximum(xp[:, :, :-1, :-1], xp[:, :, 1:, :-1]),
        jnp.maximum(xp[:, :, :-1, 1:], xp[:, :, 1:, 1:]))
    return jnp.take(jnp.take(m, h_idx, axis=2), w_idx, axis=3)


def _ref_avg(x):
    n, c, h, w = x.shape
    n_h, n_w = h // 2, w // 2
    return x[:, :, :2 * n_h, :2 * n_w].reshape(n, c, n_h, 2, n_w, 2).mean(axis=(3, 5))


if __name__ == "__main__":
    key = jax.random.PRNGKey(0)
    k_data, k_pool, k_data2, k_data3 = jax.random.split(key, 4)

    x = jax.random.normal(k_data, (2, 4, 16, 16), dtype=jnp.float32)

    # 1) Training / S3 path: fused pad + stride-1 max + stochastic grid sample.
    y_train = stochastic_pool2d(x, k_pool, training=True, s3pool_flag=False)
    jax.block_until_ready(y_train)
    assert y_train.shape == (2, 4, 8, 8), y_train.shape
    h_idx, w_idx = _sample_indices(k_pool, 16, 16, 2, True)
    assert jnp.allclose(y_train, _ref_s3(x, h_idx, w_idx), atol=1e-5, rtol=1e-5), \
        "S3 training mismatch"

    # 2) Deterministic S3 path (s3pool_flag=True, eval): cell-origin indices.
    y_s3_eval = stochastic_pool2d(x, training=False, s3pool_flag=True)
    jax.block_until_ready(y_s3_eval)
    h0, w0 = _sample_indices(None, 16, 16, 2, False)
    assert jnp.allclose(y_s3_eval, _ref_s3(x, h0, w0), atol=1e-5, rtol=1e-5), \
        "S3 eval mismatch"

    # 3) Eval path: avg_pool2d(kernel=2, stride=2).
    y_eval = stochastic_pool2d(x, training=False, s3pool_flag=False)
    jax.block_until_ready(y_eval)
    assert jnp.allclose(y_eval, _ref_avg(x), atol=1e-5, rtol=1e-5), "avg-pool mismatch"

    # 4) Ragged N*C (exercises the pl.cdiv tail handling).
    x2 = jax.random.normal(k_data2, (1, 3, 16, 16), dtype=jnp.float32)
    y2 = stochastic_pool2d(x2, training=False, s3pool_flag=True)
    jax.block_until_ready(y2)
    assert jnp.allclose(y2, _ref_s3(x2, h0, w0), atol=1e-5, rtol=1e-5), \
        "ragged-NC S3 mismatch"

    # 5) Odd spatial dims (last grid cell is wider, per the PyTorch module).
    x3 = jax.random.normal(k_data3, (1, 2, 9, 9), dtype=jnp.float32)
    y3 = stochastic_pool2d(x3, training=False, s3pool_flag=True)
    jax.block_until_ready(y3)
    assert y3.shape == (1, 2, 4, 4), y3.shape
    h9, w9 = _sample_indices(None, 9, 9, 2, False)
    assert jnp.allclose(y3, _ref_s3(x3, h9, w9), atol=1e-5, rtol=1e-5), \
        "odd-dim S3 mismatch"
    y3a = stochastic_pool2d(x3, training=False, s3pool_flag=False)
    jax.block_until_ready(y3a)
    assert jnp.allclose(y3a, _ref_avg(x3), atol=1e-5, rtol=1e-5), "odd-dim avg mismatch"

    print("KERNEL_OK")
</pallas_src>

<mosaic_0001>
module attributes {stable_mosaic.version = 11 : i64} {
  func.func @_s3_max_kernel(%arg0: i32, %arg1: memref<4x16x16xf32, #tpu.memory_space<vmem>>, %arg2: memref<16x8xf32, #tpu.memory_space<vmem>>, %arg3: memref<16x8xf32, #tpu.memory_space<vmem>>, %arg4: memref<8x16xf32, #tpu.memory_space<vmem>>, %arg5: memref<8x16xf32, #tpu.memory_space<vmem>>, %arg6: memref<4x8x8xf32, #tpu.memory_space<vmem>>) attributes {dimension_semantics = [#tpu.dimension_semantics<parallel>], iteration_bounds = array<i64: 2>, scalar_prefetch = 0 : i64, scratch_operands = 0 : i64, tpu.core_type = #tpu.core_type<tc>, window_params = [{transform_indices = @transform_0, window_bounds = array<i64: 4, 16, 16>}, {pipeline_mode = #tpu.pipeline_mode<synchronous>, transform_indices = @transform_1, window_bounds = array<i64: 16, 8>}, {pipeline_mode = #tpu.pipeline_mode<synchronous>, transform_indices = @transform_2, window_bounds = array<i64: 16, 8>}, {pipeline_mode = #tpu.pipeline_mode<synchronous>, transform_indices = @transform_3, window_bounds = array<i64: 8, 16>}, {pipeline_mode = #tpu.pipeline_mode<synchronous>, transform_indices = @transform_4, window_bounds = array<i64: 8, 16>}, {transform_indices = @transform_5, window_bounds = array<i64: 4, 8, 8>}]} {
    %c0 = arith.constant 0 : index
    %c0_0 = arith.constant 0 : index
    %c0_1 = arith.constant 0 : index
    %0 = vector.load %arg1[%c0, %c0_0, %c0_1] : memref<4x16x16xf32, #tpu.memory_space<vmem>>, vector<4x16x16xf32>
    %c0_2 = arith.constant 0 : index
    %c0_3 = arith.constant 0 : index
    %1 = vector.load %arg2[%c0_2, %c0_3] : memref<16x8xf32, #tpu.memory_space<vmem>>, vector<16x8xf32>
    %2 = vector.shape_cast %1 : vector<16x8xf32> to vector<1x16x8xf32>
    %3 = vector.broadcast %2 : vector<1x16x8xf32> to vector<4x16x8xf32>
    %c0_4 = arith.constant 0 : index
    %c0_5 = arith.constant 0 : index
    %4 = vector.load %arg3[%c0_4, %c0_5] : memref<16x8xf32, #tpu.memory_space<vmem>>, vector<16x8xf32>
    %5 = vector.shape_cast %4 : vector<16x8xf32> to vector<1x16x8xf32>
    %6 = vector.broadcast %5 : vector<1x16x8xf32> to vector<4x16x8xf32>
    %c0_6 = arith.constant 0 : index
    %c0_7 = arith.constant 0 : index
    %7 = vector.load %arg4[%c0_6, %c0_7] : memref<8x16xf32, #tpu.memory_space<vmem>>, vector<8x16xf32>
    %8 = vector.shape_cast %7 : vector<8x16xf32> to vector<1x8x16xf32>
    %9 = vector.broadcast %8 : vector<1x8x16xf32> to vector<4x8x16xf32>
    %c0_8 = arith.constant 0 : index
    %c0_9 = arith.constant 0 : index
    %10 = vector.load %arg5[%c0_8, %c0_9] : memref<8x16xf32, #tpu.memory_space<vmem>>, vector<8x16xf32>
    %11 = vector.shape_cast %10 : vector<8x16xf32> to vector<1x8x16xf32>
    %12 = vector.broadcast %11 : vector<1x8x16xf32> to vector<4x8x16xf32>
    %cst = arith.constant dense<0.000000e+00> : vector<4x16x8xf32>
    %13 = tpu.matmul %0, %3, %cst {dimension_numbers = #tpu.dot_dimension_numbers<[2], [1], [1], [2], [0, 0, 0, 1, 1, 2], [0], [0]>, precision = #tpu.contract_precision<fp32>} : vector<4x16x16xf32>, vector<4x16x8xf32>, vector<4x16x8xf32> -> vector<4x16x8xf32>
    %cst_10 = arith.constant dense<0.000000e+00> : vector<4x16x8xf32>
    %14 = tpu.matmul %0, %6, %cst_10 {dimension_numbers = #tpu.dot_dimension_numbers<[2], [1], [1], [2], [0, 0, 0, 1, 1, 2], [0], [0]>, precision = #tpu.contract_precision<fp32>} : vector<4x16x16xf32>, vector<4x16x8xf32>, vector<4x16x8xf32> -> vector<4x16x8xf32>
    %15 = arith.maximumf %13, %14 : vector<4x16x8xf32>
    %cst_11 = arith.constant dense<0.000000e+00> : vector<4x8x8xf32>
    %16 = tpu.matmul %9, %15, %cst_11 {dimension_numbers = #tpu.dot_dimension_numbers<[2], [1], [1], [2], [0, 0, 0, 1, 1, 2], [0], [0]>, precision = #tpu.contract_precision<fp32>} : vector<4x8x16xf32>, vector<4x16x8xf32>, vector<4x8x8xf32> -> vector<4x8x8xf32>
    %cst_12 = arith.constant dense<0.000000e+00> : vector<4x8x8xf32>
    %17 = tpu.matmul %12, %15, %cst_12 {dimension_numbers = #tpu.dot_dimension_numbers<[2], [1], [1], [2], [0, 0, 0, 1, 1, 2], [0], [0]>, precision = #tpu.contract_precision<fp32>} : vector<4x8x16xf32>, vector<4x16x8xf32>, vector<4x8x8xf32> -> vector<4x8x8xf32>
    %18 = arith.maximumf %16, %17 : vector<4x8x8xf32>
    %c0_13 = arith.constant 0 : index
    %c0_14 = arith.constant 0 : index
    %c0_15 = arith.constant 0 : index
    %19 = vector.load %arg6[%c0_13, %c0_14, %c0_15] : memref<4x8x8xf32, #tpu.memory_space<vmem>>, vector<4x8x8xf32>
    tpu.vector_store %arg6[%c0_13, %c0_14, %c0_15], %18 {strides = array<i32>} : memref<4x8x8xf32, #tpu.memory_space<vmem>>, vector<4x8x8xf32>,
    return
  }
  func.func @transform_0(%arg0: i32) -> (i32, i32, i32) {
    %c0_i32 = arith.constant 0 : i32
    %c0_i32_0 = arith.constant 0 : i32
    %c0_i32_1 = arith.constant 0 : i32
    return %arg0, %c0_i32, %c0_i32_0 : i32, i32, i32
  }
  func.func @transform_1(%arg0: i32) -> (i32, i32) {
    %c0_i32 = arith.constant 0 : i32
    %c0_i32_0 = arith.constant 0 : i32
    %c0_i32_1 = arith.constant 0 : i32
    return %c0_i32, %c0_i32_0 : i32, i32
  }
  func.func @transform_2(%arg0: i32) -> (i32, i32) {
    %c0_i32 = arith.constant 0 : i32
    %c0_i32_0 = arith.constant 0 : i32
    %c0_i32_1 = arith.constant 0 : i32
    return %c0_i32, %c0_i32_0 : i32, i32
  }
  func.func @transform_3(%arg0: i32) -> (i32, i32) {
    %c0_i32 = arith.constant 0 : i32
    %c0_i32_0 = arith.constant 0 : i32
    %c0_i32_1 = arith.constant 0 : i32
    return %c0_i32, %c0_i32_0 : i32, i32
  }
  func.func @transform_4(%arg0: i32) -> (i32, i32) {
    %c0_i32 = arith.constant 0 : i32
    %c0_i32_0 = arith.constant 0 : i32
    %c0_i32_1 = arith.constant 0 : i32
    return %c0_i32, %c0_i32_0 : i32, i32
  }
  func.func @transform_5(%arg0: i32) -> (i32, i32, i32) {
    %c0_i32 = arith.constant 0 : i32
    %c0_i32_0 = arith.constant 0 : i32
    %c0_i32_1 = arith.constant 0 : i32
    return %arg0, %c0_i32, %c0_i32_0 : i32, i32, i32
  }
}

</mosaic_0001>

<llo_original>
// kernel: stochastic_pool2d.1
$region0: #{stochastic_pool2d.1}
  #allocation0 [shape = 'u32[]', space=smem, size = 0x4, offset = 0x4, fixed_abs, tag = 'smem constant byte address 0x4 - core index']
  #allocation1 [shape = 'u32[144,128]{1,0:T(1,128)}', space=vmem, size = 0x12000, scoped, tag = 'internal scratch']
  %s0 = inlined_call_operand.vmem [shape: f32[8,16,16], index: 0, kind: input, shape index: {}]
  %s1 = inlined_call_operand.vmem [shape: f32[16,8], index: 1, kind: input, shape index: {}]
  %s2 = inlined_call_operand.vmem [shape: f32[16,8], index: 2, kind: input, shape index: {}]
  %s3 = inlined_call_operand.vmem [shape: f32[8,16], index: 3, kind: input, shape index: {}]
  %s4 = inlined_call_operand.vmem [shape: f32[8,16], index: 4, kind: input, shape index: {}]
  %s5 = inlined_call_operand.hbm [shape: f32[8,8,8], index: 5, kind: output, shape index: {}]
  %s6 = sld [smem:[#allocation0]]
  $region53: #{stochastic_pool2d.1} parent=0
    _
  %s8 = ssub.s32 1, %s6
  %s9 = scalar_select 0, %s8, %s6
  $region1: #{stochastic_pool2d.1} parent=0
    #allocation2 [shape = 'u8[32768]{0}', space=vmem, size = 0x8000, scoped, tag = 'output window, operand 0']
    #allocation3 [shape = 's32[2]{0}', space=sflag, size = 0x8, scoped, tag = 'scoped memory for stochastic_pool2d.1']
    %10 = vsyncpa [#allocation3], 0
    %s11 = scalar_lea.sflag [#allocation3], 1
    %12 = vsyncpa %s11, 0
    loop: start=0, step=1, limit=4
    $region2: #{stochastic_pool2d.1} parent=1 // loop_pre_header
      _
    $region3: #{stochastic_pool2d.1} parent=1 // loop_header
      %s14 = sphi 0, %s18
      %p15 = scmp.ge.s32.totalorder %s14, 4
      %s24 = sphi 0, %s26
      %s27 = sphi 0, %s24
      %s28 = sphi 0, %s27
      %s44 = sphi 0, %s28
      %s48 = sphi 0, %s48
      %s50 = sphi 0, %s48
      %s51 = sphi 0, %s50
      %s65 = sphi 0, %s51
      %s69 = sphi 0, %s69
      %s71 = sphi 0, %s69
      %s72 = sphi 0, %s71
      %s86 = sphi 0, %s72
      %s90 = sphi 0, %s90
      %s92 = sphi 0, %s90
      %s93 = sphi 0, %s92
      %s107 = sphi 0, %s93
      %s111 = sphi 0, %s111
      %s113 = sphi 0, %s111
      %s114 = sphi 0, %s113
      %s128 = sphi 0, %s114
      %s134 = sphi 0, %s136
      %s137 = sphi 0, %s134
      %s138 = sphi 0, %s137
      %s154 = sphi 0, %s138
    $region4: #{stochastic_pool2d.1} parent=1 // loop_header_branch
      %17 = sbr.rel (%p15) target = $region8
    $region5: #{stochastic_pool2d.1} parent=1 // loop_body
      %s19 = ssub.s32 %s14, 1
      %s20 = ssub.s32 %s14, 2
      %s21 = sadd.s32 %s14, 1
      %s22 = ssub.s32 %s14, %s21
      %p23 = scmp.eq.s32.totalorder %s22, 0
      %s25 = sadd.s32 %s24, 1
      %s26 = scalar_select %p23, %s24, %s25
      %p29 = pneg %p23
      %p30 = scmp.eq.s32.totalorder %s14, 1
      %p31 = por %p29, %p30
      %p32 = scmp.ne.s32.totalorder %s24, %s27
      %p33 = scmp.eq.s32.totalorder %s14, 0
      %p34 = por %p32, %p33
      %p35 = scmp.ne.s32.totalorder %s24, %s27
      %p36 = scmp.eq.s32.totalorder %s19, 1
      %p37 = por %p35, %p36
      %p38 = scmp.ne.s32.totalorder %s27, %s28
      %p39 = scmp.eq.s32.totalorder %s19, 0
      %p40 = por %p38, %p39
      %p41 = scmp.ne.s32.totalorder %s27, %s28
      %p42 = scmp.eq.s32.totalorder %s20, 1
      %p43 = por %p41, %p42
      %p45 = scmp.ne.s32.totalorder %s28, %s44
      %p46 = scmp.eq.s32.totalorder %s20, 0
      %p47 = por %p45, %p46
      %s49 = sadd.s32 %s48, 1
      %p52 = scmp.eq.s32.totalorder %s14, 1
      %p53 = scmp.ne.s32.totalorder %s48, %s50
      %p54 = scmp.eq.s32.totalorder %s14, 0
      %p55 = por %p53, %p54
      %p56 = scmp.ne.s32.totalorder %s48, %s50
      %p57 = scmp.eq.s32.totalorder %s19, 1
      %p58 = por %p56, %p57
      %p59 = scmp.ne.s32.totalorder %s50, %s51
      %p60 = scmp.eq.s32.totalorder %s19, 0
      %p61 = por %p59, %p60
      %p62 = scmp.ne.s32.totalorder %s50, %s51
      %p63 = scmp.eq.s32.totalorder %s20, 1
      %p64 = por %p62, %p63
      %p66 = scmp.ne.s32.totalorder %s51, %s65
      %p67 = scmp.eq.s32.totalorder %s20, 0
      %p68 = por %p66, %p67
      %s70 = sadd.s32 %s69, 1
      %p73 = scmp.eq.s32.totalorder %s14, 1
      %p74 = scmp.ne.s32.totalorder %s69, %s71
      %p75 = scmp.eq.s32.totalorder %s14, 0
      %p76 = por %p74, %p75
      %p77 = scmp.ne.s32.totalorder %s69, %s71
      %p78 = scmp.eq.s32.totalorder %s19, 1
      %p79 = por %p77, %p78
      %p80 = scmp.ne.s32.totalorder %s71, %s72
      %p81 = scmp.eq.s32.totalorder %s19, 0
      %p82 = por %p80, %p81
      %p83 = scmp.ne.s32.totalorder %s71, %s72
      %p84 = scmp.eq.s32.totalorder %s20, 1
      %p85 = por %p83, %p84
      %p87 = scmp.ne.s32.totalorder %s72, %s86
      %p88 = scmp.eq.s32.totalorder %s20, 0
      %p89 = por %p87, %p88
      %s91 = sadd.s32 %s90, 1
      %p94 = scmp.eq.s32.totalorder %s14, 1
      %p95 = scmp.ne.s32.totalorder %s90, %s92
      %p96 = scmp.eq.s32.totalorder %s14, 0
      %p97 = por %p95, %p96
      %p98 = scmp.ne.s32.totalorder %s90, %s92
      %p99 = scmp.eq.s32.totalorder %s19, 1
      %p100 = por %p98, %p99
      %p101 = scmp.ne.s32.totalorder %s92, %s93
      %p102 = scmp.eq.s32.totalorder %s19, 0
      %p103 = por %p101, %p102
      %p104 = scmp.ne.s32.totalorder %s92, %s93
      %p105 = scmp.eq.s32.totalorder %s20, 1
      %p106 = por %p104, %p105
      %p108 = scmp.ne.s32.totalorder %s93, %s107
      %p109 = scmp.eq.s32.totalorder %s20, 0
      %p110 = por %p108, %p109
      %s112 = sadd.s32 %s111, 1
      %p115 = scmp.eq.s32.totalorder %s14, 1
      %p116 = scmp.ne.s32.totalorder %s111, %s113
      %p117 = scmp.eq.s32.totalorder %s14, 0
      %p118 = por %p116, %p117
      %p119 = scmp.ne.s32.totalorder %s111, %s113
      %p120 = scmp.eq.s32.totalorder %s19, 1
      %p121 = por %p119, %p120
      %p122 = scmp.ne.s32.totalorder %s113, %s114
      %p123 = scmp.eq.s32.totalorder %s19, 0
      %p124 = por %p122, %p123
      %p125 = scmp.ne.s32.totalorder %s113, %s114
      %p126 = scmp.eq.s32.totalorder %s20, 1
      %p127 = por %p125, %p126
      %p129 = scmp.ne.s32.totalorder %s114, %s128
      %p130 = scmp.eq.s32.totalorder %s20, 0
      %p131 = por %p129, %p130
      %s132 = ssub.s32 %s14, %s21
      %p133 = scmp.eq.s32.totalorder %s132, 0
      %s135 = sadd.s32 %s134, 1
      %s136 = scalar_select %p133, %s134, %s135
      %p139 = pneg %p133
      %p140 = scmp.eq.s32.totalorder %s14, 1
      %p141 = por %p139, %p140
      %p142 = scmp.ne.s32.totalorder %s134, %s137
      %p143 = scmp.eq.s32.totalorder %s14, 0
      %p144 = por %p142, %p143
      %p145 = scmp.ne.s32.totalorder %s134, %s137
      %p146 = scmp.eq.s32.totalorder %s19, 1
      %p147 = por %p145, %p146
      %p148 = scmp.ne.s32.totalorder %s137, %s138
      %p149 = scmp.eq.s32.totalorder %s19, 0
      %p150 = por %p148, %p149
      %p151 = scmp.ne.s32.totalorder %s137, %s138
      %p152 = scmp.eq.s32.totalorder %s20, 1
      %p153 = por %p151, %p152
      %p155 = scmp.ne.s32.totalorder %s138, %s154
      %p156 = scmp.eq.s32.totalorder %s20, 0
      %p157 = por %p155, %p156
      %p158 = scmp.le.s32.totalorder 1, %s14
      %p159 = scmp.lt.s32.totalorder %s14, 3
      %p160 = pnand %p158, %p159
      %p161 = pneg %p160
      // Predicated region
      $region9: #{stochastic_pool2d.1} parent=5 // pred_check
        _
      $region10: #{stochastic_pool2d.1} parent=5 // pred_check_branch
        %163 = sbr.rel (%p160) target = $region12
      $region11: #{stochastic_pool2d.1} parent=5 // pred_region
        %s164 = ssub.s32 %s14, 1
        // Predicated region
        $region13: #{stochastic_pool2d.1} parent=11 // pred_check
          %p165 = pneg %p61
        $region14: #{stochastic_pool2d.1} parent=11 // pred_check_branch
          %167 = sbr.rel (%p165) target = $region16
        $region15: #{stochastic_pool2d.1} parent=11 // pred_region
          _
        $region16: #{stochastic_pool2d.1} parent=11 // pred_fallthru
          _
        // Predicated region
        $region17: #{stochastic_pool2d.1} parent=11 // pred_check
          %p168 = pneg %p82
        $region18: #{stochastic_pool2d.1} parent=11 // pred_check_branch
          %170 = sbr.rel (%p168) target = $region20
        $region19: #{stochastic_pool2d.1} parent=11 // pred_region
          _
        $region20: #{stochastic_pool2d.1} parent=11 // pred_fallthru
          _
        // Predicated region
        $region21: #{stochastic_pool2d.1} parent=11 // pred_check
          %p171 = pneg %p103
        $region22: #{stochastic_pool2d.1} parent=11 // pred_check_branch
          %173 = sbr.rel (%p171) target = $region24
        $region23: #{stochastic_pool2d.1} parent=11 // pred_region
          _
        $region24: #{stochastic_pool2d.1} parent=11 // pred_fallthru
          _
        // Predicated region
        $region25: #{stochastic_pool2d.1} parent=11 // pred_check
          %p174 = pneg %p124
        $region26: #{stochastic_pool2d.1} parent=11 // pred_check_branch
          %176 = sbr.rel (%p174) target = $region28
        $region27: #{stochastic_pool2d.1} parent=11 // pred_region
          _
        $region28: #{stochastic_pool2d.1} parent=11 // pred_fallthru
          _
      $region12: #{stochastic_pool2d.1} parent=5 // pred_fallthru
        _
      %p177 = scmp.lt.s32.totalorder %s14, 2
      // Predicated region
      $region29: #{stochastic_pool2d.1} parent=5 // pred_check
        %p178 = pneg %p177
      $region30: #{stochastic_pool2d.1} parent=5 // pred_check_branch
        %180 = sbr.rel (%p178) target = $region32
      $region31: #{stochastic_pool2d.1} parent=5 // pred_region
        // Predicated region
        $region33: #{stochastic_pool2d.1} parent=31 // pred_check
          %p181 = pneg %p34
        $region34: #{stochastic_pool2d.1} parent=31 // pred_check_branch
          %183 = sbr.rel (%p181) target = $region36
        $region35: #{stochastic_pool2d.1} parent=31 // pred_region
          %s184 = smul.u32 4, %s14
          %p185 = scmp.lt.s32.totalorder %s184, 7
          %s186 = scalar_select %p185, %s184, 7
          %s187 = smul.addr %s186, 2
          %s188 = smul.addr %s187, 8
          %s189 = scalar_lea.vmem %s0, %s188
          %s190 = smul.u32 4, %s14
        $region36: #{stochastic_pool2d.1} parent=31 // pred_fallthru
          _
      $region32: #{stochastic_pool2d.1} parent=5 // pred_fallthru
        _
      %p191 = scmp.le.s32.totalorder 1, %s14
      %p192 = scmp.lt.s32.totalorder %s14, 3
      %p193 = pnand %p191, %p192
      %p194 = pneg %p193
      // Predicated region
      $region37: #{stochastic_pool2d.1} parent=5 // pred_check
        _
      $region38: #{stochastic_pool2d.1} parent=5 // pred_check_branch
        %196 = sbr.rel (%p193) target = $region40
      $region39: #{stochastic_pool2d.1} parent=5 // pred_region
        %s197 = ssub.s32 %s14, 1
        %s198 = smul.u32 4, %s19
        %p199 = scmp.lt.s32.totalorder %s198, 7
        %s200 = scalar_select %p199, %s198, 7
        %s201 = smul.addr %s200, 2
        %s202 = smul.addr %s201, 8
        %s203 = scalar_lea.vmem %s0, %s202
        %p204 = pneg %p40
        %p205 = pneg %p37
        %p206 = pneg %p61
        %p207 = pneg %p58
        %p208 = pneg %p82
        %p209 = pneg %p79
        %p210 = pneg %p103
        %p211 = pneg %p100
        %p212 = pneg %p124
        %p213 = pneg %p121
        %p214 = pneg %p150
        %p215 = pneg %p147
        %s216 = sand.u32 %s137, 1
        %s217 = scalar_lea.sflag [#allocation3], %s216
        %s218 = sand.u32 %s137, 1
        %s219 = smul.addr %s218, 32
        %s220 = scalar_lea.vmem [#allocation2], %s219
        %s221 = smul.u32 4, %s19
        %p222 = scmp.lt.s32.totalorder %s221, 7
        %s223 = scalar_select %p222, %s221, 7
        %s224 = smul.addr %s223, 2
        %s225 = smul.addr %s224, 8
        %s226 = scalar_lea.vmem %s0, %s225
        %s227 = smul.u32 4, %s19
        %s228 = smul.u32 4, %s19
        %v229 = vld [vmem:[%s226] sm:$0xff]
        %v230 = vld [vmem:[%s226 + $0x8] sm:$0xff]
        %v231 = vld [vmem:[%s226 + $0x10] sm:$0xff]
        %v232 = vld [vmem:[%s226 + $0x18] sm:$0xff]
        %v233 = vld [vmem:[%s226 + $0x20] sm:$0xff]
        %v234 = vld [vmem:[%s226 + $0x28] sm:$0xff]
        %v235 = vld [vmem:[%s226 + $0x30] sm:$0xff]
        %v236 = vld [vmem:[%s226 + $0x38] sm:$0xff]
        %v237 = vld [vmem:[%s1] sm:$0xff]
        %v238 = vld [vmem:[%s1 + $0x8] sm:$0xff]
        %v239 = vld [vmem:[%s2] sm:$0xff]
        %v240 = vld [vmem:[%s2 + $0x8] sm:$0xff]
        %v241 = vld [vmem:[%s3] sm:$0xff]
        %v242 = vld [vmem:[%s4] sm:$0xff]
        %vm243 = vcmask 130048
        %v245 = vsel %vm243, %v229, 0
        %v248 = vsel %vm243, %v230, 0
        %250 = vmatprep.subr.mxu0 0.0
        %v251 = vand.u32 %v237, 4294901760
        %252 = vmatpush1.msra.mxu0 %v251
        %253 = vmatprep.subr.mxu0 0.0
        %v254 = vand.u32 %v238, 4294901760
        %255 = vmatpush1.msra.mxu0 %v254
        %256 = vmatprep.subr.mxu0 0.0
        %257 = vmatpush1.msra.mxu0 0.0
        %258 = vmatprep.subr.mxu0 0.0
        %259 = vmatpush1.msra.mxu0 0.0
        %260 = vmatprep.subr.mxu0 0.0
        %261 = vmatpush1.msra.mxu0 0.0
        %262 = vmatprep.subr.mxu0 0.0
        %263 = vmatpush1.msra.mxu0 0.0
        %264 = vmatprep.subr.mxu0 0.0
        %265 = vmatpush1.msra.mxu0 0.0
        %266 = vmatprep.subr.mxu0 0.0
        %267 = vmatpush1.msra.mxu0 0.0
        %268 = vmatprep.subr.mxu0 0.0
        %269 = vmatpush1.msra.mxu0 0.0
        %270 = vmatprep.subr.mxu0 0.0
        %271 = vmatpush1.msra.mxu0 0.0
        %272 = vmatprep.subr.mxu0 0.0
        %273 = vmatpush1.msra.mxu0 0.0
        %274 = vmatprep.subr.mxu0 0.0
        %275 = vmatpush1.msra.mxu0 0.0
        %276 = vmatprep.subr.mxu0 0.0
        %277 = vmatpush1.msra.mxu0 0.0
        %278 = vmatprep.subr.mxu0 0.0
        %279 = vmatpush1.msra.mxu0 0.0
        %280 = vmatprep.subr.mxu0 0.0
        %281 = vmatpush1.msra.mxu0 0.0
        %282 = vmatprep.subr.mxu0 0.0
        %283 = vmatpush1.msra.mxu0 0.0
        %284 = vmatprep.subr.mxu0 0.0
        %285 = vmatpush1.msra.mxu0 0.0
        %286 = vmatprep.subr.mxu0 0.0
        %287 = vmatpush1.msra.mxu0 0.0
        %288 = vmatprep.subr.mxu0 0.0
        %289 = vmatpush1.msra.mxu0 0.0
        %290 = vmatprep.subr.mxu0 0.0
        %291 = vmatpush1.msra.mxu0 0.0
        %292 = vmatprep.subr.mxu0 0.0
        %293 = vmatpush1.msra.mxu0 0.0
        %294 = vmatprep.subr.mxu0 0.0
        %295 = vmatpush1.msra.mxu0 0.0
        %296 = vmatprep.subr.mxu0 0.0
        %297 = vmatpush1.msra.mxu0 0.0
        %298 = vmatprep.subr.mxu0 0.0
        %299 = vmatpush1.msra.mxu0 0.0
        %300 = vmatprep.subr.mxu0 0.0
        %301 = vmatpush1.msra.mxu0 0.0
        %302 = vmatprep.subr.mxu0 0.0
        %303 = vmatpush1.msra.mxu0 0.0
        %304 = vmatprep.subr.mxu0 0.0
        %305 = vmatpush1.msra.mxu0 0.0
        %306 = vmatprep.subr.mxu0 0.0
        %307 = vmatpush1.msra.mxu0 0.0
        %308 = vmatprep.subr.mxu0 0.0
        %309 = vmatpush1.msra.mxu0 0.0
        %310 = vmatprep.subr.mxu0 0.0
        %311 = vmatpush1.msra.mxu0 0.0
        %312 = vmatprep.subr.mxu0 0.0
        %313 = vmatpush1.msra.mxu0 0.0
        %314 = vmatprep.subr.mxu0 0.0
        %315 = vmatpush1.msra.mxu0 0.0
        %316 = vmatprep.mubr.f32.mxu0 0.0
        %v317 = vand.u32 %v245, 4294901760
        %v318 = vsub.f32 %v245, %v317
        %v319 = vand.u32 %v318, 4294901760
        %v320 = vsub.f32 %v318, %v319
        %v321 = vand.u32 %v320, 4294901760
        %322 = vmatmul.mubr.f32.gmra.mrb[0].mxu0 %v321
        %v323 = vpop.f32.mrb[0].mxu0
        %v324 = vadd.f32 0.0, %v323
        %v325 = vpop.f32.mrb[0].mxu0
        %326 = vmatprep.mubr.f32.mxu0 0.0
        %v327 = vand.u32 %v248, 4294901760
        %v328 = vsub.f32 %v248, %v327
        %v329 = vand.u32 %v328, 4294901760
        %v330 = vsub.f32 %v328, %v329
        %v331 = vand.u32 %v330, 4294901760
        %332 = vmatmul.mubr.f32.gmra.mrb[0].mxu0 %v331
        %v333 = vpop.f32.mrb[0].mxu0
        %v334 = vadd.f32 0.0, %v333
        %v335 = vpop.f32.mrb[0].mxu0
        %336 = vdwg.mxu0
        %337 = vmatprep.subr.mxu0 0.0
        %v338 = vand.u32 %v237, 4294901760
        %v339 = vsub.f32 %v237, %v338
        %v340 = vand.u32 %v339, 4294901760
        %v341 = vsub.f32 %v339, %v340
        %v342 = vand.u32 %v341, 4294901760
        %343 = vmatpush1.msra.mxu0 %v342
        %344 = vmatprep.subr.mxu0 0.0
        %v345 = vand.u32 %v238, 4294901760
        %v346 = vsub.f32 %v238, %v345
        %v347 = vand.u32 %v346, 4294901760
        %v348 = vsub.f32 %v346, %v347
        %v349 = vand.u32 %v348, 4294901760
        %350 = vmatpush1.msra.mxu0 %v349
        %351 = vmatprep.subr.mxu0 0.0
        %352 = vmatpush1.msra.mxu0 0.0
        %353 = vmatprep.subr.mxu0 0.0
        %354 = vmatpush1.msra.mxu0 0.0
        %355 = vmatprep.subr.mxu0 0.0
        %356 = vmatpush1.msra.mxu0 0.0
        %357 = vmatprep.subr.mxu0 0.0
        %358 = vmatpush1.msra.mxu0 0.0
        %359 = vmatprep.subr.mxu0 0.0
        %360 = vmatpush1.msra.mxu0 0.0
        %361 = vmatprep.subr.mxu0 0.0
        %362 = vmatpush1.msra.mxu0 0.0
        %363 = vmatprep.subr.mxu0 0.0
        %364 = vmatpush1.msra.mxu0 0.0
        %365 = vmatprep.subr.mxu0 0.0
        %366 = vmatpush1.msra.mxu0 0.0
        %367 = vmatprep.subr.mxu0 0.0
        %368 = vmatpush1.msra.mxu0 0.0
        %369 = vmatprep.subr.mxu0 0.0
        %370 = vmatpush1.msra.mxu0 0.0
        %371 = vmatprep.subr.mxu0 0.0
        %372 = vmatpush1.msra.mxu0 0.0
        %373 = vmatprep.subr.mxu0 0.0
        %374 = vmatpush1.msra.mxu0 0.0
        %375 = vmatprep.subr.mxu0 0.0
        %376 = vmatpush1.msra.mxu0 0.0
        %377 = vmatprep.subr.mxu0 0.0
        %378 = vmatpush1.msra.mxu0 0.0
        %379 = vmatprep.subr.mxu0 0.0
        %380 = vmatpush1.msra.mxu0 0.0
        %381 = vmatprep.subr.mxu0 0.0
        %382 = vmatpush1.msra.mxu0 0.0
        %383 = vmatprep.subr.mxu0 0.0
        %384 = vmatpush1.msra.mxu0 0.0
        %385 = vmatprep.subr.mxu0 0.0
        %386 = vmatpush1.msra.mxu0 0.0
        %387 = vmatprep.subr.mxu0 0.0
        %388 = vmatpush1.msra.mxu0 0.0
        %389 = vmatprep.subr.mxu0 0.0
        %390 = vmatpush1.msra.mxu0 0.0
        %391 = vmatprep.subr.mxu0 0.0
        %392 = vmatpush1.msra.mxu0 0.0
        %393 = vmatprep.subr.mxu0 0.0
        %394 = vmatpush1.msra.mxu0 0.0
        %395 = vmatprep.subr.mxu0 0.0
        %396 = vmatpush1.msra.mxu0 0.0
        %397 = vmatprep.subr.mxu0 0.0
        %398 = vmatpush1.msra.mxu0 0.0
        %399 = vmatprep.subr.mxu0 0.0
        %400 = vmatpush1.msra.mxu0 0.0
        %401 = vmatprep.subr.mxu0 0.0
        %402 = vmatpush1.msra.mxu0 0.0
        %403 = vmatprep.subr.mxu0 0.0
        %404 = vmatpush1.msra.mxu0 0.0
        %405 = vmatprep.subr.mxu0 0.0
        %406 = vmatpush1.msra.mxu0 0.0
        %407 = vmatprep.subr.mxu0 0.0
        %408 = vmatpush1.msra.mxu0 0.0
        %409 = vmatprep.subr.mxu0 0.0
        %410 = vmatpush1.msra.mxu0 0.0
        %411 = vmatprep.mubr.f32.mxu0 0.0
        %v412 = vand.u32 %v245, 4294901760
        %413 = vmatmul.mubr.f32.gmra.mrb[0].mxu0 %v412
        %v414 = vpop.f32.mrb[0].mxu0
        %v415 = vadd.f32 %v324, %v414
        %v416 = vpop.f32.mrb[0].mxu0
        %417 = vmatprep.mubr.f32.mxu0 0.0
        %v418 = vand.u32 %v248, 4294901760
        %419 = vmatmul.mubr.f32.gmra.mrb[0].mxu0 %v418
        %v420 = vpop.f32.mrb[0].mxu0
        %v421 = vadd.f32 %v334, %v420
        %v422 = vpop.f32.mrb[0].mxu0
        %423 = vdwg.mxu0
        %424 = vmatprep.subr.mxu0 0.0
        %v425 = vand.u32 %v237, 4294901760
        %v426 = vsub.f32 %v237, %v425
        %427 = vmatpush1.msra.mxu0 %v426
        %428 = vmatprep.subr.mxu0 0.0
        %v429 = vand.u32 %v238, 4294901760
        %v430 = vsub.f32 %v238, %v429
        %431 = vmatpush1.msra.mxu0 %v430
        %432 = vmatprep.subr.mxu0 0.0
        %433 = vmatpush1.msra.mxu0 0.0
        %434 = vmatprep.subr.mxu0 0.0
        %435 = vmatpush1.msra.mxu0 0.0
        %436 = vmatprep.subr.mxu0 0.0
        %437 = vmatpush1.msra.mxu0 0.0
        %438 = vmatprep.subr.mxu0 0.0
        %439 = vmatpush1.msra.mxu0 0.0
        %440 = vmatprep.subr.mxu0 0.0
        %441 = vmatpush1.msra.mxu0 0.0
        %442 = vmatprep.subr.mxu0 0.0
        %443 = vmatpush1.msra.mxu0 0.0
        %444 = vmatprep.subr.mxu0 0.0
        %445 = vmatpush1.msra.mxu0 0.0
        %446 = vmatprep.subr.mxu0 0.0
        %447 = vmatpush1.msra.mxu0 0.0
        %448 = vmatprep.subr.mxu0 0.0
        %449 = vmatpush1.msra.mxu0 0.0
        %450 = vmatprep.subr.mxu0 0.0
        %451 = vmatpush1.msra.mxu0 0.0
        %452 = vmatprep.subr.mxu0 0.0
        %453 = vmatpush1.msra.mxu0 0.0
        %454 = vmatprep.subr.mxu0 0.0
        %455 = vmatpush1.msra.mxu0 0.0
        %456 = vmatprep.subr.mxu0 0.0
        %457 = vmatpush1.msra.mxu0 0.0
        %458 = vmatprep.subr.mxu0 0.0
        %459 = vmatpush1.msra.mxu0 0.0
        %460 = vmatprep.subr.mxu0 0.0
        %461 = vmatpush1.msra.mxu0 0.0
        %462 = vmatprep.subr.mxu0 0.0
        %463 = vmatpush1.msra.mxu0 0.0
        %464 = vmatprep.subr.mxu0 0.0
        %465 = vmatpush1.msra.mxu0 0.0
        %466 = vmatprep.subr.mxu0 0.0
        %467 = vmatpush1.msra.mxu0 0.0
        %468 = vmatprep.subr.mxu0 0.0
        %469 = vmatpush1.msra.mxu0 0.0
        %470 = vmatprep.subr.mxu0 0.0
        %471 = vmatpush1.msra.mxu0 0.0
        %472 = vmatprep.subr.mxu0 0.0
        %473 = vmatpush1.msra.mxu0 0.0
        %474 = vmatprep.subr.mxu0 0.0
        %475 = vmatpush1.msra.mxu0 0.0
        %476 = vmatprep.subr.mxu0 0.0
        %477 = vmatpush1.msra.mxu0 0.0
        %478 = vmatprep.subr.mxu0 0.0
        %479 = vmatpush1.msra.mxu0 0.0
        %480 = vmatprep.subr.mxu0 0.0
        %481 = vmatpush1.msra.mxu0 0.0
        %482 = vmatprep.subr.mxu0 0.0
        %483 = vmatpush1.msra.mxu0 0.0
        %484 = vmatprep.subr.mxu0 0.0
        %485 = vmatpush1.msra.mxu0 0.0
        %486 = vmatprep.subr.mxu0 0.0
        %487 = vmatpush1.msra.mxu0 0.0
        %488 = vmatprep.subr.mxu0 0.0
        %489 = vmatpush1.msra.mxu0 0.0
        %490 = vmatprep.subr.mxu0 0.0
        %491 = vmatpush1.msra.mxu0 0.0
        %492 = vmatprep.mubr.f32.mxu0 0.0
        %v493 = vand.u32 %v245, 4294901760
        %v494 = vsub.f32 %v245, %v493
        %495 = vmatmul.mubr.f32.gmra.mrb[0].mxu0 %v494
        %v496 = vpop.f32.mrb[0].mxu0
        %v497 = vadd.f32 %v415, %v496
        %v498 = vpop.f32.mrb[0].mxu0
        %499 = vmatprep.mubr.f32.mxu0 0.0
        %v500 = vand.u32 %v248, 4294901760
        %v501 = vsub.f32 %v248, %v500
        %502 = vmatmul.mubr.f32.gmra.mrb[0].mxu0 %v501
        %v503 = vpop.f32.mrb[0].mxu0
        %v504 = vadd.f32 %v421, %v503
        %v505 = vpop.f32.mrb[0].mxu0
        %506 = vdwg.mxu0
        %507 = vmatprep.subr.mxu0 0.0
        %v508 = vand.u32 %v237, 4294901760
        %509 = vmatpush1.msra.mxu0 %v508
        %510 = vmatprep.subr.mxu0 0.0
        %v511 = vand.u32 %v238, 4294901760
        %512 = vmatpush1.msra.mxu0 %v511
        %513 = vmatprep.subr.mxu0 0.0
        %514 = vmatpush1.msra.mxu0 0.0
        %515 = vmatprep.subr.mxu0 0.0
        %516 = vmatpush1.msra.mxu0 0.0
        %517 = vmatprep.subr.mxu0 0.0
        %518 = vmatpush1.msra.mxu0 0.0
        %519 = vmatprep.subr.mxu0 0.0
        %520 = vmatpush1.msra.mxu0 0.0
        %521 = vmatprep.subr.mxu0 0.0
        %522 = vmatpush1.msra.mxu0 0.0
        %523 = vmatprep.subr.mxu0 0.0
        %524 = vmatpush1.msra.mxu0 0.0
        %525 = vmatprep.subr.mxu0 0.0
        %526 = vmatpush1.msra.mxu0 0.0
        %527 = vmatprep.subr.mxu0 0.0
        %528 = vmatpush1.msra.mxu0 0.0
        %529 = vmatprep.subr.mxu0 0.0
        %530 = vmatpush1.msra.mxu0 0.0
        %531 = vmatprep.subr.mxu0 0.0
        %532 = vmatpush1.msra.mxu0 0.0
        %533 = vmatprep.subr.mxu0 0.0
        %534 = vmatpush1.msra.mxu0 0.0
        %535 = vmatprep.subr.mxu0 0.0
        %536 = vmatpush1.msra.mxu0 0.0
        %537 = vmatprep.subr.mxu0 0.0
        %538 = vmatpush1.msra.mxu0 0.0
        %539 = vmatprep.subr.mxu0 0.0
        %540 = vmatpush1.msra.mxu0 0.0
        %541 = vmatprep.subr.mxu0 0.0
        %542 = vmatpush1.msra.mxu0 0.0
        %543 = vmatprep.subr.mxu0 0.0
        %544 = vmatpush1.msra.mxu0 0.0
        %545 = vmatprep.subr.mxu0 0.0
        %546 = vmatpush1.msra.mxu0 0.0
        %547 = vmatprep.subr.mxu0 0.0
        %548 = vmatpush1.msra.mxu0 0.0
        %549 = vmatprep.subr.mxu0 0.0
        %550 = vmatpush1.msra.mxu0 0.0
        %551 = vmatprep.subr.mxu0 0.0
        %552 = vmatpush1.msra.mxu0 0.0
        %553 = vmatprep.subr.mxu0 0.0
        %554 = vmatpush1.msra.mxu0 0.0
        %555 = vmatprep.subr.mxu0 0.0
        %556 = vmatpush1.msra.mxu0 0.0
        %557 = vmatprep.subr.mxu0 0.0
        %558 = vmatpush1.msra.mxu0 0.0
        %559 = vmatprep.subr.mxu0 0.0
        %560 = vmatpush1.msra.mxu0 0.0
        %561 = vmatprep.subr.mxu0 0.0
        %562 = vmatpush1.msra.mxu0 0.0
        %563 = vmatprep.subr.mxu0 0.0
        %564 = vmatpush1.msra.mxu0 0.0
        %565 = vmatprep.subr.mxu0 0.0
        %566 = vmatpush1.msra.mxu0 0.0
        %567 = vmatprep.subr.mxu0 0.0
        %568 = vmatpush1.msra.mxu0 0.0
        %569 = vmatprep.subr.mxu0 0.0
        %570 = vmatpush1.msra.mxu0 0.0
        %571 = vmatprep.subr.mxu0 0.0
        %572 = vmatpush1.msra.mxu0 0.0
        %573 = vmatprep.mubr.f32.mxu0 0.0
        %v574 = vand.u32 %v245, 4294901760
        %v575 = vsub.f32 %v245, %v574
        %v576 = vand.u32 %v575, 4294901760
        %577 = vmatmul.mubr.f32.gmra.mrb[0].mxu0 %v576
        %v578 = vpop.f32.mrb[0].mxu0
        %v579 = vadd.f32 %v497, %v578
        %v580 = vpop.f32.mrb[0].mxu0
        %581 = vmatprep.mubr.f32.mxu0 0.0
        %v582 = vand.u32 %v248, 4294901760
        %v583 = vsub.f32 %v248, %v582
        %v584 = vand.u32 %v583, 4294901760
        %585 = vmatmul.mubr.f32.gmra.mrb[0].mxu0 %v584
        %v586 = vpop.f32.mrb[0].mxu0
        %v587 = vadd.f32 %v504, %v586
        %v588 = vpop.f32.mrb[0].mxu0
        %589 = vdwg.mxu0
        %590 = vmatprep.subr.mxu0 0.0
        %v591 = vand.u32 %v237, 4294901760
        %v592 = vsub.f32 %v237, %v591
        %v593 = vand.u32 %v592, 4294901760
        %594 = vmatpush1.msra.mxu0 %v593
        %595 = vmatprep.subr.mxu0 0.0
        %v596 = vand.u32 %v238, 4294901760
        %v597 = vsub.f32 %v238, %v596
        %v598 = vand.u32 %v597, 4294901760
        %599 = vmatpush1.msra.mxu0 %v598
        %600 = vmatprep.subr.mxu0 0.0
        %601 = vmatpush1.msra.mxu0 0.0
        %602 = vmatprep.subr.mxu0 0.0
        %603 = vmatpush1.msra.mxu0 0.0
        %604 = vmatprep.subr.mxu0 0.0
        %605 = vmatpush1.msra.mxu0 0.0
        %606 = vmatprep.subr.mxu0 0.0
        %607 = vmatpush1.msra.mxu0 0.0
        %608 = vmatprep.subr.mxu0 0.0
        %609 = vmatpush1.msra.mxu0 0.0
        %610 = vmatprep.subr.mxu0 0.0
        %611 = vmatpush1.msra.mxu0 0.0
        %612 = vmatprep.subr.mxu0 0.0
        %613 = vmatpush1.msra.mxu0 0.0
        %614 = vmatprep.subr.mxu0 0.0
        %615 = vmatpush1.msra.mxu0 0.0
        %616 = vmatprep.subr.mxu0 0.0
        %617 = vmatpush1.msra.mxu0 0.0
        %618 = vmatprep.subr.mxu0 0.0
        %619 = vmatpush1.msra.mxu0 0.0
        %620 = vmatprep.subr.mxu0 0.0
        %621 = vmatpush1.msra.mxu0 0.0
        %622 = vmatprep.subr.mxu0 0.0
        %623 = vmatpush1.msra.mxu0 0.0
        %624 = vmatprep.subr.mxu0 0.0
        %625 = vmatpush1.msra.mxu0 0.0
        %626 = vmatprep.subr.mxu0 0.0
        %627 = vmatpush1.msra.mxu0 0.0
        %628 = vmatprep.subr.mxu0 0.0
        %629 = vmatpush1.msra.mxu0 0.0
        %630 = vmatprep.subr.mxu0 0.0
        %631 = vmatpush1.msra.mxu0 0.0
        %632 = vmatprep.subr.mxu0 0.0
        %633 = vmatpush1.msra.mxu0 0.0
        %634 = vmatprep.subr.mxu0 0.0
        %635 = vmatpush1.msra.mxu0 0.0
        %636 = vmatprep.subr.mxu0 0.0
        %637 = vmatpush1.msra.mxu0 0.0
        %638 = vmatprep.subr.mxu0 0.0
        %639 = vmatpush1.msra.mxu0 0.0
        %640 = vmatprep.subr.mxu0 0.0
        %641 = vmatpush1.msra.mxu0 0.0
        %642 = vmatprep.subr.mxu0 0.0
        %643 = vmatpush1.msra.mxu0 0.0
        %644 = vmatprep.subr.mxu0 0.0
        %645 = vmatpush1.msra.mxu0 0.0
        %646 = vmatprep.subr.mxu0 0.0
        %647 = vmatpush1.msra.mxu0 0.0
        %648 = vmatprep.subr.mxu0 0.0
        %649 = vmatpush1.msra.mxu0 0.0
        %650 = vmatprep.subr.mxu0 0.0
        %651 = vmatpush1.msra.mxu0 0.0
        %652 = vmatprep.subr.mxu0 0.0
        %653 = vmatpush1.msra.mxu0 0.0
        %654 = vmatprep.subr.mxu0 0.0
        %655 = vmatpush1.msra.mxu0 0.0
        %656 = vmatprep.subr.mxu0 0.0
        %657 = vmatpush1.msra.mxu0 0.0
        %658 = vmatprep.subr.mxu0 0.0
        %659 = vmatpush1.msra.mxu0 0.0
        %660 = vmatprep.mubr.f32.mxu0 0.0
        %v661 = vand.u32 %v245, 4294901760
        %662 = vmatmul.mubr.f32.gmra.mrb[0].mxu0 %v661
        %v663 = vpop.f32.mrb[0].mxu0
        %v664 = vadd.f32 %v579, %v663
        %v665 = vpop.f32.mrb[0].mxu0
        %666 = vmatprep.mubr.f32.mxu0 0.0
        %v667 = vand.u32 %v248, 4294901760
        %668 = vmatmul.mubr.f32.gmra.mrb[0].mxu0 %v667
        %v669 = vpop.f32.mrb[0].mxu0
        %v670 = vadd.f32 %v587, %v669
        %v671 = vpop.f32.mrb[0].mxu0
        %672 = vdwg.mxu0
        %673 = vmatprep.subr.mxu0 0.0
        %v674 = vand.u32 %v237, 4294901760
        %675 = vmatpush1.msra.mxu0 %v674
        %676 = vmatprep.subr.mxu0 0.0
        %v677 = vand.u32 %v238, 4294901760
        %678 = vmatpush1.msra.mxu0 %v677
        %679 = vmatprep.subr.mxu0 0.0
        %680 = vmatpush1.msra.mxu0 0.0
        %681 = vmatprep.subr.mxu0 0.0
        %682 = vmatpush1.msra.mxu0 0.0
        %683 = vmatprep.subr.mxu0 0.0
        %684 = vmatpush1.msra.mxu0 0.0
        %685 = vmatprep.subr.mxu0 0.0
        %686 = vmatpush1.msra.mxu0 0.0
        %687 = vmatprep.subr.mxu0 0.0
        %688 = vmatpush1.msra.mxu0 0.0
        %689 = vmatprep.subr.mxu0 0.0
        %690 = vmatpush1.msra.mxu0 0.0
        %691 = vmatprep.subr.mxu0 0.0
        %692 = vmatpush1.msra.mxu0 0.0
        %693 = vmatprep.subr.mxu0 0.0
        %694 = vmatpush1.msra.mxu0 0.0
        %695 = vmatprep.subr.mxu0 0.0
        %696 = vmatpush1.msra.mxu0 0.0
        %697 = vmatprep.subr.mxu0 0.0
        %698 = vmatpush1.msra.mxu0 0.0
        %699 = vmatprep.subr.mxu0 0.0
        %700 = vmatpush1.msra.mxu0 0.0
        %701 = vmatprep.subr.mxu0 0.0
        %702 = vmatpush1.msra.mxu0 0.0
        %703 = vmatprep.subr.mxu0 0.0
        %704 = vmatpush1.msra.mxu0 0.0
        %705 = vmatprep.subr.mxu0 0.0
        %706 = vmatpush1.msra.mxu0 0.0
        %707 = vmatprep.subr.mxu0 0.0
        %708 = vmatpush1.msra.mxu0 0.0
        %709 = vmatprep.subr.mxu0 0.0
        %710 = vmatpush1.msra.mxu0 0.0
        %711 = vmatprep.subr.mxu0 0.0
        %712 = vmatpush1.msra.mxu0 0.0
        %713 = vmatprep.subr.mxu0 0.0
        %714 = vmatpush1.msra.mxu0 0.0
        %715 = vmatprep.subr.mxu0 0.0
        %716 = vmatpush1.msra.mxu0 0.0
        %717 = vmatprep.subr.mxu0 0.0
        %718 = vmatpush1.msra.mxu0 0.0
        %719 = vmatprep.subr.mxu0 0.0
        %720 = vmatpush1.msra.mxu0 0.0
        %721 = vmatprep.subr.mxu0 0.0
        %722 = vmatpush1.msra.mxu0 0.0
        %723 = vmatprep.subr.mxu0 0.0
        %724 = vmatpush1.msra.mxu0 0.0
        %725 = vmatprep.subr.mxu0 0.0
        %726 = vmatpush1.msra.mxu0 0.0
        %727 = vmatprep.subr.mxu0 0.0
        %728 = vmatpush1.msra.mxu0 0.0
        %729 = vmatprep.subr.mxu0 0.0
        %730 = vmatpush1.msra.mxu0 0.0
        %731 = vmatprep.subr.mxu0 0.0
        %732 = vmatpush1.msra.mxu0 0.0
        %733 = vmatprep.subr.mxu0 0.0
        %734 = vmatpush1.msra.mxu0 0.0
        %735 = vmatprep.subr.mxu0 0.0
        %736 = vmatpush1.msra.mxu0 0.0
        %737 = vmatprep.subr.mxu0 0.0
        %738 = vmatpush1.msra.mxu0 0.0
        %739 = vmatprep.mubr.f32.mxu0 0.0
        %v740 = vand.u32 %v245, 4294901760
        %741 = vmatmul.mubr.f32.gmra.mrb[0].mxu0 %v740
        %v742 = vpop.f32.mrb[0].mxu0
        %v743 = vadd.f32 %v664, %v742
        %v744 = vpop.f32.mrb[0].mxu0
        %745 = vmatprep.mubr.f32.mxu0 0.0
        %v746 = vand.u32 %v248, 4294901760
        %747 = vmatmul.mubr.f32.gmra.mrb[0].mxu0 %v746
        %v748 = vpop.f32.mrb[0].mxu0
        %v749 = vadd.f32 %v670, %v748
        %v750 = vpop.f32.mrb[0].mxu0
        %751 = vdwg.mxu0
        %v753 = vsel %vm243, %v231, 0
        %v756 = vsel %vm243, %v232, 0
        %758 = vmatprep.subr.mxu0 0.0
        %v759 = vand.u32 %v237, 4294901760
        %760 = vmatpush1.msra.mxu0 %v759
        %761 = vmatprep.subr.mxu0 0.0
        %v762 = vand.u32 %v238, 4294901760
        %763 = vmatpush1.msra.mxu0 %v762
        %764 = vmatprep.subr.mxu0 0.0
        %765 = vmatpush1.msra.mxu0 0.0
        %766 = vmatprep.subr.mxu0 0.0
        %767 = vmatpush1.msra.mxu0 0.0
        %768 = vmatprep.subr.mxu0 0.0
        %769 = vmatpush1.msra.mxu0 0.0
        %770 = vmatprep.subr.mxu0 0.0
        %771 = vmatpush1.msra.mxu0 0.0
        %772 = vmatprep.subr.mxu0 0.0
        %773 = vmatpush1.msra.mxu0 0.0
        %774 = vmatprep.subr.mxu0 0.0
        %775 = vmatpush1.msra.mxu0 0.0
        %776 = vmatprep.subr.mxu0 0.0
        %777 = vmatpush1.msra.mxu0 0.0
        %778 = vmatprep.subr.mxu0 0.0
        %779 = vmatpush1.msra.mxu0 0.0
        %780 = vmatprep.subr.mxu0 0.0
        %781 = vmatpush1.msra.mxu0 0.0
        %782 = vmatprep.subr.mxu0 0.0
        %783 = vmatpush1.msra.mxu0 0.0
        %784 = vmatprep.subr.mxu0 0.0
        %785 = vmatpush1.msra.mxu0 0.0
        %786 = vmatprep.subr.mxu0 0.0
        %787 = vmatpush1.msra.mxu0 0.0
        %788 = vmatprep.subr.mxu0 0.0
        %789 = vmatpush1.msra.mxu0 0.0
        %790 = vmatprep.subr.mxu0 0.0
        %791 = vmatpush1.msra.mxu0 0.0
        %792 = vmatprep.subr.mxu0 0.0
        %793 = vmatpush1.msra.mxu0 0.0
        %794 = vmatprep.subr.mxu0 0.0
        %795 = vmatpush1.msra.mxu0 0.0
        %796 = vmatprep.subr.mxu0 0.0
        %797 = vmatpush1.msra.mxu0 0.0
        %798 = vmatprep.subr.mxu0 0.0
        %799 = vmatpush1.msra.mxu0 0.0
        %800 = vmatprep.subr.mxu0 0.0
        %801 = vmatpush1.msra.mxu0 0.0
        %802 = vmatprep.subr.mxu0 0.0
        %803 = vmatpush1.msra.mxu0 0.0
        %804 = vmatprep.subr.mxu0 0.0
        %805 = vmatpush1.msra.mxu0 0.0
        %806 = vmatprep.subr.mxu0 0.0
        %807 = vmatpush1.msra.mxu0 0.0
        %808 = vmatprep.subr.mxu0 0.0
        %809 = vmatpush1.msra.mxu0 0.0
        %810 = vmatprep.subr.mxu0 0.0
        %811 = vmatpush1.msra.mxu0 0.0
        %812 = vmatprep.subr.mxu0 0.0
        %813 = vmatpush1.msra.mxu0 0.0
        %814 = vmatprep.subr.mxu0 0.0
        %815 = vmatpush1.msra.mxu0 0.0
        %816 = vmatprep.subr.mxu0 0.0
        %817 = vmatpush1.msra.mxu0 0.0
        %818 = vmatprep.subr.mxu0 0.0
        %819 = vmatpush1.msra.mxu0 0.0
        %820 = vmatprep.subr.mxu0 0.0
        %821 = vmatpush1.msra.mxu0 0.0
        %822 = vmatprep.subr.mxu0 0.0
        %823 = vmatpush1.msra.mxu0 0.0
        %824 = vmatprep.mubr.f32.mxu0 0.0
        %v825 = vand.u32 %v753, 4294901760
        %v826 = vsub.f32 %v753, %v825
        %v827 = vand.u32 %v826, 4294901760
        %v828 = vsub.f32 %v826, %v827
        %v829 = vand.u32 %v828, 4294901760
        %830 = vmatmul.mubr.f32.gmra.mrb[0].mxu0 %v829
        %v831 = vpop.f32.mrb[0].mxu0
        %v832 = vadd.f32 0.0, %v831
        %v833 = vpop.f32.mrb[0].mxu0
        %834 = vmatprep.mubr.f32.mxu0 0.0
        %v835 = vand.u32 %v756, 4294901760
        %v836 = vsub.f32 %v756, %v835
        %v837 = vand.u32 %v836, 4294901760
        %v838 = vsub.f32 %v836, %v837
        %v839 = vand.u32 %v838, 4294901760
        %840 = vmatmul.mubr.f32.gmra.mrb[0].mxu0 %v839
        %v841 = vpop.f32.mrb[0].mxu0
        %v842 = vadd.f32 0.0, %v841
        %v843 = vpop.f32.mrb[0].mxu0
        %844 = vdwg.mxu0
        %845 = vmatprep.subr.mxu0 0.0
        %v846 = vand.u32 %v237, 4294901760
        %v847 = vsub.f32 %v237, %v846
        %v848 = vand.u32 %v847, 4294901760
        %v849 = vsub.f32 %v847, %v848
        %v850 = vand.u32 %v849, 4294901760
        %851 = vmatpush1.msra.mxu0 %v850
        %852 = vmatprep.subr.mxu0 0.0
        %v853 = vand.u32 %v238, 4294901760
        %v854 = vsub.f32 %v238, %v853
        %v855 = vand.u32 %v854, 4294901760
        %v856 = vsub.f32 %v854, %v855
        %v857 = vand.u32 %v856, 4294901760
        %858 = vmatpush1.msra.mxu0 %v857
        %859 = vmatprep.subr.mxu0 0.0
        %860 = vmatpush1.msra.mxu0 0.0
        %861 = vmatprep.subr.mxu0 0.0
        %862 = vmatpush1.msra.mxu0 0.0
        %863 = vmatprep.subr.mxu0 0.0
        %864 = vmatpush1.msra.mxu0 0.0
        %865 = vmatprep.subr.mxu0 0.0
        %866 = vmatpush1.msra.mxu0 0.0
        %867 = vmatprep.subr.mxu0 0.0
        %868 = vmatpush1.msra.mxu0 0.0
        %869 = vmatprep.subr.mxu0 0.0
        %870 = vmatpush1.msra.mxu0 0.0
        %871 = vmatprep.subr.mxu0 0.0
        %872 = vmatpush1.msra.mxu0 0.0
        %873 = vmatprep.subr.mxu0 0.0
        %874 = vmatpush1.msra.mxu0 0.0
        %875 = vmatprep.subr.mxu0 0.0
        %876 = vmatpush1.msra.mxu0 0.0
        %877 = vmatprep.subr.mxu0 0.0
        %878 = vmatpush1.msra.mxu0 0.0
        %879 = vmatprep.subr.mxu0 0.0
        %880 = vmatpush1.msra.mxu0 0.0
        %881 = vmatprep.subr.mxu0 0.0
        %882 = vmatpush1.msra.mxu0 0.0
        %883 = vmatprep.subr.mxu0 0.0
        %884 = vmatpush1.msra.mxu0 0.0
        %885 = vmatprep.subr.mxu0 0.0
        %886 = vmatpush1.msra.mxu0 0.0
        %887 = vmatprep.subr.mxu0 0.0
        %888 = vmatpush1.msra.mxu0 0.0
        %889 = vmatprep.subr.mxu0 0.0
        %890 = vmatpush1.msra.mxu0 0.0
        %891 = vmatprep.subr.mxu0 0.0
        %892 = vmatpush1.msra.mxu0 0.0
        %893 = vmatprep.subr.mxu0 0.0
        %894 = vmatpush1.msra.mxu0 0.0
        %895 = vmatprep.subr.mxu0 0.0
        %896 = vmatpush1.msra.mxu0 0.0
        %897 = vmatprep.subr.mxu0 0.0
        %898 = vmatpush1.msra.mxu0 0.0
        %899 = vmatprep.subr.mxu0 0.0
        %900 = vmatpush1.msra.mxu0 0.0
        %901 = vmatprep.subr.mxu0 0.0
        %902 = vmatpush1.msra.mxu0 0.0
        %903 = vmatprep.subr.mxu0 0.0
        %904 = vmatpush1.msra.mxu0 0.0
        %905 = vmatprep.subr.mxu0 0.0
        %906 = vmatpush1.msra.mxu0 0.0
        %907 = vmatprep.subr.mxu0 0.0
        %908 = vmatpush1.msra.mxu0 0.0
        %909 = vmatprep.subr.mxu0 0.0
        %910 = vmatpush1.msra.mxu0 0.0
        %911 = vmatprep.subr.mxu0 0.0
        %912 = vmatpush1.msra.mxu0 0.0
        %913 = vmatprep.subr.mxu0 0.0
        %914 = vmatpush1.msra.mxu0 0.0
        %915 = vmatprep.subr.mxu0 0.0
        %916 = vmatpush1.msra.mxu0 0.0
        %917 = vmatprep.subr.mxu0 0.0
        %918 = vmatpush1.msra.mxu0 0.0
        %919 = vmatprep.mubr.f32.mxu0 0.0
        %v920 = vand.u32 %v753, 4294901760
        %921 = vmatmul.mubr.f32.gmra.mrb[0].mxu0 %v920
        %v922 = vpop.f32.mrb[0].mxu0
        %v923 = vadd.f32 %v832, %v922
        %v924 = vpop.f32.mrb[0].mxu0
        %925 = vmatprep.mubr.f32.mxu0 0.0
        %v926 = vand.u32 %v756, 4294901760
        %927 = vmatmul.mubr.f32.gmra.mrb[0].mxu0 %v926
        %v928 = vpop.f32.mrb[0].mxu0
        %v929 = vadd.f32 %v842, %v928
        %v930 = vpop.f32.mrb[0].mxu0
        %931 = vdwg.mxu0
        %932 = vmatprep.subr.mxu0 0.0
        %v933 = vand.u32 %v237, 4294901760
        %v934 = vsub.f32 %v237, %v933
        %935 = vmatpush1.msra.mxu0 %v934
        %936 = vmatprep.subr.mxu0 0.0
        %v937 = vand.u32 %v238, 4294901760
        %v938 = vsub.f32 %v238, %v937
        %939 = vmatpush1.msra.mxu0 %v938
        %940 = vmatprep.subr.mxu0 0.0
        %941 = vmatpush1.msra.mxu0 0.0
        %942 = vmatprep.subr.mxu0 0.0
        %943 = vmatpush1.msra.mxu0 0.0
        %944 = vmatprep.subr.mxu0 0.0
        %945 = vmatpush1.msra.mxu0 0.0
        %946 = vmatprep.subr.mxu0 0.0
        %947 = vmatpush1.msra.mxu0 0.0
        %948 = vmatprep.subr.mxu0 0.0
        %949 = vmatpush1.msra.mxu0 0.0
        %950 = vmatprep.subr.mxu0 0.0
        %951 = vmatpush1.msra.mxu0 0.0
        %952 = vmatprep.subr.mxu0 0.0
        %953 = vmatpush1.msra.mxu0 0.0
        %954 = vmatprep.subr.mxu0 0.0
        %955 = vmatpush1.msra.mxu0 0.0
        %956 = vmatprep.subr.mxu0 0.0
        %957 = vmatpush1.msra.mxu0 0.0
        %958 = vmatprep.subr.mxu0 0.0
        %959 = vmatpush1.msra.mxu0 0.0
        %960 = vmatprep.subr.mxu0 0.0
        %961 = vmatpush1.msra.mxu0 0.0
        %962 = vmatprep.subr.mxu0 0.0
        %963 = vmatpush1.msra.mxu0 0.0
        %964 = vmatprep.subr.mxu0 0.0
        %965 = vmatpush1.msra.mxu0 0.0
        %966 = vmatprep.subr.mxu0 0.0
        %967 = vmatpush1.msra.mxu0 0.0
        %968 = vmatprep.subr.mxu0 0.0
        %969 = vmatpush1.msra.mxu0 0.0
        %970 = vmatprep.subr.mxu0 0.0
        %971 = vmatpush1.msra.mxu0 0.0
        %972 = vmatprep.subr.mxu0 0.0
        %973 = vmatpush1.msra.mxu0 0.0
        %974 = vmatprep.subr.mxu0 0.0
        %975 = vmatpush1.msra.mxu0 0.0
        %976 = vmatprep.subr.mxu0 0.0
        %977 = vmatpush1.msra.mxu0 0.0
        %978 = vmatprep.subr.mxu0 0.0
        %979 = vmatpush1.msra.mxu0 0.0
        %980 = vmatprep.subr.mxu0 0.0
        %981 = vmatpush1.msra.mxu0 0.0
        %982 = vmatprep.subr.mxu0 0.0
        %983 = vmatpush1.msra.mxu0 0.0
        %984 = vmatprep.subr.mxu0 0.0
        %985 = vmatpush1.msra.mxu0 0.0
        %986 = vmatprep.subr.mxu0 0.0
        %987 = vmatpush1.msra.mxu0 0.0
        %988 = vmatprep.subr.mxu0 0.0
        %989 = vmatpush1.msra.mxu0 0.0
        %990 = vmatprep.subr.mxu0 0.0
        %991 = vmatpush1.msra.mxu0 0.0
        %992 = vmatprep.subr.mxu0 0.0
        %993 = vmatpush1.msra.mxu0 0.0
        %994 = vmatprep.subr.mxu0 0.0
        %995 = vmatpush1.msra.mxu0 0.0
        %996 = vmatprep.subr.mxu0 0.0
        %997 = vmatpush1.msra.mxu0 0.0
        %998 = vmatprep.subr.mxu0 0.0
        %999 = vmatpush1.msra.mxu0 0.0
        %1000 = vmatprep.mubr.f32.mxu0 0.0
        %v1001 = vand.u32 %v753, 4294901760
        %v1002 = vsub.f32 %v753, %v1001
        %1003 = vmatmul.mubr.f32.gmra.mrb[0].mxu0 %v1002
        %v1004 = vpop.f32.mrb[0].mxu0
        %v1005 = vadd.f32 %v923, %v1004
        %v1006 = vpop.f32.mrb[0].mxu0
        %1007 = vmatprep.mubr.f32.mxu0 0.0
        %v1008 = vand.u32 %v756, 4294901760
        %v1009 = vsub.f32 %v756, %v1008
        %1010 = vmatmul.mubr.f32.gmra.mrb[0].mxu0 %v1009
        %v1011 = vpop.f32.mrb[0].mxu0
        %v1012 = vadd.f32 %v929, %v1011
        %v1013 = vpop.f32.mrb[0].mxu0
        %1014 = vdwg.mxu0
        %1015 = vmatprep.subr.mxu0 0.0
        %v1016 = vand.u32 %v237, 4294901760
        %1017 = vmatpush1.msra.mxu0 %v1016
        %1018 = vmatprep.subr.mxu0 0.0
        %v1019 = vand.u32 %v238, 4294901760
        %1020 = vmatpush1.msra.mxu0 %v1019
        %1021 = vmatprep.subr.mxu0 0.0
        %1022 = vmatpush1.msra.mxu0 0.0
        %1023 = vmatprep.subr.mxu0 0.0
        %1024 = vmatpush1.msra.mxu0 0.0
        %1025 = vmatprep.subr.mxu0 0.0
        %1026 = vmatpush1.msra.mxu0 0.0
        %1027 = vmatprep.subr.mxu0 0.0
        %1028 = vmatpush1.msra.mxu0 0.0
        %1029 = vmatprep.subr.mxu0 0.0
        %1030 = vmatpush1.msra.mxu0 0.0
        %1031 = vmatprep.subr.mxu0 0.0
        %1032 = vmatpush1.msra.mxu0 0.0
        %1033 = vmatprep.subr.mxu0 0.0
        %1034 = vmatpush1.msra.mxu0 0.0
        %1035 = vmatprep.subr.mxu0 0.0
        %1036 = vmatpush1.msra.mxu0 0.0
        %1037 = vmatprep.subr.mxu0 0.0
        %1038 = vmatpush1.msra.mxu0 0.0
        %1039 = vmatprep.subr.mxu0 0.0
        %1040 = vmatpush1.msra.mxu0 0.0
        %1041 = vmatprep.subr.mxu0 0.0
        %1042 = vmatpush1.msra.mxu0 0.0
        %1043 = vmatprep.subr.mxu0 0.0
        %1044 = vmatpush1.msra.mxu0 0.0
        %1045 = vmatprep.subr.mxu0 0.0
        %1046 = vmatpush1.msra.mxu0 0.0
        %1047 = vmatprep.subr.mxu0 0.0
        %1048 = vmatpush1.msra.mxu0 0.0
        %1049 = vmatprep.subr.mxu0 0.0
        %1050 = vmatpush1.msra.mxu0 0.0
        %1051 = vmatprep.subr.mxu0 0.0
        %1052 = vmatpush1.msra.mxu0 0.0
        %1053 = vmatprep.subr.mxu0 0.0
        %1054 = vmatpush1.msra.mxu0 0.0
        %1055 = vmatprep.subr.mxu0 0.0
        %1056 = vmatpush1.msra.mxu0 0.0
        %1057 = vmatprep.subr.mxu0 0.0
        %1058 = vmatpush1.msra.mxu0 0.0
        %1059 = vmatprep.subr.mxu0 0.0
        %1060 = vmatpush1.msra.mxu0 0.0
        %1061 = vmatprep.subr.mxu0 0.0
        %1062 = vmatpush1.msra.mxu0 0.0
        %1063 = vmatprep.subr.mxu0 0.0
        %1064 = vmatpush1.msra.mxu0 0.0
        %1065 = vmatprep.subr.mxu0 0.0
        %1066 = vmatpush1.msra.mxu0 0.0
        %1067 = vmatprep.subr.mxu0 0.0
        %1068 = vmatpush1.msra.mxu0 0.0
        %1069 = vmatprep.subr.mxu0 0.0
        %1070 = vmatpush1.msra.mxu0 0.0
        %1071 = vmatprep.subr.mxu0 0.0
        %1072 = vmatpush1.msra.mxu0 0.0
        %1073 = vmatprep.subr.mxu0 0.0
        %1074 = vmatpush1.msra.mxu0 0.0
        %1075 = vmatprep.subr.mxu0 0.0
        %1076 = vmatpush1.msra.mxu0 0.0
        %1077 = vmatprep.subr.mxu0 0.0
        %1078 = vmatpush1.msra.mxu0 0.0
        %1079 = vmatprep.subr.mxu0 0.0
        %1080 = vmatpush1.msra.mxu0 0.0
        %1081 = vmatprep.mubr.f32.mxu0 0.0
        %v1082 = vand.u32 %v753, 4294901760
        %v1083 = vsub.f32 %v753, %v1082
        %v1084 = vand.u32 %v1083, 4294901760
        %1085 = vmatmul.mubr.f32.gmra.mrb[0].mxu0 %v1084
        %v1086 = vpop.f32.mrb[0].mxu0
        %v1087 = vadd.f32 %v1005, %v1086
        %v1088 = vpop.f32.mrb[0].mxu0
        %1089 = vmatprep.mubr.f32.mxu0 0.0
        %v1090 = vand.u32 %v756, 4294901760
        %v1091 = vsub.f32 %v756, %v1090
        %v1092 = vand.u32 %v1091, 4294901760
        %1093 = vmatmul.mubr.f32.gmra.mrb[0].mxu0 %v1092
        %v1094 = vpop.f32.mrb[0].mxu0
        %v1095 = vadd.f32 %v1012, %v1094
        %v1096 = vpop.f32.mrb[0].mxu0
        %1097 = vdwg.mxu0
        %1098 = vmatprep.subr.mxu0 0.0
        %v1099 = vand.u32 %v237, 4294901760
        %v1100 = vsub.f32 %v237, %v1099
        %v1101 = vand.u32 %v1100, 4294901760
        %1102 = vmatpush1.msra.mxu0 %v1101
        %1103 = vmatprep.subr.mxu0 0.0
        %v1104 = vand.u32 %v238, 4294901760
        %v1105 = vsub.f32 %v238, %v1104
        %v1106 = vand.u32 %v1105, 4294901760
        %1107 = vmatpush1.msra.mxu0 %v1106
        %1108 = vmatprep.subr.mxu0 0.0
        %1109 = vmatpush1.msra.mxu0 0.0
        %1110 = vmatprep.subr.mxu0 0.0
        %1111 = vmatpush1.msra.mxu0 0.0
        %1112 = vmatprep.subr.mxu0 0.0
        %1113 = vmatpush1.msra.mxu0 0.0
        %1114 = vmatprep.subr.mxu0 0.0
        %1115 = vmatpush1.msra.mxu0 0.0
        %1116 = vmatprep.subr.mxu0 0.0
        %1117 = vmatpush1.msra.mxu0 0.0
        %1118 = vmatprep.subr.mxu0 0.0
        %1119 = vmatpush1.msra.mxu0 0.0
        %1120 = vmatprep.subr.mxu0 0.0
        %1121 = vmatpush1.msra.mxu0 0.0
        %1122 = vmatprep.subr.mxu0 0.0
        %1123 = vmatpush1.msra.mxu0 0.0
        %1124 = vmatprep.subr.mxu0 0.0
        %1125 = vmatpush1.msra.mxu0 0.0
        %1126 = vmatprep.subr.mxu0 0.0
        %1127 = vmatpush1.msra.mxu0 0.0
        %1128 = vmatprep.subr.mxu0 0.0
        %1129 = vmatpush1.msra.mxu0 0.0
        %1130 = vmatprep.subr.mxu0 0.0
        %1131 = vmatpush1.msra.mxu0 0.0
        %1132 = vmatprep.subr.mxu0 0.0
        %1133 = vmatpush1.msra.mxu0 0.0
        %1134 = vmatprep.subr.mxu0 0.0
        %1135 = vmatpush1.msra.mxu0 0.0
        %1136 = vmatprep.subr.mxu0 0.0
        %1137 = vmatpush1.msra.mxu0 0.0
        %1138 = vmatprep.subr.mxu0 0.0
        %1139 = vmatpush1.msra.mxu0 0.0
        %1140 = vmatprep.subr.mxu0 0.0
        %1141 = vmatpush1.msra.mxu0 0.0
        %1142 = vmatprep.subr.mxu0 0.0
        %1143 = vmatpush1.msra.mxu0 0.0
        %1144 = vmatprep.subr.mxu0 0.0
        %1145 = vmatpush1.msra.mxu0 0.0
        %1146 = vmatprep.subr.mxu0 0.0
        %1147 = vmatpush1.msra.mxu0 0.0
        %1148 = vmatprep.subr.mxu0 0.0
        %1149 = vmatpush1.msra.mxu0 0.0
        %1150 = vmatprep.subr.mxu0 0.0
        %1151 = vmatpush1.msra.mxu0 0.0
        %1152 = vmatprep.subr.mxu0 0.0
        %1153 = vmatpush1.msra.mxu0 0.0
        %1154 = vmatprep.subr.mxu0 0.0
        %1155 = vmatpush1.msra.mxu0 0.0
        %1156 = vmatprep.subr.mxu0 0.0
        %1157 = vmatpush1.msra.mxu0 0.0
        %1158 = vmatprep.subr.mxu0 0.0
        %1159 = vmatpush1.msra.mxu0 0.0
        %1160 = vmatprep.subr.mxu0 0.0
        %1161 = vmatpush1.msra.mxu0 0.0
        %1162 = vmatprep.subr.mxu0 0.0
        %1163 = vmatpush1.msra.mxu0 0.0
        %1164 = vmatprep.subr.mxu0 0.0
        %1165 = vmatpush1.msra.mxu0 0.0
        %1166 = vmatprep.subr.mxu0 0.0
        %1167 = vmatpush1.msra.mxu0 0.0
        %1168 = vmatprep.mubr.f32.mxu0 0.0
        %v1169 = vand.u32 %v753, 4294901760
        %1170 = vmatmul.mubr.f32.gmra.mrb[0].mxu0 %v1169
        %v1171 = vpop.f32.mrb[0].mxu0
        %v1172 = vadd.f32 %v1087, %v1171
        %v1173 = vpop.f32.mrb[0].mxu0
        %1174 = vmatprep.mubr.f32.mxu0 0.0
        %v1175 = vand.u32 %v756, 4294901760
        %1176 = vmatmul.mubr.f32.gmra.mrb[0].mxu0 %v1175
        %v1177 = vpop.f32.mrb[0].mxu0
        %v1178 = vadd.f32 %v1095, %v1177
        %v1179 = vpop.f32.mrb[0].mxu0
        %1180 = vdwg.mxu0
        %1181 = vmatprep.subr.mxu0 0.0
        %v1182 = vand.u32 %v237, 4294901760
        %1183 = vmatpush1.msra.mxu0 %v1182
        %1184 = vmatprep.subr.mxu0 0.0
        %v1185 = vand.u32 %v238, 4294901760
        %1186 = vmatpush1.msra.mxu0 %v1185
        %1187 = vmatprep.subr.mxu0 0.0
        %1188 = vmatpush1.msra.mxu0 0.0
        %1189 = vmatprep.subr.mxu0 0.0
        %1190 = vmatpush1.msra.mxu0 0.0
        %1191 = vmatprep.subr.mxu0 0.0
        %1192 = vmatpush1.msra.mxu0 0.0
        %1193 = vmatprep.subr.mxu0 0.0
        %1194 = vmatpush1.msra.mxu0 0.0
        %1195 = vmatprep.subr.mxu0 0.0
        %1196 = vmatpush1.msra.mxu0 0.0
        %1197 = vmatprep.subr.mxu0 0.0
        %1198 = vmatpush1.msra.mxu0 0.0
        %1199 = vmatprep.subr.mxu0 0.0
        %1200 = vmatpush1.msra.mxu0 0.0
        %1201 = vmatprep.subr.mxu0 0.0
        %1202 = vmatpush1.msra.mxu0 0.0
        %1203 = vmatprep.subr.mxu0 0.0
        %1204 = vmatpush1.msra.mxu0 0.0
        %1205 = vmatprep.subr.mxu0 0.0
        %1206 = vmatpush1.msra.mxu0 0.0
        %1207 = vmatprep.subr.mxu0 0.0
        %1208 = vmatpush1.msra.mxu0 0.0
        %1209 = vmatprep.subr.mxu0 0.0
        %1210 = vmatpush1.msra.mxu0 0.0
        %1211 = vmatprep.subr.mxu0 0.0
        %1212 = vmatpush1.msra.mxu0 0.0
        %1213 = vmatprep.subr.mxu0 0.0
        %1214 = vmatpush1.msra.mxu0 0.0
        %1215 = vmatprep.subr.mxu0 0.0
        %1216 = vmatpush1.msra.mxu0 0.0
        %1217 = vmatprep.subr.mxu0 0.0
        %1218 = vmatpush1.msra.mxu0 0.0
        %1219 = vmatprep.subr.mxu0 0.0
        %1220 = vmatpush1.msra.mxu0 0.0
        %1221 = vmatprep.subr.mxu0 0.0
        %1222 = vmatpush1.msra.mxu0 0.0
        %1223 = vmatprep.subr.mxu0 0.0
        %1224 = vmatpush1.msra.mxu0 0.0
        %1225 = vmatprep.subr.mxu0 0.0
        %1226 = vmatpush1.msra.mxu0 0.0
        %1227 = vmatprep.subr.mxu0 0.0
        %1228 = vmatpush1.msra.mxu0 0.0
        %1229 = vmatprep.subr.mxu0 0.0
        %1230 = vmatpush1.msra.mxu0 0.0
        %1231 = vmatprep.subr.mxu0 0.0
        %1232 = vmatpush1.msra.mxu0 0.0
        %1233 = vmatprep.subr.mxu0 0.0
        %1234 = vmatpush1.msra.mxu0 0.0
        %1235 = vmatprep.subr.mxu0 0.0
        %1236 = vmatpush1.msra.mxu0 0.0
        %1237 = vmatprep.subr.mxu0 0.0
        %1238 = vmatpush1.msra.mxu0 0.0
        %1239 = vmatprep.subr.mxu0 0.0
        %1240 = vmatpush1.msra.mxu0 0.0
        %1241 = vmatprep.subr.mxu0 0.0
        %1242 = vmatpush1.msra.mxu0 0.0
        %1243 = vmatprep.subr.mxu0 0.0
        %1244 = vmatpush1.msra.mxu0 0.0
        %1245 = vmatprep.subr.mxu0 0.0
        %1246 = vmatpush1.msra.mxu0 0.0
        %1247 = vmatprep.mubr.f32.mxu0 0.0
        %v1248 = vand.u32 %v753, 4294901760
        %1249 = vmatmul.mubr.f32.gmra.mrb[0].mxu0 %v1248
        %v1250 = vpop.f32.mrb[0].mxu0
        %v1251 = vadd.f32 %v1172, %v1250
        %v1252 = vpop.f32.mrb[0].mxu0
        %1253 = vmatprep.mubr.f32.mxu0 0.0
        %v1254 = vand.u32 %v756, 4294901760
        %1255 = vmatmul.mubr.f32.gmra.mrb[0].mxu0 %v1254
        %v1256 = vpop.f32.mrb[0].mxu0
        %v1257 = vadd.f32 %v1178, %v1256
        %v1258 = vpop.f32.mrb[0].mxu0
        %1259 = vdwg.mxu0
        %v1261 = vsel %vm243, %v233, 0
        %v1264 = vsel %vm243, %v234, 0
        %1266 = vmatprep.subr.mxu0 0.0
        %v1267 = vand.u32 %v237, 4294901760
        %1268 = vmatpush1.msra.mxu0 %v1267
        %1269 = vmatprep.subr.mxu0 0.0
        %v1270 = vand.u32 %v238, 4294901760
        %1271 = vmatpush1.msra.mxu0 %v1270
        %1272 = vmatprep.subr.mxu0 0.0
        %1273 = vmatpush1.msra.mxu0 0.0
        %1274 = vmatprep.subr.mxu0 0.0
        %1275 = vmatpush1.msra.mxu0 0.0
        %1276 = vmatprep.subr.mxu0 0.0
        %1277 = vmatpush1.msra.mxu0 0.0
        %1278 = vmatprep.subr.mxu0 0.0
        %1279 = vmatpush1.msra.mxu0 0.0
        %1280 = vmatprep.subr.mxu0 0.0
        %1281 = vmatpush1.msra.mxu0 0.0
        %1282 = vmatprep.subr.mxu0 0.0
        %1283 = vmatpush1.msra.mxu0 0.0
        %1284 = vmatprep.subr.mxu0 0.0
        %1285 = vmatpush1.msra.mxu0 0.0
        %1286 = vmatprep.subr.mxu0 0.0
        %1287 = vmatpush1.msra.mxu0 0.0
        %1288 = vmatprep.subr.mxu0 0.0
        %1289 = vmatpush1.msra.mxu0 0.0
        %1290 = vmatprep.subr.mxu0 0.0
        %1291 = vmatpush1.msra.mxu0 0.0
        %1292 = vmatprep.subr.mxu0 0.0
        %1293 = vmatpush1.msra.mxu0 0.0
        %1294 = vmatprep.subr.mxu0 0.0
        %1295 = vmatpush1.msra.mxu0 0.0
        %1296 = vmatprep.subr.mxu0 0.0
        %1297 = vmatpush1.msra.mxu0 0.0
        %1298 = vmatprep.subr.mxu0 0.0
        %1299 = vmatpush1.msra.mxu0 0.0
        %1300 = vmatprep.subr.mxu0 0.0
        %1301 = vmatpush1.msra.mxu0 0.0
        %1302 = vmatprep.subr.mxu0 0.0
        %1303 = vmatpush1.msra.mxu0 0.0
        %1304 = vmatprep.subr.mxu0 0.0
        %1305 = vmatpush1.msra.mxu0 0.0
        %1306 = vmatprep.subr.mxu0 0.0
        %1307 = vmatpush1.msra.mxu0 0.0
        %1308 = vmatprep.subr.mxu0 0.0
        %1309 = vmatpush1.msra.mxu0 0.0
        %1310 = vmatprep.subr.mxu0 0.0
        %1311 = vmatpush1.msra.mxu0 0.0
        %1312 = vmatprep.subr.mxu0 0.0
        %1313 = vmatpush1.msra.mxu0 0.0
        %1314 = vmatprep.subr.mxu0 0.0
        %1315 = vmatpush1.msra.mxu0 0.0
        %1316 = vmatprep.subr.mxu0 0.0
        %1317 = vmatpush1.msra.mxu0 0.0
        %1318 = vmatprep.subr.mxu0 0.0
        %1319 = vmatpush1.msra.mxu0 0.0
        %1320 = vmatprep.subr.mxu0 0.0
        %1321 = vmatpush1.msra.mxu0 0.0
        %1322 = vmatprep.subr.mxu0 0.0
        %1323 = vmatpush1.msra.mxu0 0.0
        %1324 = vmatprep.subr.mxu0 0.0
        %1325 = vmatpush1.msra.mxu0 0.0
        %1326 = vmatprep.subr.mxu0 0.0
        %1327 = vmatpush1.msra.mxu0 0.0
        %1328 = vmatprep.subr.mxu0 0.0
        %1329 = vmatpush1.msra.mxu0 0.0
        %1330 = vmatprep.subr.mxu0 0.0
        %1331 = vmatpush1.msra.mxu0 0.0
        %1332 = vmatprep.mubr.f32.mxu0 0.0
        %v1333 = vand.u32 %v1261, 4294901760
        %v1334 = vsub.f32 %v1261, %v1333
        %v1335 = vand.u32 %v1334, 4294901760
        %v1336 = vsub.f32 %v1334, %v1335
        %v1337 = vand.u32 %v1336, 4294901760
        %1338 = vmatmul.mubr.f32.gmra.mrb[0].mxu0 %v1337
        %v1339 = vpop.f32.mrb[0].mxu0
        %v1340 = vadd.f32 0.0, %v1339
        %v1341 = vpop.f32.mrb[0].mxu0
        %1342 = vmatprep.mubr.f32.mxu0 0.0
        %v1343 = vand.u32 %v1264, 4294901760
        %v1344 = vsub.f32 %v1264, %v1343
        %v1345 = vand.u32 %v1344, 4294901760
        %v1346 = vsub.f32 %v1344, %v1345
        %v1347 = vand.u32 %v1346, 4294901760
        %1348 = vmatmul.mubr.f32.gmra.mrb[0].mxu0 %v1347
        %v1349 = vpop.f32.mrb[0].mxu0
        %v1350 = vadd.f32 0.0, %v1349
        %v1351 = vpop.f32.mrb[0].mxu0
        %1352 = vdwg.mxu0
        %1353 = vmatprep.subr.mxu0 0.0
        %v1354 = vand.u32 %v237, 4294901760
        %v1355 = vsub.f32 %v237, %v1354
        %v1356 = vand.u32 %v1355, 4294901760
        %v1357 = vsub.f32 %v1355, %v1356
        %v1358 = vand.u32 %v1357, 4294901760
        %1359 = vmatpush1.msra.mxu0 %v1358
        %1360 = vmatprep.subr.mxu0 0.0
        %v1361 = vand.u32 %v238, 4294901760
        %v1362 = vsub.f32 %v238, %v1361
        %v1363 = vand.u32 %v1362, 4294901760
        %v1364 = vsub.f32 %v1362, %v1363
        %v1365 = vand.u32 %v1364, 4294901760
        %1366 = vmatpush1.msra.mxu0 %v1365
        %1367 = vmatprep.subr.mxu0 0.0
        %1368 = vmatpush1.msra.mxu0 0.0
        %1369 = vmatprep.subr.mxu0 0.0
        %1370 = vmatpush1.msra.mxu0 0.0
        %1371 = vmatprep.subr.mxu0 0.0
        %1372 = vmatpush1.msra.mxu0 0.0
        %1373 = vmatprep.subr.mxu0 0.0
        %1374 = vmatpush1.msra.mxu0 0.0
        %1375 = vmatprep.subr.mxu0 0.0
        %1376 = vmatpush1.msra.mxu0 0.0
        %1377 = vmatprep.subr.mxu0 0.0
        %1378 = vmatpush1.msra.mxu0 0.0
        %1379 = vmatprep.subr.mxu0 0.0
        %1380 = vmatpush1.msra.mxu0 0.0
        %1381 = vmatprep.subr.mxu0 0.0
        %1382 = vmatpush1.msra.mxu0 0.0
        %1383 = vmatprep.subr.mxu0 0.0
        %1384 = vmatpush1.msra.mxu0 0.0
        %1385 = vmatprep.subr.mxu0 0.0
        %1386 = vmatpush1.msra.mxu0 0.0
        %1387 = vmatprep.subr.mxu0 0.0
        %1388 = vmatpush1.msra.mxu0 0.0
        %1389 = vmatprep.subr.mxu0 0.0
        %1390 = vmatpush1.msra.mxu0 0.0
        %1391 = vmatprep.subr.mxu0 0.0
        %1392 = vmatpush1.msra.mxu0 0.0
        %1393 = vmatprep.subr.mxu0 0.0
        %1394 = vmatpush1.msra.mxu0 0.0
        %1395 = vmatprep.subr.mxu0 0.0
        %1396 = vmatpush1.msra.mxu0 0.0
        %1397 = vmatprep.subr.mxu0 0.0
        %1398 = vmatpush1.msra.mxu0 0.0
        %1399 = vmatprep.subr.mxu0 0.0
        %1400 = vmatpush1.msra.mxu0 0.0
        %1401 = vmatprep.subr.mxu0 0.0
        %1402 = vmatpush1.msra.mxu0 0.0
        %1403 = vmatprep.subr.mxu0 0.0
        %1404 = vmatpush1.msra.mxu0 0.0
        %1405 = vmatprep.subr.mxu0 0.0
        %1406 = vmatpush1.msra.mxu0 0.0
        %1407 = vmatprep.subr.mxu0 0.0
        %1408 = vmatpush1.msra.mxu0 0.0
        %1409 = vmatprep.subr.mxu0 0.0
        %1410 = vmatpush1.msra.mxu0 0.0
        %1411 = vmatprep.subr.mxu0 0.0
        %1412 = vmatpush1.msra.mxu0 0.0
        %1413 = vmatprep.subr.mxu0 0.0
        %1414 = vmatpush1.msra.mxu0 0.0
        %1415 = vmatprep.subr.mxu0 0.0
        %1416 = vmatpush1.msra.mxu0 0.0
        %1417 = vmatprep.subr.mxu0 0.0
        %1418 = vmatpush1.msra.mxu0 0.0
        %1419 = vmatprep.subr.mxu0 0.0
        %1420 = vmatpush1.msra.mxu0 0.0
        %1421 = vmatprep.subr.mxu0 0.0
        %1422 = vmatpush1.msra.mxu0 0.0
        %1423 = vmatprep.subr.mxu0 0.0
        %1424 = vmatpush1.msra.mxu0 0.0
        %1425 = vmatprep.subr.mxu0 0.0
        %1426 = vmatpush1.msra.mxu0 0.0
        %1427 = vmatprep.mubr.f32.mxu0 0.0
        %v1428 = vand.u32 %v1261, 4294901760
        %1429 = vmatmul.mubr.f32.gmra.mrb[0].mxu0 %v1428
        %v1430 = vpop.f32.mrb[0].mxu0
        %v1431 = vadd.f32 %v1340, %v1430
        %v1432 = vpop.f32.mrb[0].mxu0
        %1433 = vmatprep.mubr.f32.mxu0 0.0
        %v1434 = vand.u32 %v1264, 4294901760
        %1435 = vmatmul.mubr.f32.gmra.mrb[0].mxu0 %v1434
        %v1436 = vpop.f32.mrb[0].mxu0
        %v1437 = vadd.f32 %v1350, %v1436
        %v1438 = vpop.f32.mrb[0].mxu0
        %1439 = vdwg.mxu0
        %1440 = vmatprep.subr.mxu0 0.0
        %v1441 = vand.u32 %v237, 4294901760
        %v1442 = vsub.f32 %v237, %v1441
        %1443 = vmatpush1.msra.mxu0 %v1442
        %1444 = vmatprep.subr.mxu0 0.0
        %v1445 = vand.u32 %v238, 4294901760
        %v1446 = vsub.f32 %v238, %v1445
        %1447 = vmatpush1.msra.mxu0 %v1446
        %1448 = vmatprep.subr.mxu0 0.0
        %1449 = vmatpush1.msra.mxu0 0.0
        %1450 = vmatprep.subr.mxu0 0.0
        %1451 = vmatpush1.msra.mxu0 0.0
        %1452 = vmatprep.subr.mxu0 0.0
        %1453 = vmatpush1.msra.mxu0 0.0
        %1454 = vmatprep.subr.mxu0 0.0
        %1455 = vmatpush1.msra.mxu0 0.0
        %1456 = vmatprep.subr.mxu0 0.0
        %1457 = vmatpush1.msra.mxu0 0.0
        %1458 = vmatprep.subr.mxu0 0.0
        %1459 = vmatpush1.msra.mxu0 0.0
        %1460 = vmatprep.subr.mxu0 0.0
        %1461 = vmatpush1.msra.mxu0 0.0
        %1462 = vmatprep.subr.mxu0 0.0
        %1463 = vmatpush1.msra.mxu0 0.0
        %1464 = vmatprep.subr.mxu0 0.0
        %1465 = vmatpush1.msra.mxu0 0.0
        %1466 = vmatprep.subr.mxu0 0.0
        %1467 = vmatpush1.msra.mxu0 0.0
        %1468 = vmatprep.subr.mxu0 0.0
        %1469 = vmatpush1.msra.mxu0 0.0
        %1470 = vmatprep.subr.mxu0 0.0
        %1471 = vmatpush1.msra.mxu0 0.0
        %1472 = vmatprep.subr.mxu0 0.0
        %1473 = vmatpush1.msra.mxu0 0.0
        %1474 = vmatprep.subr.mxu0 0.0
        %1475 = vmatpush1.msra.mxu0 0.0
        %1476 = vmatprep.subr.mxu0 0.0
        %1477 = vmatpush1.msra.mxu0 0.0
        %1478 = vmatprep.subr.mxu0 0.0
        %1479 = vmatpush1.msra.mxu0 0.0
        %1480 = vmatprep.subr.mxu0 0.0
        %1481 = vmatpush1.msra.mxu0 0.0
        %1482 = vmatprep.subr.mxu0 0.0
        %1483 = vmatpush1.msra.mxu0 0.0
        %1484 = vmatprep.subr.mxu0 0.0
        %1485 = vmatpush1.msra.mxu0 0.0
        %1486 = vmatprep.subr.mxu0 0.0
        %1487 = vmatpush1.msra.mxu0 0.0
        %1488 = vmatprep.subr.mxu0 0.0
        %1489 = vmatpush1.msra.mxu0 0.0
        %1490 = vmatprep.subr.mxu0 0.0
        %1491 = vmatpush1.msra.mxu0 0.0
        %1492 = vmatprep.subr.mxu0 0.0
        %1493 = vmatpush1.msra.mxu0 0.0
        %1494 = vmatprep.subr.mxu0 0.0
        %1495 = vmatpush1.msra.mxu0 0.0
        %1496 = vmatprep.subr.mxu0 0.0
        %1497 = vmatpush1.msra.mxu0 0.0
        %1498 = vmatprep.subr.mxu0 0.0
        %1499 = vmatpush1.msra.mxu0 0.0
        %1500 = vmatprep.subr.mxu0 0.0
        %1501 = vmatpush1.msra.mxu0 0.0
        %1502 = vmatprep.subr.mxu0 0.0
        %1503 = vmatpush1.msra.mxu0 0.0
        %1504 = vmatprep.subr.mxu0 0.0
        %1505 = vmatpush1.msra.mxu0 0.0
        %1506 = vmatprep.subr.mxu0 0.0
        %1507 = vmatpush1.msra.mxu0 0.0
        %1508 = vmatprep.mubr.f32.mxu0 0.0
        %v1509 = vand.u32 %v1261, 4294901760
        %v1510 = vsub.f32 %v1261, %v1509
        %1511 = vmatmul.mubr.f32.gmra.mrb[0].mxu0 %v1510
        %v1512 = vpop.f32.mrb[0].mxu0
        %v1513 = vadd.f32 %v1431, %v1512
        %v1514 = vpop.f32.mrb[0].mxu0
        %1515 = vmatprep.mubr.f32.mxu0 0.0
        %v1516 = vand.u32 %v1264, 4294901760
        %v1517 = vsub.f32 %v1264, %v1516
        %1518 = vmatmul.mubr.f32.gmra.mrb[0].mxu0 %v1517
        %v1519 = vpop.f32.mrb[0].mxu0
        %v1520 = vadd.f32 %v1437, %v1519
        %v1521 = vpop.f32.mrb[0].mxu0
        %1522 = vdwg.mxu0
        %1523 = vmatprep.subr.mxu0 0.0
        %v1524 = vand.u32 %v237, 4294901760
        %1525 = vmatpush1.msra.mxu0 %v1524
        %1526 = vmatprep.subr.mxu0 0.0
        %v1527 = vand.u32 %v238, 4294901760
        %1528 = vmatpush1.msra.mxu0 %v1527
        %1529 = vmatprep.subr.mxu0 0.0
        %1530 = vmatpush1.msra.mxu0 0.0
        %1531 = vmatprep.subr.mxu0 0.0
        %1532 = vmatpush1.msra.mxu0 0.0
        %1533 = vmatprep.subr.mxu0 0.0
        %1534 = vmatpush1.msra.mxu0 0.0
        %1535 = vmatprep.subr.mxu0 0.0
        %1536 = vmatpush1.msra.mxu0 0.0
        %1537 = vmatprep.subr.mxu0 0.0
        %1538 = vmatpush1.msra.mxu0 0.0
        %1539 = vmatprep.subr.mxu0 0.0
        %1540 = vmatpush1.msra.mxu0 0.0
        %1541 = vmatprep.subr.mxu0 0.0
        %1542 = vmatpush1.msra.mxu0 0.0
        %1543 = vmatprep.subr.mxu0 0.0
        %1544 = vmatpush1.msra.mxu0 0.0
        %1545 = vmatprep.subr.mxu0 0.0
        %1546 = vmatpush1.msra.mxu0 0.0
        %1547 = vmatprep.subr.mxu0 0.0
        %1548 = vmatpush1.msra.mxu0 0.0
        %1549 = vmatprep.subr.mxu0 0.0
        %1550 = vmatpush1.msra.mxu0 0.0
        %1551 = vmatprep.subr.mxu0 0.0
        %1552 = vmatpush1.msra.mxu0 0.0
        %1553 = vmatprep.subr.mxu0 0.0
        %1554 = vmatpush1.msra.mxu0 0.0
        %1555 = vmatprep.subr.mxu0 0.0
        %1556 = vmatpush1.msra.mxu0 0.0
        %1557 = vmatprep.subr.mxu0 0.0
        %1558 = vmatpush1.msra.mxu0 0.0
        %1559 = vmatprep.subr.mxu0 0.0
        %1560 = vmatpush1.msra.mxu0 0.0
        %1561 = vmatprep.subr.mxu0 0.0
        %1562 = vmatpush1.msra.mxu0 0.0
        %1563 = vmatprep.subr.mxu0 0.0
        %1564 = vmatpush1.msra.mxu0 0.0
        %1565 = vmatprep.subr.mxu0 0.0
        %1566 = vmatpush1.msra.mxu0 0.0
        %1567 = vmatprep.subr.mxu0 0.0
        %1568 = vmatpush1.msra.mxu0 0.0
        %1569 = vmatprep.subr.mxu0 0.0
        %1570 = vmatpush1.msra.mxu0 0.0
        %1571 = vmatprep.subr.mxu0 0.0
        %1572 = vmatpush1.msra.mxu0 0.0
        %1573 = vmatprep.subr.mxu0 0.0
        %1574 = vmatpush1.msra.mxu0 0.0
        %1575 = vmatprep.subr.mxu0 0.0
        %1576 = vmatpush1.msra.mxu0 0.0
        %1577 = vmatprep.subr.mxu0 0.0
        %1578 = vmatpush1.msra.mxu0 0.0
        %1579 = vmatprep.subr.mxu0 0.0
        %1580 = vmatpush1.msra.mxu0 0.0
        %1581 = vmatprep.subr.mxu0 0.0
        %1582 = vmatpush1.msra.mxu0 0.0
        %1583 = vmatprep.subr.mxu0 0.0
        %1584 = vmatpush1.msra.mxu0 0.0
        %1585 = vmatprep.subr.mxu0 0.0
        %1586 = vmatpush1.msra.mxu0 0.0
        %1587 = vmatprep.subr.mxu0 0.0
        %1588 = vmatpush1.msra.mxu0 0.0
        %1589 = vmatprep.mubr.f32.mxu0 0.0
        %v1590 = vand.u32 %v1261, 4294901760
        %v1591 = vsub.f32 %v1261, %v1590
        %v1592 = vand.u32 %v1591, 4294901760
        %1593 = vmatmul.mubr.f32.gmra.mrb[0].mxu0 %v1592
        %v1594 = vpop.f32.mrb[0].mxu0
        %v1595 = vadd.f32 %v1513, %v1594
        %v1596 = vpop.f32.mrb[0].mxu0
        %1597 = vmatprep.mubr.f32.mxu0 0.0
        %v1598 = vand.u32 %v1264, 4294901760
        %v1599 = vsub.f32 %v1264, %v1598
        %v1600 = vand.u32 %v1599, 4294901760
        %1601 = vmatmul.mubr.f32.gmra.mrb[0].mxu0 %v1600
        %v1602 = vpop.f32.mrb[0].mxu0
        %v1603 = vadd.f32 %v1520, %v1602
        %v1604 = vpop.f32.mrb[0].mxu0
        %1605 = vdwg.mxu0
        %1606 = vmatprep.subr.mxu0 0.0
        %v1607 = vand.u32 %v237, 4294901760
        %v1608 = vsub.f32 %v237, %v1607
        %v1609 = vand.u32 %v1608, 4294901760
        %1610 = vmatpush1.msra.mxu0 %v1609
        %1611 = vmatprep.subr.mxu0 0.0
        %v1612 = vand.u32 %v238, 4294901760
        %v1613 = vsub.f32 %v238, %v1612
        %v1614 = vand.u32 %v1613, 4294901760
        %1615 = vmatpush1.msra.mxu0 %v1614
        %1616 = vmatprep.subr.mxu0 0.0
        %1617 = vmatpush1.msra.mxu0 0.0
        %1618 = vmatprep.subr.mxu0 0.0
        %1619 = vmatpush1.msra.mxu0 0.0
        %1620 = vmatprep.subr.mxu0 0.0
        %1621 = vmatpush1.msra.mxu0 0.0
        %1622 = vmatprep.subr.mxu0 0.0
        %1623 = vmatpush1.msra.mxu0 0.0
        %1624 = vmatprep.subr.mxu0 0.0
        %1625 = vmatpush1.msra.mxu0 0.0
        %1626 = vmatprep.subr.mxu0 0.0
        %1627 = vmatpush1.msra.mxu0 0.0
        %1628 = vmatprep.subr.mxu0 0.0
        %1629 = vmatpush1.msra.mxu0 0.0
        %1630 = vmatprep.subr.mxu0 0.0
        %1631 = vmatpush1.msra.mxu0 0.0
        %1632 = vmatprep.subr.mxu0 0.0
        %1633 = vmatpush1.msra.mxu0 0.0
        %1634 = vmatprep.subr.mxu0 0.0
        %1635 = vmatpush1.msra.mxu0 0.0
        %1636 = vmatprep.subr.mxu0 0.0
        %1637 = vmatpush1.msra.mxu0 0.0
        %1638 = vmatprep.subr.mxu0 0.0
        %1639 = vmatpush1.msra.mxu0 0.0
        %1640 = vmatprep.subr.mxu0 0.0
        %1641 = vmatpush1.msra.mxu0 0.0
        %1642 = vmatprep.subr.mxu0 0.0
        %1643 = vmatpush1.msra.mxu0 0.0
        %1644 = vmatprep.subr.mxu0 0.0
        %1645 = vmatpush1.msra.mxu0 0.0
        %1646 = vmatprep.subr.mxu0 0.0
        %1647 = vmatpush1.msra.mxu0 0.0
        %1648 = vmatprep.subr.mxu0 0.0
        %1649 = vmatpush1.msra.mxu0 0.0
        %1650 = vmatprep.subr.mxu0 0.0
        %1651 = vmatpush1.msra.mxu0 0.0
        %1652 = vmatprep.subr.mxu0 0.0
        %1653 = vmatpush1.msra.mxu0 0.0
        %1654 = vmatprep.subr.mxu0 0.0
        %1655 = vmatpush1.msra.mxu0 0.0
        %1656 = vmatprep.subr.mxu0 0.0
        %1657 = vmatpush1.msra.mxu0 0.0
        %1658 = vmatprep.subr.mxu0 0.0
        %1659 = vmatpush1.msra.mxu0 0.0
        %1660 = vmatprep.subr.mxu0 0.0
        %1661 = vmatpush1.msra.mxu0 0.0
        %1662 = vmatprep.subr.mxu0 0.0
        %1663 = vmatpush1.msra.mxu0 0.0
        %1664 = vmatprep.subr.mxu0 0.0
        %1665 = vmatpush1.msra.mxu0 0.0
        %1666 = vmatprep.subr.mxu0 0.0
        %1667 = vmatpush1.msra.mxu0 0.0
        %1668 = vmatprep.subr.mxu0 0.0
        %1669 = vmatpush1.msra.mxu0 0.0
        %1670 = vmatprep.subr.mxu0 0.0
        %1671 = vmatpush1.msra.mxu0 0.0
        %1672 = vmatprep.subr.mxu0 0.0
        %1673 = vmatpush1.msra.mxu0 0.0
        %1674 = vmatprep.subr.mxu0 0.0
        %1675 = vmatpush1.msra.mxu0 0.0
        %1676 = vmatprep.mubr.f32.mxu0 0.0
        %v1677 = vand.u32 %v1261, 4294901760
        %1678 = vmatmul.mubr.f32.gmra.mrb[0].mxu0 %v1677
        %v1679 = vpop.f32.mrb[0].mxu0
        %v1680 = vadd.f32 %v1595, %v1679
        %v1681 = vpop.f32.mrb[0].mxu0
        %1682 = vmatprep.mubr.f32.mxu0 0.0
        %v1683 = vand.u32 %v1264, 4294901760
        %1684 = vmatmul.mubr.f32.gmra.mrb[0].mxu0 %v1683
        %v1685 = vpop.f32.mrb[0].mxu0
        %v1686 = vadd.f32 %v1603, %v1685
        %v1687 = vpop.f32.mrb[0].mxu0
        %1688 = vdwg.mxu0
        %1689 = vmatprep.subr.mxu0 0.0
        %v1690 = vand.u32 %v237, 4294901760
        %1691 = vmatpush1.msra.mxu0 %v1690
        %1692 = vmatprep.subr.mxu0 0.0
        %v1693 = vand.u32 %v238, 4294901760
        %1694 = vmatpush1.msra.mxu0 %v1693
        %1695 = vmatprep.subr.mxu0 0.0
        %1696 = vmatpush1.msra.mxu0 0.0
        %1697 = vmatprep.subr.mxu0 0.0
        %1698 = vmatpush1.msra.mxu0 0.0
        %1699 = vmatprep.subr.mxu0 0.0
        %1700 = vmatpush1.msra.mxu0 0.0
        %1701 = vmatprep.subr.mxu0 0.0
        %1702 = vmatpush1.msra.mxu0 0.0
        %1703 = vmatprep.subr.mxu0 0.0
        %1704 = vmatpush1.msra.mxu0 0.0
        %1705 = vmatprep.subr.mxu0 0.0
        %1706 = vmatpush1.msra.mxu0 0.0
        %1707 = vmatprep.subr.mxu0 0.0
        %1708 = vmatpush1.msra.mxu0 0.0
        %1709 = vmatprep.subr.mxu0 0.0
        %1710 = vmatpush1.msra.mxu0 0.0
        %1711 = vmatprep.subr.mxu0 0.0
        %1712 = vmatpush1.msra.mxu0 0.0
        %1713 = vmatprep.subr.mxu0 0.0
        %1714 = vmatpush1.msra.mxu0 0.0
        %1715 = vmatprep.subr.mxu0 0.0
        %1716 = vmatpush1.msra.mxu0 0.0
        %1717 = vmatprep.subr.mxu0 0.0
        %1718 = vmatpush1.msra.mxu0 0.0
        %1719 = vmatprep.subr.mxu0 0.0
        %1720 = vmatpush1.msra.mxu0 0.0
        %1721 = vmatprep.subr.mxu0 0.0
        %1722 = vmatpush1.msra.mxu0 0.0
        %1723 = vmatprep.subr.mxu0 0.0
        %1724 = vmatpush1.msra.mxu0 0.0
        %1725 = vmatprep.subr.mxu0 0.0
        %1726 = vmatpush1.msra.mxu0 0.0
        %1727 = vmatprep.subr.mxu0 0.0
        %1728 = vmatpush1.msra.mxu0 0.0
        %1729 = vmatprep.subr.mxu0 0.0
        %1730 = vmatpush1.msra.mxu0 0.0
        %1731 = vmatprep.subr.mxu0 0.0
        %1732 = vmatpush1.msra.mxu0 0.0
        %1733 = vmatprep.subr.mxu0 0.0
        %1734 = vmatpush1.msra.mxu0 0.0
        %1735 = vmatprep.subr.mxu0 0.0
        %1736 = vmatpush1.msra.mxu0 0.0
        %1737 = vmatprep.subr.mxu0 0.0
        %1738 = vmatpush1.msra.mxu0 0.0
        %1739 = vmatprep.subr.mxu0 0.0
        %1740 = vmatpush1.msra.mxu0 0.0
        %1741 = vmatprep.subr.mxu0 0.0
        %1742 = vmatpush1.msra.mxu0 0.0
        %1743 = vmatprep.subr.mxu0 0.0
        %1744 = vmatpush1.msra.mxu0 0.0
        %1745 = vmatprep.subr.mxu0 0.0
        %1746 = vmatpush1.msra.mxu0 0.0
        %1747 = vmatprep.subr.mxu0 0.0
        %1748 = vmatpush1.msra.mxu0 0.0
        %1749 = vmatprep.subr.mxu0 0.0
        %1750 = vmatpush1.msra.mxu0 0.0
        %1751 = vmatprep.subr.mxu0 0.0
        %1752 = vmatpush1.msra.mxu0 0.0
        %1753 = vmatprep.subr.mxu0 0.0
        %1754 = vmatpush1.msra.mxu0 0.0
        %1755 = vmatprep.mubr.f32.mxu0 0.0
        %v1756 = vand.u32 %v1261, 4294901760
        %1757 = vmatmul.mubr.f32.gmra.mrb[0].mxu0 %v1756
        %v1758 = vpop.f32.mrb[0].mxu0
        %v1759 = vadd.f32 %v1680, %v1758
        %v1760 = vpop.f32.mrb[0].mxu0
        %1761 = vmatprep.mubr.f32.mxu0 0.0
        %v1762 = vand.u32 %v1264, 4294901760
        %1763 = vmatmul.mubr.f32.gmra.mrb[0].mxu0 %v1762
        %v1764 = vpop.f32.mrb[0].mxu0
        %v1765 = vadd.f32 %v1686, %v1764
        %v1766 = vpop.f32.mrb[0].mxu0
        %1767 = vdwg.mxu0
        %v1769 = vsel %vm243, %v235, 0
        %v1772 = vsel %vm243, %v236, 0
        %1774 = vmatprep.subr.mxu0 0.0
        %v1775 = vand.u32 %v237, 4294901760
        %1776 = vmatpush1.msra.mxu0 %v1775
        %1777 = vmatprep.subr.mxu0 0.0
        %v1778 = vand.u32 %v238, 4294901760
        %1779 = vmatpush1.msra.mxu0 %v1778
        %1780 = vmatprep.subr.mxu0 0.0
        %1781 = vmatpush1.msra.mxu0 0.0
        %1782 = vmatprep.subr.mxu0 0.0
        %1783 = vmatpush1.msra.mxu0 0.0
        %1784 = vmatprep.subr.mxu0 0.0
        %1785 = vmatpush1.msra.mxu0 0.0
        %1786 = vmatprep.subr.mxu0 0.0
        %1787 = vmatpush1.msra.mxu0 0.0
        %1788 = vmatprep.subr.mxu0 0.0
        %1789 = vmatpush1.msra.mxu0 0.0
        %1790 = vmatprep.subr.mxu0 0.0
        %1791 = vmatpush1.msra.mxu0 0.0
        %1792 = vmatprep.subr.mxu0 0.0
        %1793 = vmatpush1.msra.mxu0 0.0
        %1794 = vmatprep.subr.mxu0 0.0
        %1795 = vmatpush1.msra.mxu0 0.0
        %1796 = vmatprep.subr.mxu0 0.0
        %1797 = vmatpush1.msra.mxu0 0.0
        %1798 = vmatprep.subr.mxu0 0.0
        %1799 = vmatpush1.msra.mxu0 0.0
        %1800 = vmatprep.subr.mxu0 0.0
        %1801 = vmatpush1.msra.mxu0 0.0
        %1802 = vmatprep.subr.mxu0 0.0
        %1803 = vmatpush1.msra.mxu0 0.0
        %1804 = vmatprep.subr.mxu0 0.0
        %1805 = vmatpush1.msra.mxu0 0.0
        %1806 = vmatprep.subr.mxu0 0.0
        %1807 = vmatpush1.msra.mxu0 0.0
        %1808 = vmatprep.subr.mxu0 0.0
        %1809 = vmatpush1.msra.mxu0 0.0
        %1810 = vmatprep.subr.mxu0 0.0
        %1811 = vmatpush1.msra.mxu0 0.0
        %1812 = vmatprep.subr.mxu0 0.0
        %1813 = vmatpush1.msra.mxu0 0.0
        %1814 = vmatprep.subr.mxu0 0.0
        %1815 = vmatpush1.msra.mxu0 0.0
        %1816 = vmatprep.subr.mxu0 0.0
        %1817 = vmatpush1.msra.mxu0 0.0
        %1818 = vmatprep.subr.mxu0 0.0
        %1819 = vmatpush1.msra.mxu0 0.0
        %1820 = vmatprep.subr.mxu0 0.0
        %1821 = vmatpush1.msra.mxu0 0.0
        %1822 = vmatprep.subr.mxu0 0.0
        %1823 = vmatpush1.msra.mxu0 0.0
        %1824 = vmatprep.subr.mxu0 0.0
        %1825 = vmatpush1.msra.mxu0 0.0
        %1826 = vmatprep.subr.mxu0 0.0
        %1827 = vmatpush1.msra.mxu0 0.0
        %1828 = vmatprep.subr.mxu0 0.0
        %1829 = vmatpush1.msra.mxu0 0.0
        %1830 = vmatprep.subr.mxu0 0.0
        %1831 = vmatpush1.msra.mxu0 0.0
        %1832 = vmatprep.subr.mxu0 0.0
        %1833 = vmatpush1.msra.mxu0 0.0
        %1834 = vmatprep.subr.mxu0 0.0
        %1835 = vmatpush1.msra.mxu0 0.0
        %1836 = vmatprep.subr.mxu0 0.0
        %1837 = vmatpush1.msra.mxu0 0.0
        %1838 = vmatprep.subr.mxu0 0.0
        %1839 = vmatpush1.msra.mxu0 0.0
        %1840 = vmatprep.mubr.f32.mxu0 0.0
        %v1841 = vand.u32 %v1769, 4294901760
        %v1842 = vsub.f32 %v1769, %v1841
        %v1843 = vand.u32 %v1842, 4294901760
        %v1844 = vsub.f32 %v1842, %v1843
        %v1845 = vand.u32 %v1844, 4294901760
        %1846 = vmatmul.mubr.f32.gmra.mrb[0].mxu0 %v1845
        %v1847 = vpop.f32.mrb[0].mxu0
        %v1848 = vadd.f32 0.0, %v1847
        %v1849 = vpop.f32.mrb[0].mxu0
        %1850 = vmatprep.mubr.f32.mxu0 0.0
        %v1851 = vand.u32 %v1772, 4294901760
        %v1852 = vsub.f32 %v1772, %v1851
        %v1853 = vand.u32 %v1852, 4294901760
        %v1854 = vsub.f32 %v1852, %v1853
        %v1855 = vand.u32 %v1854, 4294901760
        %1856 = vmatmul.mubr.f32.gmra.mrb[0].mxu0 %v1855
        %v1857 = vpop.f32.mrb[0].mxu0
        %v1858 = vadd.f32 0.0, %v1857
        %v1859 = vpop.f32.mrb[0].mxu0
        %1860 = vdwg.mxu0
        %1861 = vmatprep.subr.mxu0 0.0
        %v1862 = vand.u32 %v237, 4294901760
        %v1863 = vsub.f32 %v237, %v1862
        %v1864 = vand.u32 %v1863, 4294901760
        %v1865 = vsub.f32 %v1863, %v1864
        %v1866 = vand.u32 %v1865, 4294901760
        %1867 = vmatpush1.msra.mxu0 %v1866
        %1868 = vmatprep.subr.mxu0 0.0
        %v1869 = vand.u32 %v238, 4294901760
        %v1870 = vsub.f32 %v238, %v1869
        %v1871 = vand.u32 %v1870, 4294901760
        %v1872 = vsub.f32 %v1870, %v1871
        %v1873 = vand.u32 %v1872, 4294901760
        %1874 = vmatpush1.msra.mxu0 %v1873
        %1875 = vmatprep.subr.mxu0 0.0
        %1876 = vmatpush1.msra.mxu0 0.0
        %1877 = vmatprep.subr.mxu0 0.0
        %1878 = vmatpush1.msra.mxu0 0.0
        %1879 = vmatprep.subr.mxu0 0.0
        %1880 = vmatpush1.msra.mxu0 0.0
        %1881 = vmatprep.subr.mxu0 0.0
        %1882 = vmatpush1.msra.mxu0 0.0
        %1883 = vmatprep.subr.mxu0 0.0
        %1884 = vmatpush1.msra.mxu0 0.0
        %1885 = vmatprep.subr.mxu0 0.0
        %1886 = vmatpush1.msra.mxu0 0.0
        %1887 = vmatprep.subr.mxu0 0.0
        %1888 = vmatpush1.msra.mxu0 0.0
        %1889 = vmatprep.subr.mxu0 0.0
        %1890 = vmatpush1.msra.mxu0 0.0
        %1891 = vmatprep.subr.mxu0 0.0
        %1892 = vmatpush1.msra.mxu0 0.0
        %1893 = vmatprep.subr.mxu0 0.0
        %1894 = vmatpush1.msra.mxu0 0.0
        %1895 = vmatprep.subr.mxu0 0.0
        %1896 = vmatpush1.msra.mxu0 0.0
        %1897 = vmatprep.subr.mxu0 0.0
        %1898 = vmatpush1.msra.mxu0 0.0
        %1899 = vmatprep.subr.mxu0 0.0
        %1900 = vmatpush1.msra.mxu0 0.0
        %1901 = vmatprep.subr.mxu0 0.0
        %1902 = vmatpush1.msra.mxu0 0.0
        %1903 = vmatprep.subr.mxu0 0.0
        %1904 = vmatpush1.msra.mxu0 0.0
        %1905 = vmatprep.subr.mxu0 0.0
        %1906 = vmatpush1.msra.mxu0 0.0
        %1907 = vmatprep.subr.mxu0 0.0
        %1908 = vmatpush1.msra.mxu0 0.0
        %1909 = vmatprep.subr.mxu0 0.0
        %1910 = vmatpush1.msra.mxu0 0.0
        %1911 = vmatprep.subr.mxu0 0.0
        %1912 = vmatpush1.msra.mxu0 0.0
        %1913 = vmatprep.subr.mxu0 0.0
        %1914 = vmatpush1.msra.mxu0 0.0
        %1915 = vmatprep.subr.mxu0 0.0
        %1916 = vmatpush1.msra.mxu0 0.0
        %1917 = vmatprep.subr.mxu0 0.0
        %1918 = vmatpush1.msra.mxu0 0.0
        %1919 = vmatprep.subr.mxu0 0.0
        %1920 = vmatpush1.msra.mxu0 0.0
        %1921 = vmatprep.subr.mxu0 0.0
        %1922 = vmatpush1.msra.mxu0 0.0
        %1923 = vmatprep.subr.mxu0 0.0
        %1924 = vmatpush1.msra.mxu0 0.0
        %1925 = vmatprep.subr.mxu0 0.0
        %1926 = vmatpush1.msra.mxu0 0.0
        %1927 = vmatprep.subr.mxu0 0.0
        %1928 = vmatpush1.msra.mxu0 0.0
        %1929 = vmatprep.subr.mxu0 0.0
        %1930 = vmatpush1.msra.mxu0 0.0
        %1931 = vmatprep.subr.mxu0 0.0
        %1932 = vmatpush1.msra.mxu0 0.0
        %1933 = vmatprep.subr.mxu0 0.0
        %1934 = vmatpush1.msra.mxu0 0.0
        %1935 = vmatprep.mubr.f32.mxu0 0.0
        %v1936 = vand.u32 %v1769, 4294901760
        %1937 = vmatmul.mubr.f32.gmra.mrb[0].mxu0 %v1936
        %v1938 = vpop.f32.mrb[0].mxu0
        %v1939 = vadd.f32 %v1848, %v1938
        %v1940 = vpop.f32.mrb[0].mxu0
        %1941 = vmatprep.mubr.f32.mxu0 0.0
        %v1942 = vand.u32 %v1772, 4294901760
        %1943 = vmatmul.mubr.f32.gmra.mrb[0].mxu0 %v1942
        %v1944 = vpop.f32.mrb[0].mxu0
        %v1945 = vadd.f32 %v1858, %v1944
        %v1946 = vpop.f32.mrb[0].mxu0
        %1947 = vdwg.mxu0
        %1948 = vmatprep.subr.mxu0 0.0
        %v1949 = vand.u32 %v237, 4294901760
        %v1950 = vsub.f32 %v237, %v1949
        %1951 = vmatpush1.msra.mxu0 %v1950
        %1952 = vmatprep.subr.mxu0 0.0
        %v1953 = vand.u32 %v238, 4294901760
        %v1954 = vsub.f32 %v238, %v1953
        %1955 = vmatpush1.msra.mxu0 %v1954
        %1956 = vmatprep.subr.mxu0 0.0
        %1957 = vmatpush1.msra.mxu0 0.0
        %1958 = vmatprep.subr.mxu0 0.0
        %1959 = vmatpush1.msra.mxu0 0.0
        %1960 = vmatprep.subr.mxu0 0.0
        %1961 = vmatpush1.msra.mxu0 0.0
        %1962 = vmatprep.subr.mxu0 0.0
        %1963 = vmatpush1.msra.mxu0 0.0
        %1964 = vmatprep.subr.mxu0 0.0
        %1965 = vmatpush1.msra.mxu0 0.0
        %1966 = vmatprep.subr.mxu0 0.0
        %1967 = vmatpush1.msra.mxu0 0.0
        %1968 = vmatprep.subr.mxu0 0.0
        %1969 = vmatpush1.msra.mxu0 0.0
        %1970 = vmatprep.subr.mxu0 0.0
        %1971 = vmatpush1.msra.mxu0 0.0
        %1972 = vmatprep.subr.mxu0 0.0
        %1973 = vmatpush1.msra.mxu0 0.0
        %1974 = vmatprep.subr.mxu0 0.0
        %1975 = vmatpush1.msra.mxu0 0.0
        %1976 = vmatprep.subr.mxu0 0.0
        %1977 = vmatpush1.msra.mxu0 0.0
        %1978 = vmatprep.subr.mxu0 0.0
        %1979 = vmatpush1.msra.mxu0 0.0
        %1980 = vmatprep.subr.mxu0 0.0
        %1981 = vmatpush1.msra.mxu0 0.0
        %1982 = vmatprep.subr.mxu0 0.0
        %1983 = vmatpush1.msra.mxu0 0.0
        %1984 = vmatprep.subr.mxu0 0.0
        %1985 = vmatpush1.msra.mxu0 0.0
        %1986 = vmatprep.subr.mxu0 0.0
        %1987 = vmatpush1.msra.mxu0 0.0
        %1988 = vmatprep.subr.mxu0 0.0
        %1989 = vmatpush1.msra.mxu0 0.0
        %1990 = vmatprep.subr.mxu0 0.0
        %1991 = vmatpush1.msra.mxu0 0.0
        %1992 = vmatprep.subr.mxu0 0.0
        %1993 = vmatpush1.msra.mxu0 0.0
        %1994 = vmatprep.subr.mxu0 0.0
        %1995 = vmatpush1.msra.mxu0 0.0
        %1996 = vmatprep.subr.mxu0 0.0
        %1997 = vmatpush1.msra.mxu0 0.0
        %1998 = vmatprep.subr.mxu0 0.0
        %1999 = vmatpush1.msra.mxu0 0.0
        %2000 = vmatprep.subr.mxu0 0.0
        %2001 = vmatpush1.msra.mxu0 0.0
        %2002 = vmatprep.subr.mxu0 0.0
        %2003 = vmatpush1.msra.mxu0 0.0
        %2004 = vmatprep.subr.mxu0 0.0
        %2005 = vmatpush1.msra.mxu0 0.0
        %2006 = vmatprep.subr.mxu0 0.0
        %2007 = vmatpush1.msra.mxu0 0.0
        %2008 = vmatprep.subr.mxu0 0.0
        %2009 = vmatpush1.msra.mxu0 0.0
        %2010 = vmatprep.subr.mxu0 0.0
        %2011 = vmatpush1.msra.mxu0 0.0
        %2012 = vmatprep.subr.mxu0 0.0
        %2013 = vmatpush1.msra.mxu0 0.0
        %2014 = vmatprep.subr.mxu0 0.0
        %2015 = vmatpush1.msra.mxu0 0.0
        %2016 = vmatprep.mubr.f32.mxu0 0.0
        %v2017 = vand.u32 %v1769, 4294901760
        %v2018 = vsub.f32 %v1769, %v2017
        %2019 = vmatmul.mubr.f32.gmra.mrb[0].mxu0 %v2018
        %v2020 = vpop.f32.mrb[0].mxu0
        %v2021 = vadd.f32 %v1939, %v2020
        %v2022 = vpop.f32.mrb[0].mxu0
        %2023 = vmatprep.mubr.f32.mxu0 0.0
        %v2024 = vand.u32 %v1772, 4294901760
        %v2025 = vsub.f32 %v1772, %v2024
        %2026 = vmatmul.mubr.f32.gmra.mrb[0].mxu0 %v2025
        %v2027 = vpop.f32.mrb[0].mxu0
        %v2028 = vadd.f32 %v1945, %v2027
        %v2029 = vpop.f32.mrb[0].mxu0
        %2030 = vdwg.mxu0
        %2031 = vmatprep.subr.mxu0 0.0
        %v2032 = vand.u32 %v237, 4294901760
        %2033 = vmatpush1.msra.mxu0 %v2032
        %2034 = vmatprep.subr.mxu0 0.0
        %v2035 = vand.u32 %v238, 4294901760
        %2036 = vmatpush1.msra.mxu0 %v2035
        %2037 = vmatprep.subr.mxu0 0.0
        %2038 = vmatpush1.msra.mxu0 0.0
        %2039 = vmatprep.subr.mxu0 0.0
        %2040 = vmatpush1.msra.mxu0 0.0
        %2041 = vmatprep.subr.mxu0 0.0
        %2042 = vmatpush1.msra.mxu0 0.0
        %2043 = vmatprep.subr.mxu0 0.0
        %2044 = vmatpush1.msra.mxu0 0.0
        %2045 = vmatprep.subr.mxu0 0.0
        %2046 = vmatpush1.msra.mxu0 0.0
        %2047 = vmatprep.subr.mxu0 0.0
        %2048 = vmatpush1.msra.mxu0 0.0
        %2049 = vmatprep.subr.mxu0 0.0
        %2050 = vmatpush1.msra.mxu0 0.0
        %2051 = vmatprep.subr.mxu0 0.0
        %2052 = vmatpush1.msra.mxu0 0.0
        %2053 = vmatprep.subr.mxu0 0.0
        %2054 = vmatpush1.msra.mxu0 0.0
        %2055 = vmatprep.subr.mxu0 0.0
        %2056 = vmatpush1.msra.mxu0 0.0
        %2057 = vmatprep.subr.mxu0 0.0
        %2058 = vmatpush1.msra.mxu0 0.0
        %2059 = vmatprep.subr.mxu0 0.0
        %2060 = vmatpush1.msra.mxu0 0.0
        %2061 = vmatprep.subr.mxu0 0.0
        %2062 = vmatpush1.msra.mxu0 0.0
        %2063 = vmatprep.subr.mxu0 0.0
        %2064 = vmatpush1.msra.mxu0 0.0
        %2065 = vmatprep.subr.mxu0 0.0
        %2066 = vmatpush1.msra.mxu0 0.0
        %2067 = vmatprep.subr.mxu0 0.0
        %2068 = vmatpush1.msra.mxu0 0.0
        %2069 = vmatprep.subr.mxu0 0.0
        %2070 = vmatpush1.msra.mxu0 0.0
        %2071 = vmatprep.subr.mxu0 0.0
        %2072 = vmatpush1.msra.mxu0 0.0
        %2073 = vmatprep.subr.mxu0 0.0
        %2074 = vmatpush1.msra.mxu0 0.0
        %2075 = vmatprep.subr.mxu0 0.0
        %2076 = vmatpush1.msra.mxu0 0.0
        %2077 = vmatprep.subr.mxu0 0.0
        %2078 = vmatpush1.msra.mxu0 0.0
        %2079 = vmatprep.subr.mxu0 0.0
        %2080 = vmatpush1.msra.mxu0 0.0
        %2081 = vmatprep.subr.mxu0 0.0
        %2082 = vmatpush1.msra.mxu0 0.0
        %2083 = vmatprep.subr.mxu0 0.0
        %2084 = vmatpush1.msra.mxu0 0.0
        %2085 = vmatprep.subr.mxu0 0.0
        %2086 = vmatpush1.msra.mxu0 0.0
        %2087 = vmatprep.subr.mxu0 0.0
        %2088 = vmatpush1.msra.mxu0 0.0
        %2089 = vmatprep.subr.mxu0 0.0
        %2090 = vmatpush1.msra.mxu0 0.0
        %2091 = vmatprep.subr.mxu0 0.0
        %2092 = vmatpush1.msra.mxu0 0.0
        %2093 = vmatprep.subr.mxu0 0.0
        %2094 = vmatpush1.msra.mxu0 0.0
        %2095 = vmatprep.subr.mxu0 0.0
        %2096 = vmatpush1.msra.mxu0 0.0
        %2097 = vmatprep.mubr.f32.mxu0 0.0
        %v2098 = vand.u32 %v1769, 4294901760
        %v2099 = vsub.f32 %v1769, %v2098
        %v2100 = vand.u32 %v2099, 4294901760
        %2101 = vmatmul.mubr.f32.gmra.mrb[0].mxu0 %v2100
        %v2102 = vpop.f32.mrb[0].mxu0
        %v2103 = vadd.f32 %v2021, %v2102
        %v2104 = vpop.f32.mrb[0].mxu0
        %2105 = vmatprep.mubr.f32.mxu0 0.0
        %v2106 = vand.u32 %v1772, 4294901760
        %v2107 = vsub.f32 %v1772, %v2106
        %v2108 = vand.u32 %v2107, 4294901760
        %2109 = vmatmul.mubr.f32.gmra.mrb[0].mxu0 %v2108
        %v2110 = vpop.f32.mrb[0].mxu0
        %v2111 = vadd.f32 %v2028, %v2110
        %v2112 = vpop.f32.mrb[0].mxu0
        %2113 = vdwg.mxu0
        %2114 = vmatprep.subr.mxu0 0.0
        %v2115 = vand.u32 %v237, 4294901760
        %v2116 = vsub.f32 %v237, %v2115
        %v2117 = vand.u32 %v2116, 4294901760
        %2118 = vmatpush1.msra.mxu0 %v2117
        %2119 = vmatprep.subr.mxu0 0.0
        %v2120 = vand.u32 %v238, 4294901760
        %v2121 = vsub.f32 %v238, %v2120
        %v2122 = vand.u32 %v2121, 4294901760
        %2123 = vmatpush1.msra.mxu0 %v2122
        %2124 = vmatprep.subr.mxu0 0.0
        %2125 = vmatpush1.msra.mxu0 0.0
        %2126 = vmatprep.subr.mxu0 0.0
        %2127 = vmatpush1.msra.mxu0 0.0
        %2128 = vmatprep.subr.mxu0 0.0
        %2129 = vmatpush1.msra.mxu0 0.0
        %2130 = vmatprep.subr.mxu0 0.0
        %2131 = vmatpush1.msra.mxu0 0.0
        %2132 = vmatprep.subr.mxu0 0.0
        %2133 = vmatpush1.msra.mxu0 0.0
        %2134 = vmatprep.subr.mxu0 0.0
        %2135 = vmatpush1.msra.mxu0 0.0
        %2136 = vmatprep.subr.mxu0 0.0
        %2137 = vmatpush1.msra.mxu0 0.0
        %2138 = vmatprep.subr.mxu0 0.0
        %2139 = vmatpush1.msra.mxu0 0.0
        %2140 = vmatprep.subr.mxu0 0.0
        %2141 = vmatpush1.msra.mxu0 0.0
        %2142 = vmatprep.subr.mxu0 0.0
        %2143 = vmatpush1.msra.mxu0 0.0
        %2144 = vmatprep.subr.mxu0 0.0
        %2145 = vmatpush1.msra.mxu0 0.0
        %2146 = vmatprep.subr.mxu0 0.0
        %2147 = vmatpush1.msra.mxu0 0.0
        %2148 = vmatprep.subr.mxu0 0.0
        %2149 = vmatpush1.msra.mxu0 0.0
        %2150 = vmatprep.subr.mxu0 0.0
        %2151 = vmatpush1.msra.mxu0 0.0
        %2152 = vmatprep.subr.mxu0 0.0
        %2153 = vmatpush1.msra.mxu0 0.0
        %2154 = vmatprep.subr.mxu0 0.0
        %2155 = vmatpush1.msra.mxu0 0.0
        %2156 = vmatprep.subr.mxu0 0.0
        %2157 = vmatpush1.msra.mxu0 0.0
        %2158 = vmatprep.subr.mxu0 0.0
        %2159 = vmatpush1.msra.mxu0 0.0
        %2160 = vmatprep.subr.mxu0 0.0
        %2161 = vmatpush1.msra.mxu0 0.0
        %2162 = vmatprep.subr.mxu0 0.0
        %2163 = vmatpush1.msra.mxu0 0.0
        %2164 = vmatprep.subr.mxu0 0.0
        %2165 = vmatpush1.msra.mxu0 0.0
        %2166 = vmatprep.subr.mxu0 0.0
        %2167 = vmatpush1.msra.mxu0 0.0
        %2168 = vmatprep.subr.mxu0 0.0
        %2169 = vmatpush1.msra.mxu0 0.0
        %2170 = vmatprep.subr.mxu0 0.0
        %2171 = vmatpush1.msra.mxu0 0.0
        %2172 = vmatprep.subr.mxu0 0.0
        %2173 = vmatpush1.msra.mxu0 0.0
        %2174 = vmatprep.subr.mxu0 0.0
        %2175 = vmatpush1.msra.mxu0 0.0
        %2176 = vmatprep.subr.mxu0 0.0
        %2177 = vmatpush1.msra.mxu0 0.0
        %2178 = vmatprep.subr.mxu0 0.0
        %2179 = vmatpush1.msra.mxu0 0.0
        %2180 = vmatprep.subr.mxu0 0.0
        %2181 = vmatpush1.msra.mxu0 0.0
        %2182 = vmatprep.subr.mxu0 0.0
        %2183 = vmatpush1.msra.mxu0 0.0
        %2184 = vmatprep.mubr.f32.mxu0 0.0
        %v2185 = vand.u32 %v1769, 4294901760
        %2186 = vmatmul.mubr.f32.gmra.mrb[0].mxu0 %v2185
        %v2187 = vpop.f32.mrb[0].mxu0
        %v2188 = vadd.f32 %v2103, %v2187
        %v2189 = vpop.f32.mrb[0].mxu0
        %2190 = vmatprep.mubr.f32.mxu0 0.0
        %v2191 = vand.u32 %v1772, 4294901760
        %2192 = vmatmul.mubr.f32.gmra.mrb[0].mxu0 %v2191
        %v2193 = vpop.f32.mrb[0].mxu0
        %v2194 = vadd.f32 %v2111, %v2193
        %v2195 = vpop.f32.mrb[0].mxu0
        %2196 = vdwg.mxu0
        %2197 = vmatprep.subr.mxu0 0.0
        %v2198 = vand.u32 %v237, 4294901760
        %2199 = vmatpush1.msra.mxu0 %v2198
        %2200 = vmatprep.subr.mxu0 0.0
        %v2201 = vand.u32 %v238, 4294901760
        %2202 = vmatpush1.msra.mxu0 %v2201
        %2203 = vmatprep.subr.mxu0 0.0
        %2204 = vmatpush1.msra.mxu0 0.0
        %2205 = vmatprep.subr.mxu0 0.0
        %2206 = vmatpush1.msra.mxu0 0.0
        %2207 = vmatprep.subr.mxu0 0.0
        %2208 = vmatpush1.msra.mxu0 0.0
        %2209 = vmatprep.subr.mxu0 0.0
        %2210 = vmatpush1.msra.mxu0 0.0
        %2211 = vmatprep.subr.mxu0 0.0
        %2212 = vmatpush1.msra.mxu0 0.0
        %2213 = vmatprep.subr.mxu0 0.0
        %2214 = vmatpush1.msra.mxu0 0.0
        %2215 = vmatprep.subr.mxu0 0.0
        %2216 = vmatpush1.msra.mxu0 0.0
        %2217 = vmatprep.subr.mxu0 0.0
        %2218 = vmatpush1.msra.mxu0 0.0
        %2219 = vmatprep.subr.mxu0 0.0
        %2220 = vmatpush1.msra.mxu0 0.0
        %2221 = vmatprep.subr.mxu0 0.0
        %2222 = vmatpush1.msra.mxu0 0.0
        %2223 = vmatprep.subr.mxu0 0.0
        %2224 = vmatpush1.msra.mxu0 0.0
        %2225 = vmatprep.subr.mxu0 0.0
        %2226 = vmatpush1.msra.mxu0 0.0
        %2227 = vmatprep.subr.mxu0 0.0
        %2228 = vmatpush1.msra.mxu0 0.0
        %2229 = vmatprep.subr.mxu0 0.0
        %2230 = vmatpush1.msra.mxu0 0.0
        %2231 = vmatprep.subr.mxu0 0.0
        %2232 = vmatpush1.msra.mxu0 0.0
        %2233 = vmatprep.subr.mxu0 0.0
        %2234 = vmatpush1.msra.mxu0 0.0
        %2235 = vmatprep.subr.mxu0 0.0
        %2236 = vmatpush1.msra.mxu0 0.0
        %2237 = vmatprep.subr.mxu0 0.0
        %2238 = vmatpush1.msra.mxu0 0.0
        %2239 = vmatprep.subr.mxu0 0.0
        %2240 = vmatpush1.msra.mxu0 0.0
        %2241 = vmatprep.subr.mxu0 0.0
        %2242 = vmatpush1.msra.mxu0 0.0
        %2243 = vmatprep.subr.mxu0 0.0
        %2244 = vmatpush1.msra.mxu0 0.0
        %2245 = vmatprep.subr.mxu0 0.0
        %2246 = vmatpush1.msra.mxu0 0.0
        %2247 = vmatprep.subr.mxu0 0.0
        %2248 = vmatpush1.msra.mxu0 0.0
        %2249 = vmatprep.subr.mxu0 0.0
        %2250 = vmatpush1.msra.mxu0 0.0
        %2251 = vmatprep.subr.mxu0 0.0
        %2252 = vmatpush1.msra.mxu0 0.0
        %2253 = vmatprep.subr.mxu0 0.0
        %2254 = vmatpush1.msra.mxu0 0.0
        %2255 = vmatprep.subr.mxu0 0.0
        %2256 = vmatpush1.msra.mxu0 0.0
        %2257 = vmatprep.subr.mxu0 0.0
        %2258 = vmatpush1.msra.mxu0 0.0
        %2259 = vmatprep.subr.mxu0 0.0
        %2260 = vmatpush1.msra.mxu0 0.0
        %2261 = vmatprep.subr.mxu0 0.0
        %2262 = vmatpush1.msra.mxu0 0.0
        %2263 = vmatprep.mubr.f32.mxu0 0.0
        %v2264 = vand.u32 %v1769, 4294901760
        %2265 = vmatmul.mubr.f32.gmra.mrb[0].mxu0 %v2264
        %v2266 = vpop.f32.mrb[0].mxu0
        %v2267 = vadd.f32 %v2188, %v2266
        %v2268 = vpop.f32.mrb[0].mxu0
        %2269 = vmatprep.mubr.f32.mxu0 0.0
        %v2270 = vand.u32 %v1772, 4294901760
        %2271 = vmatmul.mubr.f32.gmra.mrb[0].mxu0 %v2270
        %v2272 = vpop.f32.mrb[0].mxu0
        %v2273 = vadd.f32 %v2194, %v2272
        %v2274 = vpop.f32.mrb[0].mxu0
        %2275 = vdwg.mxu0
        %2276 = vmatprep.subr.mxu0 0.0
        %v2277 = vand.u32 %v239, 4294901760
        %2278 = vmatpush1.msra.mxu0 %v2277
        %2279 = vmatprep.subr.mxu0 0.0
        %v2280 = vand.u32 %v240, 4294901760
        %2281 = vmatpush1.msra.mxu0 %v2280
        %2282 = vmatprep.subr.mxu0 0.0
        %2283 = vmatpush1.msra.mxu0 0.0
        %2284 = vmatprep.subr.mxu0 0.0
        %2285 = vmatpush1.msra.mxu0 0.0
        %2286 = vmatprep.subr.mxu0 0.0
        %2287 = vmatpush1.msra.mxu0 0.0
        %2288 = vmatprep.subr.mxu0 0.0
        %2289 = vmatpush1.msra.mxu0 0.0
        %2290 = vmatprep.subr.mxu0 0.0
        %2291 = vmatpush1.msra.mxu0 0.0
        %2292 = vmatprep.subr.mxu0 0.0
        %2293 = vmatpush1.msra.mxu0 0.0
        %2294 = vmatprep.subr.mxu0 0.0
        %2295 = vmatpush1.msra.mxu0 0.0
        %2296 = vmatprep.subr.mxu0 0.0
        %2297 = vmatpush1.msra.mxu0 0.0
        %2298 = vmatprep.subr.mxu0 0.0
        %2299 = vmatpush1.msra.mxu0 0.0
        %2300 = vmatprep.subr.mxu0 0.0
        %2301 = vmatpush1.msra.mxu0 0.0
        %2302 = vmatprep.subr.mxu0 0.0
        %2303 = vmatpush1.msra.mxu0 0.0
        %2304 = vmatprep.subr.mxu0 0.0
        %2305 = vmatpush1.msra.mxu0 0.0
        %2306 = vmatprep.subr.mxu0 0.0
        %2307 = vmatpush1.msra.mxu0 0.0
        %2308 = vmatprep.subr.mxu0 0.0
        %2309 = vmatpush1.msra.mxu0 0.0
        %2310 = vmatprep.subr.mxu0 0.0
        %2311 = vmatpush1.msra.mxu0 0.0
        %2312 = vmatprep.subr.mxu0 0.0
        %2313 = vmatpush1.msra.mxu0 0.0
        %2314 = vmatprep.subr.mxu0 0.0
        %2315 = vmatpush1.msra.mxu0 0.0
        %2316 = vmatprep.subr.mxu0 0.0
        %2317 = vmatpush1.msra.mxu0 0.0
        %2318 = vmatprep.subr.mxu0 0.0
        %2319 = vmatpush1.msra.mxu0 0.0
        %2320 = vmatprep.subr.mxu0 0.0
        %2321 = vmatpush1.msra.mxu0 0.0
        %2322 = vmatprep.subr.mxu0 0.0
        %2323 = vmatpush1.msra.mxu0 0.0
        %2324 = vmatprep.subr.mxu0 0.0
        %2325 = vmatpush1.msra.mxu0 0.0
        %2326 = vmatprep.subr.mxu0 0.0
        %2327 = vmatpush1.msra.mxu0 0.0
        %2328 = vmatprep.subr.mxu0 0.0
        %2329 = vmatpush1.msra.mxu0 0.0
        %2330 = vmatprep.subr.mxu0 0.0
        %2331 = vmatpush1.msra.mxu0 0.0
        %2332 = vmatprep.subr.mxu0 0.0
        %2333 = vmatpush1.msra.mxu0 0.0
        %2334 = vmatprep.subr.mxu0 0.0
        %2335 = vmatpush1.msra.mxu0 0.0
        %2336 = vmatprep.subr.mxu0 0.0
        %2337 = vmatpush1.msra.mxu0 0.0
        %2338 = vmatprep.subr.mxu0 0.0
        %2339 = vmatpush1.msra.mxu0 0.0
        %2340 = vmatprep.subr.mxu0 0.0
        %2341 = vmatpush1.msra.mxu0 0.0
        %2342 = vmatprep.mubr.f32.mxu0 0.0
        %v2343 = vand.u32 %v245, 4294901760
        %v2344 = vsub.f32 %v245, %v2343
        %v2345 = vand.u32 %v2344, 4294901760
        %v2346 = vsub.f32 %v2344, %v2345
        %v2347 = vand.u32 %v2346, 4294901760
        %2348 = vmatmul.mubr.f32.gmra.mrb[0].mxu0 %v2347
        %v2349 = vpop.f32.mrb[0].mxu0
        %v2350 = vadd.f32 0.0, %v2349
        %v2351 = vpop.f32.mrb[0].mxu0
        %2352 = vmatprep.mubr.f32.mxu0 0.0
        %v2353 = vand.u32 %v248, 4294901760
        %v2354 = vsub.f32 %v248, %v2353
        %v2355 = vand.u32 %v2354, 4294901760
        %v2356 = vsub.f32 %v2354, %v2355
        %v2357 = vand.u32 %v2356, 4294901760
        %2358 = vmatmul.mubr.f32.gmra.mrb[0].mxu0 %v2357
        %v2359 = vpop.f32.mrb[0].mxu0
        %v2360 = vadd.f32 0.0, %v2359
        %v2361 = vpop.f32.mrb[0].mxu0
        %2362 = vdwg.mxu0
        %2363 = vmatprep.subr.mxu0 0.0
        %v2364 = vand.u32 %v239, 4294901760
        %v2365 = vsub.f32 %v239, %v2364
        %v2366 = vand.u32 %v2365, 4294901760
        %v2367 = vsub.f32 %v2365, %v2366
        %v2368 = vand.u32 %v2367, 4294901760
        %2369 = vmatpush1.msra.mxu0 %v2368
        %2370 = vmatprep.subr.mxu0 0.0
        %v2371 = vand.u32 %v240, 4294901760
        %v2372 = vsub.f32 %v240, %v2371
        %v2373 = vand.u32 %v2372, 4294901760
        %v2374 = vsub.f32 %v2372, %v2373
        %v2375 = vand.u32 %v2374, 4294901760
        %2376 = vmatpush1.msra.mxu0 %v2375
        %2377 = vmatprep.subr.mxu0 0.0
        %2378 = vmatpush1.msra.mxu0 0.0
        %2379 = vmatprep.subr.mxu0 0.0
        %2380 = vmatpush1.msra.mxu0 0.0
        %2381 = vmatprep.subr.mxu0 0.0
        %2382 = vmatpush1.msra.mxu0 0.0
        %2383 = vmatprep.subr.mxu0 0.0
        %2384 = vmatpush1.msra.mxu0 0.0
        %2385 = vmatprep.subr.mxu0 0.0
        %2386 = vmatpush1.msra.mxu0 0.0
        %2387 = vmatprep.subr.mxu0 0.0
        %2388 = vmatpush1.msra.mxu0 0.0
        %2389 = vmatprep.subr.mxu0 0.0
        %2390 = vmatpush1.msra.mxu0 0.0
        %2391 = vmatprep.subr.mxu0 0.0
        %2392 = vmatpush1.msra.mxu0 0.0
        %2393 = vmatprep.subr.mxu0 0.0
        %2394 = vmatpush1.msra.mxu0 0.0
        %2395 = vmatprep.subr.mxu0 0.0
        %2396 = vmatpush1.msra.mxu0 0.0
        %2397 = vmatprep.subr.mxu0 0.0
        %2398 = vmatpush1.msra.mxu0 0.0
        %2399 = vmatprep.subr.mxu0 0.0
        %2400 = vmatpush1.msra.mxu0 0.0
        %2401 = vmatprep.subr.mxu0 0.0
        %2402 = vmatpush1.msra.mxu0 0.0
        %2403 = vmatprep.subr.mxu0 0.0
        %2404 = vmatpush1.msra.mxu0 0.0
        %2405 = vmatprep.subr.mxu0 0.0
        %2406 = vmatpush1.msra.mxu0 0.0
        %2407 = vmatprep.subr.mxu0 0.0
        %2408 = vmatpush1.msra.mxu0 0.0
        %2409 = vmatprep.subr.mxu0 0.0
        %2410 = vmatpush1.msra.mxu0 0.0
        %2411 = vmatprep.subr.mxu0 0.0
        %2412 = vmatpush1.msra.mxu0 0.0
        %2413 = vmatprep.subr.mxu0 0.0
        %2414 = vmatpush1.msra.mxu0 0.0
        %2415 = vmatprep.subr.mxu0 0.0
        %2416 = vmatpush1.msra.mxu0 0.0
        %2417 = vmatprep.subr.mxu0 0.0
        %2418 = vmatpush1.msra.mxu0 0.0
        %2419 = vmatprep.subr.mxu0 0.0
        %2420 = vmatpush1.msra.mxu0 0.0
        %2421 = vmatprep.subr.mxu0 0.0
        %2422 = vmatpush1.msra.mxu0 0.0
        %2423 = vmatprep.subr.mxu0 0.0
        %2424 = vmatpush1.msra.mxu0 0.0
        %2425 = vmatprep.subr.mxu0 0.0
        %2426 = vmatpush1.msra.mxu0 0.0
        %2427 = vmatprep.subr.mxu0 0.0
        %2428 = vmatpush1.msra.mxu0 0.0
        %2429 = vmatprep.subr.mxu0 0.0
        %2430 = vmatpush1.msra.mxu0 0.0
        %2431 = vmatprep.subr.mxu0 0.0
        %2432 = vmatpush1.msra.mxu0 0.0
        %2433 = vmatprep.subr.mxu0 0.0
        %2434 = vmatpush1.msra.mxu0 0.0
        %2435 = vmatprep.subr.mxu0 0.0
        %2436 = vmatpush1.msra.mxu0 0.0
        %2437 = vmatprep.mubr.f32.mxu0 0.0
        %v2438 = vand.u32 %v245, 4294901760
        %2439 = vmatmul.mubr.f32.gmra.mrb[0].mxu0 %v2438
        %v2440 = vpop.f32.mrb[0].mxu0
        %v2441 = vadd.f32 %v2350, %v2440
        %v2442 = vpop.f32.mrb[0].mxu0
        %2443 = vmatprep.mubr.f32.mxu0 0.0
        %v2444 = vand.u32 %v248, 4294901760
        %2445 = vmatmul.mubr.f32.gmra.mrb[0].mxu0 %v2444
        %v2446 = vpop.f32.mrb[0].mxu0
        %v2447 = vadd.f32 %v2360, %v2446
        %v2448 = vpop.f32.mrb[0].mxu0
        %2449 = vdwg.mxu0
        %2450 = vmatprep.subr.mxu0 0.0
        %v2451 = vand.u32 %v239, 4294901760
        %v2452 = vsub.f32 %v239, %v2451
        %2453 = vmatpush1.msra.mxu0 %v2452
        %2454 = vmatprep.subr.mxu0 0.0
        %v2455 = vand.u32 %v240, 4294901760
        %v2456 = vsub.f32 %v240, %v2455
        %2457 = vmatpush1.msra.mxu0 %v2456
        %2458 = vmatprep.subr.mxu0 0.0
        %2459 = vmatpush1.msra.mxu0 0.0
        %2460 = vmatprep.subr.mxu0 0.0
        %2461 = vmatpush1.msra.mxu0 0.0
        %2462 = vmatprep.subr.mxu0 0.0
        %2463 = vmatpush1.msra.mxu0 0.0
        %2464 = vmatprep.subr.mxu0 0.0
        %2465 = vmatpush1.msra.mxu0 0.0
        %2466 = vmatprep.subr.mxu0 0.0
        %2467 = vmatpush1.msra.mxu0 0.0
        %2468 = vmatprep.subr.mxu0 0.0
        %2469 = vmatpush1.msra.mxu0 0.0
        %2470 = vmatprep.subr.mxu0 0.0
        %2471 = vmatpush1.msra.mxu0 0.0
        %2472 = vmatprep.subr.mxu0 0.0
        %2473 = vmatpush1.msra.mxu0 0.0
        %2474 = vmatprep.subr.mxu0 0.0
        %2475 = vmatpush1.msra.mxu0 0.0
        %2476 = vmatprep.subr.mxu0 0.0
        %2477 = vmatpush1.msra.mxu0 0.0
        %2478 = vmatprep.subr.mxu0 0.0
        %2479 = vmatpush1.msra.mxu0 0.0
        %2480 = vmatprep.subr.mxu0 0.0
        %2481 = vmatpush1.msra.mxu0 0.0
        %2482 = vmatprep.subr.mxu0 0.0
        %2483 = vmatpush1.msra.mxu0 0.0
        %2484 = vmatprep.subr.mxu0 0.0
        %2485 = vmatpush1.msra.mxu0 0.0
        %2486 = vmatprep.subr.mxu0 0.0
        %2487 = vmatpush1.msra.mxu0 0.0
        %2488 = vmatprep.subr.mxu0 0.0
        %2489 = vmatpush1.msra.mxu0 0.0
        %2490 = vmatprep.subr.mxu0 0.0
        %2491 = vmatpush1.msra.mxu0 0.0
        %2492 = vmatprep.subr.mxu0 0.0
        %2493 = vmatpush1.msra.mxu0 0.0
        %2494 = vmatprep.subr.mxu0 0.0
        %2495 = vmatpush1.msra.mxu0 0.0
        %2496 = vmatprep.subr.mxu0 0.0
        %2497 = vmatpush1.msra.mxu0 0.0
        %2498 = vmatprep.subr.mxu0 0.0
        %2499 = vmatpush1.msra.mxu0 0.0
        %2500 = vmatprep.subr.mxu0 0.0
        %2501 = vmatpush1.msra.mxu0 0.0
        %2502 = vmatprep.subr.mxu0 0.0
        %2503 = vmatpush1.msra.mxu0 0.0
        %2504 = vmatprep.subr.mxu0 0.0
        %2505 = vmatpush1.msra.mxu0 0.0
        %2506 = vmatprep.subr.mxu0 0.0
        %2507 = vmatpush1.msra.mxu0 0.0
        %2508 = vmatprep.subr.mxu0 0.0
        %2509 = vmatpush1.msra.mxu0 0.0
        %2510 = vmatprep.subr.mxu0 0.0
        %2511 = vmatpush1.msra.mxu0 0.0
        %2512 = vmatprep.subr.mxu0 0.0
        %2513 = vmatpush1.msra.mxu0 0.0
        %2514 = vmatprep.subr.mxu0 0.0
        %2515 = vmatpush1.msra.mxu0 0.0
        %2516 = vmatprep.subr.mxu0 0.0
        %2517 = vmatpush1.msra.mxu0 0.0
        %2518 = vmatprep.mubr.f32.mxu0 0.0
        %v2519 = vand.u32 %v245, 4294901760
        %v2520 = vsub.f32 %v245, %v2519
        %2521 = vmatmul.mubr.f32.gmra.mrb[0].mxu0 %v2520
        %v2522 = vpop.f32.mrb[0].mxu0
        %v2523 = vadd.f32 %v2441, %v2522
        %v2524 = vpop.f32.mrb[0].mxu0
        %2525 = vmatprep.mubr.f32.mxu0 0.0
        %v2526 = vand.u32 %v248, 4294901760
        %v2527 = vsub.f32 %v248, %v2526
        %2528 = vmatmul.mubr.f32.gmra.mrb[0].mxu0 %v2527
        %v2529 = vpop.f32.mrb[0].mxu0
        %v2530 = vadd.f32 %v2447, %v2529
        %v2531 = vpop.f32.mrb[0].mxu0
        %2532 = vdwg.mxu0
        %2533 = vmatprep.subr.mxu0 0.0
        %v2534 = vand.u32 %v239, 4294901760
        %2535 = vmatpush1.msra.mxu0 %v2534
        %2536 = vmatprep.subr.mxu0 0.0
        %v2537 = vand.u32 %v240, 4294901760
        %2538 = vmatpush1.msra.mxu0 %v2537
        %2539 = vmatprep.subr.mxu0 0.0
        %2540 = vmatpush1.msra.mxu0 0.0
        %2541 = vmatprep.subr.mxu0 0.0
        %2542 = vmatpush1.msra.mxu0 0.0
        %2543 = vmatprep.subr.mxu0 0.0
        %2544 = vmatpush1.msra.mxu0 0.0
        %2545 = vmatprep.subr.mxu0 0.0
        %2546 = vmatpush1.msra.mxu0 0.0
        %2547 = vmatprep.subr.mxu0 0.0
        %2548 = vmatpush1.msra.mxu0 0.0
        %2549 = vmatprep.subr.mxu0 0.0
        %2550 = vmatpush1.msra.mxu0 0.0
        %2551 = vmatprep.subr.mxu0 0.0
        %2552 = vmatpush1.msra.mxu0 0.0
        %2553 = vmatprep.subr.mxu0 0.0
        %2554 = vmatpush1.msra.mxu0 0.0
        %2555 = vmatprep.subr.mxu0 0.0
        %2556 = vmatpush1.msra.mxu0 0.0
        %2557 = vmatprep.subr.mxu0 0.0
        %2558 = vmatpush1.msra.mxu0 0.0
        %2559 = vmatprep.subr.mxu0 0.0
        %2560 = vmatpush1.msra.mxu0 0.0
        %2561 = vmatprep.subr.mxu0 0.0
        %2562 = vmatpush1.msra.mxu0 0.0
        %2563 = vmatprep.subr.mxu0 0.0
        %2564 = vmatpush1.msra.mxu0 0.0
        %2565 = vmatprep.subr.mxu0 0.0
        %2566 = vmatpush1.msra.mxu0 0.0
        %2567 = vmatprep.subr.mxu0 0.0
        %2568 = vmatpush1.msra.mxu0 0.0
        %2569 = vmatprep.subr.mxu0 0.0
        %2570 = vmatpush1.msra.mxu0 0.0
        %2571 = vmatprep.subr.mxu0 0.0
        %2572 = vmatpush1.msra.mxu0 0.0
        %2573 = vmatprep.subr.mxu0 0.0
        %2574 = vmatpush1.msra.mxu0 0.0
        %2575 = vmatprep.subr.mxu0 0.0
        %2576 = vmatpush1.msra.mxu0 0.0
        %2577 = vmatprep.subr.mxu0 0.0
        %2578 = vmatpush1.msra.mxu0 0.0
        %2579 = vmatprep.subr.mxu0 0.0
        %2580 = vmatpush1.msra.mxu0 0.0
        %2581 = vmatprep.subr.mxu0 0.0
        %2582 = vmatpush1.msra.mxu0 0.0
        %2583 = vmatprep.subr.mxu0 0.0
        %2584 = vmatpush1.msra.mxu0 0.0
        %2585 = vmatprep.subr.mxu0 0.0
        %2586 = vmatpush1.msra.mxu0 0.0
        %2587 = vmatprep.subr.mxu0 0.0
        %2588 = vmatpush1.msra.mxu0 0.0
        %2589 = vmatprep.subr.mxu0 0.0
        %2590 = vmatpush1.msra.mxu0 0.0
        %2591 = vmatprep.subr.mxu0 0.0
        %2592 = vmatpush1.msra.mxu0 0.0
        %2593 = vmatprep.subr.mxu0 0.0
        %2594 = vmatpush1.msra.mxu0 0.0
        %2595 = vmatprep.subr.mxu0 0.0
        %2596 = vmatpush1.msra.mxu0 0.0
        %2597 = vmatprep.subr.mxu0 0.0
        %2598 = vmatpush1.msra.mxu0 0.0
        %2599 = vmatprep.mubr.f32.mxu0 0.0
        %v2600 = vand.u32 %v245, 4294901760
        %v2601 = vsub.f32 %v245, %v2600
        %v2602 = vand.u32 %v2601, 4294901760
        %2603 = vmatmul.mubr.f32.gmra.mrb[0].mxu0 %v2602
        %v2604 = vpop.f32.mrb[0].mxu0
        %v2605 = vadd.f32 %v2523, %v2604
        %v2606 = vpop.f32.mrb[0].mxu0
        %2607 = vmatprep.mubr.f32.mxu0 0.0
        %v2608 = vand.u32 %v248, 4294901760
        %v2609 = vsub.f32 %v248, %v2608
        %v2610 = vand.u32 %v2609, 4294901760
        %2611 = vmatmul.mubr.f32.gmra.mrb[0].mxu0 %v2610
        %v2612 = vpop.f32.mrb[0].mxu0
        %v2613 = vadd.f32 %v2530, %v2612
        %v2614 = vpop.f32.mrb[0].mxu0
        %2615 = vdwg.mxu0
        %2616 = vmatprep.subr.mxu0 0.0
        %v2617 = vand.u32 %v239, 4294901760
        %v2618 = vsub.f32 %v239, %v2617
        %v2619 = vand.u32 %v2618, 4294901760
        %2620 = vmatpush1.msra.mxu0 %v2619
        %2621 = vmatprep.subr.mxu0 0.0
        %v2622 = vand.u32 %v240, 4294901760
        %v2623 = vsub.f32 %v240, %v2622
        %v2624 = vand.u32 %v2623, 4294901760
        %2625 = vmatpush1.msra.mxu0 %v2624
        %2626 = vmatprep.subr.mxu0 0.0
        %2627 = vmatpush1.msra.mxu0 0.0
        %2628 = vmatprep.subr.mxu0 0.0
        %2629 = vmatpush1.msra.mxu0 0.0
        %2630 = vmatprep.subr.mxu0 0.0
        %2631 = vmatpush1.msra.mxu0 0.0
        %2632 = vmatprep.subr.mxu0 0.0
        %2633 = vmatpush1.msra.mxu0 0.0
        %2634 = vmatprep.subr.mxu0 0.0
        %2635 = vmatpush1.msra.mxu0 0.0
        %2636 = vmatprep.subr.mxu0 0.0
        %2637 = vmatpush1.msra.mxu0 0.0
        %2638 = vmatprep.subr.mxu0 0.0
        %2639 = vmatpush1.msra.mxu0 0.0
        %2640 = vmatprep.subr.mxu0 0.0
        %2641 = vmatpush1.msra.mxu0 0.0
        %2642 = vmatprep.subr.mxu0 0.0
        %2643 = vmatpush1.msra.mxu0 0.0
        %2644 = vmatprep.subr.mxu0 0.0
        %2645 = vmatpush1.msra.mxu0 0.0
        %2646 = vmatprep.subr.mxu0 0.0
        %2647 = vmatpush1.msra.mxu0 0.0
        %2648 = vmatprep.subr.mxu0 0.0
        %2649 = vmatpush1.msra.mxu0 0.0
        %2650 = vmatprep.subr.mxu0 0.0
        %2651 = vmatpush1.msra.mxu0 0.0
        %2652 = vmatprep.subr.mxu0 0.0
        %2653 = vmatpush1.msra.mxu0 0.0
        %2654 = vmatprep.subr.mxu0 0.0
        %2655 = vmatpush1.msra.mxu0 0.0
        %2656 = vmatprep.subr.mxu0 0.0
        %2657 = vmatpush1.msra.mxu0 0.0
        %2658 = vmatprep.subr.mxu0 0.0
        %2659 = vmatpush1.msra.mxu0 0.0
        %2660 = vmatprep.subr.mxu0 0.0
        %2661 = vmatpush1.msra.mxu0 0.0
        %2662 = vmatprep.subr.mxu0 0.0
        %2663 = vmatpush1.msra.mxu0 0.0
        %2664 = vmatprep.subr.mxu0 0.0
        %2665 = vmatpush1.msra.mxu0 0.0
        %2666 = vmatprep.subr.mxu0 0.0
        %2667 = vmatpush1.msra.mxu0 0.0
        %2668 = vmatprep.subr.mxu0 0.0
        %2669 = vmatpush1.msra.mxu0 0.0
        %2670 = vmatprep.subr.mxu0 0.0
        %2671 = vmatpush1.msra.mxu0 0.0
        %2672 = vmatprep.subr.mxu0 0.0
        %2673 = vmatpush1.msra.mxu0 0.0
        %2674 = vmatprep.subr.mxu0 0.0
        %2675 = vmatpush1.msra.mxu0 0.0
        %2676 = vmatprep.subr.mxu0 0.0
        %2677 = vmatpush1.msra.mxu0 0.0
        %2678 = vmatprep.subr.mxu0 0.0
        %2679 = vmatpush1.msra.mxu0 0.0
        %2680 = vmatprep.subr.mxu0 0.0
        %2681 = vmatpush1.msra.mxu0 0.0
        %2682 = vmatprep.subr.mxu0 0.0
        %2683 = vmatpush1.msra.mxu0 0.0
        %2684 = vmatprep.subr.mxu0 0.0
        %2685 = vmatpush1.msra.mxu0 0.0
        %2686 = vmatprep.mubr.f32.mxu0 0.0
        %v2687 = vand.u32 %v245, 4294901760
        %2688 = vmatmul.mubr.f32.gmra.mrb[0].mxu0 %v2687
        %v2689 = vpop.f32.mrb[0].mxu0
        %v2690 = vadd.f32 %v2605, %v2689
        %v2691 = vpop.f32.mrb[0].mxu0
        %2692 = vmatprep.mubr.f32.mxu0 0.0
        %v2693 = vand.u32 %v248, 4294901760
        %2694 = vmatmul.mubr.f32.gmra.mrb[0].mxu0 %v2693
        %v2695 = vpop.f32.mrb[0].mxu0
        %v2696 = vadd.f32 %v2613, %v2695
        %v2697 = vpop.f32.mrb[0].mxu0
        %2698 = vdwg.mxu0
        %2699 = vmatprep.subr.mxu0 0.0
        %v2700 = vand.u32 %v239, 4294901760
        %2701 = vmatpush1.msra.mxu0 %v2700
        %2702 = vmatprep.subr.mxu0 0.0
        %v2703 = vand.u32 %v240, 4294901760
        %2704 = vmatpush1.msra.mxu0 %v2703
        %2705 = vmatprep.subr.mxu0 0.0
        %2706 = vmatpush1.msra.mxu0 0.0
        %2707 = vmatprep.subr.mxu0 0.0
        %2708 = vmatpush1.msra.mxu0 0.0
        %2709 = vmatprep.subr.mxu0 0.0
        %2710 = vmatpush1.msra.mxu0 0.0
        %2711 = vmatprep.subr.mxu0 0.0
        %2712 = vmatpush1.msra.mxu0 0.0
        %2713 = vmatprep.subr.mxu0 0.0
        %2714 = vmatpush1.msra.mxu0 0.0
        %2715 = vmatprep.subr.mxu0 0.0
        %2716 = vmatpush1.msra.mxu0 0.0
        %2717 = vmatprep.subr.mxu0 0.0
        %2718 = vmatpush1.msra.mxu0 0.0
        %2719 = vmatprep.subr.mxu0 0.0
        %2720 = vmatpush1.msra.mxu0 0.0
        %2721 = vmatprep.subr.mxu0 0.0
        %2722 = vmatpush1.msra.mxu0 0.0
        %2723 = vmatprep.subr.mxu0 0.0
        %2724 = vmatpush1.msra.mxu0 0.0
        %2725 = vmatprep.subr.mxu0 0.0
        %2726 = vmatpush1.msra.mxu0 0.0
        %2727 = vmatprep.subr.mxu0 0.0
        %2728 = vmatpush1.msra.mxu0 0.0
        %2729 = vmatprep.subr.mxu0 0.0
        %2730 = vmatpush1.msra.mxu0 0.0
        %2731 = vmatprep.subr.mxu0 0.0
        %2732 = vmatpush1.msra.mxu0 0.0
        %2733 = vmatprep.subr.mxu0 0.0
        %2734 = vmatpush1.msra.mxu0 0.0
        %2735 = vmatprep.subr.mxu0 0.0
        %2736 = vmatpush1.msra.mxu0 0.0
        %2737 = vmatprep.subr.mxu0 0.0
        %2738 = vmatpush1.msra.mxu0 0.0
        %2739 = vmatprep.subr.mxu0 0.0
        %2740 = vmatpush1.msra.mxu0 0.0
        %2741 = vmatprep.subr.mxu0 0.0
        %2742 = vmatpush1.msra.mxu0 0.0
        %2743 = vmatprep.subr.mxu0 0.0
        %2744 = vmatpush1.msra.mxu0 0.0
        %2745 = vmatprep.subr.mxu0 0.0
        %2746 = vmatpush1.msra.mxu0 0.0
        %2747 = vmatprep.subr.mxu0 0.0
        %2748 = vmatpush1.msra.mxu0 0.0
        %2749 = vmatprep.subr.mxu0 0.0
        %2750 = vmatpush1.msra.mxu0 0.0
        %2751 = vmatprep.subr.mxu0 0.0
        %2752 = vmatpush1.msra.mxu0 0.0
        %2753 = vmatprep.subr.mxu0 0.0
        %2754 = vmatpush1.msra.mxu0 0.0
        %2755 = vmatprep.subr.mxu0 0.0
        %2756 = vmatpush1.msra.mxu0 0.0
        %2757 = vmatprep.subr.mxu0 0.0
        %2758 = vmatpush1.msra.mxu0 0.0
        %2759 = vmatprep.subr.mxu0 0.0
        %2760 = vmatpush1.msra.mxu0 0.0
        %2761 = vmatprep.subr.mxu0 0.0
        %2762 = vmatpush1.msra.mxu0 0.0
        %2763 = vmatprep.subr.mxu0 0.0
        %2764 = vmatpush1.msra.mxu0 0.0
        %2765 = vmatprep.mubr.f32.mxu0 0.0
        %v2766 = vand.u32 %v245, 4294901760
        %2767 = vmatmul.mubr.f32.gmra.mrb[0].mxu0 %v2766
        %v2768 = vpop.f32.mrb[0].mxu0
        %v2769 = vadd.f32 %v2690, %v2768
        %v2770 = vpop.f32.mrb[0].mxu0
        %2771 = vmatprep.mubr.f32.mxu0 0.0
        %v2772 = vand.u32 %v248, 4294901760
        %2773 = vmatmul.mubr.f32.gmra.mrb[0].mxu0 %v2772
        %v2774 = vpop.f32.mrb[0].mxu0
        %v2775 = vadd.f32 %v2696, %v2774
        %v2776 = vpop.f32.mrb[0].mxu0
        %2777 = vdwg.mxu0
        %2778 = vmatprep.subr.mxu0 0.0
        %v2779 = vand.u32 %v239, 4294901760
        %2780 = vmatpush1.msra.mxu0 %v2779
        %2781 = vmatprep.subr.mxu0 0.0
        %v2782 = vand.u32 %v240, 4294901760
        %2783 = vmatpush1.msra.mxu0 %v2782
        %2784 = vmatprep.subr.mxu0 0.0
        %2785 = vmatpush1.msra.mxu0 0.0
        %2786 = vmatprep.subr.mxu0 0.0
        %2787 = vmatpush1.msra.mxu0 0.0
        %2788 = vmatprep.subr.mxu0 0.0
        %2789 = vmatpush1.msra.mxu0 0.0
        %2790 = vmatprep.subr.mxu0 0.0
        %2791 = vmatpush1.msra.mxu0 0.0
        %2792 = vmatprep.subr.mxu0 0.0
        %2793 = vmatpush1.msra.mxu0 0.0
        %2794 = vmatprep.subr.mxu0 0.0
        %2795 = vmatpush1.msra.mxu0 0.0
        %2796 = vmatprep.subr.mxu0 0.0
        %2797 = vmatpush1.msra.mxu0 0.0
        %2798 = vmatprep.subr.mxu0 0.0
        %2799 = vmatpush1.msra.mxu0 0.0
        %2800 = vmatprep.subr.mxu0 0.0
        %2801 = vmatpush1.msra.mxu0 0.0
        %2802 = vmatprep.subr.mxu0 0.0
        %2803 = vmatpush1.msra.mxu0 0.0
        %2804 = vmatprep.subr.mxu0 0.0
        %2805 = vmatpush1.msra.mxu0 0.0
        %2806 = vmatprep.subr.mxu0 0.0
        %2807 = vmatpush1.msra.mxu0 0.0
        %2808 = vmatprep.subr.mxu0 0.0
        %2809 = vmatpush1.msra.mxu0 0.0
        %2810 = vmatprep.subr.mxu0 0.0
        %2811 = vmatpush1.msra.mxu0 0.0
        %2812 = vmatprep.subr.mxu0 0.0
        %2813 = vmatpush1.msra.mxu0 0.0
        %2814 = vmatprep.subr.mxu0 0.0
        %2815 = vmatpush1.msra.mxu0 0.0
        %2816 = vmatprep.subr.mxu0 0.0
        %2817 = vmatpush1.msra.mxu0 0.0
        %2818 = vmatprep.subr.mxu0 0.0
        %2819 = vmatpush1.msra.mxu0 0.0
        %2820 = vmatprep.subr.mxu0 0.0
        %2821 = vmatpush1.msra.mxu0 0.0
        %2822 = vmatprep.subr.mxu0 0.0
        %2823 = vmatpush1.msra.mxu0 0.0
        %2824 = vmatprep.subr.mxu0 0.0
        %2825 = vmatpush1.msra.mxu0 0.0
        %2826 = vmatprep.subr.mxu0 0.0
        %2827 = vmatpush1.msra.mxu0 0.0
        %2828 = vmatprep.subr.mxu0 0.0
        %2829 = vmatpush1.msra.mxu0 0.0
        %2830 = vmatprep.subr.mxu0 0.0
        %2831 = vmatpush1.msra.mxu0 0.0
        %2832 = vmatprep.subr.mxu0 0.0
        %2833 = vmatpush1.msra.mxu0 0.0
        %2834 = vmatprep.subr.mxu0 0.0
        %2835 = vmatpush1.msra.mxu0 0.0
        %2836 = vmatprep.subr.mxu0 0.0
        %2837 = vmatpush1.msra.mxu0 0.0
        %2838 = vmatprep.subr.mxu0 0.0
        %2839 = vmatpush1.msra.mxu0 0.0
        %2840 = vmatprep.subr.mxu0 0.0
        %2841 = vmatpush1.msra.mxu0 0.0
        %2842 = vmatprep.subr.mxu0 0.0
        %2843 = vmatpush1.msra.mxu0 0.0
        %2844 = vmatprep.mubr.f32.mxu0 0.0
        %v2845 = vand.u32 %v753, 4294901760
        %v2846 = vsub.f32 %v753, %v2845
        %v2847 = vand.u32 %v2846, 4294901760
        %v2848 = vsub.f32 %v2846, %v2847
        %v2849 = vand.u32 %v2848, 4294901760
        %2850 = vmatmul.mubr.f32.gmra.mrb[0].mxu0 %v2849
        %v2851 = vpop.f32.mrb[0].mxu0
        %v2852 = vadd.f32 0.0, %v2851
        %v2853 = vpop.f32.mrb[0].mxu0
        %2854 = vmatprep.mubr.f32.mxu0 0.0
        %v2855 = vand.u32 %v756, 4294901760
        %v2856 = vsub.f32 %v756, %v2855
        %v2857 = vand.u32 %v2856, 4294901760
        %v2858 = vsub.f32 %v2856, %v2857
        %v2859 = vand.u32 %v2858, 4294901760
        %2860 = vmatmul.mubr.f32.gmra.mrb[0].mxu0 %v2859
        %v2861 = vpop.f32.mrb[0].mxu0
        %v2862 = vadd.f32 0.0, %v2861
        %v2863 = vpop.f32.mrb[0].mxu0
        %2864 = vdwg.mxu0
        %2865 = vmatprep.subr.mxu0 0.0
        %v2866 = vand.u32 %v239, 4294901760
        %v2867 = vsub.f32 %v239, %v2866
        %v2868 = vand.u32 %v2867, 4294901760
        %v2869 = vsub.f32 %v2867, %v2868
        %v2870 = vand.u32 %v2869, 4294901760
        %2871 = vmatpush1.msra.mxu0 %v2870
        %2872 = vmatprep.subr.mxu0 0.0
        %v2873 = vand.u32 %v240, 4294901760
        %v2874 = vsub.f32 %v240, %v2873
        %v2875 = vand.u32 %v2874, 4294901760
        %v2876 = vsub.f32 %v2874, %v2875
        %v2877 = vand.u32 %v2876, 4294901760
        %2878 = vmatpush1.msra.mxu0 %v2877
        %2879 = vmatprep.subr.mxu0 0.0
        %2880 = vmatpush1.msra.mxu0 0.0
        %2881 = vmatprep.subr.mxu0 0.0
        %2882 = vmatpush1.msra.mxu0 0.0
        %2883 = vmatprep.subr.mxu0 0.0
        %2884 = vmatpush1.msra.mxu0 0.0
        %2885 = vmatprep.subr.mxu0 0.0
        %2886 = vmatpush1.msra.mxu0 0.0
        %2887 = vmatprep.subr.mxu0 0.0
        %2888 = vmatpush1.msra.mxu0 0.0
        %2889 = vmatprep.subr.mxu0 0.0
        %2890 = vmatpush1.msra.mxu0 0.0
        %2891 = vmatprep.subr.mxu0 0.0
        %2892 = vmatpush1.msra.mxu0 0.0
        %2893 = vmatprep.subr.mxu0 0.0
        %2894 = vmatpush1.msra.mxu0 0.0
        %2895 = vmatprep.subr.mxu0 0.0
        %2896 = vmatpush1.msra.mxu0 0.0
        %2897 = vmatprep.subr.mxu0 0.0
        %2898 = vmatpush1.msra.mxu0 0.0
        %2899 = vmatprep.subr.mxu0 0.0
        %2900 = vmatpush1.msra.mxu0 0.0
        %2901 = vmatprep.subr.mxu0 0.0
        %2902 = vmatpush1.msra.mxu0 0.0
        %2903 = vmatprep.subr.mxu0 0.0
        %2904 = vmatpush1.msra.mxu0 0.0
        %2905 = vmatprep.subr.mxu0 0.0
        %2906 = vmatpush1.msra.mxu0 0.0
        %2907 = vmatprep.subr.mxu0 0.0
        %2908 = vmatpush1.msra.mxu0 0.0
        %2909 = vmatprep.subr.mxu0 0.0
        %2910 = vmatpush1.msra.mxu0 0.0
        %2911 = vmatprep.subr.mxu0 0.0
        %2912 = vmatpush1.msra.mxu0 0.0
        %2913 = vmatprep.subr.mxu0 0.0
        %2914 = vmatpush1.msra.mxu0 0.0
        %2915 = vmatprep.subr.mxu0 0.0
        %2916 = vmatpush1.msra.mxu0 0.0
        %2917 = vmatprep.subr.mxu0 0.0
        %2918 = vmatpush1.msra.mxu0 0.0
        %2919 = vmatprep.subr.mxu0 0.0
        %2920 = vmatpush1.msra.mxu0 0.0
        %2921 = vmatprep.subr.mxu0 0.0
        %2922 = vmatpush1.msra.mxu0 0.0
        %2923 = vmatprep.subr.mxu0 0.0
        %2924 = vmatpush1.msra.mxu0 0.0
        %2925 = vmatprep.subr.mxu0 0.0
        %2926 = vmatpush1.msra.mxu0 0.0
        %2927 = vmatprep.subr.mxu0 0.0
        %2928 = vmatpush1.msra.mxu0 0.0
        %2929 = vmatprep.subr.mxu0 0.0
        %2930 = vmatpush1.msra.mxu0 0.0
        %2931 = vmatprep.subr.mxu0 0.0
        %2932 = vmatpush1.msra.mxu0 0.0
        %2933 = vmatprep.subr.mxu0 0.0
        %2934 = vmatpush1.msra.mxu0 0.0
        %2935 = vmatprep.subr.mxu0 0.0
        %2936 = vmatpush1.msra.mxu0 0.0
        %2937 = vmatprep.subr.mxu0 0.0
        %2938 = vmatpush1.msra.mxu0 0.0
        %2939 = vmatprep.mubr.f32.mxu0 0.0
        %v2940 = vand.u32 %v753, 4294901760
        %2941 = vmatmul.mubr.f32.gmra.mrb[0].mxu0 %v2940
        %v2942 = vpop.f32.mrb[0].mxu0
        %v2943 = vadd.f32 %v2852, %v2942
        %v2944 = vpop.f32.mrb[0].mxu0
        %2945 = vmatprep.mubr.f32.mxu0 0.0
        %v2946 = vand.u32 %v756, 4294901760
        %2947 = vmatmul.mubr.f32.gmra.mrb[0].mxu0 %v2946
        %v2948 = vpop.f32.mrb[0].mxu0
        %v2949 = vadd.f32 %v2862, %v2948
        %v2950 = vpop.f32.mrb[0].mxu0
        %2951 = vdwg.mxu0
        %2952 = vmatprep.subr.mxu0 0.0
        %v2953 = vand.u32 %v239, 4294901760
        %v2954 = vsub.f32 %v239, %v2953
        %2955 = vmatpush1.msra.mxu0 %v2954
        %2956 = vmatprep.subr.mxu0 0.0
        %v2957 = vand.u32 %v240, 4294901760
        %v2958 = vsub.f32 %v240, %v2957
        %2959 = vmatpush1.msra.mxu0 %v2958
        %2960 = vmatprep.subr.mxu0 0.0
        %2961 = vmatpush1.msra.mxu0 0.0
        %2962 = vmatprep.subr.mxu0 0.0
        %2963 = vmatpush1.msra.mxu0 0.0
        %2964 = vmatprep.subr.mxu0 0.0
        %2965 = vmatpush1.msra.mxu0 0.0
        %2966 = vmatprep.subr.mxu0 0.0
        %2967 = vmatpush1.msra.mxu0 0.0
        %2968 = vmatprep.subr.mxu0 0.0
        %2969 = vmatpush1.msra.mxu0 0.0
        %2970 = vmatprep.subr.mxu0 0.0
        %2971 = vmatpush1.msra.mxu0 0.0
        %2972 = vmatprep.subr.mxu0 0.0
        %2973 = vmatpush1.msra.mxu0 0.0
        %2974 = vmatprep.subr.mxu0 0.0
        %2975 = vmatpush1.msra.mxu0 0.0
        %2976 = vmatprep.subr.mxu0 0.0
        %2977 = vmatpush1.msra.mxu0 0.0
        %2978 = vmatprep.subr.mxu0 0.0
        %2979 = vmatpush1.msra.mxu0 0.0
        %2980 = vmatprep.subr.mxu0 0.0
        %2981 = vmatpush1.msra.mxu0 0.0
        %2982 = vmatprep.subr.mxu0 0.0
        %2983 = vmatpush1.msra.mxu0 0.0
        %2984 = vmatprep.subr.mxu0 0.0
        %2985 = vmatpush1.msra.mxu0 0.0
        %2986 = vmatprep.subr.mxu0 0.0
        %2987 = vmatpush1.msra.mxu0 0.0
        %2988 = vmatprep.subr.mxu0 0.0
        %2989 = vmatpush1.msra.mxu0 0.0
        %2990 = vmatprep.subr.mxu0 0.0
        %2991 = vmatpush1.msra.mxu0 0.0
        %2992 = vmatprep.subr.mxu0 0.0
        %2993 = vmatpush1.msra.mxu0 0.0
        %2994 = vmatprep.subr.mxu0 0.0
        %2995 = vmatpush1.msra.mxu0 0.0
        %2996 = vmatprep.subr.mxu0 0.0
        %2997 = vmatpush1.msra.mxu0 0.0
        %2998 = vmatprep.subr.mxu0 0.0
        %2999 = vmatpush1.msra.mxu0 0.0
        %3000 = vmatprep.subr.mxu0 0.0
        %3001 = vmatpush1.msra.mxu0 0.0
        %3002 = vmatprep.subr.mxu0 0.0
        %3003 = vmatpush1.msra.mxu0 0.0
        %3004 = vmatprep.subr.mxu0 0.0
        %3005 = vmatpush1.msra.mxu0 0.0
        %3006 = vmatprep.subr.mxu0 0.0
        %3007 = vmatpush1.msra.mxu0 0.0
        %3008 = vmatprep.subr.mxu0 0.0
        %3009 = vmatpush1.msra.mxu0 0.0
        %3010 = vmatprep.subr.mxu0 0.0
        %3011 = vmatpush1.msra.mxu0 0.0
        %3012 = vmatprep.subr.mxu0 0.0
        %3013 = vmatpush1.msra.mxu0 0.0
        %3014 = vmatprep.subr.mxu0 0.0
        %3015 = vmatpush1.msra.mxu0 0.0
        %3016 = vmatprep.subr.mxu0 0.0
        %3017 = vmatpush1.msra.mxu0 0.0
        %3018 = vmatprep.subr.mxu0 0.0
        %3019 = vmatpush1.msra.mxu0 0.0
        %3020 = vmatprep.mubr.f32.mxu0 0.0
        %v3021 = vand.u32 %v753, 4294901760
        %v3022 = vsub.f32 %v753, %v3021
        %3023 = vmatmul.mubr.f32.gmra.mrb[0].mxu0 %v3022
        %v3024 = vpop.f32.mrb[0].mxu0
        %v3025 = vadd.f32 %v2943, %v3024
        %v3026 = vpop.f32.mrb[0].mxu0
        %3027 = vmatprep.mubr.f32.mxu0 0.0
        %v3028 = vand.u32 %v756, 4294901760
        %v3029 = vsub.f32 %v756, %v3028
        %3030 = vmatmul.mubr.f32.gmra.mrb[0].mxu0 %v3029
        %v3031 = vpop.f32.mrb[0].mxu0
        %v3032 = vadd.f32 %v2949, %v3031
        %v3033 = vpop.f32.mrb[0].mxu0
        %3034 = vdwg.mxu0
        %3035 = vmatprep.subr.mxu0 0.0
        %v3036 = vand.u32 %v239, 4294901760
        %3037 = vmatpush1.msra.mxu0 %v3036
        %3038 = vmatprep.subr.mxu0 0.0
        %v3039 = vand.u32 %v240, 4294901760
        %3040 = vmatpush1.msra.mxu0 %v3039
        %3041 = vmatprep.subr.mxu0 0.0
        %3042 = vmatpush1.msra.mxu0 0.0
        %3043 = vmatprep.subr.mxu0 0.0
        %3044 = vmatpush1.msra.mxu0 0.0
        %3045 = vmatprep.subr.mxu0 0.0
        %3046 = vmatpush1.msra.mxu0 0.0
        %3047 = vmatprep.subr.mxu0 0.0
        %3048 = vmatpush1.msra.mxu0 0.0
        %3049 = vmatprep.subr.mxu0 0.0
        %3050 = vmatpush1.msra.mxu0 0.0
        %3051 = vmatprep.subr.mxu0 0.0
        %3052 = vmatpush1.msra.mxu0 0.0
        %3053 = vmatprep.subr.mxu0 0.0
        %3054 = vmatpush1.msra.mxu0 0.0
        %3055 = vmatprep.subr.mxu0 0.0
        %3056 = vmatpush1.msra.mxu0 0.0
        %3057 = vmatprep.subr.mxu0 0.0
        %3058 = vmatpush1.msra.mxu0 0.0
        %3059 = vmatprep.subr.mxu0 0.0
        %3060 = vmatpush1.msra.mxu0 0.0
        %3061 = vmatprep.subr.mxu0 0.0
        %3062 = vmatpush1.msra.mxu0 0.0
        %3063 = vmatprep.subr.mxu0 0.0
        %3064 = vmatpush1.msra.mxu0 0.0
        %3065 = vmatprep.subr.mxu0 0.0
        %3066 = vmatpush1.msra.mxu0 0.0
        %3067 = vmatprep.subr.mxu0 0.0
        %3068 = vmatpush1.msra.mxu0 0.0
        %3069 = vmatprep.subr.mxu0 0.0
        %3070 = vmatpush1.msra.mxu0 0.0
        %3071 = vmatprep.subr.mxu0 0.0
        %3072 = vmatpush1.msra.mxu0 0.0
        %3073 = vmatprep.subr.mxu0 0.0
        %3074 = vmatpush1.msra.mxu0 0.0
        %3075 = vmatprep.subr.mxu0 0.0
        %3076 = vmatpush1.msra.mxu0 0.0
        %3077 = vmatprep.subr.mxu0 0.0
        %3078 = vmatpush1.msra.mxu0 0.0
        %3079 = vmatprep.subr.mxu0 0.0
        %3080 = vmatpush1.msra.mxu0 0.0
        %3081 = vmatprep.subr.mxu0 0.0
        %3082 = vmatpush1.msra.mxu0 0.0
        %3083 = vmatprep.subr.mxu0 0.0
        %3084 = vmatpush1.msra.mxu0 0.0
        %3085 = vmatprep.subr.mxu0 0.0
        %3086 = vmatpush1.msra.mxu0 0.0
        %3087 = vmatprep.subr.mxu0 0.0
        %3088 = vmatpush1.msra.mxu0 0.0
        %3089 = vmatprep.subr.mxu0 0.0
        %3090 = vmatpush1.msra.mxu0 0.0
        %3091 = vmatprep.subr.mxu0 0.0
        %3092 = vmatpush1.msra.mxu0 0.0
        %3093 = vmatprep.subr.mxu0 0.0
        %3094 = vmatpush1.msra.mxu0 0.0
        %3095 = vmatprep.subr.mxu0 0.0
        %3096 = vmatpush1.msra.mxu0 0.0
        %3097 = vmatprep.subr.mxu0 0.0
        %3098 = vmatpush1.msra.mxu0 0.0
        %3099 = vmatprep.subr.mxu0 0.0
        %3100 = vmatpush1.msra.mxu0 0.0
        %3101 = vmatprep.mubr.f32.mxu0 0.0
        %v3102 = vand.u32 %v753, 4294901760
        %v3103 = vsub.f32 %v753, %v3102
        %v3104 = vand.u32 %v3103, 4294901760
        %3105 = vmatmul.mubr.f32.gmra.mrb[0].mxu0 %v3104
        %v3106 = vpop.f32.mrb[0].mxu0
        %v3107 = vadd.f32 %v3025, %v3106
        %v3108 = vpop.f32.mrb[0].mxu0
        %3109 = vmatprep.mubr.f32.mxu0 0.0
        %v3110 = vand.u32 %v756, 4294901760
        %v3111 = vsub.f32 %v756, %v3110
        %v3112 = vand.u32 %v3111, 4294901760
        %3113 = vmatmul.mubr.f32.gmra.mrb[0].mxu0 %v3112
        %v3114 = vpop.f32.mrb[0].mxu0
        %v3115 = vadd.f32 %v3032, %v3114
        %v3116 = vpop.f32.mrb[0].mxu0
        %3117 = vdwg.mxu0
        %3118 = vmatprep.subr.mxu0 0.0
        %v3119 = vand.u32 %v239, 4294901760
        %v3120 = vsub.f32 %v239, %v3119
        %v3121 = vand.u32 %v3120, 4294901760
        %3122 = vmatpush1.msra.mxu0 %v3121
        %3123 = vmatprep.subr.mxu0 0.0
        %v3124 = vand.u32 %v240, 4294901760
        %v3125 = vsub.f32 %v240, %v3124
        %v3126 = vand.u32 %v3125, 4294901760
        %3127 = vmatpush1.msra.mxu0 %v3126
        %3128 = vmatprep.subr.mxu0 0.0
        %3129 = vmatpush1.msra.mxu0 0.0
        %3130 = vmatprep.subr.mxu0 0.0
        %3131 = vmatpush1.msra.mxu0 0.0
        %3132 = vmatprep.subr.mxu0 0.0
        %3133 = vmatpush1.msra.mxu0 0.0
        %3134 = vmatprep.subr.mxu0 0.0
        %3135 = vmatpush1.msra.mxu0 0.0
        %3136 = vmatprep.subr.mxu0 0.0
        %3137 = vmatpush1.msra.mxu0 0.0
        %3138 = vmatprep.subr.mxu0 0.0
        %3139 = vmatpush1.msra.mxu0 0.0
        %3140 = vmatprep.subr.mxu0 0.0
        %3141 = vmatpush1.msra.mxu0 0.0
        %3142 = vmatprep.subr.mxu0 0.0
        %3143 = vmatpush1.msra.mxu0 0.0
        %3144 = vmatprep.subr.mxu0 0.0
        %3145 = vmatpush1.msra.mxu0 0.0
        %3146 = vmatprep.subr.mxu0 0.0
        %3147 = vmatpush1.msra.mxu0 0.0
        %3148 = vmatprep.subr.mxu0 0.0
        %3149 = vmatpush1.msra.mxu0 0.0
        %3150 = vmatprep.subr.mxu0 0.0
        %3151 = vmatpush1.msra.mxu0 0.0
        %3152 = vmatprep.subr.mxu0 0.0
        %3153 = vmatpush1.msra.mxu0 0.0
        %3154 = vmatprep.subr.mxu0 0.0
        %3155 = vmatpush1.msra.mxu0 0.0
        %3156 = vmatprep.subr.mxu0 0.0
        %3157 = vmatpush1.msra.mxu0 0.0
        %3158 = vmatprep.subr.mxu0 0.0
        %3159 = vmatpush1.msra.mxu0 0.0
        %3160 = vmatprep.subr.mxu0 0.0
        %3161 = vmatpush1.msra.mxu0 0.0
        %3162 = vmatprep.subr.mxu0 0.0
        %3163 = vmatpush1.msra.mxu0 0.0
        %3164 = vmatprep.subr.mxu0 0.0
        %3165 = vmatpush1.msra.mxu0 0.0
        %3166 = vmatprep.subr.mxu0 0.0
        %3167 = vmatpush1.msra.mxu0 0.0
        %3168 = vmatprep.subr.mxu0 0.0
        %3169 = vmatpush1.msra.mxu0 0.0
        %3170 = vmatprep.subr.mxu0 0.0
        %3171 = vmatpush1.msra.mxu0 0.0
        %3172 = vmatprep.subr.mxu0 0.0
        %3173 = vmatpush1.msra.mxu0 0.0
        %3174 = vmatprep.subr.mxu0 0.0
        %3175 = vmatpush1.msra.mxu0 0.0
        %3176 = vmatprep.subr.mxu0 0.0
        %3177 = vmatpush1.msra.mxu0 0.0
        %3178 = vmatprep.subr.mxu0 0.0
        %3179 = vmatpush1.msra.mxu0 0.0
        %3180 = vmatprep.subr.mxu0 0.0
        %3181 = vmatpush1.msra.mxu0 0.0
        %3182 = vmatprep.subr.mxu0 0.0
        %3183 = vmatpush1.msra.mxu0 0.0
        %3184 = vmatprep.subr.mxu0 0.0
        %3185 = vmatpush1.msra.mxu0 0.0
        %3186 = vmatprep.subr.mxu0 0.0
        %3187 = vmatpush1.msra.mxu0 0.0
        %3188 = vmatprep.mubr.f32.mxu0 0.0
        %v3189 = vand.u32 %v753, 4294901760
        %3190 = vmatmul.mubr.f32.gmra.mrb[0].mxu0 %v3189
        %v3191 = vpop.f32.mrb[0].mxu0
        %v3192 = vadd.f32 %v3107, %v3191
        %v3193 = vpop.f32.mrb[0].mxu0
        %3194 = vmatprep.mubr.f32.mxu0 0.0
        %v3195 = vand.u32 %v756, 4294901760
        %3196 = vmatmul.mubr.f32.gmra.mrb[0].mxu0 %v3195
        %v3197 = vpop.f32.mrb[0].mxu0
        %v3198 = vadd.f32 %v3115, %v3197
        %v3199 = vpop.f32.mrb[0].mxu0
        %3200 = vdwg.mxu0
        %3201 = vmatprep.subr.mxu0 0.0
        %v3202 = vand.u32 %v239, 4294901760
        %3203 = vmatpush1.msra.mxu0 %v3202
        %3204 = vmatprep.subr.mxu0 0.0
        %v3205 = vand.u32 %v240, 4294901760
        %3206 = vmatpush1.msra.mxu0 %v3205
        %3207 = vmatprep.subr.mxu0 0.0
        %3208 = vmatpush1.msra.mxu0 0.0
        %3209 = vmatprep.subr.mxu0 0.0
        %3210 = vmatpush1.msra.mxu0 0.0
        %3211 = vmatprep.subr.mxu0 0.0
        %3212 = vmatpush1.msra.mxu0 0.0
        %3213 = vmatprep.subr.mxu0 0.0
        %3214 = vmatpush1.msra.mxu0 0.0
        %3215 = vmatprep.subr.mxu0 0.0
        %3216 = vmatpush1.msra.mxu0 0.0
        %3217 = vmatprep.subr.mxu0 0.0
        %3218 = vmatpush1.msra.mxu0 0.0
        %3219 = vmatprep.subr.mxu0 0.0
        %3220 = vmatpush1.msra.mxu0 0.0
        %3221 = vmatprep.subr.mxu0 0.0
        %3222 = vmatpush1.msra.mxu0 0.0
        %3223 = vmatprep.subr.mxu0 0.0
        %3224 = vmatpush1.msra.mxu0 0.0
        %3225 = vmatprep.subr.mxu0 0.0
        %3226 = vmatpush1.msra.mxu0 0.0
        %3227 = vmatprep.subr.mxu0 0.0
        %3228 = vmatpush1.msra.mxu0 0.0
        %3229 = vmatprep.subr.mxu0 0.0
        %3230 = vmatpush1.msra.mxu0 0.0
        %3231 = vmatprep.subr.mxu0 0.0
        %3232 = vmatpush1.msra.mxu0 0.0
        %3233 = vmatprep.subr.mxu0 0.0
        %3234 = vmatpush1.msra.mxu0 0.0
        %3235 = vmatprep.subr.mxu0 0.0
        %3236 = vmatpush1.msra.mxu0 0.0
        %3237 = vmatprep.subr.mxu0 0.0
        %3238 = vmatpush1.msra.mxu0 0.0
        %3239 = vmatprep.subr.mxu0 0.0
        %3240 = vmatpush1.msra.mxu0 0.0
        %3241 = vmatprep.subr.mxu0 0.0
        %3242 = vmatpush1.msra.mxu0 0.0
        %3243 = vmatprep.subr.mxu0 0.0
        %3244 = vmatpush1.msra.mxu0 0.0
        %3245 = vmatprep.subr.mxu0 0.0
        %3246 = vmatpush1.msra.mxu0 0.0
        %3247 = vmatprep.subr.mxu0 0.0
        %3248 = vmatpush1.msra.mxu0 0.0
        %3249 = vmatprep.subr.mxu0 0.0
        %3250 = vmatpush1.msra.mxu0 0.0
        %3251 = vmatprep.subr.mxu0 0.0
        %3252 = vmatpush1.msra.mxu0 0.0
        %3253 = vmatprep.subr.mxu0 0.0
        %3254 = vmatpush1.msra.mxu0 0.0
        %3255 = vmatprep.subr.mxu0 0.0
        %3256 = vmatpush1.msra.mxu0 0.0
        %3257 = vmatprep.subr.mxu0 0.0
        %3258 = vmatpush1.msra.mxu0 0.0
        %3259 = vmatprep.subr.mxu0 0.0
        %3260 = vmatpush1.msra.mxu0 0.0
        %3261 = vmatprep.subr.mxu0 0.0
        %3262 = vmatpush1.msra.mxu0 0.0
        %3263 = vmatprep.subr.mxu0 0.0
        %3264 = vmatpush1.msra.mxu0 0.0
        %3265 = vmatprep.subr.mxu0 0.0
        %3266 = vmatpush1.msra.mxu0 0.0
        %3267 = vmatprep.mubr.f32.mxu0 0.0
        %v3268 = vand.u32 %v753, 4294901760
        %3269 = vmatmul.mubr.f32.gmra.mrb[0].mxu0 %v3268
        %v3270 = vpop.f32.mrb[0].mxu0
        %v3271 = vadd.f32 %v3192, %v3270
        %v3272 = vpop.f32.mrb[0].mxu0
        %3273 = vmatprep.mubr.f32.mxu0 0.0
        %v3274 = vand.u32 %v756, 4294901760
        %3275 = vmatmul.mubr.f32.gmra.mrb[0].mxu0 %v3274
        %v3276 = vpop.f32.mrb[0].mxu0
        %v3277 = vadd.f32 %v3198, %v3276
        %v3278 = vpop.f32.mrb[0].mxu0
        %3279 = vdwg.mxu0
        %3280 = vmatprep.subr.mxu0 0.0
        %v3281 = vand.u32 %v239, 4294901760
        %3282 = vmatpush1.msra.mxu0 %v3281
        %3283 = vmatprep.subr.mxu0 0.0
        %v3284 = vand.u32 %v240, 4294901760
        %3285 = vmatpush1.msra.mxu0 %v3284
        %3286 = vmatprep.subr.mxu0 0.0
        %3287 = vmatpush1.msra.mxu0 0.0
        %3288 = vmatprep.subr.mxu0 0.0
        %3289 = vmatpush1.msra.mxu0 0.0
        %3290 = vmatprep.subr.mxu0 0.0
        %3291 = vmatpush1.msra.mxu0 0.0
        %3292 = vmatprep.subr.mxu0 0.0
        %3293 = vmatpush1.msra.mxu0 0.0
        %3294 = vmatprep.subr.mxu0 0.0
        %3295 = vmatpush1.msra.mxu0 0.0
        %3296 = vmatprep.subr.mxu0 0.0
        %3297 = vmatpush1.msra.mxu0 0.0
        %3298 = vmatprep.subr.mxu0 0.0
        %3299 = vmatpush1.msra.mxu0 0.0
        %3300 = vmatprep.subr.mxu0 0.0
        %3301 = vmatpush1.msra.mxu0 0.0
        %3302 = vmatprep.subr.mxu0 0.0
        %3303 = vmatpush1.msra.mxu0 0.0
        %3304 = vmatprep.subr.mxu0 0.0
        %3305 = vmatpush1.msra.mxu0 0.0
        %3306 = vmatprep.subr.mxu0 0.0
        %3307 = vmatpush1.msra.mxu0 0.0
        %3308 = vmatprep.subr.mxu0 0.0
        %3309 = vmatpush1.msra.mxu0 0.0
        %3310 = vmatprep.subr.mxu0 0.0
        %3311 = vmatpush1.msra.mxu0 0.0
        %3312 = vmatprep.subr.mxu0 0.0
        %3313 = vmatpush1.msra.mxu0 0.0
        %3314 = vmatprep.subr.mxu0 0.0
        %3315 = vmatpush1.msra.mxu0 0.0
        %3316 = vmatprep.subr.mxu0 0.0
        %3317 = vmatpush1.msra.mxu0 0.0
        %3318 = vmatprep.subr.mxu0 0.0
        %3319 = vmatpush1.msra.mxu0 0.0
        %3320 = vmatprep.subr.mxu0 0.0
        %3321 = vmatpush1.msra.mxu0 0.0
        %3322 = vmatprep.subr.mxu0 0.0
        %3323 = vmatpush1.msra.mxu0 0.0
        %3324 = vmatprep.subr.mxu0 0.0
        %3325 = vmatpush1.msra.mxu0 0.0
        %3326 = vmatprep.subr.mxu0 0.0
        %3327 = vmatpush1.msra.mxu0 0.0
        %3328 = vmatprep.subr.mxu0 0.0
        %3329 = vmatpush1.msra.mxu0 0.0
        %3330 = vmatprep.subr.mxu0 0.0
        %3331 = vmatpush1.msra.mxu0 0.0
        %3332 = vmatprep.subr.mxu0 0.0
        %3333 = vmatpush1.msra.mxu0 0.0
        %3334 = vmatprep.subr.mxu0 0.0
        %3335 = vmatpush1.msra.mxu0 0.0
        %3336 = vmatprep.subr.mxu0 0.0
        %3337 = vmatpush1.msra.mxu0 0.0
        %3338 = vmatprep.subr.mxu0 0.0
        %3339 = vmatpush1.msra.mxu0 0.0
        %3340 = vmatprep.subr.mxu0 0.0
        %3341 = vmatpush1.msra.mxu0 0.0
        %3342 = vmatprep.subr.mxu0 0.0
        %3343 = vmatpush1.msra.mxu0 0.0
        %3344 = vmatprep.subr.mxu0 0.0
        %3345 = vmatpush1.msra.mxu0 0.0
        %3346 = vmatprep.mubr.f32.mxu0 0.0
        %v3347 = vand.u32 %v1261, 4294901760
        %v3348 = vsub.f32 %v1261, %v3347
        %v3349 = vand.u32 %v3348, 4294901760
        %v3350 = vsub.f32 %v3348, %v3349
        %v3351 = vand.u32 %v3350, 4294901760
        %3352 = vmatmul.mubr.f32.gmra.mrb[0].mxu0 %v3351
        %v3353 = vpop.f32.mrb[0].mxu0
        %v3354 = vadd.f32 0.0, %v3353
        %v3355 = vpop.f32.mrb[0].mxu0
        %3356 = vmatprep.mubr.f32.mxu0 0.0
        %v3357 = vand.u32 %v1264, 4294901760
        %v3358 = vsub.f32 %v1264, %v3357
        %v3359 = vand.u32 %v3358, 4294901760
        %v3360 = vsub.f32 %v3358, %v3359
        %v3361 = vand.u32 %v3360, 4294901760
        %3362 = vmatmul.mubr.f32.gmra.mrb[0].mxu0 %v3361
        %v3363 = vpop.f32.mrb[0].mxu0
        %v3364 = vadd.f32 0.0, %v3363
        %v3365 = vpop.f32.mrb[0].mxu0
        %3366 = vdwg.mxu0
        %3367 = vmatprep.subr.mxu0 0.0
        %v3368 = vand.u32 %v239, 4294901760
        %v3369 = vsub.f32 %v239, %v3368
        %v3370 = vand.u32 %v3369, 4294901760
        %v3371 = vsub.f32 %v3369, %v3370
        %v3372 = vand.u32 %v3371, 4294901760
        %3373 = vmatpush1.msra.mxu0 %v3372
        %3374 = vmatprep.subr.mxu0 0.0
        %v3375 = vand.u32 %v240, 4294901760
        %v3376 = vsub.f32 %v240, %v3375
        %v3377 = vand.u32 %v3376, 4294901760
        %v3378 = vsub.f32 %v3376, %v3377
        %v3379 = vand.u32 %v3378, 4294901760
        %3380 = vmatpush1.msra.mxu0 %v3379
        %3381 = vmatprep.subr.mxu0 0.0
        %3382 = vmatpush1.msra.mxu0 0.0
        %3383 = vmatprep.subr.mxu0 0.0
        %3384 = vmatpush1.msra.mxu0 0.0
        %3385 = vmatprep.subr.mxu0 0.0
        %3386 = vmatpush1.msra.mxu0 0.0
        %3387 = vmatprep.subr.mxu0 0.0
        %3388 = vmatpush1.msra.mxu0 0.0
        %3389 = vmatprep.subr.mxu0 0.0
        %3390 = vmatpush1.msra.mxu0 0.0
        %3391 = vmatprep.subr.mxu0 0.0
        %3392 = vmatpush1.msra.mxu0 0.0
        %3393 = vmatprep.subr.mxu0 0.0
        %3394 = vmatpush1.msra.mxu0 0.0
        %3395 = vmatprep.subr.mxu0 0.0
        %3396 = vmatpush1.msra.mxu0 0.0
        %3397 = vmatprep.subr.mxu0 0.0
        %3398 = vmatpush1.msra.mxu0 0.0
        %3399 = vmatprep.subr.mxu0 0.0
        %3400 = vmatpush1.msra.mxu0 0.0
        %3401 = vmatprep.subr.mxu0 0.0
        %3402 = vmatpush1.msra.mxu0 0.0
        %3403 = vmatprep.subr.mxu0 0.0
        %3404 = vmatpush1.msra.mxu0 0.0
        %3405 = vmatprep.subr.mxu0 0.0
        %3406 = vmatpush1.msra.mxu0 0.0
        %3407 = vmatprep.subr.mxu0 0.0
        %3408 = vmatpush1.msra.mxu0 0.0
        %3409 = vmatprep.subr.mxu0 0.0
        %3410 = vmatpush1.msra.mxu0 0.0
        %3411 = vmatprep.subr.mxu0 0.0
        %3412 = vmatpush1.msra.mxu0 0.0
        %3413 = vmatprep.subr.mxu0 0.0
        %3414 = vmatpush1.msra.mxu0 0.0
        %3415 = vmatprep.subr.mxu0 0.0
        %3416 = vmatpush1.msra.mxu0 0.0
        %3417 = vmatprep.subr.mxu0 0.0
        %3418 = vmatpush1.msra.mxu0 0.0
        %3419 = vmatprep.subr.mxu0 0.0
        %3420 = vmatpush1.msra.mxu0 0.0
        %3421 = vmatprep.subr.mxu0 0.0
        %3422 = vmatpush1.msra.mxu0 0.0
        %3423 = vmatprep.subr.mxu0 0.0
        %3424 = vmatpush1.msra.mxu0 0.0
        %3425 = vmatprep.subr.mxu0 0.0
        %3426 = vmatpush1.msra.mxu0 0.0
        %3427 = vmatprep.subr.mxu0 0.0
        %3428 = vmatpush1.msra.mxu0 0.0
        %3429 = vmatprep.subr.mxu0 0.0
        %3430 = vmatpush1.msra.mxu0 0.0
        %3431 = vmatprep.subr.mxu0 0.0
        %3432 = vmatpush1.msra.mxu0 0.0
        %3433 = vmatprep.subr.mxu0 0.0
        %3434 = vmatpush1.msra.mxu0 0.0
        %3435 = vmatprep.subr.mxu0 0.0
        %3436 = vmatpush1.msra.mxu0 0.0
        %3437 = vmatprep.subr.mxu0 0.0
        %3438 = vmatpush1.msra.mxu0 0.0
        %3439 = vmatprep.subr.mxu0 0.0
        %3440 = vmatpush1.msra.mxu0 0.0
        %3441 = vmatprep.mubr.f32.mxu0 0.0
        %v3442 = vand.u32 %v1261, 4294901760
        %3443 = vmatmul.mubr.f32.gmra.mrb[0].mxu0 %v3442
        %v3444 = vpop.f32.mrb[0].mxu0
        %v3445 = vadd.f32 %v3354, %v3444
        %v3446 = vpop.f32.mrb[0].mxu0
        %3447 = vmatprep.mubr.f32.mxu0 0.0
        %v3448 = vand.u32 %v1264, 4294901760
        %3449 = vmatmul.mubr.f32.gmra.mrb[0].mxu0 %v3448
        %v3450 = vpop.f32.mrb[0].mxu0
        %v3451 = vadd.f32 %v3364, %v3450
        %v3452 = vpop.f32.mrb[0].mxu0
        %3453 = vdwg.mxu0
        %3454 = vmatprep.subr.mxu0 0.0
        %v3455 = vand.u32 %v239, 4294901760
        %v3456 = vsub.f32 %v239, %v3455
        %3457 = vmatpush1.msra.mxu0 %v3456
        %3458 = vmatprep.subr.mxu0 0.0
        %v3459 = vand.u32 %v240, 4294901760
        %v3460 = vsub.f32 %v240, %v3459
        %3461 = vmatpush1.msra.mxu0 %v3460
        %3462 = vmatprep.subr.mxu0 0.0
        %3463 = vmatpush1.msra.mxu0 0.0
        %3464 = vmatprep.subr.mxu0 0.0
        %3465 = vmatpush1.msra.mxu0 0.0
        %3466 = vmatprep.subr.mxu0 0.0
        %3467 = vmatpush1.msra.mxu0 0.0
        %3468 = vmatprep.subr.mxu0 0.0
        %3469 = vmatpush1.msra.mxu0 0.0
        %3470 = vmatprep.subr.mxu0 0.0
        %3471 = vmatpush1.msra.mxu0 0.0
        %3472 = vmatprep.subr.mxu0 0.0
        %3473 = vmatpush1.msra.mxu0 0.0
        %3474 = vmatprep.subr.mxu0 0.0
        %3475 = vmatpush1.msra.mxu0 0.0
        %3476 = vmatprep.subr.mxu0 0.0
        %3477 = vmatpush1.msra.mxu0 0.0
        %3478 = vmatprep.subr.mxu0 0.0
        %3479 = vmatpush1.msra.mxu0 0.0
        %3480 = vmatprep.subr.mxu0 0.0
        %3481 = vmatpush1.msra.mxu0 0.0
        %3482 = vmatprep.subr.mxu0 0.0
        %3483 = vmatpush1.msra.mxu0 0.0
        %3484 = vmatprep.subr.mxu0 0.0
        %3485 = vmatpush1.msra.mxu0 0.0
        %3486 = vmatprep.subr.mxu0 0.0
        %3487 = vmatpush1.msra.mxu0 0.0
        %3488 = vmatprep.subr.mxu0 0.0
        %3489 = vmatpush1.msra.mxu0 0.0
        %3490 = vmatprep.subr.mxu0 0.0
        %3491 = vmatpush1.msra.mxu0 0.0
        %3492 = vmatprep.subr.mxu0 0.0
        %3493 = vmatpush1.msra.mxu0 0.0
        %3494 = vmatprep.subr.mxu0 0.0
        %3495 = vmatpush1.msra.mxu0 0.0
        %3496 = vmatprep.subr.mxu0 0.0
        %3497 = vmatpush1.msra.mxu0 0.0
        %3498 = vmatprep.subr.mxu0 0.0
        %3499 = vmatpush1.msra.mxu0 0.0
        %3500 = vmatprep.subr.mxu0 0.0
        %3501 = vmatpush1.msra.mxu0 0.0
        %3502 = vmatprep.subr.mxu0 0.0
        %3503 = vmatpush1.msra.mxu0 0.0
        %3504 = vmatprep.subr.mxu0 0.0
        %3505 = vmatpush1.msra.mxu0 0.0
        %3506 = vmatprep.subr.mxu0 0.0
        %3507 = vmatpush1.msra.mxu0 0.0
        %3508 = vmatprep.subr.mxu0 0.0
        %3509 = vmatpush1.msra.mxu0 0.0
        %3510 = vmatprep.subr.mxu0 0.0
        %3511 = vmatpush1.msra.mxu0 0.0
        %3512 = vmatprep.subr.mxu0 0.0
        %3513 = vmatpush1.msra.mxu0 0.0
        %3514 = vmatprep.subr.mxu0 0.0
        %3515 = vmatpush1.msra.mxu0 0.0
        %3516 = vmatprep.subr.mxu0 0.0
        %3517 = vmatpush1.msra.mxu0 0.0
        %3518 = vmatprep.subr.mxu0 0.0
        %3519 = vmatpush1.msra.mxu0 0.0
        %3520 = vmatprep.subr.mxu0 0.0
        %3521 = vmatpush1.msra.mxu0 0.0
        %3522 = vmatprep.mubr.f32.mxu0 0.0
        %v3523 = vand.u32 %v1261, 4294901760
        %v3524 = vsub.f32 %v1261, %v3523
        %3525 = vmatmul.mubr.f32.gmra.mrb[0].mxu0 %v3524
        %v3526 = vpop.f32.mrb[0].mxu0
        %v3527 = vadd.f32 %v3445, %v3526
        %v3528 = vpop.f32.mrb[0].mxu0
        %3529 = vmatprep.mubr.f32.mxu0 0.0
        %v3530 = vand.u32 %v1264, 4294901760
        %v3531 = vsub.f32 %v1264, %v3530
        %3532 = vmatmul.mubr.f32.gmra.mrb[0].mxu0 %v3531
        %v3533 = vpop.f32.mrb[0].mxu0
        %v3534 = vadd.f32 %v3451, %v3533
        %v3535 = vpop.f32.mrb[0].mxu0
        %3536 = vdwg.mxu0
        %3537 = vmatprep.subr.mxu0 0.0
        %v3538 = vand.u32 %v239, 4294901760
        %3539 = vmatpush1.msra.mxu0 %v3538
        %3540 = vmatprep.subr.mxu0 0.0
        %v3541 = vand.u32 %v240, 4294901760
        %3542 = vmatpush1.msra.mxu0 %v3541
        %3543 = vmatprep.subr.mxu0 0.0
        %3544 = vmatpush1.msra.mxu0 0.0
        %3545 = vmatprep.subr.mxu0 0.0
        %3546 = vmatpush1.msra.mxu0 0.0
        %3547 = vmatprep.subr.mxu0 0.0
        %3548 = vmatpush1.msra.mxu0 0.0
        %3549 = vmatprep.subr.mxu0 0.0
        %3550 = vmatpush1.msra.mxu0 0.0
        %3551 = vmatprep.subr.mxu0 0.0
        %3552 = vmatpush1.msra.mxu0 0.0
        %3553 = vmatprep.subr.mxu0 0.0
        %3554 = vmatpush1.msra.mxu0 0.0
        %3555 = vmatprep.subr.mxu0 0.0
        %3556 = vmatpush1.msra.mxu0 0.0
        %3557 = vmatprep.subr.mxu0 0.0
        %3558 = vmatpush1.msra.mxu0 0.0
        %3559 = vmatprep.subr.mxu0 0.0
        %3560 = vmatpush1.msra.mxu0 0.0
        %3561 = vmatprep.subr.mxu0 0.0
        %3562 = vmatpush1.msra.mxu0 0.0
        %3563 = vmatprep.subr.mxu0 0.0
        %3564 = vmatpush1.msra.mxu0 0.0
        %3565 = vmatprep.subr.mxu0 0.0
        %3566 = vmatpush1.msra.mxu0 0.0
        %3567 = vmatprep.subr.mxu0 0.0
        %3568 = vmatpush1.msra.mxu0 0.0
        %3569 = vmatprep.subr.mxu0 0.0
        %3570 = vmatpush1.msra.mxu0 0.0
        %3571 = vmatprep.subr.mxu0 0.0
        %3572 = vmatpush1.msra.mxu0 0.0
        %3573 = vmatprep.subr.mxu0 0.0
        %3574 = vmatpush1.msra.mxu0 0.0
        %3575 = vmatprep.subr.mxu0 0.0
        %3576 = vmatpush1.msra.mxu0 0.0
        %3577 = vmatprep.subr.mxu0 0.0
        %3578 = vmatpush1.msra.mxu0 0.0
        %3579 = vmatprep.subr.mxu0 0.0
        %3580 = vmatpush1.msra.mxu0 0.0
        %3581 = vmatprep.subr.mxu0 0.0
        %3582 = vmatpush1.msra.mxu0 0.0
        %3583 = vmatprep.subr.mxu0 0.0
        %3584 = vmatpush1.msra.mxu0 0.0
        %3585 = vmatprep.subr.mxu0 0.0
        %3586 = vmatpush1.msra.mxu0 0.0
        %3587 = vmatprep.subr.mxu0 0.0
        %3588 = vmatpush1.msra.mxu0 0.0
        %3589 = vmatprep.subr.mxu0 0.0
        %3590 = vmatpush1.msra.mxu0 0.0
        %3591 = vmatprep.subr.mxu0 0.0
        %3592 = vmatpush1.msra.mxu0 0.0
        %3593 = vmatprep.subr.mxu0 0.0
        %3594 = vmatpush1.msra.mxu0 0.0
        %3595 = vmatprep.subr.mxu0 0.0
        %3596 = vmatpush1.msra.mxu0 0.0
        %3597 = vmatprep.subr.mxu0 0.0
        %3598 = vmatpush1.msra.mxu0 0.0
        %3599 = vmatprep.subr.mxu0 0.0
        %3600 = vmatpush1.msra.mxu0 0.0
        %3601 = vmatprep.subr.mxu0 0.0
        %3602 = vmatpush1.msra.mxu0 0.0
        %3603 = vmatprep.mubr.f32.mxu0 0.0
        %v3604 = vand.u32 %v1261, 4294901760
        %v3605 = vsub.f32 %v1261, %v3604
        %v3606 = vand.u32 %v3605, 4294901760
        %3607 = vmatmul.mubr.f32.gmra.mrb[0].mxu0 %v3606
        %v3608 = vpop.f32.mrb[0].mxu0
        %v3609 = vadd.f32 %v3527, %v3608
        %v3610 = vpop.f32.mrb[0].mxu0
        %3611 = vmatprep.mubr.f32.mxu0 0.0
        %v3612 = vand.u32 %v1264, 4294901760
        %v3613 = vsub.f32 %v1264, %v3612
        %v3614 = vand.u32 %v3613, 4294901760
        %3615 = vmatmul.mubr.f32.gmra.mrb[0].mxu0 %v3614
        %v3616 = vpop.f32.mrb[0].mxu0
        %v3617 = vadd.f32 %v3534, %v3616
        %v3618 = vpop.f32.mrb[0].mxu0
        %3619 = vdwg.mxu0
        %3620 = vmatprep.subr.mxu0 0.0
        %v3621 = vand.u32 %v239, 4294901760
        %v3622 = vsub.f32 %v239, %v3621
        %v3623 = vand.u32 %v3622, 4294901760
        %3624 = vmatpush1.msra.mxu0 %v3623
        %3625 = vmatprep.subr.mxu0 0.0
        %v3626 = vand.u32 %v240, 4294901760
        %v3627 = vsub.f32 %v240, %v3626
        %v3628 = vand.u32 %v3627, 4294901760
        %3629 = vmatpush1.msra.mxu0 %v3628
        %3630 = vmatprep.subr.mxu0 0.0
        %3631 = vmatpush1.msra.mxu0 0.0
        %3632 = vmatprep.subr.mxu0 0.0
        %3633 = vmatpush1.msra.mxu0 0.0
        %3634 = vmatprep.subr.mxu0 0.0
        %3635 = vmatpush1.msra.mxu0 0.0
        %3636 = vmatprep.subr.mxu0 0.0
        %3637 = vmatpush1.msra.mxu0 0.0
        %3638 = vmatprep.subr.mxu0 0.0
        %3639 = vmatpush1.msra.mxu0 0.0
        %3640 = vmatprep.subr.mxu0 0.0
        %3641 = vmatpush1.msra.mxu0 0.0
        %3642 = vmatprep.subr.mxu0 0.0
        %3643 = vmatpush1.msra.mxu0 0.0
        %3644 = vmatprep.subr.mxu0 0.0
        %3645 = vmatpush1.msra.mxu0 0.0
        %3646 = vmatprep.subr.mxu0 0.0
        %3647 = vmatpush1.msra.mxu0 0.0
        %3648 = vmatprep.subr.mxu0 0.0
        %3649 = vmatpush1.msra.mxu0 0.0
        %3650 = vmatprep.subr.mxu0 0.0
        %3651 = vmatpush1.msra.mxu0 0.0
        %3652 = vmatprep.subr.mxu0 0.0
        %3653 = vmatpush1.msra.mxu0 0.0
        %3654 = vmatprep.subr.mxu0 0.0
        %3655 = vmatpush1.msra.mxu0 0.0
        %3656 = vmatprep.subr.mxu0 0.0
        %3657 = vmatpush1.msra.mxu0 0.0
        %3658 = vmatprep.subr.mxu0 0.0
        %3659 = vmatpush1.msra.mxu0 0.0
        %3660 = vmatprep.subr.mxu0 0.0
        %3661 = vmatpush1.msra.mxu0 0.0
        %3662 = vmatprep.subr.mxu0 0.0
        %3663 = vmatpush1.msra.mxu0 0.0
        %3664 = vmatprep.subr.mxu0 0.0
        %3665 = vmatpush1.msra.mxu0 0.0
        %3666 = vmatprep.subr.mxu0 0.0
        %3667 = vmatpush1.msra.mxu0 0.0
        %3668 = vmatprep.subr.mxu0 0.0
        %3669 = vmatpush1.msra.mxu0 0.0
        %3670 = vmatprep.subr.mxu0 0.0
        %3671 = vmatpush1.msra.mxu0 0.0
        %3672 = vmatprep.subr.mxu0 0.0
        %3673 = vmatpush1.msra.mxu0 0.0
        %3674 = vmatprep.subr.mxu0 0.0
        %3675 = vmatpush1.msra.mxu0 0.0
        %3676 = vmatprep.subr.mxu0 0.0
        %3677 = vmatpush1.msra.mxu0 0.0
        %3678 = vmatprep.subr.mxu0 0.0
        %3679 = vmatpush1.msra.mxu0 0.0
        %3680 = vmatprep.subr.mxu0 0.0
        %3681 = vmatpush1.msra.mxu0 0.0
        %3682 = vmatprep.subr.mxu0 0.0
        %3683 = vmatpush1.msra.mxu0 0.0
        %3684 = vmatprep.subr.mxu0 0.0
        %3685 = vmatpush1.msra.mxu0 0.0
        %3686 = vmatprep.subr.mxu0 0.0
        %3687 = vmatpush1.msra.mxu0 0.0
        %3688 = vmatprep.subr.mxu0 0.0
        %3689 = vmatpush1.msra.mxu0 0.0
        %3690 = vmatprep.mubr.f32.mxu0 0.0
        %v3691 = vand.u32 %v1261, 4294901760
        %3692 = vmatmul.mubr.f32.gmra.mrb[0].mxu0 %v3691
        %v3693 = vpop.f32.mrb[0].mxu0
        %v3694 = vadd.f32 %v3609, %v3693
        %v3695 = vpop.f32.mrb[0].mxu0
        %3696 = vmatprep.mubr.f32.mxu0 0.0
        %v3697 = vand.u32 %v1264, 4294901760
        %3698 = vmatmul.mubr.f32.gmra.mrb[0].mxu0 %v3697
        %v3699 = vpop.f32.mrb[0].mxu0
        %v3700 = vadd.f32 %v3617, %v3699
        %v3701 = vpop.f32.mrb[0].mxu0
        %3702 = vdwg.mxu0
        %3703 = vmatprep.subr.mxu0 0.0
        %v3704 = vand.u32 %v239, 4294901760
        %3705 = vmatpush1.msra.mxu0 %v3704
        %3706 = vmatprep.subr.mxu0 0.0
        %v3707 = vand.u32 %v240, 4294901760
        %3708 = vmatpush1.msra.mxu0 %v3707
        %3709 = vmatprep.subr.mxu0 0.0
        %3710 = vmatpush1.msra.mxu0 0.0
        %3711 = vmatprep.subr.mxu0 0.0
        %3712 = vmatpush1.msra.mxu0 0.0
        %3713 = vmatprep.subr.mxu0 0.0
        %3714 = vmatpush1.msra.mxu0 0.0
        %3715 = vmatprep.subr.mxu0 0.0
        %3716 = vmatpush1.msra.mxu0 0.0
        %3717 = vmatprep.subr.mxu0 0.0
        %3718 = vmatpush1.msra.mxu0 0.0
        %3719 = vmatprep.subr.mxu0 0.0
        %3720 = vmatpush1.msra.mxu0 0.0
        %3721 = vmatprep.subr.mxu0 0.0
        %3722 = vmatpush1.msra.mxu0 0.0
        %3723 = vmatprep.subr.mxu0 0.0
        %3724 = vmatpush1.msra.mxu0 0.0
        %3725 = vmatprep.subr.mxu0 0.0
        %3726 = vmatpush1.msra.mxu0 0.0
        %3727 = vmatprep.subr.mxu0 0.0
        %3728 = vmatpush1.msra.mxu0 0.0
        %3729 = vmatprep.subr.mxu0 0.0
        %3730 = vmatpush1.msra.mxu0 0.0
        %3731 = vmatprep.subr.mxu0 0.0
        %3732 = vmatpush1.msra.mxu0 0.0
        %3733 = vmatprep.subr.mxu0 0.0
        %3734 = vmatpush1.msra.mxu0 0.0
        %3735 = vmatprep.subr.mxu0 0.0
        %3736 = vmatpush1.msra.mxu0 0.0
        %3737 = vmatprep.subr.mxu0 0.0
        %3738 = vmatpush1.msra.mxu0 0.0
        %3739 = vmatprep.subr.mxu0 0.0
        %3740 = vmatpush1.msra.mxu0 0.0
        %3741 = vmatprep.subr.mxu0 0.0
        %3742 = vmatpush1.msra.mxu0 0.0
        %3743 = vmatprep.subr.mxu0 0.0
        %3744 = vmatpush1.msra.mxu0 0.0
        %3745 = vmatprep.subr.mxu0 0.0
        %3746 = vmatpush1.msra.mxu0 0.0
        %3747 = vmatprep.subr.mxu0 0.0
        %3748 = vmatpush1.msra.mxu0 0.0
        %3749 = vmatprep.subr.mxu0 0.0
        %3750 = vmatpush1.msra.mxu0 0.0
        %3751 = vmatprep.subr.mxu0 0.0
        %3752 = vmatpush1.msra.mxu0 0.0
        %3753 = vmatprep.subr.mxu0 0.0
        %3754 = vmatpush1.msra.mxu0 0.0
        %3755 = vmatprep.subr.mxu0 0.0
        %3756 = vmatpush1.msra.mxu0 0.0
        %3757 = vmatprep.subr.mxu0 0.0
        %3758 = vmatpush1.msra.mxu0 0.0
        %3759 = vmatprep.subr.mxu0 0.0
        %3760 = vmatpush1.msra.mxu0 0.0
        %3761 = vmatprep.subr.mxu0 0.0
        %3762 = vmatpush1.msra.mxu0 0.0
        %3763 = vmatprep.subr.mxu0 0.0
        %3764 = vmatpush1.msra.mxu0 0.0
        %3765 = vmatprep.subr.mxu0 0.0
        %3766 = vmatpush1.msra.mxu0 0.0
        %3767 = vmatprep.subr.mxu0 0.0
        %3768 = vmatpush1.msra.mxu0 0.0
        %3769 = vmatprep.mubr.f32.mxu0 0.0
        %v3770 = vand.u32 %v1261, 4294901760
        %3771 = vmatmul.mubr.f32.gmra.mrb[0].mxu0 %v3770
        %v3772 = vpop.f32.mrb[0].mxu0
        %v3773 = vadd.f32 %v3694, %v3772
        %v3774 = vpop.f32.mrb[0].mxu0
        %3775 = vmatprep.mubr.f32.mxu0 0.0
        %v3776 = vand.u32 %v1264, 4294901760
        %3777 = vmatmul.mubr.f32.gmra.mrb[0].mxu0 %v3776
        %v3778 = vpop.f32.mrb[0].mxu0
        %v3779 = vadd.f32 %v3700, %v3778
        %v3780 = vpop.f32.mrb[0].mxu0
        %3781 = vdwg.mxu0
        %3782 = vmatprep.subr.mxu0 0.0
        %v3783 = vand.u32 %v239, 4294901760
        %3784 = vmatpush1.msra.mxu0 %v3783
        %3785 = vmatprep.subr.mxu0 0.0
        %v3786 = vand.u32 %v240, 4294901760
        %3787 = vmatpush1.msra.mxu0 %v3786
        %3788 = vmatprep.subr.mxu0 0.0
        %3789 = vmatpush1.msra.mxu0 0.0
        %3790 = vmatprep.subr.mxu0 0.0
        %3791 = vmatpush1.msra.mxu0 0.0
        %3792 = vmatprep.subr.mxu0 0.0
        %3793 = vmatpush1.msra.mxu0 0.0
        %3794 = vmatprep.subr.mxu0 0.0
        %3795 = vmatpush1.msra.mxu0 0.0
        %3796 = vmatprep.subr.mxu0 0.0
        %3797 = vmatpush1.msra.mxu0 0.0
        %3798 = vmatprep.subr.mxu0 0.0
        %3799 = vmatpush1.msra.mxu0 0.0
        %3800 = vmatprep.subr.mxu0 0.0
        %3801 = vmatpush1.msra.mxu0 0.0
        %3802 = vmatprep.subr.mxu0 0.0
        %3803 = vmatpush1.msra.mxu0 0.0
        %3804 = vmatprep.subr.mxu0 0.0
        %3805 = vmatpush1.msra.mxu0 0.0
        %3806 = vmatprep.subr.mxu0 0.0
        %3807 = vmatpush1.msra.mxu0 0.0
        %3808 = vmatprep.subr.mxu0 0.0
        %3809 = vmatpush1.msra.mxu0 0.0
        %3810 = vmatprep.subr.mxu0 0.0
        %3811 = vmatpush1.msra.mxu0 0.0
        %3812 = vmatprep.subr.mxu0 0.0
        %3813 = vmatpush1.msra.mxu0 0.0
        %3814 = vmatprep.subr.mxu0 0.0
        %3815 = vmatpush1.msra.mxu0 0.0
        %3816 = vmatprep.subr.mxu0 0.0
        %3817 = vmatpush1.msra.mxu0 0.0
        %3818 = vmatprep.subr.mxu0 0.0
        %3819 = vmatpush1.msra.mxu0 0.0
        %3820 = vmatprep.subr.mxu0 0.0
        %3821 = vmatpush1.msra.mxu0 0.0
        %3822 = vmatprep.subr.mxu0 0.0
        %3823 = vmatpush1.msra.mxu0 0.0
        %3824 = vmatprep.subr.mxu0 0.0
        %3825 = vmatpush1.msra.mxu0 0.0
        %3826 = vmatprep.subr.mxu0 0.0
        %3827 = vmatpush1.msra.mxu0 0.0
        %3828 = vmatprep.subr.mxu0 0.0
        %3829 = vmatpush1.msra.mxu0 0.0
        %3830 = vmatprep.subr.mxu0 0.0
        %3831 = vmatpush1.msra.mxu0 0.0
        %3832 = vmatprep.subr.mxu0 0.0
        %3833 = vmatpush1.msra.mxu0 0.0
        %3834 = vmatprep.subr.mxu0 0.0
        %3835 = vmatpush1.msra.mxu0 0.0
        %3836 = vmatprep.subr.mxu0 0.0
        %3837 = vmatpush1.msra.mxu0 0.0
        %3838 = vmatprep.subr.mxu0 0.0
        %3839 = vmatpush1.msra.mxu0 0.0
        %3840 = vmatprep.subr.mxu0 0.0
        %3841 = vmatpush1.msra.mxu0 0.0
        %3842 = vmatprep.subr.mxu0 0.0
        %3843 = vmatpush1.msra.mxu0 0.0
        %3844 = vmatprep.subr.mxu0 0.0
        %3845 = vmatpush1.msra.mxu0 0.0
        %3846 = vmatprep.subr.mxu0 0.0
        %3847 = vmatpush1.msra.mxu0 0.0
        %3848 = vmatprep.mubr.f32.mxu0 0.0
        %v3849 = vand.u32 %v1769, 4294901760
        %v3850 = vsub.f32 %v1769, %v3849
        %v3851 = vand.u32 %v3850, 4294901760
        %v3852 = vsub.f32 %v3850, %v3851
        %v3853 = vand.u32 %v3852, 4294901760
        %3854 = vmatmul.mubr.f32.gmra.mrb[0].mxu0 %v3853
        %v3855 = vpop.f32.mrb[0].mxu0
        %v3856 = vadd.f32 0.0, %v3855
        %v3857 = vpop.f32.mrb[0].mxu0
        %3858 = vmatprep.mubr.f32.mxu0 0.0
        %v3859 = vand.u32 %v1772, 4294901760
        %v3860 = vsub.f32 %v1772, %v3859
        %v3861 = vand.u32 %v3860, 4294901760
        %v3862 = vsub.f32 %v3860, %v3861
        %v3863 = vand.u32 %v3862, 4294901760
        %3864 = vmatmul.mubr.f32.gmra.mrb[0].mxu0 %v3863
        %v3865 = vpop.f32.mrb[0].mxu0
        %v3866 = vadd.f32 0.0, %v3865
        %v3867 = vpop.f32.mrb[0].mxu0
        %3868 = vdwg.mxu0
        %3869 = vmatprep.subr.mxu0 0.0
        %v3870 = vand.u32 %v239, 4294901760
        %v3871 = vsub.f32 %v239, %v3870
        %v3872 = vand.u32 %v3871, 4294901760
        %v3873 = vsub.f32 %v3871, %v3872
        %v3874 = vand.u32 %v3873, 4294901760
        %3875 = vmatpush1.msra.mxu0 %v3874
        %3876 = vmatprep.subr.mxu0 0.0
        %v3877 = vand.u32 %v240, 4294901760
        %v3878 = vsub.f32 %v240, %v3877
        %v3879 = vand.u32 %v3878, 4294901760
        %v3880 = vsub.f32 %v3878, %v3879
        %v3881 = vand.u32 %v3880, 4294901760
        %3882 = vmatpush1.msra.mxu0 %v3881
        %3883 = vmatprep.subr.mxu0 0.0
        %3884 = vmatpush1.msra.mxu0 0.0
        %3885 = vmatprep.subr.mxu0 0.0
        %3886 = vmatpush1.msra.mxu0 0.0
        %3887 = vmatprep.subr.mxu0 0.0
        %3888 = vmatpush1.msra.mxu0 0.0
        %3889 = vmatprep.subr.mxu0 0.0
        %3890 = vmatpush1.msra.mxu0 0.0
        %3891 = vmatprep.subr.mxu0 0.0
        %3892 = vmatpush1.msra.mxu0 0.0
        %3893 = vmatprep.subr.mxu0 0.0
        %3894 = vmatpush1.msra.mxu0 0.0
        %3895 = vmatprep.subr.mxu0 0.0
        %3896 = vmatpush1.msra.mxu0 0.0
        %3897 = vmatprep.subr.mxu0 0.0
        %3898 = vmatpush1.msra.mxu0 0.0
        %3899 = vmatprep.subr.mxu0 0.0
        %3900 = vmatpush1.msra.mxu0 0.0
        %3901 = vmatprep.subr.mxu0 0.0
        %3902 = vmatpush1.msra.mxu0 0.0
        %3903 = vmatprep.subr.mxu0 0.0
        %3904 = vmatpush1.msra.mxu0 0.0
        %3905 = vmatprep.subr.mxu0 0.0
        %3906 = vmatpush1.msra.mxu0 0.0
        %3907 = vmatprep.subr.mxu0 0.0
        %3908 = vmatpush1.msra.mxu0 0.0
        %3909 = vmatprep.subr.mxu0 0.0
        %3910 = vmatpush1.msra.mxu0 0.0
        %3911 = vmatprep.subr.mxu0 0.0
        %3912 = vmatpush1.msra.mxu0 0.0
        %3913 = vmatprep.subr.mxu0 0.0
        %3914 = vmatpush1.msra.mxu0 0.0
        %3915 = vmatprep.subr.mxu0 0.0
        %3916 = vmatpush1.msra.mxu0 0.0
        %3917 = vmatprep.subr.mxu0 0.0
        %3918 = vmatpush1.msra.mxu0 0.0
        %3919 = vmatprep.subr.mxu0 0.0
        %3920 = vmatpush1.msra.mxu0 0.0
        %3921 = vmatprep.subr.mxu0 0.0
        %3922 = vmatpush1.msra.mxu0 0.0
        %3923 = vmatprep.subr.mxu0 0.0
        %3924 = vmatpush1.msra.mxu0 0.0
        %3925 = vmatprep.subr.mxu0 0.0
        %3926 = vmatpush1.msra.mxu0 0.0
        %3927 = vmatprep.subr.mxu0 0.0
        %3928 = vmatpush1.msra.mxu0 0.0
        %3929 = vmatprep.subr.mxu0 0.0
        %3930 = vmatpush1.msra.mxu0 0.0
        %3931 = vmatprep.subr.mxu0 0.0
        %3932 = vmatpush1.msra.mxu0 0.0
        %3933 = vmatprep.subr.mxu0 0.0
        %3934 = vmatpush1.msra.mxu0 0.0
        %3935 = vmatprep.subr.mxu0 0.0
        %3936 = vmatpush1.msra.mxu0 0.0
        %3937 = vmatprep.subr.mxu0 0.0
        %3938 = vmatpush1.msra.mxu0 0.0
        %3939 = vmatprep.subr.mxu0 0.0
        %3940 = vmatpush1.msra.mxu0 0.0
        %3941 = vmatprep.subr.mxu0 0.0
        %3942 = vmatpush1.msra.mxu0 0.0
        %3943 = vmatprep.mubr.f32.mxu0 0.0
        %v3944 = vand.u32 %v1769, 4294901760
        %3945 = vmatmul.mubr.f32.gmra.mrb[0].mxu0 %v3944
        %v3946 = vpop.f32.mrb[0].mxu0
        %v3947 = vadd.f32 %v3856, %v3946
        %v3948 = vpop.f32.mrb[0].mxu0
        %3949 = vmatprep.mubr.f32.mxu0 0.0
        %v3950 = vand.u32 %v1772, 4294901760
        %3951 = vmatmul.mubr.f32.gmra.mrb[0].mxu0 %v3950
        %v3952 = vpop.f32.mrb[0].mxu0
        %v3953 = vadd.f32 %v3866, %v3952
        %v3954 = vpop.f32.mrb[0].mxu0
        %3955 = vdwg.mxu0
        %3956 = vmatprep.subr.mxu0 0.0
        %v3957 = vand.u32 %v239, 4294901760
        %v3958 = vsub.f32 %v239, %v3957
        %3959 = vmatpush1.msra.mxu0 %v3958
        %3960 = vmatprep.subr.mxu0 0.0
        %v3961 = vand.u32 %v240, 4294901760
        %v3962 = vsub.f32 %v240, %v3961
        %3963 = vmatpush1.msra.mxu0 %v3962
        %3964 = vmatprep.subr.mxu0 0.0
        %3965 = vmatpush1.msra.mxu0 0.0
        %3966 = vmatprep.subr.mxu0 0.0
        %3967 = vmatpush1.msra.mxu0 0.0
        %3968 = vmatprep.subr.mxu0 0.0
        %3969 = vmatpush1.msra.mxu0 0.0
        %3970 = vmatprep.subr.mxu0 0.0
        %3971 = vmatpush1.msra.mxu0 0.0
        %3972 = vmatprep.subr.mxu0 0.0
        %3973 = vmatpush1.msra.mxu0 0.0
        %3974 = vmatprep.subr.mxu0 0.0
        %3975 = vmatpush1.msra.mxu0 0.0
        %3976 = vmatprep.subr.mxu0 0.0
        %3977 = vmatpush1.msra.mxu0 0.0
        %3978 = vmatprep.subr.mxu0 0.0
        %3979 = vmatpush1.msra.mxu0 0.0
        %3980 = vmatprep.subr.mxu0 0.0
        %3981 = vmatpush1.msra.mxu0 0.0
        %3982 = vmatprep.subr.mxu0 0.0
        %3983 = vmatpush1.msra.mxu0 0.0
        %3984 = vmatprep.subr.mxu0 0.0
        %3985 = vmatpush1.msra.mxu0 0.0
        %3986 = vmatprep.subr.mxu0 0.0
        %3987 = vmatpush1.msra.mxu0 0.0
        %3988 = vmatprep.subr.mxu0 0.0
        %3989 = vmatpush1.msra.mxu0 0.0
        %3990 = vmatprep.subr.mxu0 0.0
        %3991 = vmatpush1.msra.mxu0 0.0
        %3992 = vmatprep.subr.mxu0 0.0
        %3993 = vmatpush1.msra.mxu0 0.0
        %3994 = vmatprep.subr.mxu0 0.0
        %3995 = vmatpush1.msra.mxu0 0.0
        %3996 = vmatprep.subr.mxu0 0.0
        %3997 = vmatpush1.msra.mxu0 0.0
        %3998 = vmatprep.subr.mxu0 0.0
        %3999 = vmatpush1.msra.mxu0 0.0
        %4000 = vmatprep.subr.mxu0 0.0
        %4001 = vmatpush1.msra.mxu0 0.0
        %4002 = vmatprep.subr.mxu0 0.0
        %4003 = vmatpush1.msra.mxu0 0.0
        %4004 = vmatprep.subr.mxu0 0.0
        %4005 = vmatpush1.msra.mxu0 0.0
        %4006 = vmatprep.subr.mxu0 0.0
        %4007 = vmatpush1.msra.mxu0 0.0
        %4008 = vmatprep.subr.mxu0 0.0
        %4009 = vmatpush1.msra.mxu0 0.0
        %4010 = vmatprep.subr.mxu0 0.0
        %4011 = vmatpush1.msra.mxu0 0.0
        %4012 = vmatprep.subr.mxu0 0.0
        %4013 = vmatpush1.msra.mxu0 0.0
        %4014 = vmatprep.subr.mxu0 0.0
        %4015 = vmatpush1.msra.mxu0 0.0
        %4016 = vmatprep.subr.mxu0 0.0
        %4017 = vmatpush1.msra.mxu0 0.0
        %4018 = vmatprep.subr.mxu0 0.0
        %4019 = vmatpush1.msra.mxu0 0.0
        %4020 = vmatprep.subr.mxu0 0.0
        %4021 = vmatpush1.msra.mxu0 0.0
        %4022 = vmatprep.subr.mxu0 0.0
        %4023 = vmatpush1.msra.mxu0 0.0
        %4024 = vmatprep.mubr.f32.mxu0 0.0
        %v4025 = vand.u32 %v1769, 4294901760
        %v4026 = vsub.f32 %v1769, %v4025
        %4027 = vmatmul.mubr.f32.gmra.mrb[0].mxu0 %v4026
        %v4028 = vpop.f32.mrb[0].mxu0
        %v4029 = vadd.f32 %v3947, %v4028
        %v4030 = vpop.f32.mrb[0].mxu0
        %4031 = vmatprep.mubr.f32.mxu0 0.0
        %v4032 = vand.u32 %v1772, 4294901760
        %v4033 = vsub.f32 %v1772, %v4032
        %4034 = vmatmul.mubr.f32.gmra.mrb[0].mxu0 %v4033
        %v4035 = vpop.f32.mrb[0].mxu0
        %v4036 = vadd.f32 %v3953, %v4035
        %v4037 = vpop.f32.mrb[0].mxu0
        %4038 = vdwg.mxu0
        %4039 = vmatprep.subr.mxu0 0.0
        %v4040 = vand.u32 %v239, 4294901760
        %4041 = vmatpush1.msra.mxu0 %v4040
        %4042 = vmatprep.subr.mxu0 0.0
        %v4043 = vand.u32 %v240, 4294901760
        %4044 = vmatpush1.msra.mxu0 %v4043
        %4045 = vmatprep.subr.mxu0 0.0
        %4046 = vmatpush1.msra.mxu0 0.0
        %4047 = vmatprep.subr.mxu0 0.0
        %4048 = vmatpush1.msra.mxu0 0.0
        %4049 = vmatprep.subr.mxu0 0.0
        %4050 = vmatpush1.msra.mxu0 0.0
        %4051 = vmatprep.subr.mxu0 0.0
        %4052 = vmatpush1.msra.mxu0 0.0
        %4053 = vmatprep.subr.mxu0 0.0
        %4054 = vmatpush1.msra.mxu0 0.0
        %4055 = vmatprep.subr.mxu0 0.0
        %4056 = vmatpush1.msra.mxu0 0.0
        %4057 = vmatprep.subr.mxu0 0.0
        %4058 = vmatpush1.msra.mxu0 0.0
        %4059 = vmatprep.subr.mxu0 0.0
        %4060 = vmatpush1.msra.mxu0 0.0
        %4061 = vmatprep.subr.mxu0 0.0
        %4062 = vmatpush1.msra.mxu0 0.0
        %4063 = vmatprep.subr.mxu0 0.0
        %4064 = vmatpush1.msra.mxu0 0.0
        %4065 = vmatprep.subr.mxu0 0.0
        %4066 = vmatpush1.msra.mxu0 0.0
        %4067 = vmatprep.subr.mxu0 0.0
        %4068 = vmatpush1.msra.mxu0 0.0
        %4069 = vmatprep.subr.mxu0 0.0
        %4070 = vmatpush1.msra.mxu0 0.0
        %4071 = vmatprep.subr.mxu0 0.0
        %4072 = vmatpush1.msra.mxu0 0.0
        %4073 = vmatprep.subr.mxu0 0.0
        %4074 = vmatpush1.msra.mxu0 0.0
        %4075 = vmatprep.subr.mxu0 0.0
        %4076 = vmatpush1.msra.mxu0 0.0
        %4077 = vmatprep.subr.mxu0 0.0
        %4078 = vmatpush1.msra.mxu0 0.0
        %4079 = vmatprep.subr.mxu0 0.0
        %4080 = vmatpush1.msra.mxu0 0.0
        %4081 = vmatprep.subr.mxu0 0.0
        %4082 = vmatpush1.msra.mxu0 0.0
        %4083 = vmatprep.subr.mxu0 0.0
        %4084 = vmatpush1.msra.mxu0 0.0
        %4085 = vmatprep.subr.mxu0 0.0
        %4086 = vmatpush1.msra.mxu0 0.0
        %4087 = vmatprep.subr.mxu0 0.0
        %4088 = vmatpush1.msra.mxu0 0.0
        %4089 = vmatprep.subr.mxu0 0.0
        %4090 = vmatpush1.msra.mxu0 0.0
        %4091 = vmatprep.subr.mxu0 0.0
        %4092 = vmatpush1.msra.mxu0 0.0
        %4093 = vmatprep.subr.mxu0 0.0
        %4094 = vmatpush1.msra.mxu0 0.0
        %4095 = vmatprep.subr.mxu0 0.0
        %4096 = vmatpush1.msra.mxu0 0.0
        %4097 = vmatprep.subr.mxu0 0.0
        %4098 = vmatpush1.msra.mxu0 0.0
        %4099 = vmatprep.subr.mxu0 0.0
        %4100 = vmatpush1.msra.mxu0 0.0
        %4101 = vmatprep.subr.mxu0 0.0
        %4102 = vmatpush1.msra.mxu0 0.0
        %4103 = vmatprep.subr.mxu0 0.0
        %4104 = vmatpush1.msra.mxu0 0.0
        %4105 = vmatprep.mubr.f32.mxu0 0.0
        %v4106 = vand.u32 %v1769, 4294901760
        %v4107 = vsub.f32 %v1769, %v4106
        %v4108 = vand.u32 %v4107, 4294901760
        %4109 = vmatmul.mubr.f32.gmra.mrb[0].mxu0 %v4108
        %v4110 = vpop.f32.mrb[0].mxu0
        %v4111 = vadd.f32 %v4029, %v4110
        %v4112 = vpop.f32.mrb[0].mxu0
        %4113 = vmatprep.mubr.f32.mxu0 0.0
        %v4114 = vand.u32 %v1772, 4294901760
        %v4115 = vsub.f32 %v1772, %v4114
        %v4116 = vand.u32 %v4115, 4294901760
        %4117 = vmatmul.mubr.f32.gmra.mrb[0].mxu0 %v4116
        %v4118 = vpop.f32.mrb[0].mxu0
        %v4119 = vadd.f32 %v4036, %v4118
        %v4120 = vpop.f32.mrb[0].mxu0
        %4121 = vdwg.mxu0
        %4122 = vmatprep.subr.mxu0 0.0
        %v4123 = vand.u32 %v239, 4294901760
        %v4124 = vsub.f32 %v239, %v4123
        %v4125 = vand.u32 %v4124, 4294901760
        %4126 = vmatpush1.msra.mxu0 %v4125
        %4127 = vmatprep.subr.mxu0 0.0
        %v4128 = vand.u32 %v240, 4294901760
        %v4129 = vsub.f32 %v240, %v4128
        %v4130 = vand.u32 %v4129, 4294901760
        %4131 = vmatpush1.msra.mxu0 %v4130
        %4132 = vmatprep.subr.mxu0 0.0
        %4133 = vmatpush1.msra.mxu0 0.0
        %4134 = vmatprep.subr.mxu0 0.0
        %4135 = vmatpush1.msra.mxu0 0.0
        %4136 = vmatprep.subr.mxu0 0.0
        %4137 = vmatpush1.msra.mxu0 0.0
        %4138 = vmatprep.subr.mxu0 0.0
        %4139 = vmatpush1.msra.mxu0 0.0
        %4140 = vmatprep.subr.mxu0 0.0
        %4141 = vmatpush1.msra.mxu0 0.0
        %4142 = vmatprep.subr.mxu0 0.0
        %4143 = vmatpush1.msra.mxu0 0.0
        %4144 = vmatprep.subr.mxu0 0.0
        %4145 = vmatpush1.msra.mxu0 0.0
        %4146 = vmatprep.subr.mxu0 0.0
        %4147 = vmatpush1.msra.mxu0 0.0
        %4148 = vmatprep.subr.mxu0 0.0
        %4149 = vmatpush1.msra.mxu0 0.0
        %4150 = vmatprep.subr.mxu0 0.0
        %4151 = vmatpush1.msra.mxu0 0.0
        %4152 = vmatprep.subr.mxu0 0.0
        %4153 = vmatpush1.msra.mxu0 0.0
        %4154 = vmatprep.subr.mxu0 0.0
        %4155 = vmatpush1.msra.mxu0 0.0
        %4156 = vmatprep.subr.mxu0 0.0
        %4157 = vmatpush1.msra.mxu0 0.0
        %4158 = vmatprep.subr.mxu0 0.0
        %4159 = vmatpush1.msra.mxu0 0.0
        %4160 = vmatprep.subr.mxu0 0.0
        %4161 = vmatpush1.msra.mxu0 0.0
        %4162 = vmatprep.subr.mxu0 0.0
        %4163 = vmatpush1.msra.mxu0 0.0
        %4164 = vmatprep.subr.mxu0 0.0
        %4165 = vmatpush1.msra.mxu0 0.0
        %4166 = vmatprep.subr.mxu0 0.0
        %4167 = vmatpush1.msra.mxu0 0.0
        %4168 = vmatprep.subr.mxu0 0.0
        %4169 = vmatpush1.msra.mxu0 0.0
        %4170 = vmatprep.subr.mxu0 0.0
        %4171 = vmatpush1.msra.mxu0 0.0
        %4172 = vmatprep.subr.mxu0 0.0
        %4173 = vmatpush1.msra.mxu0 0.0
        %4174 = vmatprep.subr.mxu0 0.0
        %4175 = vmatpush1.msra.mxu0 0.0
        %4176 = vmatprep.subr.mxu0 0.0
        %4177 = vmatpush1.msra.mxu0 0.0
        %4178 = vmatprep.subr.mxu0 0.0
        %4179 = vmatpush1.msra.mxu0 0.0
        %4180 = vmatprep.subr.mxu0 0.0
        %4181 = vmatpush1.msra.mxu0 0.0
        %4182 = vmatprep.subr.mxu0 0.0
        %4183 = vmatpush1.msra.mxu0 0.0
        %4184 = vmatprep.subr.mxu0 0.0
        %4185 = vmatpush1.msra.mxu0 0.0
        %4186 = vmatprep.subr.mxu0 0.0
        %4187 = vmatpush1.msra.mxu0 0.0
        %4188 = vmatprep.subr.mxu0 0.0
        %4189 = vmatpush1.msra.mxu0 0.0
        %4190 = vmatprep.subr.mxu0 0.0
        %4191 = vmatpush1.msra.mxu0 0.0
        %4192 = vmatprep.mubr.f32.mxu0 0.0
        %v4193 = vand.u32 %v1769, 4294901760
        %4194 = vmatmul.mubr.f32.gmra.mrb[0].mxu0 %v4193
        %v4195 = vpop.f32.mrb[0].mxu0
        %v4196 = vadd.f32 %v4111, %v4195
        %v4197 = vpop.f32.mrb[0].mxu0
        %4198 = vmatprep.mubr.f32.mxu0 0.0
        %v4199 = vand.u32 %v1772, 4294901760
        %4200 = vmatmul.mubr.f32.gmra.mrb[0].mxu0 %v4199
        %v4201 = vpop.f32.mrb[0].mxu0
        %v4202 = vadd.f32 %v4119, %v4201
        %v4203 = vpop.f32.mrb[0].mxu0
        %4204 = vdwg.mxu0
        %4205 = vmatprep.subr.mxu0 0.0
        %v4206 = vand.u32 %v239, 4294901760
        %4207 = vmatpush1.msra.mxu0 %v4206
        %4208 = vmatprep.subr.mxu0 0.0
        %v4209 = vand.u32 %v240, 4294901760
        %4210 = vmatpush1.msra.mxu0 %v4209
        %4211 = vmatprep.subr.mxu0 0.0
        %4212 = vmatpush1.msra.mxu0 0.0
        %4213 = vmatprep.subr.mxu0 0.0
        %4214 = vmatpush1.msra.mxu0 0.0
        %4215 = vmatprep.subr.mxu0 0.0
        %4216 = vmatpush1.msra.mxu0 0.0
        %4217 = vmatprep.subr.mxu0 0.0
        %4218 = vmatpush1.msra.mxu0 0.0
        %4219 = vmatprep.subr.mxu0 0.0
        %4220 = vmatpush1.msra.mxu0 0.0
        %4221 = vmatprep.subr.mxu0 0.0
        %4222 = vmatpush1.msra.mxu0 0.0
        %4223 = vmatprep.subr.mxu0 0.0
        %4224 = vmatpush1.msra.mxu0 0.0
        %4225 = vmatprep.subr.mxu0 0.0
        %4226 = vmatpush1.msra.mxu0 0.0
        %4227 = vmatprep.subr.mxu0 0.0
        %4228 = vmatpush1.msra.mxu0 0.0
        %4229 = vmatprep.subr.mxu0 0.0
        %4230 = vmatpush1.msra.mxu0 0.0
        %4231 = vmatprep.subr.mxu0 0.0
        %4232 = vmatpush1.msra.mxu0 0.0
        %4233 = vmatprep.subr.mxu0 0.0
        %4234 = vmatpush1.msra.mxu0 0.0
        %4235 = vmatprep.subr.mxu0 0.0
        %4236 = vmatpush1.msra.mxu0 0.0
        %4237 = vmatprep.subr.mxu0 0.0
        %4238 = vmatpush1.msra.mxu0 0.0
        %4239 = vmatprep.subr.mxu0 0.0
        %4240 = vmatpush1.msra.mxu0 0.0
        %4241 = vmatprep.subr.mxu0 0.0
        %4242 = vmatpush1.msra.mxu0 0.0
        %4243 = vmatprep.subr.mxu0 0.0
        %4244 = vmatpush1.msra.mxu0 0.0
        %4245 = vmatprep.subr.mxu0 0.0
        %4246 = vmatpush1.msra.mxu0 0.0
        %4247 = vmatprep.subr.mxu0 0.0
        %4248 = vmatpush1.msra.mxu0 0.0
        %4249 = vmatprep.subr.mxu0 0.0
        %4250 = vmatpush1.msra.mxu0 0.0
        %4251 = vmatprep.subr.mxu0 0.0
        %4252 = vmatpush1.msra.mxu0 0.0
        %4253 = vmatprep.subr.mxu0 0.0
        %4254 = vmatpush1.msra.mxu0 0.0
        %4255 = vmatprep.subr.mxu0 0.0
        %4256 = vmatpush1.msra.mxu0 0.0
        %4257 = vmatprep.subr.mxu0 0.0
        %4258 = vmatpush1.msra.mxu0 0.0
        %4259 = vmatprep.subr.mxu0 0.0
        %4260 = vmatpush1.msra.mxu0 0.0
        %4261 = vmatprep.subr.mxu0 0.0
        %4262 = vmatpush1.msra.mxu0 0.0
        %4263 = vmatprep.subr.mxu0 0.0
        %4264 = vmatpush1.msra.mxu0 0.0
        %4265 = vmatprep.subr.mxu0 0.0
        %4266 = vmatpush1.msra.mxu0 0.0
        %4267 = vmatprep.subr.mxu0 0.0
        %4268 = vmatpush1.msra.mxu0 0.0
        %4269 = vmatprep.subr.mxu0 0.0
        %4270 = vmatpush1.msra.mxu0 0.0
        %4271 = vmatprep.mubr.f32.mxu0 0.0
        %v4272 = vand.u32 %v1769, 4294901760
        %4273 = vmatmul.mubr.f32.gmra.mrb[0].mxu0 %v4272
        %v4274 = vpop.f32.mrb[0].mxu0
        %v4275 = vadd.f32 %v4196, %v4274
        %v4276 = vpop.f32.mrb[0].mxu0
        %4277 = vmatprep.mubr.f32.mxu0 0.0
        %v4278 = vand.u32 %v1772, 4294901760
        %4279 = vmatmul.mubr.f32.gmra.mrb[0].mxu0 %v4278
        %v4280 = vpop.f32.mrb[0].mxu0
        %v4281 = vadd.f32 %v4202, %v4280
        %v4282 = vpop.f32.mrb[0].mxu0
        %4283 = vdwg.mxu0
        %v4284 = vmax.f32 %v743, %v2769
        %v4285 = vmax.f32 %v749, %v2775
        %v4286 = vmax.f32 %v1251, %v3271
        %v4287 = vmax.f32 %v1257, %v3277
        %v4288 = vmax.f32 %v1759, %v3773
        %v4289 = vmax.f32 %v1765, %v3779
        %v4290 = vmax.f32 %v2267, %v4275
        %v4291 = vmax.f32 %v2273, %v4281
        %v4293 = vsel %vm243, %v241, 0
        %4295 = vmatprep.subr.mxu0 0.0
        %v4296 = vand.u32 %v4284, 4294901760
        %4297 = vmatpush1.msra.mxu0 %v4296
        %4298 = vmatprep.subr.mxu0 0.0
        %v4299 = vand.u32 %v4285, 4294901760
        %4300 = vmatpush1.msra.mxu0 %v4299
        %4301 = vmatprep.subr.mxu0 0.0
        %4302 = vmatpush1.msra.mxu0 0.0
        %4303 = vmatprep.subr.mxu0 0.0
        %4304 = vmatpush1.msra.mxu0 0.0
        %4305 = vmatprep.subr.mxu0 0.0
        %4306 = vmatpush1.msra.mxu0 0.0
        %4307 = vmatprep.subr.mxu0 0.0
        %4308 = vmatpush1.msra.mxu0 0.0
        %4309 = vmatprep.subr.mxu0 0.0
        %4310 = vmatpush1.msra.mxu0 0.0
        %4311 = vmatprep.subr.mxu0 0.0
        %4312 = vmatpush1.msra.mxu0 0.0
        %4313 = vmatprep.subr.mxu0 0.0
        %4314 = vmatpush1.msra.mxu0 0.0
        %4315 = vmatprep.subr.mxu0 0.0
        %4316 = vmatpush1.msra.mxu0 0.0
        %4317 = vmatprep.subr.mxu0 0.0
        %4318 = vmatpush1.msra.mxu0 0.0
        %4319 = vmatprep.subr.mxu0 0.0
        %4320 = vmatpush1.msra.mxu0 0.0
        %4321 = vmatprep.subr.mxu0 0.0
        %4322 = vmatpush1.msra.mxu0 0.0
        %4323 = vmatprep.subr.mxu0 0.0
        %4324 = vmatpush1.msra.mxu0 0.0
        %4325 = vmatprep.subr.mxu0 0.0
        %4326 = vmatpush1.msra.mxu0 0.0
        %4327 = vmatprep.subr.mxu0 0.0
        %4328 = vmatpush1.msra.mxu0 0.0
        %4329 = vmatprep.subr.mxu0 0.0
        %4330 = vmatpush1.msra.mxu0 0.0
        %4331 = vmatprep.subr.mxu0 0.0
        %4332 = vmatpush1.msra.mxu0 0.0
        %4333 = vmatprep.subr.mxu0 0.0
        %4334 = vmatpush1.msra.mxu0 0.0
        %4335 = vmatprep.subr.mxu0 0.0
        %4336 = vmatpush1.msra.mxu0 0.0
        %4337 = vmatprep.subr.mxu0 0.0
        %4338 = vmatpush1.msra.mxu0 0.0
        %4339 = vmatprep.subr.mxu0 0.0
        %4340 = vmatpush1.msra.mxu0 0.0
        %4341 = vmatprep.subr.mxu0 0.0
        %4342 = vmatpush1.msra.mxu0 0.0
        %4343 = vmatprep.subr.mxu0 0.0
        %4344 = vmatpush1.msra.mxu0 0.0
        %4345 = vmatprep.subr.mxu0 0.0
        %4346 = vmatpush1.msra.mxu0 0.0
        %4347 = vmatprep.subr.mxu0 0.0
        %4348 = vmatpush1.msra.mxu0 0.0
        %4349 = vmatprep.subr.mxu0 0.0
        %4350 = vmatpush1.msra.mxu0 0.0
        %4351 = vmatprep.subr.mxu0 0.0
        %4352 = vmatpush1.msra.mxu0 0.0
        %4353 = vmatprep.subr.mxu0 0.0
        %4354 = vmatpush1.msra.mxu0 0.0
        %4355 = vmatprep.subr.mxu0 0.0
        %4356 = vmatpush1.msra.mxu0 0.0
        %4357 = vmatprep.subr.mxu0 0.0
        %4358 = vmatpush1.msra.mxu0 0.0
        %4359 = vmatprep.subr.mxu0 0.0
        %4360 = vmatpush1.msra.mxu0 0.0
        %4361 = vmatprep.mubr.f32.mxu0 0.0
        %v4362 = vand.u32 %v4293, 4294901760
        %v4363 = vsub.f32 %v4293, %v4362
        %v4364 = vand.u32 %v4363, 4294901760
        %v4365 = vsub.f32 %v4363, %v4364
        %v4366 = vand.u32 %v4365, 4294901760
        %4367 = vmatmul.mubr.f32.gmra.mrb[0].mxu0 %v4366
        %v4368 = vpop.f32.mrb[0].mxu0
        %v4369 = vadd.f32 0.0, %v4368
        %v4370 = vpop.f32.mrb[0].mxu0
        %4371 = vdwg.mxu0
        %4372 = vmatprep.subr.mxu0 0.0
        %v4373 = vand.u32 %v4284, 4294901760
        %v4374 = vsub.f32 %v4284, %v4373
        %v4375 = vand.u32 %v4374, 4294901760
        %v4376 = vsub.f32 %v4374, %v4375
        %v4377 = vand.u32 %v4376, 4294901760
        %4378 = vmatpush1.msra.mxu0 %v4377
        %4379 = vmatprep.subr.mxu0 0.0
        %v4380 = vand.u32 %v4285, 4294901760
        %v4381 = vsub.f32 %v4285, %v4380
        %v4382 = vand.u32 %v4381, 4294901760
        %v4383 = vsub.f32 %v4381, %v4382
        %v4384 = vand.u32 %v4383, 4294901760
        %4385 = vmatpush1.msra.mxu0 %v4384
        %4386 = vmatprep.subr.mxu0 0.0
        %4387 = vmatpush1.msra.mxu0 0.0
        %4388 = vmatprep.subr.mxu0 0.0
        %4389 = vmatpush1.msra.mxu0 0.0
        %4390 = vmatprep.subr.mxu0 0.0
        %4391 = vmatpush1.msra.mxu0 0.0
        %4392 = vmatprep.subr.mxu0 0.0
        %4393 = vmatpush1.msra.mxu0 0.0
        %4394 = vmatprep.subr.mxu0 0.0
        %4395 = vmatpush1.msra.mxu0 0.0
        %4396 = vmatprep.subr.mxu0 0.0
        %4397 = vmatpush1.msra.mxu0 0.0
        %4398 = vmatprep.subr.mxu0 0.0
        %4399 = vmatpush1.msra.mxu0 0.0
        %4400 = vmatprep.subr.mxu0 0.0
        %4401 = vmatpush1.msra.mxu0 0.0
        %4402 = vmatprep.subr.mxu0 0.0
        %4403 = vmatpush1.msra.mxu0 0.0
        %4404 = vmatprep.subr.mxu0 0.0
        %4405 = vmatpush1.msra.mxu0 0.0
        %4406 = vmatprep.subr.mxu0 0.0
        %4407 = vmatpush1.msra.mxu0 0.0
        %4408 = vmatprep.subr.mxu0 0.0
        %4409 = vmatpush1.msra.mxu0 0.0
        %4410 = vmatprep.subr.mxu0 0.0
        %4411 = vmatpush1.msra.mxu0 0.0
        %4412 = vmatprep.subr.mxu0 0.0
        %4413 = vmatpush1.msra.mxu0 0.0
        %4414 = vmatprep.subr.mxu0 0.0
        %4415 = vmatpush1.msra.mxu0 0.0
        %4416 = vmatprep.subr.mxu0 0.0
        %4417 = vmatpush1.msra.mxu0 0.0
        %4418 = vmatprep.subr.mxu0 0.0
        %4419 = vmatpush1.msra.mxu0 0.0
        %4420 = vmatprep.subr.mxu0 0.0
        %4421 = vmatpush1.msra.mxu0 0.0
        %4422 = vmatprep.subr.mxu0 0.0
        %4423 = vmatpush1.msra.mxu0 0.0
        %4424 = vmatprep.subr.mxu0 0.0
        %4425 = vmatpush1.msra.mxu0 0.0
        %4426 = vmatprep.subr.mxu0 0.0
        %4427 = vmatpush1.msra.mxu0 0.0
        %4428 = vmatprep.subr.mxu0 0.0
        %4429 = vmatpush1.msra.mxu0 0.0
        %4430 = vmatprep.subr.mxu0 0.0
        %4431 = vmatpush1.msra.mxu0 0.0
        %4432 = vmatprep.subr.mxu0 0.0
        %4433 = vmatpush1.msra.mxu0 0.0
        %4434 = vmatprep.subr.mxu0 0.0
        %4435 = vmatpush1.msra.mxu0 0.0
        %4436 = vmatprep.subr.mxu0 0.0
        %4437 = vmatpush1.msra.mxu0 0.0
        %4438 = vmatprep.subr.mxu0 0.0
        %4439 = vmatpush1.msra.mxu0 0.0
        %4440 = vmatprep.subr.mxu0 0.0
        %4441 = vmatpush1.msra.mxu0 0.0
        %4442 = vmatprep.subr.mxu0 0.0
        %4443 = vmatpush1.msra.mxu0 0.0
        %4444 = vmatprep.subr.mxu0 0.0
        %4445 = vmatpush1.msra.mxu0 0.0
        %4446 = vmatprep.mubr.f32.mxu0 0.0
        %v4447 = vand.u32 %v4293, 4294901760
        %4448 = vmatmul.mubr.f32.gmra.mrb[0].mxu0 %v4447
        %v4449 = vpop.f32.mrb[0].mxu0
        %v4450 = vadd.f32 %v4369, %v4449
        %v4451 = vpop.f32.mrb[0].mxu0
        %4452 = vdwg.mxu0
        %4453 = vmatprep.subr.mxu0 0.0
        %v4454 = vand.u32 %v4284, 4294901760
        %v4455 = vsub.f32 %v4284, %v4454
        %4456 = vmatpush1.msra.mxu0 %v4455
        %4457 = vmatprep.subr.mxu0 0.0
        %v4458 = vand.u32 %v4285, 4294901760
        %v4459 = vsub.f32 %v4285, %v4458
        %4460 = vmatpush1.msra.mxu0 %v4459
        %4461 = vmatprep.subr.mxu0 0.0
        %4462 = vmatpush1.msra.mxu0 0.0
        %4463 = vmatprep.subr.mxu0 0.0
        %4464 = vmatpush1.msra.mxu0 0.0
        %4465 = vmatprep.subr.mxu0 0.0
        %4466 = vmatpush1.msra.mxu0 0.0
        %4467 = vmatprep.subr.mxu0 0.0
        %4468 = vmatpush1.msra.mxu0 0.0
        %4469 = vmatprep.subr.mxu0 0.0
        %4470 = vmatpush1.msra.mxu0 0.0
        %4471 = vmatprep.subr.mxu0 0.0
        %4472 = vmatpush1.msra.mxu0 0.0
        %4473 = vmatprep.subr.mxu0 0.0
        %4474 = vmatpush1.msra.mxu0 0.0
        %4475 = vmatprep.subr.mxu0 0.0
        %4476 = vmatpush1.msra.mxu0 0.0
        %4477 = vmatprep.subr.mxu0 0.0
        %4478 = vmatpush1.msra.mxu0 0.0
        %4479 = vmatprep.subr.mxu0 0.0
        %4480 = vmatpush1.msra.mxu0 0.0
        %4481 = vmatprep.subr.mxu0 0.0
        %4482 = vmatpush1.msra.mxu0 0.0
        %4483 = vmatprep.subr.mxu0 0.0
        %4484 = vmatpush1.msra.mxu0 0.0
        %4485 = vmatprep.subr.mxu0 0.0
        %4486 = vmatpush1.msra.mxu0 0.0
        %4487 = vmatprep.subr.mxu0 0.0
        %4488 = vmatpush1.msra.mxu0 0.0
        %4489 = vmatprep.subr.mxu0 0.0
        %4490 = vmatpush1.msra.mxu0 0.0
        %4491 = vmatprep.subr.mxu0 0.0
        %4492 = vmatpush1.msra.mxu0 0.0
        %4493 = vmatprep.subr.mxu0 0.0
        %4494 = vmatpush1.msra.mxu0 0.0
        %4495 = vmatprep.subr.mxu0 0.0
        %4496 = vmatpush1.msra.mxu0 0.0
        %4497 = vmatprep.subr.mxu0 0.0
        %4498 = vmatpush1.msra.mxu0 0.0
        %4499 = vmatprep.subr.mxu0 0.0
        %4500 = vmatpush1.msra.mxu0 0.0
        %4501 = vmatprep.subr.mxu0 0.0
        %4502 = vmatpush1.msra.mxu0 0.0
        %4503 = vmatprep.subr.mxu0 0.0
        %4504 = vmatpush1.msra.mxu0 0.0
        %4505 = vmatprep.subr.mxu0 0.0
        %4506 = vmatpush1.msra.mxu0 0.0
        %4507 = vmatprep.subr.mxu0 0.0
        %4508 = vmatpush1.msra.mxu0 0.0
        %4509 = vmatprep.subr.mxu0 0.0
        %4510 = vmatpush1.msra.mxu0 0.0
        %4511 = vmatprep.subr.mxu0 0.0
        %4512 = vmatpush1.msra.mxu0 0.0
        %4513 = vmatprep.subr.mxu0 0.0
        %4514 = vmatpush1.msra.mxu0 0.0
        %4515 = vmatprep.subr.mxu0 0.0
        %4516 = vmatpush1.msra.mxu0 0.0
        %4517 = vmatprep.subr.mxu0 0.0
        %4518 = vmatpush1.msra.mxu0 0.0
        %4519 = vmatprep.subr.mxu0 0.0
        %4520 = vmatpush1.msra.mxu0 0.0
        %4521 = vmatprep.mubr.f32.mxu0 0.0
        %v4522 = vand.u32 %v4293, 4294901760
        %v4523 = vsub.f32 %v4293, %v4522
        %4524 = vmatmul.mubr.f32.gmra.mrb[0].mxu0 %v4523
        %v4525 = vpop.f32.mrb[0].mxu0
        %v4526 = vadd.f32 %v4450, %v4525
        %v4527 = vpop.f32.mrb[0].mxu0
        %4528 = vdwg.mxu0
        %4529 = vmatprep.subr.mxu0 0.0
        %v4530 = vand.u32 %v4284, 4294901760
        %4531 = vmatpush1.msra.mxu0 %v4530
        %4532 = vmatprep.subr.mxu0 0.0
        %v4533 = vand.u32 %v4285, 4294901760
        %4534 = vmatpush1.msra.mxu0 %v4533
        %4535 = vmatprep.subr.mxu0 0.0
        %4536 = vmatpush1.msra.mxu0 0.0
        %4537 = vmatprep.subr.mxu0 0.0
        %4538 = vmatpush1.msra.mxu0 0.0
        %4539 = vmatprep.subr.mxu0 0.0
        %4540 = vmatpush1.msra.mxu0 0.0
        %4541 = vmatprep.subr.mxu0 0.0
        %4542 = vmatpush1.msra.mxu0 0.0
        %4543 = vmatprep.subr.mxu0 0.0
        %4544 = vmatpush1.msra.mxu0 0.0
        %4545 = vmatprep.subr.mxu0 0.0
        %4546 = vmatpush1.msra.mxu0 0.0
        %4547 = vmatprep.subr.mxu0 0.0
        %4548 = vmatpush1.msra.mxu0 0.0
        %4549 = vmatprep.subr.mxu0 0.0
        %4550 = vmatpush1.msra.mxu0 0.0
        %4551 = vmatprep.subr.mxu0 0.0
        %4552 = vmatpush1.msra.mxu0 0.0
        %4553 = vmatprep.subr.mxu0 0.0
        %4554 = vmatpush1.msra.mxu0 0.0
        %4555 = vmatprep.subr.mxu0 0.0
        %4556 = vmatpush1.msra.mxu0 0.0
        %4557 = vmatprep.subr.mxu0 0.0
        %4558 = vmatpush1.msra.mxu0 0.0
        %4559 = vmatprep.subr.mxu0 0.0
        %4560 = vmatpush1.msra.mxu0 0.0
        %4561 = vmatprep.subr.mxu0 0.0
        %4562 = vmatpush1.msra.mxu0 0.0
        %4563 = vmatprep.subr.mxu0 0.0
        %4564 = vmatpush1.msra.mxu0 0.0
        %4565 = vmatprep.subr.mxu0 0.0
        %4566 = vmatpush1.msra.mxu0 0.0
        %4567 = vmatprep.subr.mxu0 0.0
        %4568 = vmatpush1.msra.mxu0 0.0
        %4569 = vmatprep.subr.mxu0 0.0
        %4570 = vmatpush1.msra.mxu0 0.0
        %4571 = vmatprep.subr.mxu0 0.0
        %4572 = vmatpush1.msra.mxu0 0.0
        %4573 = vmatprep.subr.mxu0 0.0
        %4574 = vmatpush1.msra.mxu0 0.0
        %4575 = vmatprep.subr.mxu0 0.0
        %4576 = vmatpush1.msra.mxu0 0.0
        %4577 = vmatprep.subr.mxu0 0.0
        %4578 = vmatpush1.msra.mxu0 0.0
        %4579 = vmatprep.subr.mxu0 0.0
        %4580 = vmatpush1.msra.mxu0 0.0
        %4581 = vmatprep.subr.mxu0 0.0
        %4582 = vmatpush1.msra.mxu0 0.0
        %4583 = vmatprep.subr.mxu0 0.0
        %4584 = vmatpush1.msra.mxu0 0.0
        %4585 = vmatprep.subr.mxu0 0.0
        %4586 = vmatpush1.msra.mxu0 0.0
        %4587 = vmatprep.subr.mxu0 0.0
        %4588 = vmatpush1.msra.mxu0 0.0
        %4589 = vmatprep.subr.mxu0 0.0
        %4590 = vmatpush1.msra.mxu0 0.0
        %4591 = vmatprep.subr.mxu0 0.0
        %4592 = vmatpush1.msra.mxu0 0.0
        %4593 = vmatprep.subr.mxu0 0.0
        %4594 = vmatpush1.msra.mxu0 0.0
        %4595 = vmatprep.mubr.f32.mxu0 0.0
        %v4596 = vand.u32 %v4293, 4294901760
        %v4597 = vsub.f32 %v4293, %v4596
        %v4598 = vand.u32 %v4597, 4294901760
        %4599 = vmatmul.mubr.f32.gmra.mrb[0].mxu0 %v4598
        %v4600 = vpop.f32.mrb[0].mxu0
        %v4601 = vadd.f32 %v4526, %v4600
        %v4602 = vpop.f32.mrb[0].mxu0
        %4603 = vdwg.mxu0
        %4604 = vmatprep.subr.mxu0 0.0
        %v4605 = vand.u32 %v4284, 4294901760
        %v4606 = vsub.f32 %v4284, %v4605
        %v4607 = vand.u32 %v4606, 4294901760
        %4608 = vmatpush1.msra.mxu0 %v4607
        %4609 = vmatprep.subr.mxu0 0.0
        %v4610 = vand.u32 %v4285, 4294901760
        %v4611 = vsub.f32 %v4285, %v4610
        %v4612 = vand.u32 %v4611, 4294901760
        %4613 = vmatpush1.msra.mxu0 %v4612
        %4614 = vmatprep.subr.mxu0 0.0
        %4615 = vmatpush1.msra.mxu0 0.0
        %4616 = vmatprep.subr.mxu0 0.0
        %4617 = vmatpush1.msra.mxu0 0.0
        %4618 = vmatprep.subr.mxu0 0.0
        %4619 = vmatpush1.msra.mxu0 0.0
        %4620 = vmatprep.subr.mxu0 0.0
        %4621 = vmatpush1.msra.mxu0 0.0
        %4622 = vmatprep.subr.mxu0 0.0
        %4623 = vmatpush1.msra.mxu0 0.0
        %4624 = vmatprep.subr.mxu0 0.0
        %4625 = vmatpush1.msra.mxu0 0.0
        %4626 = vmatprep.subr.mxu0 0.0
        %4627 = vmatpush1.msra.mxu0 0.0
        %4628 = vmatprep.subr.mxu0 0.0
        %4629 = vmatpush1.msra.mxu0 0.0
        %4630 = vmatprep.subr.mxu0 0.0
        %4631 = vmatpush1.msra.mxu0 0.0
        %4632 = vmatprep.subr.mxu0 0.0
        %4633 = vmatpush1.msra.mxu0 0.0
        %4634 = vmatprep.subr.mxu0 0.0
        %4635 = vmatpush1.msra.mxu0 0.0
        %4636 = vmatprep.subr.mxu0 0.0
        %4637 = vmatpush1.msra.mxu0 0.0
        %4638 = vmatprep.subr.mxu0 0.0
        %4639 = vmatpush1.msra.mxu0 0.0
        %4640 = vmatprep.subr.mxu0 0.0
        %4641 = vmatpush1.msra.mxu0 0.0
        %4642 = vmatprep.subr.mxu0 0.0
        %4643 = vmatpush1.msra.mxu0 0.0
        %4644 = vmatprep.subr.mxu0 0.0
        %4645 = vmatpush1.msra.mxu0 0.0
        %4646 = vmatprep.subr.mxu0 0.0
        %4647 = vmatpush1.msra.mxu0 0.0
        %4648 = vmatprep.subr.mxu0 0.0
        %4649 = vmatpush1.msra.mxu0 0.0
        %4650 = vmatprep.subr.mxu0 0.0
        %4651 = vmatpush1.msra.mxu0 0.0
        %4652 = vmatprep.subr.mxu0 0.0
        %4653 = vmatpush1.msra.mxu0 0.0
        %4654 = vmatprep.subr.mxu0 0.0
        %4655 = vmatpush1.msra.mxu0 0.0
        %4656 = vmatprep.subr.mxu0 0.0
        %4657 = vmatpush1.msra.mxu0 0.0
        %4658 = vmatprep.subr.mxu0 0.0
        %4659 = vmatpush1.msra.mxu0 0.0
        %4660 = vmatprep.subr.mxu0 0.0
        %4661 = vmatpush1.msra.mxu0 0.0
        %4662 = vmatprep.subr.mxu0 0.0
        %4663 = vmatpush1.msra.mxu0 0.0
        %4664 = vmatprep.subr.mxu0 0.0
        %4665 = vmatpush1.msra.mxu0 0.0
        %4666 = vmatprep.subr.mxu0 0.0
        %4667 = vmatpush1.msra.mxu0 0.0
        %4668 = vmatprep.subr.mxu0 0.0
        %4669 = vmatpush1.msra.mxu0 0.0
        %4670 = vmatprep.subr.mxu0 0.0
        %4671 = vmatpush1.msra.mxu0 0.0
        %4672 = vmatprep.subr.mxu0 0.0
        %4673 = vmatpush1.msra.mxu0 0.0
        %4674 = vmatprep.mubr.f32.mxu0 0.0
        %v4675 = vand.u32 %v4293, 4294901760
        %4676 = vmatmul.mubr.f32.gmra.mrb[0].mxu0 %v4675
        %v4677 = vpop.f32.mrb[0].mxu0
        %v4678 = vadd.f32 %v4601, %v4677
        %v4679 = vpop.f32.mrb[0].mxu0
        %4680 = vdwg.mxu0
        %4681 = vmatprep.subr.mxu0 0.0
        %v4682 = vand.u32 %v4284, 4294901760
        %4683 = vmatpush1.msra.mxu0 %v4682
        %4684 = vmatprep.subr.mxu0 0.0
        %v4685 = vand.u32 %v4285, 4294901760
        %4686 = vmatpush1.msra.mxu0 %v4685
        %4687 = vmatprep.subr.mxu0 0.0
        %4688 = vmatpush1.msra.mxu0 0.0
        %4689 = vmatprep.subr.mxu0 0.0
        %4690 = vmatpush1.msra.mxu0 0.0
        %4691 = vmatprep.subr.mxu0 0.0
        %4692 = vmatpush1.msra.mxu0 0.0
        %4693 = vmatprep.subr.mxu0 0.0
        %4694 = vmatpush1.msra.mxu0 0.0
        %4695 = vmatprep.subr.mxu0 0.0
        %4696 = vmatpush1.msra.mxu0 0.0
        %4697 = vmatprep.subr.mxu0 0.0
        %4698 = vmatpush1.msra.mxu0 0.0
        %4699 = vmatprep.subr.mxu0 0.0
        %4700 = vmatpush1.msra.mxu0 0.0
        %4701 = vmatprep.subr.mxu0 0.0
        %4702 = vmatpush1.msra.mxu0 0.0
        %4703 = vmatprep.subr.mxu0 0.0
        %4704 = vmatpush1.msra.mxu0 0.0
        %4705 = vmatprep.subr.mxu0 0.0
        %4706 = vmatpush1.msra.mxu0 0.0
        %4707 = vmatprep.subr.mxu0 0.0
        %4708 = vmatpush1.msra.mxu0 0.0
        %4709 = vmatprep.subr.mxu0 0.0
        %4710 = vmatpush1.msra.mxu0 0.0
        %4711 = vmatprep.subr.mxu0 0.0
        %4712 = vmatpush1.msra.mxu0 0.0
        %4713 = vmatprep.subr.mxu0 0.0
        %4714 = vmatpush1.msra.mxu0 0.0
        %4715 = vmatprep.subr.mxu0 0.0
        %4716 = vmatpush1.msra.mxu0 0.0
        %4717 = vmatprep.subr.mxu0 0.0
        %4718 = vmatpush1.msra.mxu0 0.0
        %4719 = vmatprep.subr.mxu0 0.0
        %4720 = vmatpush1.msra.mxu0 0.0
        %4721 = vmatprep.subr.mxu0 0.0
        %4722 = vmatpush1.msra.mxu0 0.0
        %4723 = vmatprep.subr.mxu0 0.0
        %4724 = vmatpush1.msra.mxu0 0.0
        %4725 = vmatprep.subr.mxu0 0.0
        %4726 = vmatpush1.msra.mxu0 0.0
        %4727 = vmatprep.subr.mxu0 0.0
        %4728 = vmatpush1.msra.mxu0 0.0
        %4729 = vmatprep.subr.mxu0 0.0
        %4730 = vmatpush1.msra.mxu0 0.0
        %4731 = vmatprep.subr.mxu0 0.0
        %4732 = vmatpush1.msra.mxu0 0.0
        %4733 = vmatprep.subr.mxu0 0.0
        %4734 = vmatpush1.msra.mxu0 0.0
        %4735 = vmatprep.subr.mxu0 0.0
        %4736 = vmatpush1.msra.mxu0 0.0
        %4737 = vmatprep.subr.mxu0 0.0
        %4738 = vmatpush1.msra.mxu0 0.0
        %4739 = vmatprep.subr.mxu0 0.0
        %4740 = vmatpush1.msra.mxu0 0.0
        %4741 = vmatprep.subr.mxu0 0.0
        %4742 = vmatpush1.msra.mxu0 0.0
        %4743 = vmatprep.subr.mxu0 0.0
        %4744 = vmatpush1.msra.mxu0 0.0
        %4745 = vmatprep.subr.mxu0 0.0
        %4746 = vmatpush1.msra.mxu0 0.0
        %4747 = vmatprep.mubr.f32.mxu0 0.0
        %v4748 = vand.u32 %v4293, 4294901760
        %4749 = vmatmul.mubr.f32.gmra.mrb[0].mxu0 %v4748
        %v4750 = vpop.f32.mrb[0].mxu0
        %v4751 = vadd.f32 %v4678, %v4750
        %v4752 = vpop.f32.mrb[0].mxu0
        %4753 = vdwg.mxu0
        %4754 = vmatprep.subr.mxu0 0.0
        %v4755 = vand.u32 %v4286, 4294901760
        %4756 = vmatpush1.msra.mxu0 %v4755
        %4757 = vmatprep.subr.mxu0 0.0
        %v4758 = vand.u32 %v4287, 4294901760
        %4759 = vmatpush1.msra.mxu0 %v4758
        %4760 = vmatprep.subr.mxu0 0.0
        %4761 = vmatpush1.msra.mxu0 0.0
        %4762 = vmatprep.subr.mxu0 0.0
        %4763 = vmatpush1.msra.mxu0 0.0
        %4764 = vmatprep.subr.mxu0 0.0
        %4765 = vmatpush1.msra.mxu0 0.0
        %4766 = vmatprep.subr.mxu0 0.0
        %4767 = vmatpush1.msra.mxu0 0.0
        %4768 = vmatprep.subr.mxu0 0.0
        %4769 = vmatpush1.msra.mxu0 0.0
        %4770 = vmatprep.subr.mxu0 0.0
        %4771 = vmatpush1.msra.mxu0 0.0
        %4772 = vmatprep.subr.mxu0 0.0
        %4773 = vmatpush1.msra.mxu0 0.0
        %4774 = vmatprep.subr.mxu0 0.0
        %4775 = vmatpush1.msra.mxu0 0.0
        %4776 = vmatprep.subr.mxu0 0.0
        %4777 = vmatpush1.msra.mxu0 0.0
        %4778 = vmatprep.subr.mxu0 0.0
        %4779 = vmatpush1.msra.mxu0 0.0
        %4780 = vmatprep.subr.mxu0 0.0
        %4781 = vmatpush1.msra.mxu0 0.0
        %4782 = vmatprep.subr.mxu0 0.0
        %4783 = vmatpush1.msra.mxu0 0.0
        %4784 = vmatprep.subr.mxu0 0.0
        %4785 = vmatpush1.msra.mxu0 0.0
        %4786 = vmatprep.subr.mxu0 0.0
        %4787 = vmatpush1.msra.mxu0 0.0
        %4788 = vmatprep.subr.mxu0 0.0
        %4789 = vmatpush1.msra.mxu0 0.0
        %4790 = vmatprep.subr.mxu0 0.0
        %4791 = vmatpush1.msra.mxu0 0.0
        %4792 = vmatprep.subr.mxu0 0.0
        %4793 = vmatpush1.msra.mxu0 0.0
        %4794 = vmatprep.subr.mxu0 0.0
        %4795 = vmatpush1.msra.mxu0 0.0
        %4796 = vmatprep.subr.mxu0 0.0
        %4797 = vmatpush1.msra.mxu0 0.0
        %4798 = vmatprep.subr.mxu0 0.0
        %4799 = vmatpush1.msra.mxu0 0.0
        %4800 = vmatprep.subr.mxu0 0.0
        %4801 = vmatpush1.msra.mxu0 0.0
        %4802 = vmatprep.subr.mxu0 0.0
        %4803 = vmatpush1.msra.mxu0 0.0
        %4804 = vmatprep.subr.mxu0 0.0
        %4805 = vmatpush1.msra.mxu0 0.0
        %4806 = vmatprep.subr.mxu0 0.0
        %4807 = vmatpush1.msra.mxu0 0.0
        %4808 = vmatprep.subr.mxu0 0.0
        %4809 = vmatpush1.msra.mxu0 0.0
        %4810 = vmatprep.subr.mxu0 0.0
        %4811 = vmatpush1.msra.mxu0 0.0
        %4812 = vmatprep.subr.mxu0 0.0
        %4813 = vmatpush1.msra.mxu0 0.0
        %4814 = vmatprep.subr.mxu0 0.0
        %4815 = vmatpush1.msra.mxu0 0.0
        %4816 = vmatprep.subr.mxu0 0.0
        %4817 = vmatpush1.msra.mxu0 0.0
        %4818 = vmatprep.subr.mxu0 0.0
        %4819 = vmatpush1.msra.mxu0 0.0
        %4820 = vmatprep.mubr.f32.mxu0 0.0
        %v4821 = vand.u32 %v4293, 4294901760
        %v4822 = vsub.f32 %v4293, %v4821
        %v4823 = vand.u32 %v4822, 4294901760
        %v4824 = vsub.f32 %v4822, %v4823
        %v4825 = vand.u32 %v4824, 4294901760
        %4826 = vmatmul.mubr.f32.gmra.mrb[0].mxu0 %v4825
        %v4827 = vpop.f32.mrb[0].mxu0
        %v4828 = vadd.f32 0.0, %v4827
        %v4829 = vpop.f32.mrb[0].mxu0
        %4830 = vdwg.mxu0
        %4831 = vmatprep.subr.mxu0 0.0
        %v4832 = vand.u32 %v4286, 4294901760
        %v4833 = vsub.f32 %v4286, %v4832
        %v4834 = vand.u32 %v4833, 4294901760
        %v4835 = vsub.f32 %v4833, %v4834
        %v4836 = vand.u32 %v4835, 4294901760
        %4837 = vmatpush1.msra.mxu0 %v4836
        %4838 = vmatprep.subr.mxu0 0.0
        %v4839 = vand.u32 %v4287, 4294901760
        %v4840 = vsub.f32 %v4287, %v4839
        %v4841 = vand.u32 %v4840, 4294901760
        %v4842 = vsub.f32 %v4840, %v4841
        %v4843 = vand.u32 %v4842, 4294901760
        %4844 = vmatpush1.msra.mxu0 %v4843
        %4845 = vmatprep.subr.mxu0 0.0
        %4846 = vmatpush1.msra.mxu0 0.0
        %4847 = vmatprep.subr.mxu0 0.0
        %4848 = vmatpush1.msra.mxu0 0.0
        %4849 = vmatprep.subr.mxu0 0.0
        %4850 = vmatpush1.msra.mxu0 0.0
        %4851 = vmatprep.subr.mxu0 0.0
        %4852 = vmatpush1.msra.mxu0 0.0
        %4853 = vmatprep.subr.mxu0 0.0
        %4854 = vmatpush1.msra.mxu0 0.0
        %4855 = vmatprep.subr.mxu0 0.0
        %4856 = vmatpush1.msra.mxu0 0.0
        %4857 = vmatprep.subr.mxu0 0.0
        %4858 = vmatpush1.msra.mxu0 0.0
        %4859 = vmatprep.subr.mxu0 0.0
        %4860 = vmatpush1.msra.mxu0 0.0
        %4861 = vmatprep.subr.mxu0 0.0
        %4862 = vmatpush1.msra.mxu0 0.0
        %4863 = vmatprep.subr.mxu0 0.0
        %4864 = vmatpush1.msra.mxu0 0.0
        %4865 = vmatprep.subr.mxu0 0.0
        %4866 = vmatpush1.msra.mxu0 0.0
        %4867 = vmatprep.subr.mxu0 0.0
        %4868 = vmatpush1.msra.mxu0 0.0
        %4869 = vmatprep.subr.mxu0 0.0
        %4870 = vmatpush1.msra.mxu0 0.0
        %4871 = vmatprep.subr.mxu0 0.0
        %4872 = vmatpush1.msra.mxu0 0.0
        %4873 = vmatprep.subr.mxu0 0.0
        %4874 = vmatpush1.msra.mxu0 0.0
        %4875 = vmatprep.subr.mxu0 0.0
        %4876 = vmatpush1.msra.mxu0 0.0
        %4877 = vmatprep.subr.mxu0 0.0
        %4878 = vmatpush1.msra.mxu0 0.0
        %4879 = vmatprep.subr.mxu0 0.0
        %4880 = vmatpush1.msra.mxu0 0.0
        %4881 = vmatprep.subr.mxu0 0.0
        %4882 = vmatpush1.msra.mxu0 0.0
        %4883 = vmatprep.subr.mxu0 0.0
        %4884 = vmatpush1.msra.mxu0 0.0
        %4885 = vmatprep.subr.mxu0 0.0
        %4886 = vmatpush1.msra.mxu0 0.0
        %4887 = vmatprep.subr.mxu0 0.0
        %4888 = vmatpush1.msra.mxu0 0.0
        %4889 = vmatprep.subr.mxu0 0.0
        %4890 = vmatpush1.msra.mxu0 0.0
        %4891 = vmatprep.subr.mxu0 0.0
        %4892 = vmatpush1.msra.mxu0 0.0
        %4893 = vmatprep.subr.mxu0 0.0
        %4894 = vmatpush1.msra.mxu0 0.0
        %4895 = vmatprep.subr.mxu0 0.0
        %4896 = vmatpush1.msra.mxu0 0.0
        %4897 = vmatprep.subr.mxu0 0.0
        %4898 = vmatpush1.msra.mxu0 0.0
        %4899 = vmatprep.subr.mxu0 0.0
        %4900 = vmatpush1.msra.mxu0 0.0
        %4901 = vmatprep.subr.mxu0 0.0
        %4902 = vmatpush1.msra.mxu0 0.0
        %4903 = vmatprep.subr.mxu0 0.0
        %4904 = vmatpush1.msra.mxu0 0.0
        %4905 = vmatprep.mubr.f32.mxu0 0.0
        %v4906 = vand.u32 %v4293, 4294901760
        %4907 = vmatmul.mubr.f32.gmra.mrb[0].mxu0 %v4906
        %v4908 = vpop.f32.mrb[0].mxu0
        %v4909 = vadd.f32 %v4828, %v4908
        %v4910 = vpop.f32.mrb[0].mxu0
        %4911 = vdwg.mxu0
        %4912 = vmatprep.subr.mxu0 0.0
        %v4913 = vand.u32 %v4286, 4294901760
        %v4914 = vsub.f32 %v4286, %v4913
        %4915 = vmatpush1.msra.mxu0 %v4914
        %4916 = vmatprep.subr.mxu0 0.0
        %v4917 = vand.u32 %v4287, 4294901760
        %v4918 = vsub.f32 %v4287, %v4917
        %4919 = vmatpush1.msra.mxu0 %v4918
        %4920 = vmatprep.subr.mxu0 0.0
        %4921 = vmatpush1.msra.mxu0 0.0
        %4922 = vmatprep.subr.mxu0 0.0
        %4923 = vmatpush1.msra.mxu0 0.0
        %4924 = vmatprep.subr.mxu0 0.0
        %4925 = vmatpush1.msra.mxu0 0.0
        %4926 = vmatprep.subr.mxu0 0.0
        %4927 = vmatpush1.msra.mxu0 0.0
        %4928 = vmatprep.subr.mxu0 0.0
        %4929 = vmatpush1.msra.mxu0 0.0
        %4930 = vmatprep.subr.mxu0 0.0
        %4931 = vmatpush1.msra.mxu0 0.0
        %4932 = vmatprep.subr.mxu0 0.0
        %4933 = vmatpush1.msra.mxu0 0.0
        %4934 = vmatprep.subr.mxu0 0.0
        %4935 = vmatpush1.msra.mxu0 0.0
        %4936 = vmatprep.subr.mxu0 0.0
        %4937 = vmatpush1.msra.mxu0 0.0
        %4938 = vmatprep.subr.mxu0 0.0
        %4939 = vmatpush1.msra.mxu0 0.0
        %4940 = vmatprep.subr.mxu0 0.0
        %4941 = vmatpush1.msra.mxu0 0.0
        %4942 = vmatprep.subr.mxu0 0.0
        %4943 = vmatpush1.msra.mxu0 0.0
        %4944 = vmatprep.subr.mxu0 0.0
        %4945 = vmatpush1.msra.mxu0 0.0
        %4946 = vmatprep.subr.mxu0 0.0
        %4947 = vmatpush1.msra.mxu0 0.0
        %4948 = vmatprep.subr.mxu0 0.0
        %4949 = vmatpush1.msra.mxu0 0.0
        %4950 = vmatprep.subr.mxu0 0.0
        %4951 = vmatpush1.msra.mxu0 0.0
        %4952 = vmatprep.subr.mxu0 0.0
        %4953 = vmatpush1.msra.mxu0 0.0
        %4954 = vmatprep.subr.mxu0 0.0
        %4955 = vmatpush1.msra.mxu0 0.0
        %4956 = vmatprep.subr.mxu0 0.0
        %4957 = vmatpush1.msra.mxu0 0.0
        %4958 = vmatprep.subr.mxu0 0.0
        %4959 = vmatpush1.msra.mxu0 0.0
        %4960 = vmatprep.subr.mxu0 0.0
        %4961 = vmatpush1.msra.mxu0 0.0
        %4962 = vmatprep.subr.mxu0 0.0
        %4963 = vmatpush1.msra.mxu0 0.0
        %4964 = vmatprep.subr.mxu0 0.0
        %4965 = vmatpush1.msra.mxu0 0.0
        %4966 = vmatprep.subr.mxu0 0.0
        %4967 = vmatpush1.msra.mxu0 0.0
        %4968 = vmatprep.subr.mxu0 0.0
        %4969 = vmatpush1.msra.mxu0 0.0
        %4970 = vmatprep.subr.mxu0 0.0
        %4971 = vmatpush1.msra.mxu0 0.0
        %4972 = vmatprep.subr.mxu0 0.0
        %4973 = vmatpush1.msra.mxu0 0.0
        %4974 = vmatprep.subr.mxu0 0.0
        %4975 = vmatpush1.msra.mxu0 0.0
        %4976 = vmatprep.subr.mxu0 0.0
        %4977 = vmatpush1.msra.mxu0 0.0
        %4978 = vmatprep.subr.mxu0 0.0
        %4979 = vmatpush1.msra.mxu0 0.0
        %4980 = vmatprep.mubr.f32.mxu0 0.0
        %v4981 = vand.u32 %v4293, 4294901760
        %v4982 = vsub.f32 %v4293, %v4981
        %4983 = vmatmul.mubr.f32.gmra.mrb[0].mxu0 %v4982
        %v4984 = vpop.f32.mrb[0].mxu0
        %v4985 = vadd.f32 %v4909, %v4984
        %v4986 = vpop.f32.mrb[0].mxu0
        %4987 = vdwg.mxu0
        %4988 = vmatprep.subr.mxu0 0.0
        %v4989 = vand.u32 %v4286, 4294901760
        %4990 = vmatpush1.msra.mxu0 %v4989
        %4991 = vmatprep.subr.mxu0 0.0
        %v4992 = vand.u32 %v4287, 4294901760
        %4993 = vmatpush1.msra.mxu0 %v4992
        %4994 = vmatprep.subr.mxu0 0.0
        %4995 = vmatpush1.msra.mxu0 0.0
        %4996 = vmatprep.subr.mxu0 0.0
        %4997 = vmatpush1.msra.mxu0 0.0
        %4998 = vmatprep.subr.mxu0 0.0
        %4999 = vmatpush1.msra.mxu0 0.0
        %5000 = vmatprep.subr.mxu0 0.0
        %5001 = vmatpush1.msra.mxu0 0.0
        %5002 = vmatprep.subr.mxu0 0.0
        %5003 = vmatpush1.msra.mxu0 0.0
        %5004 = vmatprep.subr.mxu0 0.0
        %5005 = vmatpush1.msra.mxu0 0.0
        %5006 = vmatprep.subr.mxu0 0.0
        %5007 = vmatpush1.msra.mxu0 0.0
        %5008 = vmatprep.subr.mxu0 0.0
        %5009 = vmatpush1.msra.mxu0 0.0
        %5010 = vmatprep.subr.mxu0 0.0
        %5011 = vmatpush1.msra.mxu0 0.0
        %5012 = vmatprep.subr.mxu0 0.0
        %5013 = vmatpush1.msra.mxu0 0.0
        %5014 = vmatprep.subr.mxu0 0.0
        %5015 = vmatpush1.msra.mxu0 0.0
        %5016 = vmatprep.subr.mxu0 0.0
        %5017 = vmatpush1.msra.mxu0 0.0
        %5018 = vmatprep.subr.mxu0 0.0
        %5019 = vmatpush1.msra.mxu0 0.0
        %5020 = vmatprep.subr.mxu0 0.0
        %5021 = vmatpush1.msra.mxu0 0.0
        %5022 = vmatprep.subr.mxu0 0.0
        %5023 = vmatpush1.msra.mxu0 0.0
        %5024 = vmatprep.subr.mxu0 0.0
        %5025 = vmatpush1.msra.mxu0 0.0
        %5026 = vmatprep.subr.mxu0 0.0
        %5027 = vmatpush1.msra.mxu0 0.0
        %5028 = vmatprep.subr.mxu0 0.0
        %5029 = vmatpush1.msra.mxu0 0.0
        %5030 = vmatprep.subr.mxu0 0.0
        %5031 = vmatpush1.msra.mxu0 0.0
        %5032 = vmatprep.subr.mxu0 0.0
        %5033 = vmatpush1.msra.mxu0 0.0
        %5034 = vmatprep.subr.mxu0 0.0
        %5035 = vmatpush1.msra.mxu0 0.0
        %5036 = vmatprep.subr.mxu0 0.0
        %5037 = vmatpush1.msra.mxu0 0.0
        %5038 = vmatprep.subr.mxu0 0.0
        %5039 = vmatpush1.msra.mxu0 0.0
        %5040 = vmatprep.subr.mxu0 0.0
        %5041 = vmatpush1.msra.mxu0 0.0
        %5042 = vmatprep.subr.mxu0 0.0
        %5043 = vmatpush1.msra.mxu0 0.0
        %5044 = vmatprep.subr.mxu0 0.0
        %5045 = vmatpush1.msra.mxu0 0.0
        %5046 = vmatprep.subr.mxu0 0.0
        %5047 = vmatpush1.msra.mxu0 0.0
        %5048 = vmatprep.subr.mxu0 0.0
        %5049 = vmatpush1.msra.mxu0 0.0
        %5050 = vmatprep.subr.mxu0 0.0
        %5051 = vmatpush1.msra.mxu0 0.0
        %5052 = vmatprep.subr.mxu0 0.0
        %5053 = vmatpush1.msra.mxu0 0.0
        %5054 = vmatprep.mubr.f32.mxu0 0.0
        %v5055 = vand.u32 %v4293, 4294901760
        %v5056 = vsub.f32 %v4293, %v5055
        %v5057 = vand.u32 %v5056, 4294901760
        %5058 = vmatmul.mubr.f32.gmra.mrb[0].mxu0 %v5057
        %v5059 = vpop.f32.mrb[0].mxu0
        %v5060 = vadd.f32 %v4985, %v5059
        %v5061 = vpop.f32.mrb[0].mxu0
        %5062 = vdwg.mxu0
        %5063 = vmatprep.subr.mxu0 0.0
        %v5064 = vand.u32 %v4286, 4294901760
        %v5065 = vsub.f32 %v4286, %v5064
        %v5066 = vand.u32 %v5065, 4294901760
        %5067 = vmatpush1.msra.mxu0 %v5066
        %5068 = vmatprep.subr.mxu0 0.0
        %v5069 = vand.u32 %v4287, 4294901760
        %v5070 = vsub.f32 %v4287, %v5069
        %v5071 = vand.u32 %v5070, 4294901760
        %5072 = vmatpush1.msra.mxu0 %v5071
        %5073 = vmatprep.subr.mxu0 0.0
        %5074 = vmatpush1.msra.mxu0 0.0
        %5075 = vmatprep.subr.mxu0 0.0
        %5076 = vmatpush1.msra.mxu0 0.0
        %5077 = vmatprep.subr.mxu0 0.0
        %5078 = vmatpush1.msra.mxu0 0.0
        %5079 = vmatprep.subr.mxu0 0.0
        %5080 = vmatpush1.msra.mxu0 0.0
        %5081 = vmatprep.subr.mxu0 0.0
        %5082 = vmatpush1.msra.mxu0 0.0
        %5083 = vmatprep.subr.mxu0 0.0
        %5084 = vmatpush1.msra.mxu0 0.0
        %5085 = vmatprep.subr.mxu0 0.0
        %5086 = vmatpush1.msra.mxu0 0.0
        %5087 = vmatprep.subr.mxu0 0.0
        %5088 = vmatpush1.msra.mxu0 0.0
        %5089 = vmatprep.subr.mxu0 0.0
        %5090 = vmatpush1.msra.mxu0 0.0
        %5091 = vmatprep.subr.mxu0 0.0
        %5092 = vmatpush1.msra.mxu0 0.0
        %5093 = vmatprep.subr.mxu0 0.0
        %5094 = vmatpush1.msra.mxu0 0.0
        %5095 = vmatprep.subr.mxu0 0.0
        %5096 = vmatpush1.msra.mxu0 0.0
        %5097 = vmatprep.subr.mxu0 0.0
        %5098 = vmatpush1.msra.mxu0 0.0
        %5099 = vmatprep.subr.mxu0 0.0
        %5100 = vmatpush1.msra.mxu0 0.0
        %5101 = vmatprep.subr.mxu0 0.0
        %5102 = vmatpush1.msra.mxu0 0.0
        %5103 = vmatprep.subr.mxu0 0.0
        %5104 = vmatpush1.msra.mxu0 0.0
        %5105 = vmatprep.subr.mxu0 0.0
        %5106 = vmatpush1.msra.mxu0 0.0
        %5107 = vmatprep.subr.mxu0 0.0
        %5108 = vmatpush1.msra.mxu0 0.0
        %5109 = vmatprep.subr.mxu0 0.0
        %5110 = vmatpush1.msra.mxu0 0.0
        %5111 = vmatprep.subr.mxu0 0.0
        %5112 = vmatpush1.msra.mxu0 0.0
        %5113 = vmatprep.subr.mxu0 0.0
        %5114 = vmatpush1.msra.mxu0 0.0
        %5115 = vmatprep.subr.mxu0 0.0
        %5116 = vmatpush1.msra.mxu0 0.0
        %5117 = vmatprep.subr.mxu0 0.0
        %5118 = vmatpush1.msra.mxu0 0.0
        %5119 = vmatprep.subr.mxu0 0.0
        %5120 = vmatpush1.msra.mxu0 0.0
        %5121 = vmatprep.subr.mxu0 0.0
        %5122 = vmatpush1.msra.mxu0 0.0
        %5123 = vmatprep.subr.mxu0 0.0
        %5124 = vmatpush1.msra.mxu0 0.0
        %5125 = vmatprep.subr.mxu0 0.0
        %5126 = vmatpush1.msra.mxu0 0.0
        %5127 = vmatprep.subr.mxu0 0.0
        %5128 = vmatpush1.msra.mxu0 0.0
        %5129 = vmatprep.subr.mxu0 0.0
        %5130 = vmatpush1.msra.mxu0 0.0
        %5131 = vmatprep.subr.mxu0 0.0
        %5132 = vmatpush1.msra.mxu0 0.0
        %5133 = vmatprep.mubr.f32.mxu0 0.0
        %v5134 = vand.u32 %v4293, 4294901760
        %5135 = vmatmul.mubr.f32.gmra.mrb[0].mxu0 %v5134
        %v5136 = vpop.f32.mrb[0].mxu0
        %v5137 = vadd.f32 %v5060, %v5136
        %v5138 = vpop.f32.mrb[0].mxu0
        %5139 = vdwg.mxu0
        %5140 = vmatprep.subr.mxu0 0.0
        %v5141 = vand.u32 %v4286, 4294901760
        %5142 = vmatpush1.msra.mxu0 %v5141
        %5143 = vmatprep.subr.mxu0 0.0
        %v5144 = vand.u32 %v4287, 4294901760
        %5145 = vmatpush1.msra.mxu0 %v5144
        %5146 = vmatprep.subr.mxu0 0.0
        %5147 = vmatpush1.msra.mxu0 0.0
        %5148 = vmatprep.subr.mxu0 0.0
        %5149 = vmatpush1.msra.mxu0 0.0
        %5150 = vmatprep.subr.mxu0 0.0
        %5151 = vmatpush1.msra.mxu0 0.0
        %5152 = vmatprep.subr.mxu0 0.0
        %5153 = vmatpush1.msra.mxu0 0.0
        %5154 = vmatprep.subr.mxu0 0.0
        %5155 = vmatpush1.msra.mxu0 0.0
        %5156 = vmatprep.subr.mxu0 0.0
        %5157 = vmatpush1.msra.mxu0 0.0
        %5158 = vmatprep.subr.mxu0 0.0
        %5159 = vmatpush1.msra.mxu0 0.0
        %5160 = vmatprep.subr.mxu0 0.0
        %5161 = vmatpush1.msra.mxu0 0.0
        %5162 = vmatprep.subr.mxu0 0.0
        %5163 = vmatpush1.msra.mxu0 0.0
        %5164 = vmatprep.subr.mxu0 0.0
        %5165 = vmatpush1.msra.mxu0 0.0
        %5166 = vmatprep.subr.mxu0 0.0
        %5167 = vmatpush1.msra.mxu0 0.0
        %5168 = vmatprep.subr.mxu0 0.0
        %5169 = vmatpush1.msra.mxu0 0.0
        %5170 = vmatprep.subr.mxu0 0.0
        %5171 = vmatpush1.msra.mxu0 0.0
        %5172 = vmatprep.subr.mxu0 0.0
        %5173 = vmatpush1.msra.mxu0 0.0
        %5174 = vmatprep.subr.mxu0 0.0
        %5175 = vmatpush1.msra.mxu0 0.0
        %5176 = vmatprep.subr.mxu0 0.0
        %5177 = vmatpush1.msra.mxu0 0.0
        %5178 = vmatprep.subr.mxu0 0.0
        %5179 = vmatpush1.msra.mxu0 0.0
        %5180 = vmatprep.subr.mxu0 0.0
        %5181 = vmatpush1.msra.mxu0 0.0
        %5182 = vmatprep.subr.mxu0 0.0
        %5183 = vmatpush1.msra.mxu0 0.0
        %5184 = vmatprep.subr.mxu0 0.0
        %5185 = vmatpush1.msra.mxu0 0.0
        %5186 = vmatprep.subr.mxu0 0.0
        %5187 = vmatpush1.msra.mxu0 0.0
        %5188 = vmatprep.subr.mxu0 0.0
        %5189 = vmatpush1.msra.mxu0 0.0
        %5190 = vmatprep.subr.mxu0 0.0
        %5191 = vmatpush1.msra.mxu0 0.0
        %5192 = vmatprep.subr.mxu0 0.0
        %5193 = vmatpush1.msra.mxu0 0.0
        %5194 = vmatprep.subr.mxu0 0.0
        %5195 = vmatpush1.msra.mxu0 0.0
        %5196 = vmatprep.subr.mxu0 0.0
        %5197 = vmatpush1.msra.mxu0 0.0
        %5198 = vmatprep.subr.mxu0 0.0
        %5199 = vmatpush1.msra.mxu0 0.0
        %5200 = vmatprep.subr.mxu0 0.0
        %5201 = vmatpush1.msra.mxu0 0.0
        %5202 = vmatprep.subr.mxu0 0.0
        %5203 = vmatpush1.msra.mxu0 0.0
        %5204 = vmatprep.subr.mxu0 0.0
        %5205 = vmatpush1.msra.mxu0 0.0
        %5206 = vmatprep.mubr.f32.mxu0 0.0
        %v5207 = vand.u32 %v4293, 4294901760
        %5208 = vmatmul.mubr.f32.gmra.mrb[0].mxu0 %v5207
        %v5209 = vpop.f32.mrb[0].mxu0
        %v5210 = vadd.f32 %v5137, %v5209
        %v5211 = vpop.f32.mrb[0].mxu0
        %5212 = vdwg.mxu0
        %5213 = vmatprep.subr.mxu0 0.0
        %v5214 = vand.u32 %v4288, 4294901760
        %5215 = vmatpush1.msra.mxu0 %v5214
        %5216 = vmatprep.subr.mxu0 0.0
        %v5217 = vand.u32 %v4289, 4294901760
        %5218 = vmatpush1.msra.mxu0 %v5217
        %5219 = vmatprep.subr.mxu0 0.0
        %5220 = vmatpush1.msra.mxu0 0.0
        %5221 = vmatprep.subr.mxu0 0.0
        %5222 = vmatpush1.msra.mxu0 0.0
        %5223 = vmatprep.subr.mxu0 0.0
        %5224 = vmatpush1.msra.mxu0 0.0
        %5225 = vmatprep.subr.mxu0 0.0
        %5226 = vmatpush1.msra.mxu0 0.0
        %5227 = vmatprep.subr.mxu0 0.0
        %5228 = vmatpush1.msra.mxu0 0.0
        %5229 = vmatprep.subr.mxu0 0.0
        %5230 = vmatpush1.msra.mxu0 0.0
        %5231 = vmatprep.subr.mxu0 0.0
        %5232 = vmatpush1.msra.mxu0 0.0
        %5233 = vmatprep.subr.mxu0 0.0
        %5234 = vmatpush1.msra.mxu0 0.0
        %5235 = vmatprep.subr.mxu0 0.0
        %5236 = vmatpush1.msra.mxu0 0.0
        %5237 = vmatprep.subr.mxu0 0.0
        %5238 = vmatpush1.msra.mxu0 0.0
        %5239 = vmatprep.subr.mxu0 0.0
        %5240 = vmatpush1.msra.mxu0 0.0
        %5241 = vmatprep.subr.mxu0 0.0
        %5242 = vmatpush1.msra.mxu0 0.0
        %5243 = vmatprep.subr.mxu0 0.0
        %5244 = vmatpush1.msra.mxu0 0.0
        %5245 = vmatprep.subr.mxu0 0.0
        %5246 = vmatpush1.msra.mxu0 0.0
        %5247 = vmatprep.subr.mxu0 0.0
        %5248 = vmatpush1.msra.mxu0 0.0
        %5249 = vmatprep.subr.mxu0 0.0
        %5250 = vmatpush1.msra.mxu0 0.0
        %5251 = vmatprep.subr.mxu0 0.0
        %5252 = vmatpush1.msra.mxu0 0.0
        %5253 = vmatprep.subr.mxu0 0.0
        %5254 = vmatpush1.msra.mxu0 0.0
        %5255 = vmatprep.subr.mxu0 0.0
        %5256 = vmatpush1.msra.mxu0 0.0
        %5257 = vmatprep.subr.mxu0 0.0
        %5258 = vmatpush1.msra.mxu0 0.0
        %5259 = vmatprep.subr.mxu0 0.0
        %5260 = vmatpush1.msra.mxu0 0.0
        %5261 = vmatprep.subr.mxu0 0.0
        %5262 = vmatpush1.msra.mxu0 0.0
        %5263 = vmatprep.subr.mxu0 0.0
        %5264 = vmatpush1.msra.mxu0 0.0
        %5265 = vmatprep.subr.mxu0 0.0
        %5266 = vmatpush1.msra.mxu0 0.0
        %5267 = vmatprep.subr.mxu0 0.0
        %5268 = vmatpush1.msra.mxu0 0.0
        %5269 = vmatprep.subr.mxu0 0.0
        %5270 = vmatpush1.msra.mxu0 0.0
        %5271 = vmatprep.subr.mxu0 0.0
        %5272 = vmatpush1.msra.mxu0 0.0
        %5273 = vmatprep.subr.mxu0 0.0
        %5274 = vmatpush1.msra.mxu0 0.0
        %5275 = vmatprep.subr.mxu0 0.0
        %5276 = vmatpush1.msra.mxu0 0.0
        %5277 = vmatprep.subr.mxu0 0.0
        %5278 = vmatpush1.msra.mxu0 0.0
        %5279 = vmatprep.mubr.f32.mxu0 0.0
        %v5280 = vand.u32 %v4293, 4294901760
        %v5281 = vsub.f32 %v4293, %v5280
        %v5282 = vand.u32 %v5281, 4294901760
        %v5283 = vsub.f32 %v5281, %v5282
        %v5284 = vand.u32 %v5283, 4294901760
        %5285 = vmatmul.mubr.f32.gmra.mrb[0].mxu0 %v5284
        %v5286 = vpop.f32.mrb[0].mxu0
        %v5287 = vadd.f32 0.0, %v5286
        %v5288 = vpop.f32.mrb[0].mxu0
        %5289 = vdwg.mxu0
        %5290 = vmatprep.subr.mxu0 0.0
        %v5291 = vand.u32 %v4288, 4294901760
        %v5292 = vsub.f32 %v4288, %v5291
        %v5293 = vand.u32 %v5292, 4294901760
        %v5294 = vsub.f32 %v5292, %v5293
        %v5295 = vand.u32 %v5294, 4294901760
        %5296 = vmatpush1.msra.mxu0 %v5295
        %5297 = vmatprep.subr.mxu0 0.0
        %v5298 = vand.u32 %v4289, 4294901760
        %v5299 = vsub.f32 %v4289, %v5298
        %v5300 = vand.u32 %v5299, 4294901760
        %v5301 = vsub.f32 %v5299, %v5300
        %v5302 = vand.u32 %v5301, 4294901760
        %5303 = vmatpush1.msra.mxu0 %v5302
        %5304 = vmatprep.subr.mxu0 0.0
        %5305 = vmatpush1.msra.mxu0 0.0
        %5306 = vmatprep.subr.mxu0 0.0
        %5307 = vmatpush1.msra.mxu0 0.0
        %5308 = vmatprep.subr.mxu0 0.0
        %5309 = vmatpush1.msra.mxu0 0.0
        %5310 = vmatprep.subr.mxu0 0.0
        %5311 = vmatpush1.msra.mxu0 0.0
        %5312 = vmatprep.subr.mxu0 0.0
        %5313 = vmatpush1.msra.mxu0 0.0
        %5314 = vmatprep.subr.mxu0 0.0
        %5315 = vmatpush1.msra.mxu0 0.0
        %5316 = vmatprep.subr.mxu0 0.0
        %5317 = vmatpush1.msra.mxu0 0.0
        %5318 = vmatprep.subr.mxu0 0.0
        %5319 = vmatpush1.msra.mxu0 0.0
        %5320 = vmatprep.subr.mxu0 0.0
        %5321 = vmatpush1.msra.mxu0 0.0
        %5322 = vmatprep.subr.mxu0 0.0
        %5323 = vmatpush1.msra.mxu0 0.0
        %5324 = vmatprep.subr.mxu0 0.0
        %5325 = vmatpush1.msra.mxu0 0.0
        %5326 = vmatprep.subr.mxu0 0.0
        %5327 = vmatpush1.msra.mxu0 0.0
        %5328 = vmatprep.subr.mxu0 0.0
        %5329 = vmatpush1.msra.mxu0 0.0
        %5330 = vmatprep.subr.mxu0 0.0
        %5331 = vmatpush1.msra.mxu0 0.0
        %5332 = vmatprep.subr.mxu0 0.0
        %5333 = vmatpush1.msra.mxu0 0.0
        %5334 = vmatprep.subr.mxu0 0.0
        %5335 = vmatpush1.msra.mxu0 0.0
        %5336 = vmatprep.subr.mxu0 0.0
        %5337 = vmatpush1.msra.mxu0 0.0
        %5338 = vmatprep.subr.mxu0 0.0
        %5339 = vmatpush1.msra.mxu0 0.0
        %5340 = vmatprep.subr.mxu0 0.0
        %5341 = vmatpush1.msra.mxu0 0.0
        %5342 = vmatprep.subr.mxu0 0.0
        %5343 = vmatpush1.msra.mxu0 0.0
        %5344 = vmatprep.subr.mxu0 0.0
        %5345 = vmatpush1.msra.mxu0 0.0
        %5346 = vmatprep.subr.mxu0 0.0
        %5347 = vmatpush1.msra.mxu0 0.0
        %5348 = vmatprep.subr.mxu0 0.0
        %5349 = vmatpush1.msra.mxu0 0.0
        %5350 = vmatprep.subr.mxu0 0.0
        %5351 = vmatpush1.msra.mxu0 0.0
        %5352 = vmatprep.subr.mxu0 0.0
        %5353 = vmatpush1.msra.mxu0 0.0
        %5354 = vmatprep.subr.mxu0 0.0
        %5355 = vmatpush1.msra.mxu0 0.0
        %5356 = vmatprep.subr.mxu0 0.0
        %5357 = vmatpush1.msra.mxu0 0.0
        %5358 = vmatprep.subr.mxu0 0.0
        %5359 = vmatpush1.msra.mxu0 0.0
        %5360 = vmatprep.subr.mxu0 0.0
        %5361 = vmatpush1.msra.mxu0 0.0
        %5362 = vmatprep.subr.mxu0 0.0
        %5363 = vmatpush1.msra.mxu0 0.0
        %5364 = vmatprep.mubr.f32.mxu0 0.0
        %v5365 = vand.u32 %v4293, 4294901760
        %5366 = vmatmul.mubr.f32.gmra.mrb[0].mxu0 %v5365
        %v5367 = vpop.f32.mrb[0].mxu0
        %v5368 = vadd.f32 %v5287, %v5367
        %v5369 = vpop.f32.mrb[0].mxu0
        %5370 = vdwg.mxu0
        %5371 = vmatprep.subr.mxu0 0.0
        %v5372 = vand.u32 %v4288, 4294901760
        %v5373 = vsub.f32 %v4288, %v5372
        %5374 = vmatpush1.msra.mxu0 %v5373
        %5375 = vmatprep.subr.mxu0 0.0
        %v5376 = vand.u32 %v4289, 4294901760
        %v5377 = vsub.f32 %v4289, %v5376
        %5378 = vmatpush1.msra.mxu0 %v5377
        %5379 = vmatprep.subr.mxu0 0.0
        %5380 = vmatpush1.msra.mxu0 0.0
        %5381 = vmatprep.subr.mxu0 0.0
        %5382 = vmatpush1.msra.mxu0 0.0
        %5383 = vmatprep.subr.mxu0 0.0
        %5384 = vmatpush1.msra.mxu0 0.0
        %5385 = vmatprep.subr.mxu0 0.0
        %5386 = vmatpush1.msra.mxu0 0.0
        %5387 = vmatprep.subr.mxu0 0.0
        %5388 = vmatpush1.msra.mxu0 0.0
        %5389 = vmatprep.subr.mxu0 0.0
        %5390 = vmatpush1.msra.mxu0 0.0
        %5391 = vmatprep.subr.mxu0 0.0
        %5392 = vmatpush1.msra.mxu0 0.0
        %5393 = vmatprep.subr.mxu0 0.0
        %5394 = vmatpush1.msra.mxu0 0.0
        %5395 = vmatprep.subr.mxu0 0.0
        %5396 = vmatpush1.msra.mxu0 0.0
        %5397 = vmatprep.subr.mxu0 0.0
        %5398 = vmatpush1.msra.mxu0 0.0
        %5399 = vmatprep.subr.mxu0 0.0
        %5400 = vmatpush1.msra.mxu0 0.0
        %5401 = vmatprep.subr.mxu0 0.0
        %5402 = vmatpush1.msra.mxu0 0.0
        %5403 = vmatprep.subr.mxu0 0.0
        %5404 = vmatpush1.msra.mxu0 0.0
        %5405 = vmatprep.subr.mxu0 0.0
        %5406 = vmatpush1.msra.mxu0 0.0
        %5407 = vmatprep.subr.mxu0 0.0
        %5408 = vmatpush1.msra.mxu0 0.0
        %5409 = vmatprep.subr.mxu0 0.0
        %5410 = vmatpush1.msra.mxu0 0.0
        %5411 = vmatprep.subr.mxu0 0.0
        %5412 = vmatpush1.msra.mxu0 0.0
        %5413 = vmatprep.subr.mxu0 0.0
        %5414 = vmatpush1.msra.mxu0 0.0
        %5415 = vmatprep.subr.mxu0 0.0
        %5416 = vmatpush1.msra.mxu0 0.0
        %5417 = vmatprep.subr.mxu0 0.0
        %5418 = vmatpush1.msra.mxu0 0.0
        %5419 = vmatprep.subr.mxu0 0.0
        %5420 = vmatpush1.msra.mxu0 0.0
        %5421 = vmatprep.subr.mxu0 0.0
        %5422 = vmatpush1.msra.mxu0 0.0
        %5423 = vmatprep.subr.mxu0 0.0
        %5424 = vmatpush1.msra.mxu0 0.0
        %5425 = vmatprep.subr.mxu0 0.0
        %5426 = vmatpush1.msra.mxu0 0.0
        %5427 = vmatprep.subr.mxu0 0.0
        %5428 = vmatpush1.msra.mxu0 0.0
        %5429 = vmatprep.subr.mxu0 0.0
        %5430 = vmatpush1.msra.mxu0 0.0
        %5431 = vmatprep.subr.mxu0 0.0
        %5432 = vmatpush1.msra.mxu0 0.0
        %5433 = vmatprep.subr.mxu0 0.0
        %5434 = vmatpush1.msra.mxu0 0.0
        %5435 = vmatprep.subr.mxu0 0.0
        %5436 = vmatpush1.msra.mxu0 0.0
        %5437 = vmatprep.subr.mxu0 0.0
        %5438 = vmatpush1.msra.mxu0 0.0
        %5439 = vmatprep.mubr.f32.mxu0 0.0
        %v5440 = vand.u32 %v4293, 4294901760
        %v5441 = vsub.f32 %v4293, %v5440
        %5442 = vmatmul.mubr.f32.gmra.mrb[0].mxu0 %v5441
        %v5443 = vpop.f32.mrb[0].mxu0
        %v5444 = vadd.f32 %v5368, %v5443
        %v5445 = vpop.f32.mrb[0].mxu0
        %5446 = vdwg.mxu0
        %5447 = vmatprep.subr.mxu0 0.0
        %v5448 = vand.u32 %v4288, 4294901760
        %5449 = vmatpush1.msra.mxu0 %v5448
        %5450 = vmatprep.subr.mxu0 0.0
        %v5451 = vand.u32 %v4289, 4294901760
        %5452 = vmatpush1.msra.mxu0 %v5451
        %5453 = vmatprep.subr.mxu0 0.0
        %5454 = vmatpush1.msra.mxu0 0.0
        %5455 = vmatprep.subr.mxu0 0.0
        %5456 = vmatpush1.msra.mxu0 0.0
        %5457 = vmatprep.subr.mxu0 0.0
        %5458 = vmatpush1.msra.mxu0 0.0
        %5459 = vmatprep.subr.mxu0 0.0
        %5460 = vmatpush1.msra.mxu0 0.0
        %5461 = vmatprep.subr.mxu0 0.0
        %5462 = vmatpush1.msra.mxu0 0.0
        %5463 = vmatprep.subr.mxu0 0.0
        %5464 = vmatpush1.msra.mxu0 0.0
        %5465 = vmatprep.subr.mxu0 0.0
        %5466 = vmatpush1.msra.mxu0 0.0
        %5467 = vmatprep.subr.mxu0 0.0
        %5468 = vmatpush1.msra.mxu0 0.0
        %5469 = vmatprep.subr.mxu0 0.0
        %5470 = vmatpush1.msra.mxu0 0.0
        %5471 = vmatprep.subr.mxu0 0.0
        %5472 = vmatpush1.msra.mxu0 0.0
        %5473 = vmatprep.subr.mxu0 0.0
        %5474 = vmatpush1.msra.mxu0 0.0
        %5475 = vmatprep.subr.mxu0 0.0
        %5476 = vmatpush1.msra.mxu0 0.0
        %5477 = vmatprep.subr.mxu0 0.0
        %5478 = vmatpush1.msra.mxu0 0.0
        %5479 = vmatprep.subr.mxu0 0.0
        %5480 = vmatpush1.msra.mxu0 0.0
        %5481 = vmatprep.subr.mxu0 0.0
        %5482 = vmatpush1.msra.mxu0 0.0
        %5483 = vmatprep.subr.mxu0 0.0
        %5484 = vmatpush1.msra.mxu0 0.0
        %5485 = vmatprep.subr.mxu0 0.0
        %5486 = vmatpush1.msra.mxu0 0.0
        %5487 = vmatprep.subr.mxu0 0.0
        %5488 = vmatpush1.msra.mxu0 0.0
        %5489 = vmatprep.subr.mxu0 0.0
        %5490 = vmatpush1.msra.mxu0 0.0
        %5491 = vmatprep.subr.mxu0 0.0
        %5492 = vmatpush1.msra.mxu0 0.0
        %5493 = vmatprep.subr.mxu0 0.0
        %5494 = vmatpush1.msra.mxu0 0.0
        %5495 = vmatprep.subr.mxu0 0.0
        %5496 = vmatpush1.msra.mxu0 0.0
        %5497 = vmatprep.subr.mxu0 0.0
        %5498 = vmatpush1.msra.mxu0 0.0
        %5499 = vmatprep.subr.mxu0 0.0
        %5500 = vmatpush1.msra.mxu0 0.0
        %5501 = vmatprep.subr.mxu0 0.0
        %5502 = vmatpush1.msra.mxu0 0.0
        %5503 = vmatprep.subr.mxu0 0.0
        %5504 = vmatpush1.msra.mxu0 0.0
        %5505 = vmatprep.subr.mxu0 0.0
        %5506 = vmatpush1.msra.mxu0 0.0
        %5507 = vmatprep.subr.mxu0 0.0
        %5508 = vmatpush1.msra.mxu0 0.0
        %5509 = vmatprep.subr.mxu0 0.0
        %5510 = vmatpush1.msra.mxu0 0.0
        %5511 = vmatprep.subr.mxu0 0.0
        %5512 = vmatpush1.msra.mxu0 0.0
        %5513 = vmatprep.mubr.f32.mxu0 0.0
        %v5514 = vand.u32 %v4293, 4294901760
        %v5515 = vsub.f32 %v4293, %v5514
        %v5516 = vand.u32 %v5515, 4294901760
        %5517 = vmatmul.mubr.f32.gmra.mrb[0].mxu0 %v5516
        %v5518 = vpop.f32.mrb[0].mxu0
        %v5519 = vadd.f32 %v5444, %v5518
        %v5520 = vpop.f32.mrb[0].mxu0
        %5521 = vdwg.mxu0
        %5522 = vmatprep.subr.mxu0 0.0
        %v5523 = vand.u32 %v4288, 4294901760
        %v5524 = vsub.f32 %v4288, %v5523
        %v5525 = vand.u32 %v5524, 4294901760
        %5526 = vmatpush1.msra.mxu0 %v5525
        %5527 = vmatprep.subr.mxu0 0.0
        %v5528 = vand.u32 %v4289, 4294901760
        %v5529 = vsub.f32 %v4289, %v5528
        %v5530 = vand.u32 %v5529, 4294901760
        %5531 = vmatpush1.msra.mxu0 %v5530
        %5532 = vmatprep.subr.mxu0 0.0
        %5533 = vmatpush1.msra.mxu0 0.0
        %5534 = vmatprep.subr.mxu0 0.0
        %5535 = vmatpush1.msra.mxu0 0.0
        %5536 = vmatprep.subr.mxu0 0.0
        %5537 = vmatpush1.msra.mxu0 0.0
        %5538 = vmatprep.subr.mxu0 0.0
        %5539 = vmatpush1.msra.mxu0 0.0
        %5540 = vmatprep.subr.mxu0 0.0
        %5541 = vmatpush1.msra.mxu0 0.0
        %5542 = vmatprep.subr.mxu0 0.0
        %5543 = vmatpush1.msra.mxu0 0.0
        %5544 = vmatprep.subr.mxu0 0.0
        %5545 = vmatpush1.msra.mxu0 0.0
        %5546 = vmatprep.subr.mxu0 0.0
        %5547 = vmatpush1.msra.mxu0 0.0
        %5548 = vmatprep.subr.mxu0 0.0
        %5549 = vmatpush1.msra.mxu0 0.0
        %5550 = vmatprep.subr.mxu0 0.0
        %5551 = vmatpush1.msra.mxu0 0.0
        %5552 = vmatprep.subr.mxu0 0.0
        %5553 = vmatpush1.msra.mxu0 0.0
        %5554 = vmatprep.subr.mxu0 0.0
        %5555 = vmatpush1.msra.mxu0 0.0
        %5556 = vmatprep.subr.mxu0 0.0
        %5557 = vmatpush1.msra.mxu0 0.0
        %5558 = vmatprep.subr.mxu0 0.0
        %5559 = vmatpush1.msra.mxu0 0.0
        %5560 = vmatprep.subr.mxu0 0.0
        %5561 = vmatpush1.msra.mxu0 0.0
        %5562 = vmatprep.subr.mxu0 0.0
        %5563 = vmatpush1.msra.mxu0 0.0
        %5564 = vmatprep.subr.mxu0 0.0
        %5565 = vmatpush1.msra.mxu0 0.0
        %5566 = vmatprep.subr.mxu0 0.0
        %5567 = vmatpush1.msra.mxu0 0.0
        %5568 = vmatprep.subr.mxu0 0.0
        %5569 = vmatpush1.msra.mxu0 0.0
        %5570 = vmatprep.subr.mxu0 0.0
        %5571 = vmatpush1.msra.mxu0 0.0
        %5572 = vmatprep.subr.mxu0 0.0
        %5573 = vmatpush1.msra.mxu0 0.0
        %5574 = vmatprep.subr.mxu0 0.0
        %5575 = vmatpush1.msra.mxu0 0.0
        %5576 = vmatprep.subr.mxu0 0.0
        %5577 = vmatpush1.msra.mxu0 0.0
        %5578 = vmatprep.subr.mxu0 0.0
        %5579 = vmatpush1.msra.mxu0 0.0
        %5580 = vmatprep.subr.mxu0 0.0
        %5581 = vmatpush1.msra.mxu0 0.0
        %5582 = vmatprep.subr.mxu0 0.0
        %5583 = vmatpush1.msra.mxu0 0.0
        %5584 = vmatprep.subr.mxu0 0.0
        %5585 = vmatpush1.msra.mxu0 0.0
        %5586 = vmatprep.subr.mxu0 0.0
        %5587 = vmatpush1.msra.mxu0 0.0
        %5588 = vmatprep.subr.mxu0 0.0
        %5589 = vmatpush1.msra.mxu0 0.0
        %5590 = vmatprep.subr.mxu0 0.0
        %5591 = vmatpush1.msra.mxu0 0.0
        %5592 = vmatprep.mubr.f32.mxu0 0.0
        %v5593 = vand.u32 %v4293, 4294901760
        %5594 = vmatmul.mubr.f32.gmra.mrb[0].mxu0 %v5593
        %v5595 = vpop.f32.mrb[0].mxu0
        %v5596 = vadd.f32 %v5519, %v5595
        %v5597 = vpop.f32.mrb[0].mxu0
        %5598 = vdwg.mxu0
        %5599 = vmatprep.subr.mxu0 0.0
        %v5600 = vand.u32 %v4288, 4294901760
        %5601 = vmatpush1.msra.mxu0 %v5600
        %5602 = vmatprep.subr.mxu0 0.0
        %v5603 = vand.u32 %v4289, 4294901760
        %5604 = vmatpush1.msra.mxu0 %v5603
        %5605 = vmatprep.subr.mxu0 0.0
        %5606 = vmatpush1.msra.mxu0 0.0
        %5607 = vmatprep.subr.mxu0 0.0
        %5608 = vmatpush1.msra.mxu0 0.0
        %5609 = vmatprep.subr.mxu0 0.0
        %5610 = vmatpush1.msra.mxu0 0.0
        %5611 = vmatprep.subr.mxu0 0.0
        %5612 = vmatpush1.msra.mxu0 0.0
        %5613 = vmatprep.subr.mxu0 0.0
        %5614 = vmatpush1.msra.mxu0 0.0
        %5615 = vmatprep.subr.mxu0 0.0
        %5616 = vmatpush1.msra.mxu0 0.0
        %5617 = vmatprep.subr.mxu0 0.0
        %5618 = vmatpush1.msra.mxu0 0.0
        %5619 = vmatprep.subr.mxu0 0.0
        %5620 = vmatpush1.msra.mxu0 0.0
        %5621 = vmatprep.subr.mxu0 0.0
        %5622 = vmatpush1.msra.mxu0 0.0
        %5623 = vmatprep.subr.mxu0 0.0
        %5624 = vmatpush1.msra.mxu0 0.0
        %5625 = vmatprep.subr.mxu0 0.0
        %5626 = vmatpush1.msra.mxu0 0.0
        %5627 = vmatprep.subr.mxu0 0.0
        %5628 = vmatpush1.msra.mxu0 0.0
        %5629 = vmatprep.subr.mxu0 0.0
        %5630 = vmatpush1.msra.mxu0 0.0
        %5631 = vmatprep.subr.mxu0 0.0
        %5632 = vmatpush1.msra.mxu0 0.0
        %5633 = vmatprep.subr.mxu0 0.0
        %5634 = vmatpush1.msra.mxu0 0.0
        %5635 = vmatprep.subr.mxu0 0.0
        %5636 = vmatpush1.msra.mxu0 0.0
        %5637 = vmatprep.subr.mxu0 0.0
        %5638 = vmatpush1.msra.mxu0 0.0
        %5639 = vmatprep.subr.mxu0 0.0
        %5640 = vmatpush1.msra.mxu0 0.0
        %5641 = vmatprep.subr.mxu0 0.0
        %5642 = vmatpush1.msra.mxu0 0.0
        %5643 = vmatprep.subr.mxu0 0.0
        %5644 = vmatpush1.msra.mxu0 0.0
        %5645 = vmatprep.subr.mxu0 0.0
        %5646 = vmatpush1.msra.mxu0 0.0
        %5647 = vmatprep.subr.mxu0 0.0
        %5648 = vmatpush1.msra.mxu0 0.0
        %5649 = vmatprep.subr.mxu0 0.0
        %5650 = vmatpush1.msra.mxu0 0.0
        %5651 = vmatprep.subr.mxu0 0.0
        %5652 = vmatpush1.msra.mxu0 0.0
        %5653 = vmatprep.subr.mxu0 0.0
        %5654 = vmatpush1.msra.mxu0 0.0
        %5655 = vmatprep.subr.mxu0 0.0
        %5656 = vmatpush1.msra.mxu0 0.0
        %5657 = vmatprep.subr.mxu0 0.0
        %5658 = vmatpush1.msra.mxu0 0.0
        %5659 = vmatprep.subr.mxu0 0.0
        %5660 = vmatpush1.msra.mxu0 0.0
        %5661 = vmatprep.subr.mxu0 0.0
        %5662 = vmatpush1.msra.mxu0 0.0
        %5663 = vmatprep.subr.mxu0 0.0
        %5664 = vmatpush1.msra.mxu0 0.0
        %5665 = vmatprep.mubr.f32.mxu0 0.0
        %v5666 = vand.u32 %v4293, 4294901760
        %5667 = vmatmul.mubr.f32.gmra.mrb[0].mxu0 %v5666
        %v5668 = vpop.f32.mrb[0].mxu0
        %v5669 = vadd.f32 %v5596, %v5668
        %v5670 = vpop.f32.mrb[0].mxu0
        %5671 = vdwg.mxu0
        %5672 = vmatprep.subr.mxu0 0.0
        %v5673 = vand.u32 %v4290, 4294901760
        %5674 = vmatpush1.msra.mxu0 %v5673
        %5675 = vmatprep.subr.mxu0 0.0
        %v5676 = vand.u32 %v4291, 4294901760
        %5677 = vmatpush1.msra.mxu0 %v5676
        %5678 = vmatprep.subr.mxu0 0.0
        %5679 = vmatpush1.msra.mxu0 0.0
        %5680 = vmatprep.subr.mxu0 0.0
        %5681 = vmatpush1.msra.mxu0 0.0
        %5682 = vmatprep.subr.mxu0 0.0
        %5683 = vmatpush1.msra.mxu0 0.0
        %5684 = vmatprep.subr.mxu0 0.0
        %5685 = vmatpush1.msra.mxu0 0.0
        %5686 = vmatprep.subr.mxu0 0.0
        %5687 = vmatpush1.msra.mxu0 0.0
        %5688 = vmatprep.subr.mxu0 0.0
        %5689 = vmatpush1.msra.mxu0 0.0
        %5690 = vmatprep.subr.mxu0 0.0
        %5691 = vmatpush1.msra.mxu0 0.0
        %5692 = vmatprep.subr.mxu0 0.0
        %5693 = vmatpush1.msra.mxu0 0.0
        %5694 = vmatprep.subr.mxu0 0.0
        %5695 = vmatpush1.msra.mxu0 0.0
        %5696 = vmatprep.subr.mxu0 0.0
        %5697 = vmatpush1.msra.mxu0 0.0
        %5698 = vmatprep.subr.mxu0 0.0
        %5699 = vmatpush1.msra.mxu0 0.0
        %5700 = vmatprep.subr.mxu0 0.0
        %5701 = vmatpush1.msra.mxu0 0.0
        %5702 = vmatprep.subr.mxu0 0.0
        %5703 = vmatpush1.msra.mxu0 0.0
        %5704 = vmatprep.subr.mxu0 0.0
        %5705 = vmatpush1.msra.mxu0 0.0
        %5706 = vmatprep.subr.mxu0 0.0
        %5707 = vmatpush1.msra.mxu0 0.0
        %5708 = vmatprep.subr.mxu0 0.0
        %5709 = vmatpush1.msra.mxu0 0.0
        %5710 = vmatprep.subr.mxu0 0.0
        %5711 = vmatpush1.msra.mxu0 0.0
        %5712 = vmatprep.subr.mxu0 0.0
        %5713 = vmatpush1.msra.mxu0 0.0
        %5714 = vmatprep.subr.mxu0 0.0
        %5715 = vmatpush1.msra.mxu0 0.0
        %5716 = vmatprep.subr.mxu0 0.0
        %5717 = vmatpush1.msra.mxu0 0.0
        %5718 = vmatprep.subr.mxu0 0.0
        %5719 = vmatpush1.msra.mxu0 0.0
        %5720 = vmatprep.subr.mxu0 0.0
        %5721 = vmatpush1.msra.mxu0 0.0
        %5722 = vmatprep.subr.mxu0 0.0
        %5723 = vmatpush1.msra.mxu0 0.0
        %5724 = vmatprep.subr.mxu0 0.0
        %5725 = vmatpush1.msra.mxu0 0.0
        %5726 = vmatprep.subr.mxu0 0.0
        %5727 = vmatpush1.msra.mxu0 0.0
        %5728 = vmatprep.subr.mxu0 0.0
        %5729 = vmatpush1.msra.mxu0 0.0
        %5730 = vmatprep.subr.mxu0 0.0
        %5731 = vmatpush1.msra.mxu0 0.0
        %5732 = vmatprep.subr.mxu0 0.0
        %5733 = vmatpush1.msra.mxu0 0.0
        %5734 = vmatprep.subr.mxu0 0.0
        %5735 = vmatpush1.msra.mxu0 0.0
        %5736 = vmatprep.subr.mxu0 0.0
        %5737 = vmatpush1.msra.mxu0 0.0
        %5738 = vmatprep.mubr.f32.mxu0 0.0
        %v5739 = vand.u32 %v4293, 4294901760
        %v5740 = vsub.f32 %v4293, %v5739
        %v5741 = vand.u32 %v5740, 4294901760
        %v5742 = vsub.f32 %v5740, %v5741
        %v5743 = vand.u32 %v5742, 4294901760
        %5744 = vmatmul.mubr.f32.gmra.mrb[0].mxu0 %v5743
        %v5745 = vpop.f32.mrb[0].mxu0
        %v5746 = vadd.f32 0.0, %v5745
        %v5747 = vpop.f32.mrb[0].mxu0
        %5748 = vdwg.mxu0
        %5749 = vmatprep.subr.mxu0 0.0
        %v5750 = vand.u32 %v4290, 4294901760
        %v5751 = vsub.f32 %v4290, %v5750
        %v5752 = vand.u32 %v5751, 4294901760
        %v5753 = vsub.f32 %v5751, %v5752
        %v5754 = vand.u32 %v5753, 4294901760
        %5755 = vmatpush1.msra.mxu0 %v5754
        %5756 = vmatprep.subr.mxu0 0.0
        %v5757 = vand.u32 %v4291, 4294901760
        %v5758 = vsub.f32 %v4291, %v5757
        %v5759 = vand.u32 %v5758, 4294901760
        %v5760 = vsub.f32 %v5758, %v5759
        %v5761 = vand.u32 %v5760, 4294901760
        %5762 = vmatpush1.msra.mxu0 %v5761
        %5763 = vmatprep.subr.mxu0 0.0
        %5764 = vmatpush1.msra.mxu0 0.0
        %5765 = vmatprep.subr.mxu0 0.0
        %5766 = vmatpush1.msra.mxu0 0.0
        %5767 = vmatprep.subr.mxu0 0.0
        %5768 = vmatpush1.msra.mxu0 0.0
        %5769 = vmatprep.subr.mxu0 0.0
        %5770 = vmatpush1.msra.mxu0 0.0
        %5771 = vmatprep.subr.mxu0 0.0
        %5772 = vmatpush1.msra.mxu0 0.0
        %5773 = vmatprep.subr.mxu0 0.0
        %5774 = vmatpush1.msra.mxu0 0.0
        %5775 = vmatprep.subr.mxu0 0.0
        %5776 = vmatpush1.msra.mxu0 0.0
        %5777 = vmatprep.subr.mxu0 0.0
        %5778 = vmatpush1.msra.mxu0 0.0
        %5779 = vmatprep.subr.mxu0 0.0
        %5780 = vmatpush1.msra.mxu0 0.0
        %5781 = vmatprep.subr.mxu0 0.0
        %5782 = vmatpush1.msra.mxu0 0.0
        %5783 = vmatprep.subr.mxu0 0.0
        %5784 = vmatpush1.msra.mxu0 0.0
        %5785 = vmatprep.subr.mxu0 0.0
        %5786 = vmatpush1.msra.mxu0 0.0
        %5787 = vmatprep.subr.mxu0 0.0
        %5788 = vmatpush1.msra.mxu0 0.0
        %5789 = vmatprep.subr.mxu0 0.0
        %5790 = vmatpush1.msra.mxu0 0.0
        %5791 = vmatprep.subr.mxu0 0.0
        %5792 = vmatpush1.msra.mxu0 0.0
        %5793 = vmatprep.subr.mxu0 0.0
        %5794 = vmatpush1.msra.mxu0 0.0
        %5795 = vmatprep.subr.mxu0 0.0
        %5796 = vmatpush1.msra.mxu0 0.0
        %5797 = vmatprep.subr.mxu0 0.0
        %5798 = vmatpush1.msra.mxu0 0.0
        %5799 = vmatprep.subr.mxu0 0.0
        %5800 = vmatpush1.msra.mxu0 0.0
        %5801 = vmatprep.subr.mxu0 0.0
        %5802 = vmatpush1.msra.mxu0 0.0
        %5803 = vmatprep.subr.mxu0 0.0
        %5804 = vmatpush1.msra.mxu0 0.0
        %5805 = vmatprep.subr.mxu0 0.0
        %5806 = vmatpush1.msra.mxu0 0.0
        %5807 = vmatprep.subr.mxu0 0.0
        %5808 = vmatpush1.msra.mxu0 0.0
        %5809 = vmatprep.subr.mxu0 0.0
        %5810 = vmatpush1.msra.mxu0 0.0
        %5811 = vmatprep.subr.mxu0 0.0
        %5812 = vmatpush1.msra.mxu0 0.0
        %5813 = vmatprep.subr.mxu0 0.0
        %5814 = vmatpush1.msra.mxu0 0.0
        %5815 = vmatprep.subr.mxu0 0.0
        %5816 = vmatpush1.msra.mxu0 0.0
        %5817 = vmatprep.subr.mxu0 0.0
        %5818 = vmatpush1.msra.mxu0 0.0
        %5819 = vmatprep.subr.mxu0 0.0
        %5820 = vmatpush1.msra.mxu0 0.0
        %5821 = vmatprep.subr.mxu0 0.0
        %5822 = vmatpush1.msra.mxu0 0.0
        %5823 = vmatprep.mubr.f32.mxu0 0.0
        %v5824 = vand.u32 %v4293, 4294901760
        %5825 = vmatmul.mubr.f32.gmra.mrb[0].mxu0 %v5824
        %v5826 = vpop.f32.mrb[0].mxu0
        %v5827 = vadd.f32 %v5746, %v5826
        %v5828 = vpop.f32.mrb[0].mxu0
        %5829 = vdwg.mxu0
        %5830 = vmatprep.subr.mxu0 0.0
        %v5831 = vand.u32 %v4290, 4294901760
        %v5832 = vsub.f32 %v4290, %v5831
        %5833 = vmatpush1.msra.mxu0 %v5832
        %5834 = vmatprep.subr.mxu0 0.0
        %v5835 = vand.u32 %v4291, 4294901760
        %v5836 = vsub.f32 %v4291, %v5835
        %5837 = vmatpush1.msra.mxu0 %v5836
        %5838 = vmatprep.subr.mxu0 0.0
        %5839 = vmatpush1.msra.mxu0 0.0
        %5840 = vmatprep.subr.mxu0 0.0
        %5841 = vmatpush1.msra.mxu0 0.0
        %5842 = vmatprep.subr.mxu0 0.0
        %5843 = vmatpush1.msra.mxu0 0.0
        %5844 = vmatprep.subr.mxu0 0.0
        %5845 = vmatpush1.msra.mxu0 0.0
        %5846 = vmatprep.subr.mxu0 0.0
        %5847 = vmatpush1.msra.mxu0 0.0
        %5848 = vmatprep.subr.mxu0 0.0
        %5849 = vmatpush1.msra.mxu0 0.0
        %5850 = vmatprep.subr.mxu0 0.0
        %5851 = vmatpush1.msra.mxu0 0.0
        %5852 = vmatprep.subr.mxu0 0.0
        %5853 = vmatpush1.msra.mxu0 0.0
        %5854 = vmatprep.subr.mxu0 0.0
        %5855 = vmatpush1.msra.mxu0 0.0
        %5856 = vmatprep.subr.mxu0 0.0
        %5857 = vmatpush1.msra.mxu0 0.0
        %5858 = vmatprep.subr.mxu0 0.0
        %5859 = vmatpush1.msra.mxu0 0.0
        %5860 = vmatprep.subr.mxu0 0.0
        %5861 = vmatpush1.msra.mxu0 0.0
        %5862 = vmatprep.subr.mxu0 0.0
        %5863 = vmatpush1.msra.mxu0 0.0
        %5864 = vmatprep.subr.mxu0 0.0
        %5865 = vmatpush1.msra.mxu0 0.0
        %5866 = vmatprep.subr.mxu0 0.0
        %5867 = vmatpush1.msra.mxu0 0.0
        %5868 = vmatprep.subr.mxu0 0.0
        %5869 = vmatpush1.msra.mxu0 0.0
        %5870 = vmatprep.subr.mxu0 0.0
        %5871 = vmatpush1.msra.mxu0 0.0
        %5872 = vmatprep.subr.mxu0 0.0
        %5873 = vmatpush1.msra.mxu0 0.0
        %5874 = vmatprep.subr.mxu0 0.0
        %5875 = vmatpush1.msra.mxu0 0.0
        %5876 = vmatprep.subr.mxu0 0.0
        %5877 = vmatpush1.msra.mxu0 0.0
        %5878 = vmatprep.subr.mxu0 0.0
        %5879 = vmatpush1.msra.mxu0 0.0
        %5880 = vmatprep.subr.mxu0 0.0
        %5881 = vmatpush1.msra.mxu0 0.0
        %5882 = vmatprep.subr.mxu0 0.0
        %5883 = vmatpush1.msra.mxu0 0.0
        %5884 = vmatprep.subr.mxu0 0.0
        %5885 = vmatpush1.msra.mxu0 0.0
        %5886 = vmatprep.subr.mxu0 0.0
        %5887 = vmatpush1.msra.mxu0 0.0
        %5888 = vmatprep.subr.mxu0 0.0
        %5889 = vmatpush1.msra.mxu0 0.0
        %5890 = vmatprep.subr.mxu0 0.0
        %5891 = vmatpush1.msra.mxu0 0.0
        %5892 = vmatprep.subr.mxu0 0.0
        %5893 = vmatpush1.msra.mxu0 0.0
        %5894 = vmatprep.subr.mxu0 0.0
        %5895 = vmatpush1.msra.mxu0 0.0
        %5896 = vmatprep.subr.mxu0 0.0
        %5897 = vmatpush1.msra.mxu0 0.0
        %5898 = vmatprep.mubr.f32.mxu0 0.0
        %v5899 = vand.u32 %v4293, 4294901760
        %v5900 = vsub.f32 %v4293, %v5899
        %5901 = vmatmul.mubr.f32.gmra.mrb[0].mxu0 %v5900
        %v5902 = vpop.f32.mrb[0].mxu0
        %v5903 = vadd.f32 %v5827, %v5902
        %v5904 = vpop.f32.mrb[0].mxu0
        %5905 = vdwg.mxu0
        %5906 = vmatprep.subr.mxu0 0.0
        %v5907 = vand.u32 %v4290, 4294901760
        %5908 = vmatpush1.msra.mxu0 %v5907
        %5909 = vmatprep.subr.mxu0 0.0
        %v5910 = vand.u32 %v4291, 4294901760
        %5911 = vmatpush1.msra.mxu0 %v5910
        %5912 = vmatprep.subr.mxu0 0.0
        %5913 = vmatpush1.msra.mxu0 0.0
        %5914 = vmatprep.subr.mxu0 0.0
        %5915 = vmatpush1.msra.mxu0 0.0
        %5916 = vmatprep.subr.mxu0 0.0
        %5917 = vmatpush1.msra.mxu0 0.0
        %5918 = vmatprep.subr.mxu0 0.0
        %5919 = vmatpush1.msra.mxu0 0.0
        %5920 = vmatprep.subr.mxu0 0.0
        %5921 = vmatpush1.msra.mxu0 0.0
        %5922 = vmatprep.subr.mxu0 0.0
        %5923 = vmatpush1.msra.mxu0 0.0
        %5924 = vmatprep.subr.mxu0 0.0
        %5925 = vmatpush1.msra.mxu0 0.0
        %5926 = vmatprep.subr.mxu0 0.0
        %5927 = vmatpush1.msra.mxu0 0.0
        %5928 = vmatprep.subr.mxu0 0.0
        %5929 = vmatpush1.msra.mxu0 0.0
        %5930 = vmatprep.subr.mxu0 0.0
        %5931 = vmatpush1.msra.mxu0 0.0
        %5932 = vmatprep.subr.mxu0 0.0
        %5933 = vmatpush1.msra.mxu0 0.0
        %5934 = vmatprep.subr.mxu0 0.0
        %5935 = vmatpush1.msra.mxu0 0.0
        %5936 = vmatprep.subr.mxu0 0.0
        %5937 = vmatpush1.msra.mxu0 0.0
        %5938 = vmatprep.subr.mxu0 0.0
        %5939 = vmatpush1.msra.mxu0 0.0
        %5940 = vmatprep.subr.mxu0 0.0
        %5941 = vmatpush1.msra.mxu0 0.0
        %5942 = vmatprep.subr.mxu0 0.0
        %5943 = vmatpush1.msra.mxu0 0.0
        %5944 = vmatprep.subr.mxu0 0.0
        %5945 = vmatpush1.msra.mxu0 0.0
        %5946 = vmatprep.subr.mxu0 0.0
        %5947 = vmatpush1.msra.mxu0 0.0
        %5948 = vmatprep.subr.mxu0 0.0
        %5949 = vmatpush1.msra.mxu0 0.0
        %5950 = vmatprep.subr.mxu0 0.0
        %5951 = vmatpush1.msra.mxu0 0.0
        %5952 = vmatprep.subr.mxu0 0.0
        %5953 = vmatpush1.msra.mxu0 0.0
        %5954 = vmatprep.subr.mxu0 0.0
        %5955 = vmatpush1.msra.mxu0 0.0
        %5956 = vmatprep.subr.mxu0 0.0
        %5957 = vmatpush1.msra.mxu0 0.0
        %5958 = vmatprep.subr.mxu0 0.0
        %5959 = vmatpush1.msra.mxu0 0.0
        %5960 = vmatprep.subr.mxu0 0.0
        %5961 = vmatpush1.msra.mxu0 0.0
        %5962 = vmatprep.subr.mxu0 0.0
        %5963 = vmatpush1.msra.mxu0 0.0
        %5964 = vmatprep.subr.mxu0 0.0
        %5965 = vmatpush1.msra.mxu0 0.0
        %5966 = vmatprep.subr.mxu0 0.0
        %5967 = vmatpush1.msra.mxu0 0.0
        %5968 = vmatprep.subr.mxu0 0.0
        %5969 = vmatpush1.msra.mxu0 0.0
        %5970 = vmatprep.subr.mxu0 0.0
        %5971 = vmatpush1.msra.mxu0 0.0
        %5972 = vmatprep.mubr.f32.mxu0 0.0
        %v5973 = vand.u32 %v4293, 4294901760
        %v5974 = vsub.f32 %v4293, %v5973
        %v5975 = vand.u32 %v5974, 4294901760
        %5976 = vmatmul.mubr.f32.gmra.mrb[0].mxu0 %v5975
        %v5977 = vpop.f32.mrb[0].mxu0
        %v5978 = vadd.f32 %v5903, %v5977
        %v5979 = vpop.f32.mrb[0].mxu0
        %5980 = vdwg.mxu0
        %5981 = vmatprep.subr.mxu0 0.0
        %v5982 = vand.u32 %v4290, 4294901760
        %v5983 = vsub.f32 %v4290, %v5982
        %v5984 = vand.u32 %v5983, 4294901760
        %5985 = vmatpush1.msra.mxu0 %v5984
        %5986 = vmatprep.subr.mxu0 0.0
        %v5987 = vand.u32 %v4291, 4294901760
        %v5988 = vsub.f32 %v4291, %v5987
        %v5989 = vand.u32 %v5988, 4294901760
        %5990 = vmatpush1.msra.mxu0 %v5989
        %5991 = vmatprep.subr.mxu0 0.0
        %5992 = vmatpush1.msra.mxu0 0.0
        %5993 = vmatprep.subr.mxu0 0.0
        %5994 = vmatpush1.msra.mxu0 0.0
        %5995 = vmatprep.subr.mxu0 0.0
        %5996 = vmatpush1.msra.mxu0 0.0
        %5997 = vmatprep.subr.mxu0 0.0
        %5998 = vmatpush1.msra.mxu0 0.0
        %5999 = vmatprep.subr.mxu0 0.0
        %6000 = vmatpush1.msra.mxu0 0.0
        %6001 = vmatprep.subr.mxu0 0.0
        %6002 = vmatpush1.msra.mxu0 0.0
        %6003 = vmatprep.subr.mxu0 0.0
        %6004 = vmatpush1.msra.mxu0 0.0
        %6005 = vmatprep.subr.mxu0 0.0
        %6006 = vmatpush1.msra.mxu0 0.0
        %6007 = vmatprep.subr.mxu0 0.0
        %6008 = vmatpush1.msra.mxu0 0.0
        %6009 = vmatprep.subr.mxu0 0.0
        %6010 = vmatpush1.msra.mxu0 0.0
        %6011 = vmatprep.subr.mxu0 0.0
        %6012 = vmatpush1.msra.mxu0 0.0
        %6013 = vmatprep.subr.mxu0 0.0
        %6014 = vmatpush1.msra.mxu0 0.0
        %6015 = vmatprep.subr.mxu0 0.0
        %6016 = vmatpush1.msra.mxu0 0.0
        %6017 = vmatprep.subr.mxu0 0.0
        %6018 = vmatpush1.msra.mxu0 0.0
        %6019 = vmatprep.subr.mxu0 0.0
        %6020 = vmatpush1.msra.mxu0 0.0
        %6021 = vmatprep.subr.mxu0 0.0
        %6022 = vmatpush1.msra.mxu0 0.0
        %6023 = vmatprep.subr.mxu0 0.0
        %6024 = vmatpush1.msra.mxu0 0.0
        %6025 = vmatprep.subr.mxu0 0.0
        %6026 = vmatpush1.msra.mxu0 0.0
        %6027 = vmatprep.subr.mxu0 0.0
        %6028 = vmatpush1.msra.mxu0 0.0
        %6029 = vmatprep.subr.mxu0 0.0
        %6030 = vmatpush1.msra.mxu0 0.0
        %6031 = vmatprep.subr.mxu0 0.0
        %6032 = vmatpush1.msra.mxu0 0.0
        %6033 = vmatprep.subr.mxu0 0.0
        %6034 = vmatpush1.msra.mxu0 0.0
        %6035 = vmatprep.subr.mxu0 0.0
        %6036 = vmatpush1.msra.mxu0 0.0
        %6037 = vmatprep.subr.mxu0 0.0
        %6038 = vmatpush1.msra.mxu0 0.0
        %6039 = vmatprep.subr.mxu0 0.0
        %6040 = vmatpush1.msra.mxu0 0.0
        %6041 = vmatprep.subr.mxu0 0.0
        %6042 = vmatpush1.msra.mxu0 0.0
        %6043 = vmatprep.subr.mxu0 0.0
        %6044 = vmatpush1.msra.mxu0 0.0
        %6045 = vmatprep.subr.mxu0 0.0
        %6046 = vmatpush1.msra.mxu0 0.0
        %6047 = vmatprep.subr.mxu0 0.0
        %6048 = vmatpush1.msra.mxu0 0.0
        %6049 = vmatprep.subr.mxu0 0.0
        %6050 = vmatpush1.msra.mxu0 0.0
        %6051 = vmatprep.mubr.f32.mxu0 0.0
        %v6052 = vand.u32 %v4293, 4294901760
        %6053 = vmatmul.mubr.f32.gmra.mrb[0].mxu0 %v6052
        %v6054 = vpop.f32.mrb[0].mxu0
        %v6055 = vadd.f32 %v5978, %v6054
        %v6056 = vpop.f32.mrb[0].mxu0
        %6057 = vdwg.mxu0
        %6058 = vmatprep.subr.mxu0 0.0
        %v6059 = vand.u32 %v4290, 4294901760
        %6060 = vmatpush1.msra.mxu0 %v6059
        %6061 = vmatprep.subr.mxu0 0.0
        %v6062 = vand.u32 %v4291, 4294901760
        %6063 = vmatpush1.msra.mxu0 %v6062
        %6064 = vmatprep.subr.mxu0 0.0
        %6065 = vmatpush1.msra.mxu0 0.0
        %6066 = vmatprep.subr.mxu0 0.0
        %6067 = vmatpush1.msra.mxu0 0.0
        %6068 = vmatprep.subr.mxu0 0.0
        %6069 = vmatpush1.msra.mxu0 0.0
        %6070 = vmatprep.subr.mxu0 0.0
        %6071 = vmatpush1.msra.mxu0 0.0
        %6072 = vmatprep.subr.mxu0 0.0
        %6073 = vmatpush1.msra.mxu0 0.0
        %6074 = vmatprep.subr.mxu0 0.0
        %6075 = vmatpush1.msra.mxu0 0.0
        %6076 = vmatprep.subr.mxu0 0.0
        %6077 = vmatpush1.msra.mxu0 0.0
        %6078 = vmatprep.subr.mxu0 0.0
        %6079 = vmatpush1.msra.mxu0 0.0
        %6080 = vmatprep.subr.mxu0 0.0
        %6081 = vmatpush1.msra.mxu0 0.0
        %6082 = vmatprep.subr.mxu0 0.0
        %6083 = vmatpush1.msra.mxu0 0.0
        %6084 = vmatprep.subr.mxu0 0.0
        %6085 = vmatpush1.msra.mxu0 0.0
        %6086 = vmatprep.subr.mxu0 0.0
        %6087 = vmatpush1.msra.mxu0 0.0
        %6088 = vmatprep.subr.mxu0 0.0
        %6089 = vmatpush1.msra.mxu0 0.0
        %6090 = vmatprep.subr.mxu0 0.0
        %6091 = vmatpush1.msra.mxu0 0.0
        %6092 = vmatprep.subr.mxu0 0.0
        %6093 = vmatpush1.msra.mxu0 0.0
        %6094 = vmatprep.subr.mxu0 0.0
        %6095 = vmatpush1.msra.mxu0 0.0
        %6096 = vmatprep.subr.mxu0 0.0
        %6097 = vmatpush1.msra.mxu0 0.0
        %6098 = vmatprep.subr.mxu0 0.0
        %6099 = vmatpush1.msra.mxu0 0.0
        %6100 = vmatprep.subr.mxu0 0.0
        %6101 = vmatpush1.msra.mxu0 0.0
        %6102 = vmatprep.subr.mxu0 0.0
        %6103 = vmatpush1.msra.mxu0 0.0
        %6104 = vmatprep.subr.mxu0 0.0
        %6105 = vmatpush1.msra.mxu0 0.0
        %6106 = vmatprep.subr.mxu0 0.0
        %6107 = vmatpush1.msra.mxu0 0.0
        %6108 = vmatprep.subr.mxu0 0.0
        %6109 = vmatpush1.msra.mxu0 0.0
        %6110 = vmatprep.subr.mxu0 0.0
        %6111 = vmatpush1.msra.mxu0 0.0
        %6112 = vmatprep.subr.mxu0 0.0
        %6113 = vmatpush1.msra.mxu0 0.0
        %6114 = vmatprep.subr.mxu0 0.0
        %6115 = vmatpush1.msra.mxu0 0.0
        %6116 = vmatprep.subr.mxu0 0.0
        %6117 = vmatpush1.msra.mxu0 0.0
        %6118 = vmatprep.subr.mxu0 0.0
        %6119 = vmatpush1.msra.mxu0 0.0
        %6120 = vmatprep.subr.mxu0 0.0
        %6121 = vmatpush1.msra.mxu0 0.0
        %6122 = vmatprep.subr.mxu0 0.0
        %6123 = vmatpush1.msra.mxu0 0.0
        %6124 = vmatprep.mubr.f32.mxu0 0.0
        %v6125 = vand.u32 %v4293, 4294901760
        %6126 = vmatmul.mubr.f32.gmra.mrb[0].mxu0 %v6125
        %v6127 = vpop.f32.mrb[0].mxu0
        %v6128 = vadd.f32 %v6055, %v6127
        %v6129 = vpop.f32.mrb[0].mxu0
        %6130 = vdwg.mxu0
        %v6132 = vsel %vm243, %v242, 0
        %6134 = vmatprep.subr.mxu0 0.0
        %v6135 = vand.u32 %v4284, 4294901760
        %6136 = vmatpush1.msra.mxu0 %v6135
        %6137 = vmatprep.subr.mxu0 0.0
        %v6138 = vand.u32 %v4285, 4294901760
        %6139 = vmatpush1.msra.mxu0 %v6138
        %6140 = vmatprep.subr.mxu0 0.0
        %6141 = vmatpush1.msra.mxu0 0.0
        %6142 = vmatprep.subr.mxu0 0.0
        %6143 = vmatpush1.msra.mxu0 0.0
        %6144 = vmatprep.subr.mxu0 0.0
        %6145 = vmatpush1.msra.mxu0 0.0
        %6146 = vmatprep.subr.mxu0 0.0
        %6147 = vmatpush1.msra.mxu0 0.0
        %6148 = vmatprep.subr.mxu0 0.0
        %6149 = vmatpush1.msra.mxu0 0.0
        %6150 = vmatprep.subr.mxu0 0.0
        %6151 = vmatpush1.msra.mxu0 0.0
        %6152 = vmatprep.subr.mxu0 0.0
        %6153 = vmatpush1.msra.mxu0 0.0
        %6154 = vmatprep.subr.mxu0 0.0
        %6155 = vmatpush1.msra.mxu0 0.0
        %6156 = vmatprep.subr.mxu0 0.0
        %6157 = vmatpush1.msra.mxu0 0.0
        %6158 = vmatprep.subr.mxu0 0.0
        %6159 = vmatpush1.msra.mxu0 0.0
        %6160 = vmatprep.subr.mxu0 0.0
        %6161 = vmatpush1.msra.mxu0 0.0
        %6162 = vmatprep.subr.mxu0 0.0
        %6163 = vmatpush1.msra.mxu0 0.0
        %6164 = vmatprep.subr.mxu0 0.0
        %6165 = vmatpush1.msra.mxu0 0.0
        %6166 = vmatprep.subr.mxu0 0.0
        %6167 = vmatpush1.msra.mxu0 0.0
        %6168 = vmatprep.subr.mxu0 0.0
        %6169 = vmatpush1.msra.mxu0 0.0
        %6170 = vmatprep.subr.mxu0 0.0
        %6171 = vmatpush1.msra.mxu0 0.0
        %6172 = vmatprep.subr.mxu0 0.0
        %6173 = vmatpush1.msra.mxu0 0.0
        %6174 = vmatprep.subr.mxu0 0.0
        %6175 = vmatpush1.msra.mxu0 0.0
        %6176 = vmatprep.subr.mxu0 0.0
        %6177 = vmatpush1.msra.mxu0 0.0
        %6178 = vmatprep.subr.mxu0 0.0
        %6179 = vmatpush1.msra.mxu0 0.0
        %6180 = vmatprep.subr.mxu0 0.0
        %6181 = vmatpush1.msra.mxu0 0.0
        %6182 = vmatprep.subr.mxu0 0.0
        %6183 = vmatpush1.msra.mxu0 0.0
        %6184 = vmatprep.subr.mxu0 0.0
        %6185 = vmatpush1.msra.mxu0 0.0
        %6186 = vmatprep.subr.mxu0 0.0
        %6187 = vmatpush1.msra.mxu0 0.0
        %6188 = vmatprep.subr.mxu0 0.0
        %6189 = vmatpush1.msra.mxu0 0.0
        %6190 = vmatprep.subr.mxu0 0.0
        %6191 = vmatpush1.msra.mxu0 0.0
        %6192 = vmatprep.subr.mxu0 0.0
        %6193 = vmatpush1.msra.mxu0 0.0
        %6194 = vmatprep.subr.mxu0 0.0
        %6195 = vmatpush1.msra.mxu0 0.0
        %6196 = vmatprep.subr.mxu0 0.0
        %6197 = vmatpush1.msra.mxu0 0.0
        %6198 = vmatprep.subr.mxu0 0.0
        %6199 = vmatpush1.msra.mxu0 0.0
        %6200 = vmatprep.mubr.f32.mxu0 0.0
        %v6201 = vand.u32 %v6132, 4294901760
        %v6202 = vsub.f32 %v6132, %v6201
        %v6203 = vand.u32 %v6202, 4294901760
        %v6204 = vsub.f32 %v6202, %v6203
        %v6205 = vand.u32 %v6204, 4294901760
        %6206 = vmatmul.mubr.f32.gmra.mrb[0].mxu0 %v6205
        %v6207 = vpop.f32.mrb[0].mxu0
        %v6208 = vadd.f32 0.0, %v6207
        %v6209 = vpop.f32.mrb[0].mxu0
        %6210 = vdwg.mxu0
        %6211 = vmatprep.subr.mxu0 0.0
        %v6212 = vand.u32 %v4284, 4294901760
        %v6213 = vsub.f32 %v4284, %v6212
        %v6214 = vand.u32 %v6213, 4294901760
        %v6215 = vsub.f32 %v6213, %v6214
        %v6216 = vand.u32 %v6215, 4294901760
        %6217 = vmatpush1.msra.mxu0 %v6216
        %6218 = vmatprep.subr.mxu0 0.0
        %v6219 = vand.u32 %v4285, 4294901760
        %v6220 = vsub.f32 %v4285, %v6219
        %v6221 = vand.u32 %v6220, 4294901760
        %v6222 = vsub.f32 %v6220, %v6221
        %v6223 = vand.u32 %v6222, 4294901760
        %6224 = vmatpush1.msra.mxu0 %v6223
        %6225 = vmatprep.subr.mxu0 0.0
        %6226 = vmatpush1.msra.mxu0 0.0
        %6227 = vmatprep.subr.mxu0 0.0
        %6228 = vmatpush1.msra.mxu0 0.0
        %6229 = vmatprep.subr.mxu0 0.0
        %6230 = vmatpush1.msra.mxu0 0.0
        %6231 = vmatprep.subr.mxu0 0.0
        %6232 = vmatpush1.msra.mxu0 0.0
        %6233 = vmatprep.subr.mxu0 0.0
        %6234 = vmatpush1.msra.mxu0 0.0
        %6235 = vmatprep.subr.mxu0 0.0
        %6236 = vmatpush1.msra.mxu0 0.0
        %6237 = vmatprep.subr.mxu0 0.0
        %6238 = vmatpush1.msra.mxu0 0.0
        %6239 = vmatprep.subr.mxu0 0.0
        %6240 = vmatpush1.msra.mxu0 0.0
        %6241 = vmatprep.subr.mxu0 0.0
        %6242 = vmatpush1.msra.mxu0 0.0
        %6243 = vmatprep.subr.mxu0 0.0
        %6244 = vmatpush1.msra.mxu0 0.0
        %6245 = vmatprep.subr.mxu0 0.0
        %6246 = vmatpush1.msra.mxu0 0.0
        %6247 = vmatprep.subr.mxu0 0.0
        %6248 = vmatpush1.msra.mxu0 0.0
        %6249 = vmatprep.subr.mxu0 0.0
        %6250 = vmatpush1.msra.mxu0 0.0
        %6251 = vmatprep.subr.mxu0 0.0
        %6252 = vmatpush1.msra.mxu0 0.0
        %6253 = vmatprep.subr.mxu0 0.0
        %6254 = vmatpush1.msra.mxu0 0.0
        %6255 = vmatprep.subr.mxu0 0.0
        %6256 = vmatpush1.msra.mxu0 0.0
        %6257 = vmatprep.subr.mxu0 0.0
        %6258 = vmatpush1.msra.mxu0 0.0
        %6259 = vmatprep.subr.mxu0 0.0
        %6260 = vmatpush1.msra.mxu0 0.0
        %6261 = vmatprep.subr.mxu0 0.0
        %6262 = vmatpush1.msra.mxu0 0.0
        %6263 = vmatprep.subr.mxu0 0.0
        %6264 = vmatpush1.msra.mxu0 0.0
        %6265 = vmatprep.subr.mxu0 0.0
        %6266 = vmatpush1.msra.mxu0 0.0
        %6267 = vmatprep.subr.mxu0 0.0
        %6268 = vmatpush1.msra.mxu0 0.0
        %6269 = vmatprep.subr.mxu0 0.0
        %6270 = vmatpush1.msra.mxu0 0.0
        %6271 = vmatprep.subr.mxu0 0.0
        %6272 = vmatpush1.msra.mxu0 0.0
        %6273 = vmatprep.subr.mxu0 0.0
        %6274 = vmatpush1.msra.mxu0 0.0
        %6275 = vmatprep.subr.mxu0 0.0
        %6276 = vmatpush1.msra.mxu0 0.0
        %6277 = vmatprep.subr.mxu0 0.0
        %6278 = vmatpush1.msra.mxu0 0.0
        %6279 = vmatprep.subr.mxu0 0.0
        %6280 = vmatpush1.msra.mxu0 0.0
        %6281 = vmatprep.subr.mxu0 0.0
        %6282 = vmatpush1.msra.mxu0 0.0
        %6283 = vmatprep.subr.mxu0 0.0
        %6284 = vmatpush1.msra.mxu0 0.0
        %6285 = vmatprep.mubr.f32.mxu0 0.0
        %v6286 = vand.u32 %v6132, 4294901760
        %6287 = vmatmul.mubr.f32.gmra.mrb[0].mxu0 %v6286
        %v6288 = vpop.f32.mrb[0].mxu0
        %v6289 = vadd.f32 %v6208, %v6288
        %v6290 = vpop.f32.mrb[0].mxu0
        %6291 = vdwg.mxu0
        %6292 = vmatprep.subr.mxu0 0.0
        %v6293 = vand.u32 %v4284, 4294901760
        %v6294 = vsub.f32 %v4284, %v6293
        %6295 = vmatpush1.msra.mxu0 %v6294
        %6296 = vmatprep.subr.mxu0 0.0
        %v6297 = vand.u32 %v4285, 4294901760
        %v6298 = vsub.f32 %v4285, %v6297
        %6299 = vmatpush1.msra.mxu0 %v6298
        %6300 = vmatprep.subr.mxu0 0.0
        %6301 = vmatpush1.msra.mxu0 0.0
        %6302 = vmatprep.subr.mxu0 0.0
        %6303 = vmatpush1.msra.mxu0 0.0
        %6304 = vmatprep.subr.mxu0 0.0
        %6305 = vmatpush1.msra.mxu0 0.0
        %6306 = vmatprep.subr.mxu0 0.0
        %6307 = vmatpush1.msra.mxu0 0.0
        %6308 = vmatprep.subr.mxu0 0.0
        %6309 = vmatpush1.msra.mxu0 0.0
        %6310 = vmatprep.subr.mxu0 0.0
        %6311 = vmatpush1.msra.mxu0 0.0
        %6312 = vmatprep.subr.mxu0 0.0
        %6313 = vmatpush1.msra.mxu0 0.0
        %6314 = vmatprep.subr.mxu0 0.0
        %6315 = vmatpush1.msra.mxu0 0.0
        %6316 = vmatprep.subr.mxu0 0.0
        %6317 = vmatpush1.msra.mxu0 0.0
        %6318 = vmatprep.subr.mxu0 0.0
        %6319 = vmatpush1.msra.mxu0 0.0
        %6320 = vmatprep.subr.mxu0 0.0
        %6321 = vmatpush1.msra.mxu0 0.0
        %6322 = vmatprep.subr.mxu0 0.0
        %6323 = vmatpush1.msra.mxu0 0.0
        %6324 = vmatprep.subr.mxu0 0.0
        %6325 = vmatpush1.msra.mxu0 0.0
        %6326 = vmatprep.subr.mxu0 0.0
        %6327 = vmatpush1.msra.mxu0 0.0
        %6328 = vmatprep.subr.mxu0 0.0
        %6329 = vmatpush1.msra.mxu0 0.0
        %6330 = vmatprep.subr.mxu0 0.0
        %6331 = vmatpush1.msra.mxu0 0.0
        %6332 = vmatprep.subr.mxu0 0.0
        %6333 = vmatpush1.msra.mxu0 0.0
        %6334 = vmatprep.subr.mxu0 0.0
        %6335 = vmatpush1.msra.mxu0 0.0
        %6336 = vmatprep.subr.mxu0 0.0
        %6337 = vmatpush1.msra.mxu0 0.0
        %6338 = vmatprep.subr.mxu0 0.0
        %6339 = vmatpush1.msra.mxu0 0.0
        %6340 = vmatprep.subr.mxu0 0.0
        %6341 = vmatpush1.msra.mxu0 0.0
        %6342 = vmatprep.subr.mxu0 0.0
        %6343 = vmatpush1.msra.mxu0 0.0
        %6344 = vmatprep.subr.mxu0 0.0
        %6345 = vmatpush1.msra.mxu0 0.0
        %6346 = vmatprep.subr.mxu0 0.0
        %6347 = vmatpush1.msra.mxu0 0.0
        %6348 = vmatprep.subr.mxu0 0.0
        %6349 = vmatpush1.msra.mxu0 0.0
        %6350 = vmatprep.subr.mxu0 0.0
        %6351 = vmatpush1.msra.mxu0 0.0
        %6352 = vmatprep.subr.mxu0 0.0
        %6353 = vmatpush1.msra.mxu0 0.0
        %6354 = vmatprep.subr.mxu0 0.0
        %6355 = vmatpush1.msra.mxu0 0.0
        %6356 = vmatprep.subr.mxu0 0.0
        %6357 = vmatpush1.msra.mxu0 0.0
        %6358 = vmatprep.subr.mxu0 0.0
        %6359 = vmatpush1.msra.mxu0 0.0
        %6360 = vmatprep.mubr.f32.mxu0 0.0
        %v6361 = vand.u32 %v6132, 4294901760
        %v6362 = vsub.f32 %v6132, %v6361
        %6363 = vmatmul.mubr.f32.gmra.mrb[0].mxu0 %v6362
        %v6364 = vpop.f32.mrb[0].mxu0
        %v6365 = vadd.f32 %v6289, %v6364
        %v6366 = vpop.f32.mrb[0].mxu0
        %6367 = vdwg.mxu0
        %6368 = vmatprep.subr.mxu0 0.0
        %v6369 = vand.u32 %v4284, 4294901760
        %6370 = vmatpush1.msra.mxu0 %v6369
        %6371 = vmatprep.subr.mxu0 0.0
        %v6372 = vand.u32 %v4285, 4294901760
        %6373 = vmatpush1.msra.mxu0 %v6372
        %6374 = vmatprep.subr.mxu0 0.0
        %6375 = vmatpush1.msra.mxu0 0.0
        %6376 = vmatprep.subr.mxu0 0.0
        %6377 = vmatpush1.msra.mxu0 0.0
        %6378 = vmatprep.subr.mxu0 0.0
        %6379 = vmatpush1.msra.mxu0 0.0
        %6380 = vmatprep.subr.mxu0 0.0
        %6381 = vmatpush1.msra.mxu0 0.0
        %6382 = vmatprep.subr.mxu0 0.0
        %6383 = vmatpush1.msra.mxu0 0.0
        %6384 = vmatprep.subr.mxu0 0.0
        %6385 = vmatpush1.msra.mxu0 0.0
        %6386 = vmatprep.subr.mxu0 0.0
        %6387 = vmatpush1.msra.mxu0 0.0
        %6388 = vmatprep.subr.mxu0 0.0
        %6389 = vmatpush1.msra.mxu0 0.0
        %6390 = vmatprep.subr.mxu0 0.0
        %6391 = vmatpush1.msra.mxu0 0.0
        %6392 = vmatprep.subr.mxu0 0.0
        %6393 = vmatpush1.msra.mxu0 0.0
        %6394 = vmatprep.subr.mxu0 0.0
        %6395 = vmatpush1.msra.mxu0 0.0
        %6396 = vmatprep.subr.mxu0 0.0
        %6397 = vmatpush1.msra.mxu0 0.0
        %6398 = vmatprep.subr.mxu0 0.0
        %6399 = vmatpush1.msra.mxu0 0.0
        %6400 = vmatprep.subr.mxu0 0.0
        %6401 = vmatpush1.msra.mxu0 0.0
        %6402 = vmatprep.subr.mxu0 0.0
        %6403 = vmatpush1.msra.mxu0 0.0
        %6404 = vmatprep.subr.mxu0 0.0
        %6405 = vmatpush1.msra.mxu0 0.0
        %6406 = vmatprep.subr.mxu0 0.0
        %6407 = vmatpush1.msra.mxu0 0.0
        %6408 = vmatprep.subr.mxu0 0.0
        %6409 = vmatpush1.msra.mxu0 0.0
        %6410 = vmatprep.subr.mxu0 0.0
        %6411 = vmatpush1.msra.mxu0 0.0
        %6412 = vmatprep.subr.mxu0 0.0
        %6413 = vmatpush1.msra.mxu0 0.0
        %6414 = vmatprep.subr.mxu0 0.0
        %6415 = vmatpush1.msra.mxu0 0.0
        %6416 = vmatprep.subr.mxu0 0.0
        %6417 = vmatpush1.msra.mxu0 0.0
        %6418 = vmatprep.subr.mxu0 0.0
        %6419 = vmatpush1.msra.mxu0 0.0
        %6420 = vmatprep.subr.mxu0 0.0
        %6421 = vmatpush1.msra.mxu0 0.0
        %6422 = vmatprep.subr.mxu0 0.0
        %6423 = vmatpush1.msra.mxu0 0.0
        %6424 = vmatprep.subr.mxu0 0.0
        %6425 = vmatpush1.msra.mxu0 0.0
        %6426 = vmatprep.subr.mxu0 0.0
        %6427 = vmatpush1.msra.mxu0 0.0
        %6428 = vmatprep.subr.mxu0 0.0
        %6429 = vmatpush1.msra.mxu0 0.0
        %6430 = vmatprep.subr.mxu0 0.0
        %6431 = vmatpush1.msra.mxu0 0.0
        %6432 = vmatprep.subr.mxu0 0.0
        %6433 = vmatpush1.msra.mxu0 0.0
        %6434 = vmatprep.mubr.f32.mxu0 0.0
        %v6435 = vand.u32 %v6132, 4294901760
        %v6436 = vsub.f32 %v6132, %v6435
        %v6437 = vand.u32 %v6436, 4294901760
        %6438 = vmatmul.mubr.f32.gmra.mrb[0].mxu0 %v6437
        %v6439 = vpop.f32.mrb[0].mxu0
        %v6440 = vadd.f32 %v6365, %v6439
        %v6441 = vpop.f32.mrb[0].mxu0
        %6442 = vdwg.mxu0
        %6443 = vmatprep.subr.mxu0 0.0
        %v6444 = vand.u32 %v4284, 4294901760
        %v6445 = vsub.f32 %v4284, %v6444
        %v6446 = vand.u32 %v6445, 4294901760
        %6447 = vmatpush1.msra.mxu0 %v6446
        %6448 = vmatprep.subr.mxu0 0.0
        %v6449 = vand.u32 %v4285, 4294901760
        %v6450 = vsub.f32 %v4285, %v6449
        %v6451 = vand.u32 %v6450, 4294901760
        %6452 = vmatpush1.msra.mxu0 %v6451
        %6453 = vmatprep.subr.mxu0 0.0
        %6454 = vmatpush1.msra.mxu0 0.0
        %6455 = vmatprep.subr.mxu0 0.0
        %6456 = vmatpush1.msra.mxu0 0.0
        %6457 = vmatprep.subr.mxu0 0.0
        %6458 = vmatpush1.msra.mxu0 0.0
        %6459 = vmatprep.subr.mxu0 0.0
        %6460 = vmatpush1.msra.mxu0 0.0
        %6461 = vmatprep.subr.mxu0 0.0
        %6462 = vmatpush1.msra.mxu0 0.0
        %6463 = vmatprep.subr.mxu0 0.0
        %6464 = vmatpush1.msra.mxu0 0.0
        %6465 = vmatprep.subr.mxu0 0.0
        %6466 = vmatpush1.msra.mxu0 0.0
        %6467 = vmatprep.subr.mxu0 0.0
        %6468 = vmatpush1.msra.mxu0 0.0
        %6469 = vmatprep.subr.mxu0 0.0
        %6470 = vmatpush1.msra.mxu0 0.0
        %6471 = vmatprep.subr.mxu0 0.0
        %6472 = vmatpush1.msra.mxu0 0.0
        %6473 = vmatprep.subr.mxu0 0.0
        %6474 = vmatpush1.msra.mxu0 0.0
        %6475 = vmatprep.subr.mxu0 0.0
        %6476 = vmatpush1.msra.mxu0 0.0
        %6477 = vmatprep.subr.mxu0 0.0
        %6478 = vmatpush1.msra.mxu0 0.0
        %6479 = vmatprep.subr.mxu0 0.0
        %6480 = vmatpush1.msra.mxu0 0.0
        %6481 = vmatprep.subr.mxu0 0.0
        %6482 = vmatpush1.msra.mxu0 0.0
        %6483 = vmatprep.subr.mxu0 0.0
        %6484 = vmatpush1.msra.mxu0 0.0
        %6485 = vmatprep.subr.mxu0 0.0
        %6486 = vmatpush1.msra.mxu0 0.0
        %6487 = vmatprep.subr.mxu0 0.0
        %6488 = vmatpush1.msra.mxu0 0.0
        %6489 = vmatprep.subr.mxu0 0.0
        %6490 = vmatpush1.msra.mxu0 0.0
        %6491 = vmatprep.subr.mxu0 0.0
        %6492 = vmatpush1.msra.mxu0 0.0
        %6493 = vmatprep.subr.mxu0 0.0
        %6494 = vmatpush1.msra.mxu0 0.0
        %6495 = vmatprep.subr.mxu0 0.0
        %6496 = vmatpush1.msra.mxu0 0.0
        %6497 = vmatprep.subr.mxu0 0.0
        %6498 = vmatpush1.msra.mxu0 0.0
        %6499 = vmatprep.subr.mxu0 0.0
        %6500 = vmatpush1.msra.mxu0 0.0
        %6501 = vmatprep.subr.mxu0 0.0
        %6502 = vmatpush1.msra.mxu0 0.0
        %6503 = vmatprep.subr.mxu0 0.0
        %6504 = vmatpush1.msra.mxu0 0.0
        %6505 = vmatprep.subr.mxu0 0.0
        %6506 = vmatpush1.msra.mxu0 0.0
        %6507 = vmatprep.subr.mxu0 0.0
        %6508 = vmatpush1.msra.mxu0 0.0
        %6509 = vmatprep.subr.mxu0 0.0
        %6510 = vmatpush1.msra.mxu0 0.0
        %6511 = vmatprep.subr.mxu0 0.0
        %6512 = vmatpush1.msra.mxu0 0.0
        %6513 = vmatprep.mubr.f32.mxu0 0.0
        %v6514 = vand.u32 %v6132, 4294901760
        %6515 = vmatmul.mubr.f32.gmra.mrb[0].mxu0 %v6514
        %v6516 = vpop.f32.mrb[0].mxu0
        %v6517 = vadd.f32 %v6440, %v6516
        %v6518 = vpop.f32.mrb[0].mxu0
        %6519 = vdwg.mxu0
        %6520 = vmatprep.subr.mxu0 0.0
        %v6521 = vand.u32 %v4284, 4294901760
        %6522 = vmatpush1.msra.mxu0 %v6521
        %6523 = vmatprep.subr.mxu0 0.0
        %v6524 = vand.u32 %v4285, 4294901760
        %6525 = vmatpush1.msra.mxu0 %v6524
        %6526 = vmatprep.subr.mxu0 0.0
        %6527 = vmatpush1.msra.mxu0 0.0
        %6528 = vmatprep.subr.mxu0 0.0
        %6529 = vmatpush1.msra.mxu0 0.0
        %6530 = vmatprep.subr.mxu0 0.0
        %6531 = vmatpush1.msra.mxu0 0.0
        %6532 = vmatprep.subr.mxu0 0.0
        %6533 = vmatpush1.msra.mxu0 0.0
        %6534 = vmatprep.subr.mxu0 0.0
        %6535 = vmatpush1.msra.mxu0 0.0
        %6536 = vmatprep.subr.mxu0 0.0
        %6537 = vmatpush1.msra.mxu0 0.0
        %6538 = vmatprep.subr.mxu0 0.0
        %6539 = vmatpush1.msra.mxu0 0.0
        %6540 = vmatprep.subr.mxu0 0.0
        %6541 = vmatpush1.msra.mxu0 0.0
        %6542 = vmatprep.subr.mxu0 0.0
        %6543 = vmatpush1.msra.mxu0 0.0
        %6544 = vmatprep.subr.mxu0 0.0
        %6545 = vmatpush1.msra.mxu0 0.0
        %6546 = vmatprep.subr.mxu0 0.0
        %6547 = vmatpush1.msra.mxu0 0.0
        %6548 = vmatprep.subr.mxu0 0.0
        %6549 = vmatpush1.msra.mxu0 0.0
        %6550 = vmatprep.subr.mxu0 0.0
        %6551 = vmatpush1.msra.mxu0 0.0
        %6552 = vmatprep.subr.mxu0 0.0
        %6553 = vmatpush1.msra.mxu0 0.0
        %6554 = vmatprep.subr.mxu0 0.0
        %6555 = vmatpush1.msra.mxu0 0.0
        %6556 = vmatprep.subr.mxu0 0.0
        %6557 = vmatpush1.msra.mxu0 0.0
        %6558 = vmatprep.subr.mxu0 0.0
        %6559 = vmatpush1.msra.mxu0 0.0
        %6560 = vmatprep.subr.mxu0 0.0
        %6561 = vmatpush1.msra.mxu0 0.0
        %6562 = vmatprep.subr.mxu0 0.0
        %6563 = vmatpush1.msra.mxu0 0.0
        %6564 = vmatprep.subr.mxu0 0.0
        %6565 = vmatpush1.msra.mxu0 0.0
        %6566 = vmatprep.subr.mxu0 0.0
        %6567 = vmatpush1.msra.mxu0 0.0
        %6568 = vmatprep.subr.mxu0 0.0
        %6569 = vmatpush1.msra.mxu0 0.0
        %6570 = vmatprep.subr.mxu0 0.0
        %6571 = vmatpush1.msra.mxu0 0.0
        %6572 = vmatprep.subr.mxu0 0.0
        %6573 = vmatpush1.msra.mxu0 0.0
        %6574 = vmatprep.subr.mxu0 0.0
        %6575 = vmatpush1.msra.mxu0 0.0
        %6576 = vmatprep.subr.mxu0 0.0
        %6577 = vmatpush1.msra.mxu0 0.0
        %6578 = vmatprep.subr.mxu0 0.0
        %6579 = vmatpush1.msra.mxu0 0.0
        %6580 = vmatprep.subr.mxu0 0.0
        %6581 = vmatpush1.msra.mxu0 0.0
        %6582 = vmatprep.subr.mxu0 0.0
        %6583 = vmatpush1.msra.mxu0 0.0
        %6584 = vmatprep.subr.mxu0 0.0
        %6585 = vmatpush1.msra.mxu0 0.0
        %6586 = vmatprep.mubr.f32.mxu0 0.0
        %v6587 = vand.u32 %v6132, 4294901760
        %6588 = vmatmul.mubr.f32.gmra.mrb[0].mxu0 %v6587
        %v6589 = vpop.f32.mrb[0].mxu0
        %v6590 = vadd.f32 %v6517, %v6589
        %v6591 = vpop.f32.mrb[0].mxu0
        %6592 = vdwg.mxu0
        %6593 = vmatprep.subr.mxu0 0.0
        %v6594 = vand.u32 %v4286, 4294901760
        %6595 = vmatpush1.msra.mxu0 %v6594
        %6596 = vmatprep.subr.mxu0 0.0
        %v6597 = vand.u32 %v4287, 4294901760
        %6598 = vmatpush1.msra.mxu0 %v6597
        %6599 = vmatprep.subr.mxu0 0.0
        %6600 = vmatpush1.msra.mxu0 0.0
        %6601 = vmatprep.subr.mxu0 0.0
        %6602 = vmatpush1.msra.mxu0 0.0
        %6603 = vmatprep.subr.mxu0 0.0
        %6604 = vmatpush1.msra.mxu0 0.0
        %6605 = vmatprep.subr.mxu0 0.0
        %6606 = vmatpush1.msra.mxu0 0.0
        %6607 = vmatprep.subr.mxu0 0.0
        %6608 = vmatpush1.msra.mxu0 0.0
        %6609 = vmatprep.subr.mxu0 0.0
        %6610 = vmatpush1.msra.mxu0 0.0
        %6611 = vmatprep.subr.mxu0 0.0
        %6612 = vmatpush1.msra.mxu0 0.0
        %6613 = vmatprep.subr.mxu0 0.0
        %6614 = vmatpush1.msra.mxu0 0.0
        %6615 = vmatprep.subr.mxu0 0.0
        %6616 = vmatpush1.msra.mxu0 0.0
        %6617 = vmatprep.subr.mxu0 0.0
        %6618 = vmatpush1.msra.mxu0 0.0
        %6619 = vmatprep.subr.mxu0 0.0
        %6620 = vmatpush1.msra.mxu0 0.0
        %6621 = vmatprep.subr.mxu0 0.0
        %6622 = vmatpush1.msra.mxu0 0.0
        %6623 = vmatprep.subr.mxu0 0.0
        %6624 = vmatpush1.msra.mxu0 0.0
        %6625 = vmatprep.subr.mxu0 0.0
        %6626 = vmatpush1.msra.mxu0 0.0
        %6627 = vmatprep.subr.mxu0 0.0
        %6628 = vmatpush1.msra.mxu0 0.0
        %6629 = vmatprep.subr.mxu0 0.0
        %6630 = vmatpush1.msra.mxu0 0.0
        %6631 = vmatprep.subr.mxu0 0.0
        %6632 = vmatpush1.msra.mxu0 0.0
        %6633 = vmatprep.subr.mxu0 0.0
        %6634 = vmatpush1.msra.mxu0 0.0
        %6635 = vmatprep.subr.mxu0 0.0
        %6636 = vmatpush1.msra.mxu0 0.0
        %6637 = vmatprep.subr.mxu0 0.0
        %6638 = vmatpush1.msra.mxu0 0.0
        %6639 = vmatprep.subr.mxu0 0.0
        %6640 = vmatpush1.msra.mxu0 0.0
        %6641 = vmatprep.subr.mxu0 0.0
        %6642 = vmatpush1.msra.mxu0 0.0
        %6643 = vmatprep.subr.mxu0 0.0
        %6644 = vmatpush1.msra.mxu0 0.0
        %6645 = vmatprep.subr.mxu0 0.0
        %6646 = vmatpush1.msra.mxu0 0.0
        %6647 = vmatprep.subr.mxu0 0.0
        %6648 = vmatpush1.msra.mxu0 0.0
        %6649 = vmatprep.subr.mxu0 0.0
        %6650 = vmatpush1.msra.mxu0 0.0
        %6651 = vmatprep.subr.mxu0 0.0
        %6652 = vmatpush1.msra.mxu0 0.0
        %6653 = vmatprep.subr.mxu0 0.0
        %6654 = vmatpush1.msra.mxu0 0.0
        %6655 = vmatprep.subr.mxu0 0.0
        %6656 = vmatpush1.msra.mxu0 0.0
        %6657 = vmatprep.subr.mxu0 0.0
        %6658 = vmatpush1.msra.mxu0 0.0
        %6659 = vmatprep.mubr.f32.mxu0 0.0
        %v6660 = vand.u32 %v6132, 4294901760
        %v6661 = vsub.f32 %v6132, %v6660
        %v6662 = vand.u32 %v6661, 4294901760
        %v6663 = vsub.f32 %v6661, %v6662
        %v6664 = vand.u32 %v6663, 4294901760
        %6665 = vmatmul.mubr.f32.gmra.mrb[0].mxu0 %v6664
        %v6666 = vpop.f32.mrb[0].mxu0
        %v6667 = vadd.f32 0.0, %v6666
        %v6668 = vpop.f32.mrb[0].mxu0
        %6669 = vdwg.mxu0
        %6670 = vmatprep.subr.mxu0 0.0
        %v6671 = vand.u32 %v4286, 4294901760
        %v6672 = vsub.f32 %v4286, %v6671
        %v6673 = vand.u32 %v6672, 4294901760
        %v6674 = vsub.f32 %v6672, %v6673
        %v6675 = vand.u32 %v6674, 4294901760
        %6676 = vmatpush1.msra.mxu0 %v6675
        %6677 = vmatprep.subr.mxu0 0.0
        %v6678 = vand.u32 %v4287, 4294901760
        %v6679 = vsub.f32 %v4287, %v6678
        %v6680 = vand.u32 %v6679, 4294901760
        %v6681 = vsub.f32 %v6679, %v6680
        %v6682 = vand.u32 %v6681, 4294901760
        %6683 = vmatpush1.msra.mxu0 %v6682
        %6684 = vmatprep.subr.mxu0 0.0
        %6685 = vmatpush1.msra.mxu0 0.0
        %6686 = vmatprep.subr.mxu0 0.0
        %6687 = vmatpush1.msra.mxu0 0.0
        %6688 = vmatprep.subr.mxu0 0.0
        %6689 = vmatpush1.msra.mxu0 0.0
        %6690 = vmatprep.subr.mxu0 0.0
        %6691 = vmatpush1.msra.mxu0 0.0
        %6692 = vmatprep.subr.mxu0 0.0
        %6693 = vmatpush1.msra.mxu0 0.0
        %6694 = vmatprep.subr.mxu0 0.0
        %6695 = vmatpush1.msra.mxu0 0.0
        %6696 = vmatprep.subr.mxu0 0.0
        %6697 = vmatpush1.msra.mxu0 0.0
        %6698 = vmatprep.subr.mxu0 0.0
        %6699 = vmatpush1.msra.mxu0 0.0
        %6700 = vmatprep.subr.mxu0 0.0
        %6701 = vmatpush1.msra.mxu0 0.0
        %6702 = vmatprep.subr.mxu0 0.0
        %6703 = vmatpush1.msra.mxu0 0.0
        %6704 = vmatprep.subr.mxu0 0.0
        %6705 = vmatpush1.msra.mxu0 0.0
        %6706 = vmatprep.subr.mxu0 0.0
        %6707 = vmatpush1.msra.mxu0 0.0
        %6708 = vmatprep.subr.mxu0 0.0
        %6709 = vmatpush1.msra.mxu0 0.0
        %6710 = vmatprep.subr.mxu0 0.0
        %6711 = vmatpush1.msra.mxu0 0.0
        %6712 = vmatprep.subr.mxu0 0.0
        %6713 = vmatpush1.msra.mxu0 0.0
        %6714 = vmatprep.subr.mxu0 0.0
        %6715 = vmatpush1.msra.mxu0 0.0
        %6716 = vmatprep.subr.mxu0 0.0
        %6717 = vmatpush1.msra.mxu0 0.0
        %6718 = vmatprep.subr.mxu0 0.0
        %6719 = vmatpush1.msra.mxu0 0.0
        %6720 = vmatprep.subr.mxu0 0.0
        %6721 = vmatpush1.msra.mxu0 0.0
        %6722 = vmatprep.subr.mxu0 0.0
        %6723 = vmatpush1.msra.mxu0 0.0
        %6724 = vmatprep.subr.mxu0 0.0
        %6725 = vmatpush1.msra.mxu0 0.0
        %6726 = vmatprep.subr.mxu0 0.0
        %6727 = vmatpush1.msra.mxu0 0.0
        %6728 = vmatprep.subr.mxu0 0.0
        %6729 = vmatpush1.msra.mxu0 0.0
        %6730 = vmatprep.subr.mxu0 0.0
        %6731 = vmatpush1.msra.mxu0 0.0
        %6732 = vmatprep.subr.mxu0 0.0
        %6733 = vmatpush1.msra.mxu0 0.0
        %6734 = vmatprep.subr.mxu0 0.0
        %6735 = vmatpush1.msra.mxu0 0.0
        %6736 = vmatprep.subr.mxu0 0.0
        %6737 = vmatpush1.msra.mxu0 0.0
        %6738 = vmatprep.subr.mxu0 0.0
        %6739 = vmatpush1.msra.mxu0 0.0
        %6740 = vmatprep.subr.mxu0 0.0
        %6741 = vmatpush1.msra.mxu0 0.0
        %6742 = vmatprep.subr.mxu0 0.0
        %6743 = vmatpush1.msra.mxu0 0.0
        %6744 = vmatprep.mubr.f32.mxu0 0.0
        %v6745 = vand.u32 %v6132, 4294901760
        %6746 = vmatmul.mubr.f32.gmra.mrb[0].mxu0 %v6745
        %v6747 = vpop.f32.mrb[0].mxu0
        %v6748 = vadd.f32 %v6667, %v6747
        %v6749 = vpop.f32.mrb[0].mxu0
        %6750 = vdwg.mxu0
        %6751 = vmatprep.subr.mxu0 0.0
        %v6752 = vand.u32 %v4286, 4294901760
        %v6753 = vsub.f32 %v4286, %v6752
        %6754 = vmatpush1.msra.mxu0 %v6753
        %6755 = vmatprep.subr.mxu0 0.0
        %v6756 = vand.u32 %v4287, 4294901760
        %v6757 = vsub.f32 %v4287, %v6756
        %6758 = vmatpush1.msra.mxu0 %v6757
        %6759 = vmatprep.subr.mxu0 0.0
        %6760 = vmatpush1.msra.mxu0 0.0
        %6761 = vmatprep.subr.mxu0 0.0
        %6762 = vmatpush1.msra.mxu0 0.0
        %6763 = vmatprep.subr.mxu0 0.0
        %6764 = vmatpush1.msra.mxu0 0.0
        %6765 = vmatprep.subr.mxu0 0.0
        %6766 = vmatpush1.msra.mxu0 0.0
        %6767 = vmatprep.subr.mxu0 0.0
        %6768 = vmatpush1.msra.mxu0 0.0
        %6769 = vmatprep.subr.mxu0 0.0
        %6770 = vmatpush1.msra.mxu0 0.0
        %6771 = vmatprep.subr.mxu0 0.0
        %6772 = vmatpush1.msra.mxu0 0.0
        %6773 = vmatprep.subr.mxu0 0.0
        %6774 = vmatpush1.msra.mxu0 0.0
        %6775 = vmatprep.subr.mxu0 0.0
        %6776 = vmatpush1.msra.mxu0 0.0
        %6777 = vmatprep.subr.mxu0 0.0
        %6778 = vmatpush1.msra.mxu0 0.0
        %6779 = vmatprep.subr.mxu0 0.0
        %6780 = vmatpush1.msra.mxu0 0.0
        %6781 = vmatprep.subr.mxu0 0.0
        %6782 = vmatpush1.msra.mxu0 0.0
        %6783 = vmatprep.subr.mxu0 0.0
        %6784 = vmatpush1.msra.mxu0 0.0
        %6785 = vmatprep.subr.mxu0 0.0
        %6786 = vmatpush1.msra.mxu0 0.0
        %6787 = vmatprep.subr.mxu0 0.0
        %6788 = vmatpush1.msra.mxu0 0.0
        %6789 = vmatprep.subr.mxu0 0.0
        %6790 = vmatpush1.msra.mxu0 0.0
        %6791 = vmatprep.subr.mxu0 0.0
        %6792 = vmatpush1.msra.mxu0 0.0
        %6793 = vmatprep.subr.mxu0 0.0
        %6794 = vmatpush1.msra.mxu0 0.0
        %6795 = vmatprep.subr.mxu0 0.0
        %6796 = vmatpush1.msra.mxu0 0.0
        %6797 = vmatprep.subr.mxu0 0.0
        %6798 = vmatpush1.msra.mxu0 0.0
        %6799 = vmatprep.subr.mxu0 0.0
        %6800 = vmatpush1.msra.mxu0 0.0
        %6801 = vmatprep.subr.mxu0 0.0
        %6802 = vmatpush1.msra.mxu0 0.0
        %6803 = vmatprep.subr.mxu0 0.0
        %6804 = vmatpush1.msra.mxu0 0.0
        %6805 = vmatprep.subr.mxu0 0.0
        %6806 = vmatpush1.msra.mxu0 0.0
        %6807 = vmatprep.subr.mxu0 0.0
        %6808 = vmatpush1.msra.mxu0 0.0
        %6809 = vmatprep.subr.mxu0 0.0
        %6810 = vmatpush1.msra.mxu0 0.0
        %6811 = vmatprep.subr.mxu0 0.0
        %6812 = vmatpush1.msra.mxu0 0.0
        %6813 = vmatprep.subr.mxu0 0.0
        %6814 = vmatpush1.msra.mxu0 0.0
        %6815 = vmatprep.subr.mxu0 0.0
        %6816 = vmatpush1.msra.mxu0 0.0
        %6817 = vmatprep.subr.mxu0 0.0
        %6818 = vmatpush1.msra.mxu0 0.0
        %6819 = vmatprep.mubr.f32.mxu0 0.0
        %v6820 = vand.u32 %v6132, 4294901760
        %v6821 = vsub.f32 %v6132, %v6820
        %6822 = vmatmul.mubr.f32.gmra.mrb[0].mxu0 %v6821
        %v6823 = vpop.f32.mrb[0].mxu0
        %v6824 = vadd.f32 %v6748, %v6823
        %v6825 = vpop.f32.mrb[0].mxu0
        %6826 = vdwg.mxu0
        %6827 = vmatprep.subr.mxu0 0.0
        %v6828 = vand.u32 %v4286, 4294901760
        %6829 = vmatpush1.msra.mxu0 %v6828
        %6830 = vmatprep.subr.mxu0 0.0
        %v6831 = vand.u32 %v4287, 4294901760
        %6832 = vmatpush1.msra.mxu0 %v6831
        %6833 = vmatprep.subr.mxu0 0.0
        %6834 = vmatpush1.msra.mxu0 0.0
        %6835 = vmatprep.subr.mxu0 0.0
        %6836 = vmatpush1.msra.mxu0 0.0
        %6837 = vmatprep.subr.mxu0 0.0
        %6838 = vmatpush1.msra.mxu0 0.0
        %6839 = vmatprep.subr.mxu0 0.0
        %6840 = vmatpush1.msra.mxu0 0.0
        %6841 = vmatprep.subr.mxu0 0.0
        %6842 = vmatpush1.msra.mxu0 0.0
        %6843 = vmatprep.subr.mxu0 0.0
        %6844 = vmatpush1.msra.mxu0 0.0
        %6845 = vmatprep.subr.mxu0 0.0
        %6846 = vmatpush1.msra.mxu0 0.0
        %6847 = vmatprep.subr.mxu0 0.0
        %6848 = vmatpush1.msra.mxu0 0.0
        %6849 = vmatprep.subr.mxu0 0.0
        %6850 = vmatpush1.msra.mxu0 0.0
        %6851 = vmatprep.subr.mxu0 0.0
        %6852 = vmatpush1.msra.mxu0 0.0
        %6853 = vmatprep.subr.mxu0 0.0
        %6854 = vmatpush1.msra.mxu0 0.0
        %6855 = vmatprep.subr.mxu0 0.0
        %6856 = vmatpush1.msra.mxu0 0.0
        %6857 = vmatprep.subr.mxu0 0.0
        %6858 = vmatpush1.msra.mxu0 0.0
        %6859 = vmatprep.subr.mxu0 0.0
        %6860 = vmatpush1.msra.mxu0 0.0
        %6861 = vmatprep.subr.mxu0 0.0
        %6862 = vmatpush1.msra.mxu0 0.0
        %6863 = vmatprep.subr.mxu0 0.0
        %6864 = vmatpush1.msra.mxu0 0.0
        %6865 = vmatprep.subr.mxu0 0.0
        %6866 = vmatpush1.msra.mxu0 0.0
        %6867 = vmatprep.subr.mxu0 0.0
        %6868 = vmatpush1.msra.mxu0 0.0
        %6869 = vmatprep.subr.mxu0 0.0
        %6870 = vmatpush1.msra.mxu0 0.0
        %6871 = vmatprep.subr.mxu0 0.0
        %6872 = vmatpush1.msra.mxu0 0.0
        %6873 = vmatprep.subr.mxu0 0.0
        %6874 = vmatpush1.msra.mxu0 0.0
        %6875 = vmatprep.subr.mxu0 0.0
        %6876 = vmatpush1.msra.mxu0 0.0
        %6877 = vmatprep.subr.mxu0 0.0
        %6878 = vmatpush1.msra.mxu0 0.0
        %6879 = vmatprep.subr.mxu0 0.0
        %6880 = vmatpush1.msra.mxu0 0.0
        %6881 = vmatprep.subr.mxu0 0.0
        %6882 = vmatpush1.msra.mxu0 0.0
        %6883 = vmatprep.subr.mxu0 0.0
        %6884 = vmatpush1.msra.mxu0 0.0
        %6885 = vmatprep.subr.mxu0 0.0
        %6886 = vmatpush1.msra.mxu0 0.0
        %6887 = vmatprep.subr.mxu0 0.0
        %6888 = vmatpush1.msra.mxu0 0.0
        %6889 = vmatprep.subr.mxu0 0.0
        %6890 = vmatpush1.msra.mxu0 0.0
        %6891 = vmatprep.subr.mxu0 0.0
        %6892 = vmatpush1.msra.mxu0 0.0
        %6893 = vmatprep.mubr.f32.mxu0 0.0
        %v6894 = vand.u32 %v6132, 4294901760
        %v6895 = vsub.f32 %v6132, %v6894
        %v6896 = vand.u32 %v6895, 4294901760
        %6897 = vmatmul.mubr.f32.gmra.mrb[0].mxu0 %v6896
        %v6898 = vpop.f32.mrb[0].mxu0
        %v6899 = vadd.f32 %v6824, %v6898
        %v6900 = vpop.f32.mrb[0].mxu0
        %6901 = vdwg.mxu0
        %6902 = vmatprep.subr.mxu0 0.0
        %v6903 = vand.u32 %v4286, 4294901760
        %v6904 = vsub.f32 %v4286, %v6903
        %v6905 = vand.u32 %v6904, 4294901760
        %6906 = vmatpush1.msra.mxu0 %v6905
        %6907 = vmatprep.subr.mxu0 0.0
        %v6908 = vand.u32 %v4287, 4294901760
        %v6909 = vsub.f32 %v4287, %v6908
        %v6910 = vand.u32 %v6909, 4294901760
        %6911 = vmatpush1.msra.mxu0 %v6910
        %6912 = vmatprep.subr.mxu0 0.0
        %6913 = vmatpush1.msra.mxu0 0.0
        %6914 = vmatprep.subr.mxu0 0.0
        %6915 = vmatpush1.msra.mxu0 0.0
        %6916 = vmatprep.subr.mxu0 0.0
        %6917 = vmatpush1.msra.mxu0 0.0
        %6918 = vmatprep.subr.mxu0 0.0
        %6919 = vmatpush1.msra.mxu0 0.0
        %6920 = vmatprep.subr.mxu0 0.0
        %6921 = vmatpush1.msra.mxu0 0.0
        %6922 = vmatprep.subr.mxu0 0.0
        %6923 = vmatpush1.msra.mxu0 0.0
        %6924 = vmatprep.subr.mxu0 0.0
        %6925 = vmatpush1.msra.mxu0 0.0
        %6926 = vmatprep.subr.mxu0 0.0
        %6927 = vmatpush1.msra.mxu0 0.0
        %6928 = vmatprep.subr.mxu0 0.0
        %6929 = vmatpush1.msra.mxu0 0.0
        %6930 = vmatprep.subr.mxu0 0.0
        %6931 = vmatpush1.msra.mxu0 0.0
        %6932 = vmatprep.subr.mxu0 0.0
        %6933 = vmatpush1.msra.mxu0 0.0
        %6934 = vmatprep.subr.mxu0 0.0
        %6935 = vmatpush1.msra.mxu0 0.0
        %6936 = vmatprep.subr.mxu0 0.0
        %6937 = vmatpush1.msra.mxu0 0.0
        %6938 = vmatprep.subr.mxu0 0.0
        %6939 = vmatpush1.msra.mxu0 0.0
        %6940 = vmatprep.subr.mxu0 0.0
        %6941 = vmatpush1.msra.mxu0 0.0
        %6942 = vmatprep.subr.mxu0 0.0
        %6943 = vmatpush1.msra.mxu0 0.0
        %6944 = vmatprep.subr.mxu0 0.0
        %6945 = vmatpush1.msra.mxu0 0.0
        %6946 = vmatprep.subr.mxu0 0.0
        %6947 = vmatpush1.msra.mxu0 0.0
        %6948 = vmatprep.subr.mxu0 0.0
        %6949 = vmatpush1.msra.mxu0 0.0
        %6950 = vmatprep.subr.mxu0 0.0
        %6951 = vmatpush1.msra.mxu0 0.0
        %6952 = vmatprep.subr.mxu0 0.0
        %6953 = vmatpush1.msra.mxu0 0.0
        %6954 = vmatprep.subr.mxu0 0.0
        %6955 = vmatpush1.msra.mxu0 0.0
        %6956 = vmatprep.subr.mxu0 0.0
        %6957 = vmatpush1.msra.mxu0 0.0
        %6958 = vmatprep.subr.mxu0 0.0
        %6959 = vmatpush1.msra.mxu0 0.0
        %6960 = vmatprep.subr.mxu0 0.0
        %6961 = vmatpush1.msra.mxu0 0.0
        %6962 = vmatprep.subr.mxu0 0.0
        %6963 = vmatpush1.msra.mxu0 0.0
        %6964 = vmatprep.subr.mxu0 0.0
        %6965 = vmatpush1.msra.mxu0 0.0
        %6966 = vmatprep.subr.mxu0 0.0
        %6967 = vmatpush1.msra.mxu0 0.0
        %6968 = vmatprep.subr.mxu0 0.0
        %6969 = vmatpush1.msra.mxu0 0.0
        %6970 = vmatprep.subr.mxu0 0.0
        %6971 = vmatpush1.msra.mxu0 0.0
        %6972 = vmatprep.mubr.f32.mxu0 0.0
        %v6973 = vand.u32 %v6132, 4294901760
        %6974 = vmatmul.mubr.f32.gmra.mrb[0].mxu0 %v6973
        %v6975 = vpop.f32.mrb[0].mxu0
        %v6976 = vadd.f32 %v6899, %v6975
        %v6977 = vpop.f32.mrb[0].mxu0
        %6978 = vdwg.mxu0
        %6979 = vmatprep.subr.mxu0 0.0
        %v6980 = vand.u32 %v4286, 4294901760
        %6981 = vmatpush1.msra.mxu0 %v6980
        %6982 = vmatprep.subr.mxu0 0.0
        %v6983 = vand.u32 %v4287, 4294901760
        %6984 = vmatpush1.msra.mxu0 %v6983
        %6985 = vmatprep.subr.mxu0 0.0
        %6986 = vmatpush1.msra.mxu0 0.0
        %6987 = vmatprep.subr.mxu0 0.0
        %6988 = vmatpush1.msra.mxu0 0.0
        %6989 = vmatprep.subr.mxu0 0.0
        %6990 = vmatpush1.msra.mxu0 0.0
        %6991 = vmatprep.subr.mxu0 0.0
        %6992 = vmatpush1.msra.mxu0 0.0
        %6993 = vmatprep.subr.mxu0 0.0
        %6994 = vmatpush1.msra.mxu0 0.0
        %6995 = vmatprep.subr.mxu0 0.0
        %6996 = vmatpush1.msra.mxu0 0.0
        %6997 = vmatprep.subr.mxu0 0.0
        %6998 = vmatpush1.msra.mxu0 0.0
        %6999 = vmatprep.subr.mxu0 0.0
        %7000 = vmatpush1.msra.mxu0 0.0
        %7001 = vmatprep.subr.mxu0 0.0
        %7002 = vmatpush1.msra.mxu0 0.0
        %7003 = vmatprep.subr.mxu0 0.0
        %7004 = vmatpush1.msra.mxu0 0.0
        %7005 = vmatprep.subr.mxu0 0.0
        %7006 = vmatpush1.msra.mxu0 0.0
        %7007 = vmatprep.subr.mxu0 0.0
        %7008 = vmatpush1.msra.mxu0 0.0
        %7009 = vmatprep.subr.mxu0 0.0
        %7010 = vmatpush1.msra.mxu0 0.0
        %7011 = vmatprep.subr.mxu0 0.0
        %7012 = vmatpush1.msra.mxu0 0.0
        %7013 = vmatprep.subr.mxu0 0.0
        %7014 = vmatpush1.msra.mxu0 0.0
        %7015 = vmatprep.subr.mxu0 0.0
        %7016 = vmatpush1.msra.mxu0 0.0
        %7017 = vmatprep.subr.mxu0 0.0
        %7018 = vmatpush1.msra.mxu0 0.0
        %7019 = vmatprep.subr.mxu0 0.0
        %7020 = vmatpush1.msra.mxu0 0.0
        %7021 = vmatprep.subr.mxu0 0.0
        %7022 = vmatpush1.msra.mxu0 0.0
        %7023 = vmatprep.subr.mxu0 0.0
        %7024 = vmatpush1.msra.mxu0 0.0
        %7025 = vmatprep.subr.mxu0 0.0
        %7026 = vmatpush1.msra.mxu0 0.0
        %7027 = vmatprep.subr.mxu0 0.0
        %7028 = vmatpush1.msra.mxu0 0.0
        %7029 = vmatprep.subr.mxu0 0.0
        %7030 = vmatpush1.msra.mxu0 0.0
        %7031 = vmatprep.subr.mxu0 0.0
        %7032 = vmatpush1.msra.mxu0 0.0
        %7033 = vmatprep.subr.mxu0 0.0
        %7034 = vmatpush1.msra.mxu0 0.0
        %7035 = vmatprep.subr.mxu0 0.0
        %7036 = vmatpush1.msra.mxu0 0.0
        %7037 = vmatprep.subr.mxu0 0.0
        %7038 = vmatpush1.msra.mxu0 0.0
        %7039 = vmatprep.subr.mxu0 0.0
        %7040 = vmatpush1.msra.mxu0 0.0
        %7041 = vmatprep.subr.mxu0 0.0
        %7042 = vmatpush1.msra.mxu0 0.0
        %7043 = vmatprep.subr.mxu0 0.0
        %7044 = vmatpush1.msra.mxu0 0.0
        %7045 = vmatprep.mubr.f32.mxu0 0.0
        %v7046 = vand.u32 %v6132, 4294901760
        %7047 = vmatmul.mubr.f32.gmra.mrb[0].mxu0 %v7046
        %v7048 = vpop.f32.mrb[0].mxu0
        %v7049 = vadd.f32 %v6976, %v7048
        %v7050 = vpop.f32.mrb[0].mxu0
        %7051 = vdwg.mxu0
        %7052 = vmatprep.subr.mxu0 0.0
        %v7053 = vand.u32 %v4288, 4294901760
        %7054 = vmatpush1.msra.mxu0 %v7053
        %7055 = vmatprep.subr.mxu0 0.0
        %v7056 = vand.u32 %v4289, 4294901760
        %7057 = vmatpush1.msra.mxu0 %v7056
        %7058 = vmatprep.subr.mxu0 0.0
        %7059 = vmatpush1.msra.mxu0 0.0
        %7060 = vmatprep.subr.mxu0 0.0
        %7061 = vmatpush1.msra.mxu0 0.0
        %7062 = vmatprep.subr.mxu0 0.0
        %7063 = vmatpush1.msra.mxu0 0.0
        %7064 = vmatprep.subr.mxu0 0.0
        %7065 = vmatpush1.msra.mxu0 0.0
        %7066 = vmatprep.subr.mxu0 0.0
        %7067 = vmatpush1.msra.mxu0 0.0
        %7068 = vmatprep.subr.mxu0 0.0
        %7069 = vmatpush1.msra.mxu0 0.0
        %7070 = vmatprep.subr.mxu0 0.0
        %7071 = vmatpush1.msra.mxu0 0.0
        %7072 = vmatprep.subr.mxu0 0.0
        %7073 = vmatpush1.msra.mxu0 0.0
        %7074 = vmatprep.subr.mxu0 0.0
        %7075 = vmatpush1.msra.mxu0 0.0
        %7076 = vmatprep.subr.mxu0 0.0
        %7077 = vmatpush1.msra.mxu0 0.0
        %7078 = vmatprep.subr.mxu0 0.0
        %7079 = vmatpush1.msra.mxu0 0.0
        %7080 = vmatprep.subr.mxu0 0.0
        %7081 = vmatpush1.msra.mxu0 0.0
        %7082 = vmatprep.subr.mxu0 0.0
        %7083 = vmatpush1.msra.mxu0 0.0
        %7084 = vmatprep.subr.mxu0 0.0
        %7085 = vmatpush1.msra.mxu0 0.0
        %7086 = vmatprep.subr.mxu0 0.0
        %7087 = vmatpush1.msra.mxu0 0.0
        %7088 = vmatprep.subr.mxu0 0.0
        %7089 = vmatpush1.msra.mxu0 0.0
        %7090 = vmatprep.subr.mxu0 0.0
        %7091 = vmatpush1.msra.mxu0 0.0
        %7092 = vmatprep.subr.mxu0 0.0
        %7093 = vmatpush1.msra.mxu0 0.0
        %7094 = vmatprep.subr.mxu0 0.0
        %7095 = vmatpush1.msra.mxu0 0.0
        %7096 = vmatprep.subr.mxu0 0.0
        %7097 = vmatpush1.msra.mxu0 0.0
        %7098 = vmatprep.subr.mxu0 0.0
        %7099 = vmatpush1.msra.mxu0 0.0
        %7100 = vmatprep.subr.mxu0 0.0
        %7101 = vmatpush1.msra.mxu0 0.0
        %7102 = vmatprep.subr.mxu0 0.0
        %7103 = vmatpush1.msra.mxu0 0.0
        %7104 = vmatprep.subr.mxu0 0.0
        %7105 = vmatpush1.msra.mxu0 0.0
        %7106 = vmatprep.subr.mxu0 0.0
        %7107 = vmatpush1.msra.mxu0 0.0
        %7108 = vmatprep.subr.mxu0 0.0
        %7109 = vmatpush1.msra.mxu0 0.0
        %7110 = vmatprep.subr.mxu0 0.0
        %7111 = vmatpush1.msra.mxu0 0.0
        %7112 = vmatprep.subr.mxu0 0.0
        %7113 = vmatpush1.msra.mxu0 0.0
        %7114 = vmatprep.subr.mxu0 0.0
        %7115 = vmatpush1.msra.mxu0 0.0
        %7116 = vmatprep.subr.mxu0 0.0
        %7117 = vmatpush1.msra.mxu0 0.0
        %7118 = vmatprep.mubr.f32.mxu0 0.0
        %v7119 = vand.u32 %v6132, 4294901760
        %v7120 = vsub.f32 %v6132, %v7119
        %v7121 = vand.u32 %v7120, 4294901760
        %v7122 = vsub.f32 %v7120, %v7121
        %v7123 = vand.u32 %v7122, 4294901760
        %7124 = vmatmul.mubr.f32.gmra.mrb[0].mxu0 %v7123
        %v7125 = vpop.f32.mrb[0].mxu0
        %v7126 = vadd.f32 0.0, %v7125
        %v7127 = vpop.f32.mrb[0].mxu0
        %7128 = vdwg.mxu0
        %7129 = vmatprep.subr.mxu0 0.0
        %v7130 = vand.u32 %v4288, 4294901760
        %v7131 = vsub.f32 %v4288, %v7130
        %v7132 = vand.u32 %v7131, 4294901760
        %v7133 = vsub.f32 %v7131, %v7132
        %v7134 = vand.u32 %v7133, 4294901760
        %7135 = vmatpush1.msra.mxu0 %v7134
        %7136 = vmatprep.subr.mxu0 0.0
        %v7137 = vand.u32 %v4289, 4294901760
        %v7138 = vsub.f32 %v4289, %v7137
        %v7139 = vand.u32 %v7138, 4294901760
        %v7140 = vsub.f32 %v7138, %v7139
        %v7141 = vand.u32 %v7140, 4294901760
        %7142 = vmatpush1.msra.mxu0 %v7141
        %7143 = vmatprep.subr.mxu0 0.0
        %7144 = vmatpush1.msra.mxu0 0.0
        %7145 = vmatprep.subr.mxu0 0.0
        %7146 = vmatpush1.msra.mxu0 0.0
        %7147 = vmatprep.subr.mxu0 0.0
        %7148 = vmatpush1.msra.mxu0 0.0
        %7149 = vmatprep.subr.mxu0 0.0
        %7150 = vmatpush1.msra.mxu0 0.0
        %7151 = vmatprep.subr.mxu0 0.0
        %7152 = vmatpush1.msra.mxu0 0.0
        %7153 = vmatprep.subr.mxu0 0.0
        %7154 = vmatpush1.msra.mxu0 0.0
        %7155 = vmatprep.subr.mxu0 0.0
        %7156 = vmatpush1.msra.mxu0 0.0
        %7157 = vmatprep.subr.mxu0 0.0
        %7158 = vmatpush1.msra.mxu0 0.0
        %7159 = vmatprep.subr.mxu0 0.0
        %7160 = vmatpush1.msra.mxu0 0.0
        %7161 = vmatprep.subr.mxu0 0.0
        %7162 = vmatpush1.msra.mxu0 0.0
        %7163 = vmatprep.subr.mxu0 0.0
        %7164 = vmatpush1.msra.mxu0 0.0
        %7165 = vmatprep.subr.mxu0 0.0
        %7166 = vmatpush1.msra.mxu0 0.0
        %7167 = vmatprep.subr.mxu0 0.0
        %7168 = vmatpush1.msra.mxu0 0.0
        %7169 = vmatprep.subr.mxu0 0.0
        %7170 = vmatpush1.msra.mxu0 0.0
        %7171 = vmatprep.subr.mxu0 0.0
        %7172 = vmatpush1.msra.mxu0 0.0
        %7173 = vmatprep.subr.mxu0 0.0
        %7174 = vmatpush1.msra.mxu0 0.0
        %7175 = vmatprep.subr.mxu0 0.0
        %7176 = vmatpush1.msra.mxu0 0.0
        %7177 = vmatprep.subr.mxu0 0.0
        %7178 = vmatpush1.msra.mxu0 0.0
        %7179 = vmatprep.subr.mxu0 0.0
        %7180 = vmatpush1.msra.mxu0 0.0
        %7181 = vmatprep.subr.mxu0 0.0
        %7182 = vmatpush1.msra.mxu0 0.0
        %7183 = vmatprep.subr.mxu0 0.0
        %7184 = vmatpush1.msra.mxu0 0.0
        %7185 = vmatprep.subr.mxu0 0.0
        %7186 = vmatpush1.msra.mxu0 0.0
        %7187 = vmatprep.subr.mxu0 0.0
        %7188 = vmatpush1.msra.mxu0 0.0
        %7189 = vmatprep.subr.mxu0 0.0
        %7190 = vmatpush1.msra.mxu0 0.0
        %7191 = vmatprep.subr.mxu0 0.0
        %7192 = vmatpush1.msra.mxu0 0.0
        %7193 = vmatprep.subr.mxu0 0.0
        %7194 = vmatpush1.msra.mxu0 0.0
        %7195 = vmatprep.subr.mxu0 0.0
        %7196 = vmatpush1.msra.mxu0 0.0
        %7197 = vmatprep.subr.mxu0 0.0
        %7198 = vmatpush1.msra.mxu0 0.0
        %7199 = vmatprep.subr.mxu0 0.0
        %7200 = vmatpush1.msra.mxu0 0.0
        %7201 = vmatprep.subr.mxu0 0.0
        %7202 = vmatpush1.msra.mxu0 0.0
        %7203 = vmatprep.mubr.f32.mxu0 0.0
        %v7204 = vand.u32 %v6132, 4294901760
        %7205 = vmatmul.mubr.f32.gmra.mrb[0].mxu0 %v7204
        %v7206 = vpop.f32.mrb[0].mxu0
        %v7207 = vadd.f32 %v7126, %v7206
        %v7208 = vpop.f32.mrb[0].mxu0
        %7209 = vdwg.mxu0
        %7210 = vmatprep.subr.mxu0 0.0
        %v7211 = vand.u32 %v4288, 4294901760
        %v7212 = vsub.f32 %v4288, %v7211
        %7213 = vmatpush1.msra.mxu0 %v7212
        %7214 = vmatprep.subr.mxu0 0.0
        %v7215 = vand.u32 %v4289, 4294901760
        %v7216 = vsub.f32 %v4289, %v7215
        %7217 = vmatpush1.msra.mxu0 %v7216
        %7218 = vmatprep.subr.mxu0 0.0
        %7219 = vmatpush1.msra.mxu0 0.0
        %7220 = vmatprep.subr.mxu0 0.0
        %7221 = vmatpush1.msra.mxu0 0.0
        %7222 = vmatprep.subr.mxu0 0.0
        %7223 = vmatpush1.msra.mxu0 0.0
        %7224 = vmatprep.subr.mxu0 0.0
        %7225 = vmatpush1.msra.mxu0 0.0
        %7226 = vmatprep.subr.mxu0 0.0
        %7227 = vmatpush1.msra.mxu0 0.0
        %7228 = vmatprep.subr.mxu0 0.0
        %7229 = vmatpush1.msra.mxu0 0.0
        %7230 = vmatprep.subr.mxu0 0.0
        %7231 = vmatpush1.msra.mxu0 0.0
        %7232 = vmatprep.subr.mxu0 0.0
        %7233 = vmatpush1.msra.mxu0 0.0
        %7234 = vmatprep.subr.mxu0 0.0
        %7235 = vmatpush1.msra.mxu0 0.0
        %7236 = vmatprep.subr.mxu0 0.0
        %7237 = vmatpush1.msra.mxu0 0.0
        %7238 = vmatprep.subr.mxu0 0.0
        %7239 = vmatpush1.msra.mxu0 0.0
        %7240 = vmatprep.subr.mxu0 0.0
        %7241 = vmatpush1.msra.mxu0 0.0
        %7242 = vmatprep.subr.mxu0 0.0
        %7243 = vmatpush1.msra.mxu0 0.0
        %7244 = vmatprep.subr.mxu0 0.0
        %7245 = vmatpush1.msra.mxu0 0.0
        %7246 = vmatprep.subr.mxu0 0.0
        %7247 = vmatpush1.msra.mxu0 0.0
        %7248 = vmatprep.subr.mxu0 0.0
        %7249 = vmatpush1.msra.mxu0 0.0
        %7250 = vmatprep.subr.mxu0 0.0
        %7251 = vmatpush1.msra.mxu0 0.0
        %7252 = vmatprep.subr.mxu0 0.0
        %7253 = vmatpush1.msra.mxu0 0.0
        %7254 = vmatprep.subr.mxu0 0.0
        %7255 = vmatpush1.msra.mxu0 0.0
        %7256 = vmatprep.subr.mxu0 0.0
        %7257 = vmatpush1.msra.mxu0 0.0
        %7258 = vmatprep.subr.mxu0 0.0
        %7259 = vmatpush1.msra.mxu0 0.0
        %7260 = vmatprep.subr.mxu0 0.0
        %7261 = vmatpush1.msra.mxu0 0.0
        %7262 = vmatprep.subr.mxu0 0.0
        %7263 = vmatpush1.msra.mxu0 0.0
        %7264 = vmatprep.subr.mxu0 0.0
        %7265 = vmatpush1.msra.mxu0 0.0
        %7266 = vmatprep.subr.mxu0 0.0
        %7267 = vmatpush1.msra.mxu0 0.0
        %7268 = vmatprep.subr.mxu0 0.0
        %7269 = vmatpush1.msra.mxu0 0.0
        %7270 = vmatprep.subr.mxu0 0.0
        %7271 = vmatpush1.msra.mxu0 0.0
        %7272 = vmatprep.subr.mxu0 0.0
        %7273 = vmatpush1.msra.mxu0 0.0
        %7274 = vmatprep.subr.mxu0 0.0
        %7275 = vmatpush1.msra.mxu0 0.0
        %7276 = vmatprep.subr.mxu0 0.0
        %7277 = vmatpush1.msra.mxu0 0.0
        %7278 = vmatprep.mubr.f32.mxu0 0.0
        %v7279 = vand.u32 %v6132, 4294901760
        %v7280 = vsub.f32 %v6132, %v7279
        %7281 = vmatmul.mubr.f32.gmra.mrb[0].mxu0 %v7280
        %v7282 = vpop.f32.mrb[0].mxu0
        %v7283 = vadd.f32 %v7207, %v7282
        %v7284 = vpop.f32.mrb[0].mxu0
        %7285 = vdwg.mxu0
        %7286 = vmatprep.subr.mxu0 0.0
        %v7287 = vand.u32 %v4288, 4294901760
        %7288 = vmatpush1.msra.mxu0 %v7287
        %7289 = vmatprep.subr.mxu0 0.0
        %v7290 = vand.u32 %v4289, 4294901760
        %7291 = vmatpush1.msra.mxu0 %v7290
        %7292 = vmatprep.subr.mxu0 0.0
        %7293 = vmatpush1.msra.mxu0 0.0
        %7294 = vmatprep.subr.mxu0 0.0
        %7295 = vmatpush1.msra.mxu0 0.0
        %7296 = vmatprep.subr.mxu0 0.0
        %7297 = vmatpush1.msra.mxu0 0.0
        %7298 = vmatprep.subr.mxu0 0.0
        %7299 = vmatpush1.msra.mxu0 0.0
        %7300 = vmatprep.subr.mxu0 0.0
        %7301 = vmatpush1.msra.mxu0 0.0
        %7302 = vmatprep.subr.mxu0 0.0
        %7303 = vmatpush1.msra.mxu0 0.0
        %7304 = vmatprep.subr.mxu0 0.0
        %7305 = vmatpush1.msra.mxu0 0.0
        %7306 = vmatprep.subr.mxu0 0.0
        %7307 = vmatpush1.msra.mxu0 0.0
        %7308 = vmatprep.subr.mxu0 0.0
        %7309 = vmatpush1.msra.mxu0 0.0
        %7310 = vmatprep.subr.mxu0 0.0
        %7311 = vmatpush1.msra.mxu0 0.0
        %7312 = vmatprep.subr.mxu0 0.0
        %7313 = vmatpush1.msra.mxu0 0.0
        %7314 = vmatprep.subr.mxu0 0.0
        %7315 = vmatpush1.msra.mxu0 0.0
        %7316 = vmatprep.subr.mxu0 0.0
        %7317 = vmatpush1.msra.mxu0 0.0
        %7318 = vmatprep.subr.mxu0 0.0
        %7319 = vmatpush1.msra.mxu0 0.0
        %7320 = vmatprep.subr.mxu0 0.0
        %7321 = vmatpush1.msra.mxu0 0.0
        %7322 = vmatprep.subr.mxu0 0.0
        %7323 = vmatpush1.msra.mxu0 0.0
        %7324 = vmatprep.subr.mxu0 0.0
        %7325 = vmatpush1.msra.mxu0 0.0
        %7326 = vmatprep.subr.mxu0 0.0
        %7327 = vmatpush1.msra.mxu0 0.0
        %7328 = vmatprep.subr.mxu0 0.0
        %7329 = vmatpush1.msra.mxu0 0.0
        %7330 = vmatprep.subr.mxu0 0.0
        %7331 = vmatpush1.msra.mxu0 0.0
        %7332 = vmatprep.subr.mxu0 0.0
        %7333 = vmatpush1.msra.mxu0 0.0
        %7334 = vmatprep.subr.mxu0 0.0
        %7335 = vmatpush1.msra.mxu0 0.0
        %7336 = vmatprep.subr.mxu0 0.0
        %7337 = vmatpush1.msra.mxu0 0.0
        %7338 = vmatprep.subr.mxu0 0.0
        %7339 = vmatpush1.msra.mxu0 0.0
        %7340 = vmatprep.subr.mxu0 0.0
        %7341 = vmatpush1.msra.mxu0 0.0
        %7342 = vmatprep.subr.mxu0 0.0
        %7343 = vmatpush1.msra.mxu0 0.0
        %7344 = vmatprep.subr.mxu0 0.0
        %7345 = vmatpush1.msra.mxu0 0.0
        %7346 = vmatprep.subr.mxu0 0.0
        %7347 = vmatpush1.msra.mxu0 0.0
        %7348 = vmatprep.subr.mxu0 0.0
        %7349 = vmatpush1.msra.mxu0 0.0
        %7350 = vmatprep.subr.mxu0 0.0
        %7351 = vmatpush1.msra.mxu0 0.0
        %7352 = vmatprep.mubr.f32.mxu0 0.0
        %v7353 = vand.u32 %v6132, 4294901760
        %v7354 = vsub.f32 %v6132, %v7353
        %v7355 = vand.u32 %v7354, 4294901760
        %7356 = vmatmul.mubr.f32.gmra.mrb[0].mxu0 %v7355
        %v7357 = vpop.f32.mrb[0].mxu0
        %v7358 = vadd.f32 %v7283, %v7357
        %v7359 = vpop.f32.mrb[0].mxu0
        %7360 = vdwg.mxu0
        %7361 = vmatprep.subr.mxu0 0.0
        %v7362 = vand.u32 %v4288, 4294901760
        %v7363 = vsub.f32 %v4288, %v7362
        %v7364 = vand.u32 %v7363, 4294901760
        %7365 = vmatpush1.msra.mxu0 %v7364
        %7366 = vmatprep.subr.mxu0 0.0
        %v7367 = vand.u32 %v4289, 4294901760
        %v7368 = vsub.f32 %v4289, %v7367
        %v7369 = vand.u32 %v7368, 4294901760
        %7370 = vmatpush1.msra.mxu0 %v7369
        %7371 = vmatprep.subr.mxu0 0.0
        %7372 = vmatpush1.msra.mxu0 0.0
        %7373 = vmatprep.subr.mxu0 0.0
        %7374 = vmatpush1.msra.mxu0 0.0
        %7375 = vmatprep.subr.mxu0 0.0
        %7376 = vmatpush1.msra.mxu0 0.0
        %7377 = vmatprep.subr.mxu0 0.0
        %7378 = vmatpush1.msra.mxu0 0.0
        %7379 = vmatprep.subr.mxu0 0.0
        %7380 = vmatpush1.msra.mxu0 0.0
        %7381 = vmatprep.subr.mxu0 0.0
        %7382 = vmatpush1.msra.mxu0 0.0
        %7383 = vmatprep.subr.mxu0 0.0
        %7384 = vmatpush1.msra.mxu0 0.0
        %7385 = vmatprep.subr.mxu0 0.0
        %7386 = vmatpush1.msra.mxu0 0.0
        %7387 = vmatprep.subr.mxu0 0.0
        %7388 = vmatpush1.msra.mxu0 0.0
        %7389 = vmatprep.subr.mxu0 0.0
        %7390 = vmatpush1.msra.mxu0 0.0
        %7391 = vmatprep.subr.mxu0 0.0
        %7392 = vmatpush1.msra.mxu0 0.0
        %7393 = vmatprep.subr.mxu0 0.0
        %7394 = vmatpush1.msra.mxu0 0.0
        %7395 = vmatprep.subr.mxu0 0.0
        %7396 = vmatpush1.msra.mxu0 0.0
        %7397 = vmatprep.subr.mxu0 0.0
        %7398 = vmatpush1.msra.mxu0 0.0
        %7399 = vmatprep.subr.mxu0 0.0
        %7400 = vmatpush1.msra.mxu0 0.0
        %7401 = vmatprep.subr.mxu0 0.0
        %7402 = vmatpush1.msra.mxu0 0.0
        %7403 = vmatprep.subr.mxu0 0.0
        %7404 = vmatpush1.msra.mxu0 0.0
        %7405 = vmatprep.subr.mxu0 0.0
        %7406 = vmatpush1.msra.mxu0 0.0
        %7407 = vmatprep.subr.mxu0 0.0
        %7408 = vmatpush1.msra.mxu0 0.0
        %7409 = vmatprep.subr.mxu0 0.0
        %7410 = vmatpush1.msra.mxu0 0.0
        %7411 = vmatprep.subr.mxu0 0.0
        %7412 = vmatpush1.msra.mxu0 0.0
        %7413 = vmatprep.subr.mxu0 0.0
        %7414 = vmatpush1.msra.mxu0 0.0
        %7415 = vmatprep.subr.mxu0 0.0
        %7416 = vmatpush1.msra.mxu0 0.0
        %7417 = vmatprep.subr.mxu0 0.0
        %7418 = vmatpush1.msra.mxu0 0.0
        %7419 = vmatprep.subr.mxu0 0.0
        %7420 = vmatpush1.msra.mxu0 0.0
        %7421 = vmatprep.subr.mxu0 0.0
        %7422 = vmatpush1.msra.mxu0 0.0
        %7423 = vmatprep.subr.mxu0 0.0
        %7424 = vmatpush1.msra.mxu0 0.0
        %7425 = vmatprep.subr.mxu0 0.0
        %7426 = vmatpush1.msra.mxu0 0.0
        %7427 = vmatprep.subr.mxu0 0.0
        %7428 = vmatpush1.msra.mxu0 0.0
        %7429 = vmatprep.subr.mxu0 0.0
        %7430 = vmatpush1.msra.mxu0 0.0
        %7431 = vmatprep.mubr.f32.mxu0 0.0
        %v7432 = vand.u32 %v6132, 4294901760
        %7433 = vmatmul.mubr.f32.gmra.mrb[0].mxu0 %v7432
        %v7434 = vpop.f32.mrb[0].mxu0
        %v7435 = vadd.f32 %v7358, %v7434
        %v7436 = vpop.f32.mrb[0].mxu0
        %7437 = vdwg.mxu0
        %7438 = vmatprep.subr.mxu0 0.0
        %v7439 = vand.u32 %v4288, 4294901760
        %7440 = vmatpush1.msra.mxu0 %v7439
        %7441 = vmatprep.subr.mxu0 0.0
        %v7442 = vand.u32 %v4289, 4294901760
        %7443 = vmatpush1.msra.mxu0 %v7442
        %7444 = vmatprep.subr.mxu0 0.0
        %7445 = vmatpush1.msra.mxu0 0.0
        %7446 = vmatprep.subr.mxu0 0.0
        %7447 = vmatpush1.msra.mxu0 0.0
        %7448 = vmatprep.subr.mxu0 0.0
        %7449 = vmatpush1.msra.mxu0 0.0
        %7450 = vmatprep.subr.mxu0 0.0
        %7451 = vmatpush1.msra.mxu0 0.0
        %7452 = vmatprep.subr.mxu0 0.0
        %7453 = vmatpush1.msra.mxu0 0.0
        %7454 = vmatprep.subr.mxu0 0.0
        %7455 = vmatpush1.msra.mxu0 0.0
        %7456 = vmatprep.subr.mxu0 0.0
        %7457 = vmatpush1.msra.mxu0 0.0
        %7458 = vmatprep.subr.mxu0 0.0
        %7459 = vmatpush1.msra.mxu0 0.0
        %7460 = vmatprep.subr.mxu0 0.0
        %7461 = vmatpush1.msra.mxu0 0.0
        %7462 = vmatprep.subr.mxu0 0.0
        %7463 = vmatpush1.msra.mxu0 0.0
        %7464 = vmatprep.subr.mxu0 0.0
        %7465 = vmatpush1.msra.mxu0 0.0
        %7466 = vmatprep.subr.mxu0 0.0
        %7467 = vmatpush1.msra.mxu0 0.0
        %7468 = vmatprep.subr.mxu0 0.0
        %7469 = vmatpush1.msra.mxu0 0.0
        %7470 = vmatprep.subr.mxu0 0.0
        %7471 = vmatpush1.msra.mxu0 0.0
        %7472 = vmatprep.subr.mxu0 0.0
        %7473 = vmatpush1.msra.mxu0 0.0
        %7474 = vmatprep.subr.mxu0 0.0
        %7475 = vmatpush1.msra.mxu0 0.0
        %7476 = vmatprep.subr.mxu0 0.0
        %7477 = vmatpush1.msra.mxu0 0.0
        %7478 = vmatprep.subr.mxu0 0.0
        %7479 = vmatpush1.msra.mxu0 0.0
        %7480 = vmatprep.subr.mxu0 0.0
        %7481 = vmatpush1.msra.mxu0 0.0
        %7482 = vmatprep.subr.mxu0 0.0
        %7483 = vmatpush1.msra.mxu0 0.0
        %7484 = vmatprep.subr.mxu0 0.0
        %7485 = vmatpush1.msra.mxu0 0.0
        %7486 = vmatprep.subr.mxu0 0.0
        %7487 = vmatpush1.msra.mxu0 0.0
        %7488 = vmatprep.subr.mxu0 0.0
        %7489 = vmatpush1.msra.mxu0 0.0
        %7490 = vmatprep.subr.mxu0 0.0
        %7491 = vmatpush1.msra.mxu0 0.0
        %7492 = vmatprep.subr.mxu0 0.0
        %7493 = vmatpush1.msra.mxu0 0.0
        %7494 = vmatprep.subr.mxu0 0.0
        %7495 = vmatpush1.msra.mxu0 0.0
        %7496 = vmatprep.subr.mxu0 0.0
        %7497 = vmatpush1.msra.mxu0 0.0
        %7498 = vmatprep.subr.mxu0 0.0
        %7499 = vmatpush1.msra.mxu0 0.0
        %7500 = vmatprep.subr.mxu0 0.0
        %7501 = vmatpush1.msra.mxu0 0.0
        %7502 = vmatprep.subr.mxu0 0.0
        %7503 = vmatpush1.msra.mxu0 0.0
        %7504 = vmatprep.mubr.f32.mxu0 0.0
        %v7505 = vand.u32 %v6132, 4294901760
        %7506 = vmatmul.mubr.f32.gmra.mrb[0].mxu0 %v7505
        %v7507 = vpop.f32.mrb[0].mxu0
        %v7508 = vadd.f32 %v7435, %v7507
        %v7509 = vpop.f32.mrb[0].mxu0
        %7510 = vdwg.mxu0
        %7511 = vmatprep.subr.mxu0 0.0
        %v7512 = vand.u32 %v4290, 4294901760
        %7513 = vmatpush1.msra.mxu0 %v7512
        %7514 = vmatprep.subr.mxu0 0.0
        %v7515 = vand.u32 %v4291, 4294901760
        %7516 = vmatpush1.msra.mxu0 %v7515
        %7517 = vmatprep.subr.mxu0 0.0
        %7518 = vmatpush1.msra.mxu0 0.0
        %7519 = vmatprep.subr.mxu0 0.0
        %7520 = vmatpush1.msra.mxu0 0.0
        %7521 = vmatprep.subr.mxu0 0.0
        %7522 = vmatpush1.msra.mxu0 0.0
        %7523 = vmatprep.subr.mxu0 0.0
        %7524 = vmatpush1.msra.mxu0 0.0
        %7525 = vmatprep.subr.mxu0 0.0
        %7526 = vmatpush1.msra.mxu0 0.0
        %7527 = vmatprep.subr.mxu0 0.0
        %7528 = vmatpush1.msra.mxu0 0.0
        %7529 = vmatprep.subr.mxu0 0.0
        %7530 = vmatpush1.msra.mxu0 0.0
        %7531 = vmatprep.subr.mxu0 0.0
        %7532 = vmatpush1.msra.mxu0 0.0
        %7533 = vmatprep.subr.mxu0 0.0
        %7534 = vmatpush1.msra.mxu0 0.0
        %7535 = vmatprep.subr.mxu0 0.0
        %7536 = vmatpush1.msra.mxu0 0.0
        %7537 = vmatprep.subr.mxu0 0.0
        %7538 = vmatpush1.msra.mxu0 0.0
        %7539 = vmatprep.subr.mxu0 0.0
        %7540 = vmatpush1.msra.mxu0 0.0
        %7541 = vmatprep.subr.mxu0 0.0
        %7542 = vmatpush1.msra.mxu0 0.0
        %7543 = vmatprep.subr.mxu0 0.0
        %7544 = vmatpush1.msra.mxu0 0.0
        %7545 = vmatprep.subr.mxu0 0.0
        %7546 = vmatpush1.msra.mxu0 0.0
        %7547 = vmatprep.subr.mxu0 0.0
        %7548 = vmatpush1.msra.mxu0 0.0
        %7549 = vmatprep.subr.mxu0 0.0
        %7550 = vmatpush1.msra.mxu0 0.0
        %7551 = vmatprep.subr.mxu0 0.0
        %7552 = vmatpush1.msra.mxu0 0.0
        %7553 = vmatprep.subr.mxu0 0.0
        %7554 = vmatpush1.msra.mxu0 0.0
        %7555 = vmatprep.subr.mxu0 0.0
        %7556 = vmatpush1.msra.mxu0 0.0
        %7557 = vmatprep.subr.mxu0 0.0
        %7558 = vmatpush1.msra.mxu0 0.0
        %7559 = vmatprep.subr.mxu0 0.0
        %7560 = vmatpush1.msra.mxu0 0.0
        %7561 = vmatprep.subr.mxu0 0.0
        %7562 = vmatpush1.msra.mxu0 0.0
        %7563 = vmatprep.subr.mxu0 0.0
        %7564 = vmatpush1.msra.mxu0 0.0
        %7565 = vmatprep.subr.mxu0 0.0
        %7566 = vmatpush1.msra.mxu0 0.0
        %7567 = vmatprep.subr.mxu0 0.0
        %7568 = vmatpush1.msra.mxu0 0.0
        %7569 = vmatprep.subr.mxu0 0.0
        %7570 = vmatpush1.msra.mxu0 0.0
        %7571 = vmatprep.subr.mxu0 0.0
        %7572 = vmatpush1.msra.mxu0 0.0
        %7573 = vmatprep.subr.mxu0 0.0
        %7574 = vmatpush1.msra.mxu0 0.0
        %7575 = vmatprep.subr.mxu0 0.0
        %7576 = vmatpush1.msra.mxu0 0.0
        %7577 = vmatprep.mubr.f32.mxu0 0.0
        %v7578 = vand.u32 %v6132, 4294901760
        %v7579 = vsub.f32 %v6132, %v7578
        %v7580 = vand.u32 %v7579, 4294901760
        %v7581 = vsub.f32 %v7579, %v7580
        %v7582 = vand.u32 %v7581, 4294901760
        %7583 = vmatmul.mubr.f32.gmra.mrb[0].mxu0 %v7582
        %v7584 = vpop.f32.mrb[0].mxu0
        %v7585 = vadd.f32 0.0, %v7584
        %v7586 = vpop.f32.mrb[0].mxu0
        %7587 = vdwg.mxu0
        %7588 = vmatprep.subr.mxu0 0.0
        %v7589 = vand.u32 %v4290, 4294901760
        %v7590 = vsub.f32 %v4290, %v7589
        %v7591 = vand.u32 %v7590, 4294901760
        %v7592 = vsub.f32 %v7590, %v7591
        %v7593 = vand.u32 %v7592, 4294901760
        %7594 = vmatpush1.msra.mxu0 %v7593
        %7595 = vmatprep.subr.mxu0 0.0
        %v7596 = vand.u32 %v4291, 4294901760
        %v7597 = vsub.f32 %v4291, %v7596
        %v7598 = vand.u32 %v7597, 4294901760
        %v7599 = vsub.f32 %v7597, %v7598
        %v7600 = vand.u32 %v7599, 4294901760
        %7601 = vmatpush1.msra.mxu0 %v7600
        %7602 = vmatprep.subr.mxu0 0.0
        %7603 = vmatpush1.msra.mxu0 0.0
        %7604 = vmatprep.subr.mxu0 0.0
        %7605 = vmatpush1.msra.mxu0 0.0
        %7606 = vmatprep.subr.mxu0 0.0
        %7607 = vmatpush1.msra.mxu0 0.0
        %7608 = vmatprep.subr.mxu0 0.0
        %7609 = vmatpush1.msra.mxu0 0.0
        %7610 = vmatprep.subr.mxu0 0.0
        %7611 = vmatpush1.msra.mxu0 0.0
        %7612 = vmatprep.subr.mxu0 0.0
        %7613 = vmatpush1.msra.mxu0 0.0
        %7614 = vmatprep.subr.mxu0 0.0
        %7615 = vmatpush1.msra.mxu0 0.0
        %7616 = vmatprep.subr.mxu0 0.0
        %7617 = vmatpush1.msra.mxu0 0.0
        %7618 = vmatprep.subr.mxu0 0.0
        %7619 = vmatpush1.msra.mxu0 0.0
        %7620 = vmatprep.subr.mxu0 0.0
        %7621 = vmatpush1.msra.mxu0 0.0
        %7622 = vmatprep.subr.mxu0 0.0
        %7623 = vmatpush1.msra.mxu0 0.0
        %7624 = vmatprep.subr.mxu0 0.0
        %7625 = vmatpush1.msra.mxu0 0.0
        %7626 = vmatprep.subr.mxu0 0.0
        %7627 = vmatpush1.msra.mxu0 0.0
        %7628 = vmatprep.subr.mxu0 0.0
        %7629 = vmatpush1.msra.mxu0 0.0
        %7630 = vmatprep.subr.mxu0 0.0
        %7631 = vmatpush1.msra.mxu0 0.0
        %7632 = vmatprep.subr.mxu0 0.0
        %7633 = vmatpush1.msra.mxu0 0.0
        %7634 = vmatprep.subr.mxu0 0.0
        %7635 = vmatpush1.msra.mxu0 0.0
        %7636 = vmatprep.subr.mxu0 0.0
        %7637 = vmatpush1.msra.mxu0 0.0
        %7638 = vmatprep.subr.mxu0 0.0
        %7639 = vmatpush1.msra.mxu0 0.0
        %7640 = vmatprep.subr.mxu0 0.0
        %7641 = vmatpush1.msra.mxu0 0.0
        %7642 = vmatprep.subr.mxu0 0.0
        %7643 = vmatpush1.msra.mxu0 0.0
        %7644 = vmatprep.subr.mxu0 0.0
        %7645 = vmatpush1.msra.mxu0 0.0
        %7646 = vmatprep.subr.mxu0 0.0
        %7647 = vmatpush1.msra.mxu0 0.0
        %7648 = vmatprep.subr.mxu0 0.0
        %7649 = vmatpush1.msra.mxu0 0.0
        %7650 = vmatprep.subr.mxu0 0.0
        %7651 = vmatpush1.msra.mxu0 0.0
        %7652 = vmatprep.subr.mxu0 0.0
        %7653 = vmatpush1.msra.mxu0 0.0
        %7654 = vmatprep.subr.mxu0 0.0
        %7655 = vmatpush1.msra.mxu0 0.0
        %7656 = vmatprep.subr.mxu0 0.0
        %7657 = vmatpush1.msra.mxu0 0.0
        %7658 = vmatprep.subr.mxu0 0.0
        %7659 = vmatpush1.msra.mxu0 0.0
        %7660 = vmatprep.subr.mxu0 0.0
        %7661 = vmatpush1.msra.mxu0 0.0
        %7662 = vmatprep.mubr.f32.mxu0 0.0
        %v7663 = vand.u32 %v6132, 4294901760
        %7664 = vmatmul.mubr.f32.gmra.mrb[0].mxu0 %v7663
        %v7665 = vpop.f32.mrb[0].mxu0
        %v7666 = vadd.f32 %v7585, %v7665
        %v7667 = vpop.f32.mrb[0].mxu0
        %7668 = vdwg.mxu0
        %7669 = vmatprep.subr.mxu0 0.0
        %v7670 = vand.u32 %v4290, 4294901760
        %v7671 = vsub.f32 %v4290, %v7670
        %7672 = vmatpush1.msra.mxu0 %v7671
        %7673 = vmatprep.subr.mxu0 0.0
        %v7674 = vand.u32 %v4291, 4294901760
        %v7675 = vsub.f32 %v4291, %v7674
        %7676 = vmatpush1.msra.mxu0 %v7675
        %7677 = vmatprep.subr.mxu0 0.0
        %7678 = vmatpush1.msra.mxu0 0.0
        %7679 = vmatprep.subr.mxu0 0.0
        %7680 = vmatpush1.msra.mxu0 0.0
        %7681 = vmatprep.subr.mxu0 0.0
        %7682 = vmatpush1.msra.mxu0 0.0
        %7683 = vmatprep.subr.mxu0 0.0
        %7684 = vmatpush1.msra.mxu0 0.0
        %7685 = vmatprep.subr.mxu0 0.0
        %7686 = vmatpush1.msra.mxu0 0.0
        %7687 = vmatprep.subr.mxu0 0.0
        %7688 = vmatpush1.msra.mxu0 0.0
        %7689 = vmatprep.subr.mxu0 0.0
        %7690 = vmatpush1.msra.mxu0 0.0
        %7691 = vmatprep.subr.mxu0 0.0
        %7692 = vmatpush1.msra.mxu0 0.0
        %7693 = vmatprep.subr.mxu0 0.0
        %7694 = vmatpush1.msra.mxu0 0.0
        %7695 = vmatprep.subr.mxu0 0.0
        %7696 = vmatpush1.msra.mxu0 0.0
        %7697 = vmatprep.subr.mxu0 0.0
        %7698 = vmatpush1.msra.mxu0 0.0
        %7699 = vmatprep.subr.mxu0 0.0
        %7700 = vmatpush1.msra.mxu0 0.0
        %7701 = vmatprep.subr.mxu0 0.0
        %7702 = vmatpush1.msra.mxu0 0.0
        %7703 = vmatprep.subr.mxu0 0.0
        %7704 = vmatpush1.msra.mxu0 0.0
        %7705 = vmatprep.subr.mxu0 0.0
        %7706 = vmatpush1.msra.mxu0 0.0
        %7707 = vmatprep.subr.mxu0 0.0
        %7708 = vmatpush1.msra.mxu0 0.0
        %7709 = vmatprep.subr.mxu0 0.0
        %7710 = vmatpush1.msra.mxu0 0.0
        %7711 = vmatprep.subr.mxu0 0.0
        %7712 = vmatpush1.msra.mxu0 0.0
        %7713 = vmatprep.subr.mxu0 0.0
        %7714 = vmatpush1.msra.mxu0 0.0
        %7715 = vmatprep.subr.mxu0 0.0
        %7716 = vmatpush1.msra.mxu0 0.0
        %7717 = vmatprep.subr.mxu0 0.0
        %7718 = vmatpush1.msra.mxu0 0.0
        %7719 = vmatprep.subr.mxu0 0.0
        %7720 = vmatpush1.msra.mxu0 0.0
        %7721 = vmatprep.subr.mxu0 0.0
        %7722 = vmatpush1.msra.mxu0 0.0
        %7723 = vmatprep.subr.mxu0 0.0
        %7724 = vmatpush1.msra.mxu0 0.0
        %7725 = vmatprep.subr.mxu0 0.0
        %7726 = vmatpush1.msra.mxu0 0.0
        %7727 = vmatprep.subr.mxu0 0.0
        %7728 = vmatpush1.msra.mxu0 0.0
        %7729 = vmatprep.subr.mxu0 0.0
        %7730 = vmatpush1.msra.mxu0 0.0
        %7731 = vmatprep.subr.mxu0 0.0
        %7732 = vmatpush1.msra.mxu0 0.0
        %7733 = vmatprep.subr.mxu0 0.0
        %7734 = vmatpush1.msra.mxu0 0.0
        %7735 = vmatprep.subr.mxu0 0.0
        %7736 = vmatpush1.msra.mxu0 0.0
        %7737 = vmatprep.mubr.f32.mxu0 0.0
        %v7738 = vand.u32 %v6132, 4294901760
        %v7739 = vsub.f32 %v6132, %v7738
        %7740 = vmatmul.mubr.f32.gmra.mrb[0].mxu0 %v7739
        %v7741 = vpop.f32.mrb[0].mxu0
        %v7742 = vadd.f32 %v7666, %v7741
        %v7743 = vpop.f32.mrb[0].mxu0
        %7744 = vdwg.mxu0
        %7745 = vmatprep.subr.mxu0 0.0
        %v7746 = vand.u32 %v4290, 4294901760
        %7747 = vmatpush1.msra.mxu0 %v7746
        %7748 = vmatprep.subr.mxu0 0.0
        %v7749 = vand.u32 %v4291, 4294901760
        %7750 = vmatpush1.msra.mxu0 %v7749
        %7751 = vmatprep.subr.mxu0 0.0
        %7752 = vmatpush1.msra.mxu0 0.0
        %7753 = vmatprep.subr.mxu0 0.0
        %7754 = vmatpush1.msra.mxu0 0.0
        %7755 = vmatprep.subr.mxu0 0.0
        %7756 = vmatpush1.msra.mxu0 0.0
        %7757 = vmatprep.subr.mxu0 0.0
        %7758 = vmatpush1.msra.mxu0 0.0
        %7759 = vmatprep.subr.mxu0 0.0
        %7760 = vmatpush1.msra.mxu0 0.0
        %7761 = vmatprep.subr.mxu0 0.0
        %7762 = vmatpush1.msra.mxu0 0.0
        %7763 = vmatprep.subr.mxu0 0.0
        %7764 = vmatpush1.msra.mxu0 0.0
        %7765 = vmatprep.subr.mxu0 0.0
        %7766 = vmatpush1.msra.mxu0 0.0
        %7767 = vmatprep.subr.mxu0 0.0
        %7768 = vmatpush1.msra.mxu0 0.0
        %7769 = vmatprep.subr.mxu0 0.0
        %7770 = vmatpush1.msra.mxu0 0.0
        %7771 = vmatprep.subr.mxu0 0.0
        %7772 = vmatpush1.msra.mxu0 0.0
        %7773 = vmatprep.subr.mxu0 0.0
        %7774 = vmatpush1.msra.mxu0 0.0
        %7775 = vmatprep.subr.mxu0 0.0
        %7776 = vmatpush1.msra.mxu0 0.0
        %7777 = vmatprep.subr.mxu0 0.0
        %7778 = vmatpush1.msra.mxu0 0.0
        %7779 = vmatprep.subr.mxu0 0.0
        %7780 = vmatpush1.msra.mxu0 0.0
        %7781 = vmatprep.subr.mxu0 0.0
        %7782 = vmatpush1.msra.mxu0 0.0
        %7783 = vmatprep.subr.mxu0 0.0
        %7784 = vmatpush1.msra.mxu0 0.0
        %7785 = vmatprep.subr.mxu0 0.0
        %7786 = vmatpush1.msra.mxu0 0.0
        %7787 = vmatprep.subr.mxu0 0.0
        %7788 = vmatpush1.msra.mxu0 0.0
        %7789 = vmatprep.subr.mxu0 0.0
        %7790 = vmatpush1.msra.mxu0 0.0
        %7791 = vmatprep.subr.mxu0 0.0
        %7792 = vmatpush1.msra.mxu0 0.0
        %7793 = vmatprep.subr.mxu0 0.0
        %7794 = vmatpush1.msra.mxu0 0.0
        %7795 = vmatprep.subr.mxu0 0.0
        %7796 = vmatpush1.msra.mxu0 0.0
        %7797 = vmatprep.subr.mxu0 0.0
        %7798 = vmatpush1.msra.mxu0 0.0
        %7799 = vmatprep.subr.mxu0 0.0
        %7800 = vmatpush1.msra.mxu0 0.0
        %7801 = vmatprep.subr.mxu0 0.0
        %7802 = vmatpush1.msra.mxu0 0.0
        %7803 = vmatprep.subr.mxu0 0.0
        %7804 = vmatpush1.msra.mxu0 0.0
        %7805 = vmatprep.subr.mxu0 0.0
        %7806 = vmatpush1.msra.mxu0 0.0
        %7807 = vmatprep.subr.mxu0 0.0
        %7808 = vmatpush1.msra.mxu0 0.0
        %7809 = vmatprep.subr.mxu0 0.0
        %7810 = vmatpush1.msra.mxu0 0.0
        %7811 = vmatprep.mubr.f32.mxu0 0.0
        %v7812 = vand.u32 %v6132, 4294901760
        %v7813 = vsub.f32 %v6132, %v7812
        %v7814 = vand.u32 %v7813, 4294901760
        %7815 = vmatmul.mubr.f32.gmra.mrb[0].mxu0 %v7814
        %v7816 = vpop.f32.mrb[0].mxu0
        %v7817 = vadd.f32 %v7742, %v7816
        %v7818 = vpop.f32.mrb[0].mxu0
        %7819 = vdwg.mxu0
        %7820 = vmatprep.subr.mxu0 0.0
        %v7821 = vand.u32 %v4290, 4294901760
        %v7822 = vsub.f32 %v4290, %v7821
        %v7823 = vand.u32 %v7822, 4294901760
        %7824 = vmatpush1.msra.mxu0 %v7823
        %7825 = vmatprep.subr.mxu0 0.0
        %v7826 = vand.u32 %v4291, 4294901760
        %v7827 = vsub.f32 %v4291, %v7826
        %v7828 = vand.u32 %v7827, 4294901760
        %7829 = vmatpush1.msra.mxu0 %v7828
        %7830 = vmatprep.subr.mxu0 0.0
        %7831 = vmatpush1.msra.mxu0 0.0
        %7832 = vmatprep.subr.mxu0 0.0
        %7833 = vmatpush1.msra.mxu0 0.0
        %7834 = vmatprep.subr.mxu0 0.0
        %7835 = vmatpush1.msra.mxu0 0.0
        %7836 = vmatprep.subr.mxu0 0.0
        %7837 = vmatpush1.msra.mxu0 0.0
        %7838 = vmatprep.subr.mxu0 0.0
        %7839 = vmatpush1.msra.mxu0 0.0
        %7840 = vmatprep.subr.mxu0 0.0
        %7841 = vmatpush1.msra.mxu0 0.0
        %7842 = vmatprep.subr.mxu0 0.0
        %7843 = vmatpush1.msra.mxu0 0.0
        %7844 = vmatprep.subr.mxu0 0.0
        %7845 = vmatpush1.msra.mxu0 0.0
        %7846 = vmatprep.subr.mxu0 0.0
        %7847 = vmatpush1.msra.mxu0 0.0
        %7848 = vmatprep.subr.mxu0 0.0
        %7849 = vmatpush1.msra.mxu0 0.0
        %7850 = vmatprep.subr.mxu0 0.0
        %7851 = vmatpush1.msra.mxu0 0.0
        %7852 = vmatprep.subr.mxu0 0.0
        %7853 = vmatpush1.msra.mxu0 0.0
        %7854 = vmatprep.subr.mxu0 0.0
        %7855 = vmatpush1.msra.mxu0 0.0
        %7856 = vmatprep.subr.mxu0 0.0
        %7857 = vmatpush1.msra.mxu0 0.0
        %7858 = vmatprep.subr.mxu0 0.0
        %7859 = vmatpush1.msra.mxu0 0.0
        %7860 = vmatprep.subr.mxu0 0.0
        %7861 = vmatpush1.msra.mxu0 0.0
        %7862 = vmatprep.subr.mxu0 0.0
        %7863 = vmatpush1.msra.mxu0 0.0
        %7864 = vmatprep.subr.mxu0 0.0
        %7865 = vmatpush1.msra.mxu0 0.0
        %7866 = vmatprep.subr.mxu0 0.0
        %7867 = vmatpush1.msra.mxu0 0.0
        %7868 = vmatprep.subr.mxu0 0.0
        %7869 = vmatpush1.msra.mxu0 0.0
        %7870 = vmatprep.subr.mxu0 0.0
        %7871 = vmatpush1.msra.mxu0 0.0
        %7872 = vmatprep.subr.mxu0 0.0
        %7873 = vmatpush1.msra.mxu0 0.0
        %7874 = vmatprep.subr.mxu0 0.0
        %7875 = vmatpush1.msra.mxu0 0.0
        %7876 = vmatprep.subr.mxu0 0.0
        %7877 = vmatpush1.msra.mxu0 0.0
        %7878 = vmatprep.subr.mxu0 0.0
        %7879 = vmatpush1.msra.mxu0 0.0
        %7880 = vmatprep.subr.mxu0 0.0
        %7881 = vmatpush1.msra.mxu0 0.0
        %7882 = vmatprep.subr.mxu0 0.0
        %7883 = vmatpush1.msra.mxu0 0.0
        %7884 = vmatprep.subr.mxu0 0.0
        %7885 = vmatpush1.msra.mxu0 0.0
        %7886 = vmatprep.subr.mxu0 0.0
        %7887 = vmatpush1.msra.mxu0 0.0
        %7888 = vmatprep.subr.mxu0 0.0
        %7889 = vmatpush1.msra.mxu0 0.0
        %7890 = vmatprep.mubr.f32.mxu0 0.0
        %v7891 = vand.u32 %v6132, 4294901760
        %7892 = vmatmul.mubr.f32.gmra.mrb[0].mxu0 %v7891
        %v7893 = vpop.f32.mrb[0].mxu0
        %v7894 = vadd.f32 %v7817, %v7893
        %v7895 = vpop.f32.mrb[0].mxu0
        %7896 = vdwg.mxu0
        %7897 = vmatprep.subr.mxu0 0.0
        %v7898 = vand.u32 %v4290, 4294901760
        %7899 = vmatpush1.msra.mxu0 %v7898
        %7900 = vmatprep.subr.mxu0 0.0
        %v7901 = vand.u32 %v4291, 4294901760
        %7902 = vmatpush1.msra.mxu0 %v7901
        %7903 = vmatprep.subr.mxu0 0.0
        %7904 = vmatpush1.msra.mxu0 0.0
        %7905 = vmatprep.subr.mxu0 0.0
        %7906 = vmatpush1.msra.mxu0 0.0
        %7907 = vmatprep.subr.mxu0 0.0
        %7908 = vmatpush1.msra.mxu0 0.0
        %7909 = vmatprep.subr.mxu0 0.0
        %7910 = vmatpush1.msra.mxu0 0.0
        %7911 = vmatprep.subr.mxu0 0.0
        %7912 = vmatpush1.msra.mxu0 0.0
        %7913 = vmatprep.subr.mxu0 0.0
        %7914 = vmatpush1.msra.mxu0 0.0
        %7915 = vmatprep.subr.mxu0 0.0
        %7916 = vmatpush1.msra.mxu0 0.0
        %7917 = vmatprep.subr.mxu0 0.0
        %7918 = vmatpush1.msra.mxu0 0.0
        %7919 = vmatprep.subr.mxu0 0.0
        %7920 = vmatpush1.msra.mxu0 0.0
        %7921 = vmatprep.subr.mxu0 0.0
        %7922 = vmatpush1.msra.mxu0 0.0
        %7923 = vmatprep.subr.mxu0 0.0
        %7924 = vmatpush1.msra.mxu0 0.0
        %7925 = vmatprep.subr.mxu0 0.0
        %7926 = vmatpush1.msra.mxu0 0.0
        %7927 = vmatprep.subr.mxu0 0.0
        %7928 = vmatpush1.msra.mxu0 0.0
        %7929 = vmatprep.subr.mxu0 0.0
        %7930 = vmatpush1.msra.mxu0 0.0
        %7931 = vmatprep.subr.mxu0 0.0
        %7932 = vmatpush1.msra.mxu0 0.0
        %7933 = vmatprep.subr.mxu0 0.0
        %7934 = vmatpush1.msra.mxu0 0.0
        %7935 = vmatprep.subr.mxu0 0.0
        %7936 = vmatpush1.msra.mxu0 0.0
        %7937 = vmatprep.subr.mxu0 0.0
        %7938 = vmatpush1.msra.mxu0 0.0
        %7939 = vmatprep.subr.mxu0 0.0
        %7940 = vmatpush1.msra.mxu0 0.0
        %7941 = vmatprep.subr.mxu0 0.0
        %7942 = vmatpush1.msra.mxu0 0.0
        %7943 = vmatprep.subr.mxu0 0.0
        %7944 = vmatpush1.msra.mxu0 0.0
        %7945 = vmatprep.subr.mxu0 0.0
        %7946 = vmatpush1.msra.mxu0 0.0
        %7947 = vmatprep.subr.mxu0 0.0
        %7948 = vmatpush1.msra.mxu0 0.0
        %7949 = vmatprep.subr.mxu0 0.0
        %7950 = vmatpush1.msra.mxu0 0.0
        %7951 = vmatprep.subr.mxu0 0.0
        %7952 = vmatpush1.msra.mxu0 0.0
        %7953 = vmatprep.subr.mxu0 0.0
        %7954 = vmatpush1.msra.mxu0 0.0
        %7955 = vmatprep.subr.mxu0 0.0
        %7956 = vmatpush1.msra.mxu0 0.0
        %7957 = vmatprep.subr.mxu0 0.0
        %7958 = vmatpush1.msra.mxu0 0.0
        %7959 = vmatprep.subr.mxu0 0.0
        %7960 = vmatpush1.msra.mxu0 0.0
        %7961 = vmatprep.subr.mxu0 0.0
        %7962 = vmatpush1.msra.mxu0 0.0
        %7963 = vmatprep.mubr.f32.mxu0 0.0
        %v7964 = vand.u32 %v6132, 4294901760
        %7965 = vmatmul.mubr.f32.gmra.mrb[0].mxu0 %v7964
        %v7966 = vpop.f32.mrb[0].mxu0
        %v7967 = vadd.f32 %v7894, %v7966
        %v7968 = vpop.f32.mrb[0].mxu0
        %7969 = vdwg.mxu0
        %v7970 = vmax.f32 %v4751, %v6590
        %v7971 = vmax.f32 %v5210, %v7049
        %v7972 = vmax.f32 %v5669, %v7508
        %v7973 = vmax.f32 %v6128, %v7967
        %vm7974 = vcmask 64512
        %7975 = vst.msk [vmem:[%s220] sm:$0xff] %vm7974, %v7970
        %7976 = vst.msk [vmem:[%s220 + $0x8] sm:$0xff] %vm7974, %v7971
        %7977 = vst.msk [vmem:[%s220 + $0x10] sm:$0xff] %vm7974, %v7972
        %7978 = vst.msk [vmem:[%s220 + $0x18] sm:$0xff] %vm7974, %v7973
        %s7979 = sand.u32 %s137, 1
        %s7980 = scalar_lea.sflag [#allocation3], %s7979
        %s7981 = sand.u32 %s137, 1
        %s7982 = smul.addr %s7981, 32
        %s7983 = scalar_lea.vmem [#allocation2], %s7982
        // Predicated region
        $region41: #{stochastic_pool2d.1} parent=39 // pred_check
          %p7984 = pneg %p147
        $region42: #{stochastic_pool2d.1} parent=39 // pred_check_branch
          %7986 = sbr.rel (%p7984) target = $region44
        $region43: #{stochastic_pool2d.1} parent=39 // pred_region
          %s7987 = smul.u32 4, %s19
          %s7989 = ssub.s32 512, 512
          %7990 = vsyncadd %s7980, %s7989
          %s7991 = smul.addr %s7987, 128
          %s7992 = scalar_lea.hbm %s5, %s7991
          %s7993 = sshll.u32 %s7983, 4
          %s7994 = int_to_ptr.vmem [resolvable:$true] %s7993
          %7999 = dma.vmem_to_hbm [thread:$0]  %s7994, 512, %s7992, %s7980, 128, 128, 8
        $region44: #{stochastic_pool2d.1} parent=39 // pred_fallthru
          _
      $region40: #{stochastic_pool2d.1} parent=5 // pred_fallthru
        _
      %p8000 = scmp.le.s32.totalorder 2, %s14
      // Predicated region
      $region45: #{stochastic_pool2d.1} parent=5 // pred_check
        %p8001 = pneg %p8000
      $region46: #{stochastic_pool2d.1} parent=5 // pred_check_branch
        %8003 = sbr.rel (%p8001) target = $region48
      $region47: #{stochastic_pool2d.1} parent=5 // pred_region
        %s8004 = ssub.s32 %s14, 2
        // Predicated region
        $region49: #{stochastic_pool2d.1} parent=47 // pred_check
          %p8005 = pneg %p153
        $region50: #{stochastic_pool2d.1} parent=47 // pred_check_branch
          %8007 = sbr.rel (%p8005) target = $region52
        $region51: #{stochastic_pool2d.1} parent=47 // pred_region
          %s8008 = sand.u32 %s138, 1
          %s8009 = scalar_lea.sflag [#allocation3], %s8008
          %s8010 = sand.u32 %s138, 1
          %s8011 = smul.addr %s8010, 32
          %s8012 = scalar_lea.vmem [#allocation2], %s8011
          %8013 = dma.done %s8009, 512
        $region52: #{stochastic_pool2d.1} parent=47 // pred_fallthru
          _
      $region48: #{stochastic_pool2d.1} parent=5 // pred_fallthru
        _
    $region6: #{stochastic_pool2d.1} parent=1 // loop_footer
      %s18 = sadd.s32 1, %s14
    $region7: #{stochastic_pool2d.1} parent=1 // loop_footer_branch
      %13 = sbr.rel target = $region3
    $region8: #{stochastic_pool2d.1} parent=1 // loop_exit
      _
    %8014 = vsyncpa [#allocation3], 1
    %s8015 = scalar_lea.sflag [#allocation3], 1
    %8016 = vsyncpa %s8015, 1

</llo_original>
